<compile_context>
chip_gen: v7x
topology: tpu7x:2x2x1
jax: 0.10.0
libtpu: 0.0.40
codegen_flags: <defaults>
</compile_context>

<pallas_src>
from functools import partial

import jax
import jax.numpy as jnp
from jax.experimental import pallas as pl
from jax.experimental.pallas import tpu as pltpu

CPAD = 128   # all channel-like dims padded to one full lane group


def _cparams():
    return pltpu.CompilerParams(
        dimension_semantics=("parallel",),
        vmem_limit_bytes=32 * 1024 * 1024)


def _pad_to(x, shape):
    return jnp.pad(x, [(0, t - s) for s, t in zip(x.shape, shape)])


# ---------------------------------------------------------------------------
# Pallas kernels
# ---------------------------------------------------------------------------

def _backbone_rpn_kernel(x_ref, wbb_ref, bbb_ref, wr_ref, br_ref,
                         wh_ref, bh_ref, feat_ref, rpn_ref, featp_ref,
                         *, H, W):
    """Fused per-image trunk: backbone conv -> relu -> rpn conv -> relu ->
    fused 1x1 (loc | score) head.  All intermediates stay in VMEM.

    x_ref:    (1, H+2, W+2, C)  spatially padded input (C = CPAD), f32
    wbb_ref:  (9*C, C) bf16     backbone conv weights (tap-major rows)
    wr_ref:   (9*C, C) bf16     rpn conv weights
    wh_ref:   (C, C)   bf16     fused rpn 1x1 head (cols: loc | score | 0pad)
    feat_ref: (1, H, W, C)      f32 base feature output (needed by RoI pool)
    rpn_ref:  (1, H*W, C)       f32 rpn head output (lane-dense slab)
    featp_ref:(H+2, W+2, C)     f32 VMEM scratch: zero-halo'd base feature
    """
    C = feat_ref.shape[-1]

    def conv3x3_relu(xp, w_ref, b_row):
        # one im2col matmul on the MXU: (H*W, 9C) x (9C, C)
        cols = [xp[kh:kh + H, kw:kw + W, :]
                for kh in range(3) for kw in range(3)]
        patch = jnp.concatenate(cols, axis=-1).reshape(H * W, 9 * C)
        acc = jnp.dot(patch.astype(jnp.bfloat16), w_ref[...],
                      preferred_element_type=jnp.float32)
        return jnp.maximum(acc + b_row, 0.0)

    # backbone conv + relu
    feat = conv3x3_relu(x_ref[0], wbb_ref, bbb_ref[0])          # (H*W, C)
    feat2d = feat.reshape(H, W, C)
    feat_ref[...] = feat2d.reshape(1, H, W, C)

    # zero-halo the feature in VMEM scratch for the RPN conv (no HBM trip)
    featp_ref[...] = jnp.zeros_like(featp_ref)
    featp_ref[1:H + 1, 1:W + 1, :] = feat2d
    mid = conv3x3_relu(featp_ref[...], wr_ref, br_ref[0])       # (H*W, C)

    # fused 1x1 rpn heads (loc | score) as a single matmul
    out = jnp.dot(mid.astype(jnp.bfloat16), wh_ref[...],
                  preferred_element_type=jnp.float32)
    rpn_ref[...] = (out + bh_ref[0]).reshape(1, H * W, C)


def backbone_rpn_trunk(x, p):
    """x: (N, H, W, CPAD) f32 -> (feat (N,H,W,C) f32, rpn_out (N,H*W,C) f32)."""
    N, H, W, C = x.shape
    # TODO(synk): for real-size feature maps, tile spatially with a halo in the
    # BlockSpec (and re-derive tile sizes for v7x's 64 MiB VMEM) instead of a
    # wrapper-side pad + whole-image block; fine at 16x16.
    xp = jnp.pad(x, ((0, 0), (1, 1), (1, 1), (0, 0)))
    bcast = lambda r, c: pl.BlockSpec((r, c), lambda n: (0, 0))
    return pl.pallas_call(
        partial(_backbone_rpn_kernel, H=H, W=W),
        out_shape=(jax.ShapeDtypeStruct((N, H, W, C), jnp.float32),
                   jax.ShapeDtypeStruct((N, H * W, C), jnp.float32)),
        grid=(N,),
        in_specs=[
            pl.BlockSpec((1, H + 2, W + 2, C), lambda n: (n, 0, 0, 0)),
            bcast(9 * C, C), bcast(1, C),          # backbone conv
            bcast(9 * C, C), bcast(1, C),          # rpn conv
            bcast(C, C), bcast(1, C),              # fused rpn 1x1 heads
        ],
        out_specs=[
            pl.BlockSpec((1, H, W, C), lambda n: (n, 0, 0, 0)),
            pl.BlockSpec((1, H * W, C), lambda n: (n, 0, 0)),
        ],
        scratch_shapes=[pltpu.VMEM((H + 2, W + 2, C), jnp.float32)],
        compiler_params=_cparams(),
    )(xp, p["w_bb"], p["b_bb"], p["w_rpn"], p["b_rpn"],
      p["w_rpn_head"], p["b_rpn_head"])


def _head_kernel(x_ref, w1_ref, b1_ref, w2_ref, b2_ref, w3_ref, b3_ref, o_ref):
    """Fused detection head: fc1 -> relu -> fc2 -> relu -> {cls_loc | score}."""
    h = jnp.dot(x_ref[...].astype(jnp.bfloat16), w1_ref[...],
                preferred_element_type=jnp.float32)
    h = jnp.maximum(h + b1_ref[0], 0.0)
    h = jnp.dot(h.astype(jnp.bfloat16), w2_ref[...],
                preferred_element_type=jnp.float32)
    h = jnp.maximum(h + b2_ref[0], 0.0)
    o = jnp.dot(h.astype(jnp.bfloat16), w3_ref[...],
                preferred_element_type=jnp.float32)
    o_ref[...] = o + b3_ref[0]


def fused_head(flat, w1, b1, w2, b2, w3, b3):
    """flat: (R, D) f32; weights bf16; returns lane-dense (R, 128) slab."""
    R, D = flat.shape
    F = w1.shape[1]
    O = w3.shape[1]
    full = lambda *s: pl.BlockSpec(s, lambda i: (0,) * len(s))
    return pl.pallas_call(
        _head_kernel,
        out_shape=jax.ShapeDtypeStruct((R, O), jnp.float32),
        grid=(1,),
        in_specs=[full(R, D),
                  full(D, F), full(1, F),
                  full(F, F), full(1, F),
                  full(F, O), full(1, O)],
        out_specs=full(R, O),
        compiler_params=_cparams(),
    )(flat, w1, b1, w2, b2, w3, b3)


def _decode_kernel(anchor_ref, loc_ref, o_ref, *, img_h, img_w):
    """loc2bbox in transposed (4, A) layout: anchor axis on the 128 lanes.

    anchor_ref: (4, A)     rows = (y1, x1, y2, x2)
    loc_ref:    (1, 4, A)  rows = (dy, dx, dh, dw)
    o_ref:      (1, 4, A)  rows = clipped (y1, x1, y2, x2)
    """
    a = anchor_ref[...]
    l = loc_ref[0]
    ah = a[2:3, :] - a[0:1, :]
    aw = a[3:4, :] - a[1:2, :]
    acy = a[0:1, :] + 0.5 * ah
    acx = a[1:2, :] + 0.5 * aw
    cy = l[0:1, :] * ah + acy
    cx = l[1:2, :] * aw + acx
    h = jnp.exp(l[2:3, :]) * ah
    w = jnp.exp(l[3:4, :]) * aw
    o_ref[0, 0:1, :] = jnp.clip(cy - 0.5 * h, 0.0, img_h)
    o_ref[0, 1:2, :] = jnp.clip(cx - 0.5 * w, 0.0, img_w)
    o_ref[0, 2:3, :] = jnp.clip(cy + 0.5 * h, 0.0, img_h)
    o_ref[0, 3:4, :] = jnp.clip(cx + 0.5 * w, 0.0, img_w)


def decode_boxes(anchors_t, loc_t, img_h, img_w):
    """anchors_t: (4, A); loc_t: (N, 4, A) -> decoded & clipped (N, 4, A)."""
    N, _, A = loc_t.shape
    return pl.pallas_call(
        partial(_decode_kernel, img_h=float(img_h), img_w=float(img_w)),
        out_shape=jax.ShapeDtypeStruct((N, 4, A), jnp.float32),
        grid=(N,),
        in_specs=[
            pl.BlockSpec((4, A), lambda n: (0, 0)),
            pl.BlockSpec((1, 4, A), lambda n: (n, 0, 0)),
        ],
        out_specs=pl.BlockSpec((1, 4, A), lambda n: (n, 0, 0)),
        compiler_params=_cparams(),
    )(anchors_t, loc_t)


# ---------------------------------------------------------------------------
# Glue: anchors, proposal selection, RoI sampling
# ---------------------------------------------------------------------------

def make_anchors(H, W, scales):
    """Anchors in transposed (4, H*W*S) layout; rows = (y1, x1, y2, x2)."""
    ys, xs = jnp.meshgrid(jnp.arange(H, dtype=jnp.float32) + 0.5,
                          jnp.arange(W, dtype=jnp.float32) + 0.5,
                          indexing="ij")
    cy = ys.reshape(H * W, 1)
    cx = xs.reshape(H * W, 1)
    half = jnp.asarray(scales, jnp.float32).reshape(1, -1) * 0.5
    y1 = (cy - half).reshape(-1)
    x1 = (cx - half).reshape(-1)
    y2 = (cy + half).reshape(-1)
    x2 = (cx + half).reshape(-1)
    return jnp.stack([y1, x1, y2, x2], axis=0)            # (4, H*W*S)


def roi_pool_nearest(feat, rois, roi_indices, pool):
    """Nearest-neighbor RoI pooling. feat: (N,H,W,C), rois: (R,4) -> (R,p,p,C).
    # TODO(synk): data-dependent gather stays in XLA glue; a Pallas version
    # needs PrefetchScalarGridSpec + per-RoI manual DMA (and bilinear RoIAlign
    # for torchvision parity) -- not worth it at this toy size.
    """
    H, W = feat.shape[1], feat.shape[2]
    y1, x1, y2, x2 = rois[:, 0], rois[:, 1], rois[:, 2], rois[:, 3]
    g = (jnp.arange(pool, dtype=jnp.float32) + 0.5) / pool
    ys = y1[:, None] + g[None, :] * (y2 - y1)[:, None]     # (R, p)
    xs = x1[:, None] + g[None, :] * (x2 - x1)[:, None]     # (R, p)
    yi = jnp.clip(jnp.floor(ys).astype(jnp.int32), 0, H - 1)
    xi = jnp.clip(jnp.floor(xs).astype(jnp.int32), 0, W - 1)
    ni = roi_indices[:, None, None]
    return feat[ni, yi[:, :, None], xi[:, None, :], :]     # (R, p, p, C)


# ---------------------------------------------------------------------------
# FasterRCNN (backbone + rpn + head), synthetic small configuration
# ---------------------------------------------------------------------------

class FasterRCNNPallas:
    def __init__(self, key, in_ch=4, feat_ch=16, mid_ch=16, n_anchor=3,
                 n_rois=32, pool=7, fc_dim=64, n_class=5,
                 anchor_scales=(2.0, 4.0, 8.0)):
        self.n_anchor = n_anchor
        self.n_rois = n_rois
        self.pool = pool
        self.n_class = n_class
        self.anchor_scales = anchor_scales

        def w(k, shape):
            return jax.random.normal(k, shape, jnp.float32) * 0.05

        ks = jax.random.split(key, 8)
        C = CPAD

        # backbone conv: (3,3,in_ch,feat_ch) zero-padded -> (9*C, C) bf16
        w_bb = _pad_to(w(ks[0], (3, 3, in_ch, feat_ch)), (3, 3, C, C))
        w_bb = w_bb.reshape(9 * C, C).astype(jnp.bfloat16)

        # rpn conv
        w_rpn = _pad_to(w(ks[1], (3, 3, feat_ch, mid_ch)), (3, 3, C, C))
        w_rpn = w_rpn.reshape(9 * C, C).astype(jnp.bfloat16)

        # fused rpn heads: columns [0:na*4]=loc, [na*4:na*6]=score, rest zero
        w_loc = w(ks[2], (mid_ch, n_anchor * 4))
        w_sc = w(ks[3], (mid_ch, n_anchor * 2))
        w_rpn_head = jnp.zeros((C, C), jnp.float32)
        w_rpn_head = w_rpn_head.at[:mid_ch, : n_anchor * 4].set(w_loc)
        w_rpn_head = w_rpn_head.at[:mid_ch, n_anchor * 4: n_anchor * 6].set(w_sc)
        w_rpn_head = w_rpn_head.astype(jnp.bfloat16)

        # detection head: fc1 in (pool, pool, channel) flatten order, padded
        w_fc1 = _pad_to(w(ks[4], (pool, pool, feat_ch, fc_dim)), (pool, pool, C, C))
        w_fc1 = w_fc1.reshape(pool * pool * C, C).astype(jnp.bfloat16)
        w_fc2 = _pad_to(w(ks[5], (fc_dim, fc_dim)), (C, C)).astype(jnp.bfloat16)

        # fused output heads: [0:n_class*4]=cls_loc, [n_class*4:n_class*5]=score
        w_cls_loc = w(ks[6], (fc_dim, n_class * 4))
        w_score = w(ks[7], (fc_dim, n_class))
        w_out = jnp.zeros((C, C), jnp.float32)
        w_out = w_out.at[:fc_dim, : n_class * 4].set(w_cls_loc)
        w_out = w_out.at[:fc_dim, n_class * 4: n_class * 5].set(w_score)
        w_out = w_out.astype(jnp.bfloat16)

        zb = jnp.zeros((1, C), jnp.float32)
        self.p = {
            "w_bb": w_bb, "b_bb": zb,
            "w_rpn": w_rpn, "b_rpn": zb,
            "w_rpn_head": w_rpn_head, "b_rpn_head": zb,
            "w_fc1": w_fc1, "b_fc1": zb,
            "w_fc2": w_fc2, "b_fc2": zb,
            "w_out": w_out, "b_out": zb,
        }

    # ---- rpn proposal stage (decode + top-k selection) ---------------------
    def rpn(self, rpn_out, feat_shape, img_size, scale):
        # TODO(synk): `scale`-based min-size filtering and NMS of the original
        # proposal layer are not implemented; proposals are the top-k scoring
        # decoded anchors.
        N, H, W, _ = feat_shape
        img_h, img_w = img_size
        na = self.n_anchor
        A = H * W * na

        loc = rpn_out[:, :, : na * 4].reshape(N, A, 4)
        score = rpn_out[:, :, na * 4: na * 6].reshape(N, A, 2)
        fg = score[..., 1] - score[..., 0]   # monotone in fg softmax prob

        anchors_t = make_anchors(H, W, self.anchor_scales)    # (4, A)
        loc_t = jnp.transpose(loc, (0, 2, 1))                 # (N, 4, A)
        dec_t = decode_boxes(anchors_t, loc_t, img_h, img_w)  # (N, 4, A)

        def select(dec_t_n, fg_n):
            _, idx = jax.lax.top_k(fg_n, self.n_rois)
            return dec_t_n[:, idx].T                          # (R, 4)

        rois = jax.vmap(select)(dec_t, fg).reshape(-1, 4)
        roi_indices = jnp.repeat(jnp.arange(N, dtype=jnp.int32), self.n_rois)
        return loc, score, rois, roi_indices, anchors_t

    # ---- head ------------------------------------------------------------
    def head(self, feat, rois, roi_indices, img_size):
        pooled = roi_pool_nearest(feat, rois, roi_indices, self.pool)
        R = pooled.shape[0]
        flat = pooled.reshape(R, -1)                           # (R, p*p*CPAD)
        out = fused_head(flat,
                         self.p["w_fc1"], self.p["b_fc1"],
                         self.p["w_fc2"], self.p["b_fc2"],
                         self.p["w_out"], self.p["b_out"])     # (R, 128)
        roi_cls_locs = out[:, : self.n_class * 4]
        roi_scores = out[:, self.n_class * 4: self.n_class * 5]
        return roi_cls_locs, roi_scores

    # ---- forward (mirrors FasterRCNN.forward) ------------------------------
    def __call__(self, x, scale=1.0):
        # x: (N, C, H, W)  (PyTorch NCHW)
        img_size = (x.shape[2], x.shape[3])
        x_nhwc = jnp.transpose(x, (0, 2, 3, 1)).astype(jnp.float32)
        x_nhwc = _pad_to(x_nhwc, x_nhwc.shape[:3] + (CPAD,))   # lane-dense C

        # fused: backbone conv -> relu -> rpn conv -> relu -> rpn 1x1 heads
        base_feature, rpn_out = backbone_rpn_trunk(x_nhwc, self.p)

        _, _, rois, roi_indices, _ = self.rpn(rpn_out, base_feature.shape,
                                              img_size, scale)
        roi_cls_locs, roi_scores = self.head(base_feature, rois, roi_indices,
                                             img_size)
        return roi_cls_locs, roi_scores, roi_indices


# ---------------------------------------------------------------------------

if __name__ == "__main__":
    key = jax.random.PRNGKey(0)
    k_param, k_x = jax.random.split(key)

    model = FasterRCNNPallas(k_param)
    x = jax.random.normal(k_x, (2, 4, 16, 16), jnp.float32)   # NCHW input

    fwd = jax.jit(lambda inp: model(inp, scale=1.0))
    roi_cls_locs, roi_scores, roi_indices = fwd(x)
    jax.block_until_ready((roi_cls_locs, roi_scores, roi_indices))

    assert roi_cls_locs.shape == (64, 20)
    assert roi_scores.shape == (64, 5)
    assert roi_indices.shape == (64,)
    print("KERNEL_OK")
</pallas_src>

<mosaic_0001>
module attributes {stable_mosaic.version = 11 : i64} {
  func.func @_backbone_rpn_kernel(%arg0: i32, %arg1: memref<1x18x18x128xf32, #tpu.memory_space<vmem>>, %arg2: memref<1152x128xbf16, #tpu.memory_space<vmem>>, %arg3: memref<1x128xf32, #tpu.memory_space<vmem>>, %arg4: memref<1152x128xbf16, #tpu.memory_space<vmem>>, %arg5: memref<1x128xf32, #tpu.memory_space<vmem>>, %arg6: memref<128x128xbf16, #tpu.memory_space<vmem>>, %arg7: memref<1x128xf32, #tpu.memory_space<vmem>>, %arg8: memref<1x16x16x128xf32, #tpu.memory_space<vmem>>, %arg9: memref<1x256x128xf32, #tpu.memory_space<vmem>>, %arg10: memref<18x18x128xf32, #tpu.memory_space<vmem>>) attributes {dimension_semantics = [#tpu.dimension_semantics<parallel>], iteration_bounds = array<i64: 2>, scalar_prefetch = 0 : i64, scratch_operands = 1 : i64, tpu.core_type = #tpu.core_type<tc>, window_params = [{transform_indices = @transform_0, window_bounds = array<i64: 1, 18, 18, 128>}, {pipeline_mode = #tpu.pipeline_mode<synchronous>, transform_indices = @transform_1, window_bounds = array<i64: 1152, 128>}, {pipeline_mode = #tpu.pipeline_mode<synchronous>, transform_indices = @transform_2, window_bounds = array<i64: 1, 128>}, {pipeline_mode = #tpu.pipeline_mode<synchronous>, transform_indices = @transform_3, window_bounds = array<i64: 1152, 128>}, {pipeline_mode = #tpu.pipeline_mode<synchronous>, transform_indices = @transform_4, window_bounds = array<i64: 1, 128>}, {pipeline_mode = #tpu.pipeline_mode<synchronous>, transform_indices = @transform_5, window_bounds = array<i64: 128, 128>}, {pipeline_mode = #tpu.pipeline_mode<synchronous>, transform_indices = @transform_6, window_bounds = array<i64: 1, 128>}, {transform_indices = @transform_7, window_bounds = array<i64: 1, 16, 16, 128>}, {transform_indices = @transform_8, window_bounds = array<i64: 1, 256, 128>}]} {
    %c0 = arith.constant 0 : index
    %c0_0 = arith.constant 0 : index
    %c0_1 = arith.constant 0 : index
    %c0_2 = arith.constant 0 : index
    %0 = vector.load %arg1[%c0, %c0_0, %c0_1, %c0_2] : memref<1x18x18x128xf32, #tpu.memory_space<vmem>>, vector<1x18x18x128xf32>
    %1 = vector.shape_cast %0 : vector<1x18x18x128xf32> to vector<18x18x128xf32>
    %c0_3 = arith.constant 0 : index
    %c0_4 = arith.constant 0 : index
    %2 = vector.load %arg3[%c0_3, %c0_4] : memref<1x128xf32, #tpu.memory_space<vmem>>, vector<1x128xf32>
    %3 = vector.shape_cast %2 : vector<1x128xf32> to vector<128xf32>
    %4 = vector.extract_strided_slice %1 {offsets = [0, 0, 0], sizes = [16, 16, 128], strides = [1, 1, 1]} : vector<18x18x128xf32> to vector<16x16x128xf32>
    %5 = vector.extract_strided_slice %1 {offsets = [0, 1, 0], sizes = [16, 16, 128], strides = [1, 1, 1]} : vector<18x18x128xf32> to vector<16x16x128xf32>
    %6 = vector.extract_strided_slice %1 {offsets = [0, 2, 0], sizes = [16, 16, 128], strides = [1, 1, 1]} : vector<18x18x128xf32> to vector<16x16x128xf32>
    %7 = vector.extract_strided_slice %1 {offsets = [1, 0, 0], sizes = [16, 16, 128], strides = [1, 1, 1]} : vector<18x18x128xf32> to vector<16x16x128xf32>
    %8 = vector.extract_strided_slice %1 {offsets = [1, 1, 0], sizes = [16, 16, 128], strides = [1, 1, 1]} : vector<18x18x128xf32> to vector<16x16x128xf32>
    %9 = vector.extract_strided_slice %1 {offsets = [1, 2, 0], sizes = [16, 16, 128], strides = [1, 1, 1]} : vector<18x18x128xf32> to vector<16x16x128xf32>
    %10 = vector.extract_strided_slice %1 {offsets = [2, 0, 0], sizes = [16, 16, 128], strides = [1, 1, 1]} : vector<18x18x128xf32> to vector<16x16x128xf32>
    %11 = vector.extract_strided_slice %1 {offsets = [2, 1, 0], sizes = [16, 16, 128], strides = [1, 1, 1]} : vector<18x18x128xf32> to vector<16x16x128xf32>
    %12 = vector.extract_strided_slice %1 {offsets = [2, 2, 0], sizes = [16, 16, 128], strides = [1, 1, 1]} : vector<18x18x128xf32> to vector<16x16x128xf32>
    %13 = tpu.concatenate %4, %5, %6, %7, %8, %9, %10, %11, %12 in 2 : vector<16x16x128xf32>, vector<16x16x128xf32>, vector<16x16x128xf32>, vector<16x16x128xf32>, vector<16x16x128xf32>, vector<16x16x128xf32>, vector<16x16x128xf32>, vector<16x16x128xf32>, vector<16x16x128xf32> -> vector<16x16x1152xf32>
    %14 = vector.shape_cast %13 : vector<16x16x1152xf32> to vector<256x1152xf32>
    %15 = arith.truncf %14 : vector<256x1152xf32> to vector<256x1152xbf16>
    %c0_5 = arith.constant 0 : index
    %c0_6 = arith.constant 0 : index
    %16 = vector.load %arg2[%c0_5, %c0_6] : memref<1152x128xbf16, #tpu.memory_space<vmem>>, vector<1152x128xbf16>
    %cst = arith.constant dense<0.000000e+00> : vector<256x128xf32>
    %17 = tpu.matmul %15, %16, %cst {dimension_numbers = #tpu.dot_dimension_numbers<[1], [0], [0], [1], [0, 0, 1, 1], [], []>} : vector<256x1152xbf16>, vector<1152x128xbf16>, vector<256x128xf32> -> vector<256x128xf32>
    %18 = vector.shape_cast %3 : vector<128xf32> to vector<1x128xf32>
    %19 = vector.broadcast %18 : vector<1x128xf32> to vector<256x128xf32>
    %20 = arith.addf %17, %19 : vector<256x128xf32>
    %cst_7 = arith.constant 0.000000e+00 : f32
    %21 = vector.broadcast %cst_7 : f32 to vector<256x128xf32>
    %22 = arith.maximumf %20, %21 : vector<256x128xf32>
    %23 = vector.shape_cast %22 : vector<256x128xf32> to vector<16x16x128xf32>
    %24 = vector.shape_cast %23 : vector<16x16x128xf32> to vector<1x16x16x128xf32>
    %c0_8 = arith.constant 0 : index
    %c0_9 = arith.constant 0 : index
    %c0_10 = arith.constant 0 : index
    %c0_11 = arith.constant 0 : index
    %25 = vector.load %arg8[%c0_8, %c0_9, %c0_10, %c0_11] : memref<1x16x16x128xf32, #tpu.memory_space<vmem>>, vector<1x16x16x128xf32>
    tpu.vector_store %arg8[%c0_8, %c0_9, %c0_10, %c0_11], %24 {strides = array<i32>} : memref<1x16x16x128xf32, #tpu.memory_space<vmem>>, vector<1x16x16x128xf32>,
    %cst_12 = arith.constant 0.000000e+00 : f32
    %26 = vector.broadcast %cst_12 : f32 to vector<18x18x128xf32>
    %c0_13 = arith.constant 0 : index
    %c0_14 = arith.constant 0 : index
    %c0_15 = arith.constant 0 : index
    %27 = vector.load %arg10[%c0_13, %c0_14, %c0_15] : memref<18x18x128xf32, #tpu.memory_space<vmem>>, vector<18x18x128xf32>
    tpu.vector_store %arg10[%c0_13, %c0_14, %c0_15], %26 {strides = array<i32>} : memref<18x18x128xf32, #tpu.memory_space<vmem>>, vector<18x18x128xf32>,
    %c1 = arith.constant 1 : index
    %c1_16 = arith.constant 1 : index
    %c0_17 = arith.constant 0 : index
    %28 = vector.load %arg10[%c1, %c1_16, %c0_17] : memref<18x18x128xf32, #tpu.memory_space<vmem>>, vector<16x16x128xf32>
    tpu.vector_store %arg10[%c1, %c1_16, %c0_17], %23 {strides = array<i32>} : memref<18x18x128xf32, #tpu.memory_space<vmem>>, vector<16x16x128xf32>,
    %c0_18 = arith.constant 0 : index
    %c0_19 = arith.constant 0 : index
    %c0_20 = arith.constant 0 : index
    %29 = vector.load %arg10[%c0_18, %c0_19, %c0_20] : memref<18x18x128xf32, #tpu.memory_space<vmem>>, vector<18x18x128xf32>
    %c0_21 = arith.constant 0 : index
    %c0_22 = arith.constant 0 : index
    %30 = vector.load %arg5[%c0_21, %c0_22] : memref<1x128xf32, #tpu.memory_space<vmem>>, vector<1x128xf32>
    %31 = vector.shape_cast %30 : vector<1x128xf32> to vector<128xf32>
    %32 = vector.extract_strided_slice %29 {offsets = [0, 0, 0], sizes = [16, 16, 128], strides = [1, 1, 1]} : vector<18x18x128xf32> to vector<16x16x128xf32>
    %33 = vector.extract_strided_slice %29 {offsets = [0, 1, 0], sizes = [16, 16, 128], strides = [1, 1, 1]} : vector<18x18x128xf32> to vector<16x16x128xf32>
    %34 = vector.extract_strided_slice %29 {offsets = [0, 2, 0], sizes = [16, 16, 128], strides = [1, 1, 1]} : vector<18x18x128xf32> to vector<16x16x128xf32>
    %35 = vector.extract_strided_slice %29 {offsets = [1, 0, 0], sizes = [16, 16, 128], strides = [1, 1, 1]} : vector<18x18x128xf32> to vector<16x16x128xf32>
    %36 = vector.extract_strided_slice %29 {offsets = [1, 1, 0], sizes = [16, 16, 128], strides = [1, 1, 1]} : vector<18x18x128xf32> to vector<16x16x128xf32>
    %37 = vector.extract_strided_slice %29 {offsets = [1, 2, 0], sizes = [16, 16, 128], strides = [1, 1, 1]} : vector<18x18x128xf32> to vector<16x16x128xf32>
    %38 = vector.extract_strided_slice %29 {offsets = [2, 0, 0], sizes = [16, 16, 128], strides = [1, 1, 1]} : vector<18x18x128xf32> to vector<16x16x128xf32>
    %39 = vector.extract_strided_slice %29 {offsets = [2, 1, 0], sizes = [16, 16, 128], strides = [1, 1, 1]} : vector<18x18x128xf32> to vector<16x16x128xf32>
    %40 = vector.extract_strided_slice %29 {offsets = [2, 2, 0], sizes = [16, 16, 128], strides = [1, 1, 1]} : vector<18x18x128xf32> to vector<16x16x128xf32>
    %41 = tpu.concatenate %32, %33, %34, %35, %36, %37, %38, %39, %40 in 2 : vector<16x16x128xf32>, vector<16x16x128xf32>, vector<16x16x128xf32>, vector<16x16x128xf32>, vector<16x16x128xf32>, vector<16x16x128xf32>, vector<16x16x128xf32>, vector<16x16x128xf32>, vector<16x16x128xf32> -> vector<16x16x1152xf32>
    %42 = vector.shape_cast %41 : vector<16x16x1152xf32> to vector<256x1152xf32>
    %43 = arith.truncf %42 : vector<256x1152xf32> to vector<256x1152xbf16>
    %c0_23 = arith.constant 0 : index
    %c0_24 = arith.constant 0 : index
    %44 = vector.load %arg4[%c0_23, %c0_24] : memref<1152x128xbf16, #tpu.memory_space<vmem>>, vector<1152x128xbf16>
    %cst_25 = arith.constant dense<0.000000e+00> : vector<256x128xf32>
    %45 = tpu.matmul %43, %44, %cst_25 {dimension_numbers = #tpu.dot_dimension_numbers<[1], [0], [0], [1], [0, 0, 1, 1], [], []>} : vector<256x1152xbf16>, vector<1152x128xbf16>, vector<256x128xf32> -> vector<256x128xf32>
    %46 = vector.shape_cast %31 : vector<128xf32> to vector<1x128xf32>
    %47 = vector.broadcast %46 : vector<1x128xf32> to vector<256x128xf32>
    %48 = arith.addf %45, %47 : vector<256x128xf32>
    %cst_26 = arith.constant 0.000000e+00 : f32
    %49 = vector.broadcast %cst_26 : f32 to vector<256x128xf32>
    %50 = arith.maximumf %48, %49 : vector<256x128xf32>
    %51 = arith.truncf %50 : vector<256x128xf32> to vector<256x128xbf16>
    %c0_27 = arith.constant 0 : index
    %c0_28 = arith.constant 0 : index
    %52 = vector.load %arg6[%c0_27, %c0_28] : memref<128x128xbf16, #tpu.memory_space<vmem>>, vector<128x128xbf16>
    %cst_29 = arith.constant dense<0.000000e+00> : vector<256x128xf32>
    %53 = tpu.matmul %51, %52, %cst_29 {dimension_numbers = #tpu.dot_dimension_numbers<[1], [0], [0], [1], [0, 0, 1, 1], [], []>} : vector<256x128xbf16>, vector<128x128xbf16>, vector<256x128xf32> -> vector<256x128xf32>
    %c0_30 = arith.constant 0 : index
    %c0_31 = arith.constant 0 : index
    %54 = vector.load %arg7[%c0_30, %c0_31] : memref<1x128xf32, #tpu.memory_space<vmem>>, vector<1x128xf32>
    %55 = vector.shape_cast %54 : vector<1x128xf32> to vector<128xf32>
    %56 = vector.shape_cast %55 : vector<128xf32> to vector<1x128xf32>
    %57 = vector.broadcast %56 : vector<1x128xf32> to vector<256x128xf32>
    %58 = arith.addf %53, %57 : vector<256x128xf32>
    %59 = vector.shape_cast %58 : vector<256x128xf32> to vector<1x256x128xf32>
    %c0_32 = arith.constant 0 : index
    %c0_33 = arith.constant 0 : index
    %c0_34 = arith.constant 0 : index
    %60 = vector.load %arg9[%c0_32, %c0_33, %c0_34] : memref<1x256x128xf32, #tpu.memory_space<vmem>>, vector<1x256x128xf32>
    tpu.vector_store %arg9[%c0_32, %c0_33, %c0_34], %59 {strides = array<i32>} : memref<1x256x128xf32, #tpu.memory_space<vmem>>, vector<1x256x128xf32>,
    return
  }
  func.func @transform_0(%arg0: i32) -> (i32, i32, i32, i32) {
    %c0_i32 = arith.constant 0 : i32
    %c0_i32_0 = arith.constant 0 : i32
    %c0_i32_1 = arith.constant 0 : i32
    %c0_i32_2 = arith.constant 0 : i32
    return %arg0, %c0_i32, %c0_i32_0, %c0_i32_1 : i32, i32, i32, i32
  }
  func.func @transform_1(%arg0: i32) -> (i32, i32) {
    %c0_i32 = arith.constant 0 : i32
    %c0_i32_0 = arith.constant 0 : i32
    %c0_i32_1 = arith.constant 0 : i32
    return %c0_i32, %c0_i32_0 : i32, i32
  }
  func.func @transform_2(%arg0: i32) -> (i32, i32) {
    %c0_i32 = arith.constant 0 : i32
    %c0_i32_0 = arith.constant 0 : i32
    %c0_i32_1 = arith.constant 0 : i32
    return %c0_i32, %c0_i32_0 : i32, i32
  }
  func.func @transform_3(%arg0: i32) -> (i32, i32) {
    %c0_i32 = arith.constant 0 : i32
    %c0_i32_0 = arith.constant 0 : i32
    %c0_i32_1 = arith.constant 0 : i32
    return %c0_i32, %c0_i32_0 : i32, i32
  }
  func.func @transform_4(%arg0: i32) -> (i32, i32) {
    %c0_i32 = arith.constant 0 : i32
    %c0_i32_0 = arith.constant 0 : i32
    %c0_i32_1 = arith.constant 0 : i32
    return %c0_i32, %c0_i32_0 : i32, i32
  }
  func.func @transform_5(%arg0: i32) -> (i32, i32) {
    %c0_i32 = arith.constant 0 : i32
    %c0_i32_0 = arith.constant 0 : i32
    %c0_i32_1 = arith.constant 0 : i32
    return %c0_i32, %c0_i32_0 : i32, i32
  }
  func.func @transform_6(%arg0: i32) -> (i32, i32) {
    %c0_i32 = arith.constant 0 : i32
    %c0_i32_0 = arith.constant 0 : i32
    %c0_i32_1 = arith.constant 0 : i32
    return %c0_i32, %c0_i32_0 : i32, i32
  }
  func.func @transform_7(%arg0: i32) -> (i32, i32, i32, i32) {
    %c0_i32 = arith.constant 0 : i32
    %c0_i32_0 = arith.constant 0 : i32
    %c0_i32_1 = arith.constant 0 : i32
    %c0_i32_2 = arith.constant 0 : i32
    return %arg0, %c0_i32, %c0_i32_0, %c0_i32_1 : i32, i32, i32, i32
  }
  func.func @transform_8(%arg0: i32) -> (i32, i32, i32) {
    %c0_i32 = arith.constant 0 : i32
    %c0_i32_0 = arith.constant 0 : i32
    %c0_i32_1 = arith.constant 0 : i32
    return %arg0, %c0_i32, %c0_i32_0 : i32, i32, i32
  }
}

module attributes {stable_mosaic.version = 11 : i64} {
  func.func @_decode_kernel(%arg0: i32, %arg1: memref<4x768xf32, #tpu.memory_space<vmem>>, %arg2: memref<1x4x768xf32, #tpu.memory_space<vmem>>, %arg3: memref<1x4x768xf32, #tpu.memory_space<vmem>>) attributes {dimension_semantics = [#tpu.dimension_semantics<parallel>], iteration_bounds = array<i64: 2>, scalar_prefetch = 0 : i64, scratch_operands = 0 : i64, tpu.core_type = #tpu.core_type<tc>, window_params = [{pipeline_mode = #tpu.pipeline_mode<synchronous>, transform_indices = @transform_0, window_bounds = array<i64: 4, 768>}, {transform_indices = @transform_1, window_bounds = array<i64: 1, 4, 768>}, {transform_indices = @transform_2, window_bounds = array<i64: 1, 4, 768>}]} {
    %c0 = arith.constant 0 : index
    %c0_0 = arith.constant 0 : index
    %0 = vector.load %arg1[%c0, %c0_0] : memref<4x768xf32, #tpu.memory_space<vmem>>, vector<4x768xf32>
    %c0_1 = arith.constant 0 : index
    %c0_2 = arith.constant 0 : index
    %c0_3 = arith.constant 0 : index
    %1 = vector.load %arg2[%c0_1, %c0_2, %c0_3] : memref<1x4x768xf32, #tpu.memory_space<vmem>>, vector<1x4x768xf32>
    %2 = vector.shape_cast %1 : vector<1x4x768xf32> to vector<4x768xf32>
    %3 = vector.extract_strided_slice %0 {offsets = [2, 0], sizes = [1, 768], strides = [1, 1]} : vector<4x768xf32> to vector<1x768xf32>
    %4 = vector.extract_strided_slice %0 {offsets = [0, 0], sizes = [1, 768], strides = [1, 1]} : vector<4x768xf32> to vector<1x768xf32>
    %5 = arith.subf %3, %4 : vector<1x768xf32>
    %6 = vector.extract_strided_slice %0 {offsets = [3, 0], sizes = [1, 768], strides = [1, 1]} : vector<4x768xf32> to vector<1x768xf32>
    %7 = vector.extract_strided_slice %0 {offsets = [1, 0], sizes = [1, 768], strides = [1, 1]} : vector<4x768xf32> to vector<1x768xf32>
    %8 = arith.subf %6, %7 : vector<1x768xf32>
    %9 = vector.extract_strided_slice %0 {offsets = [0, 0], sizes = [1, 768], strides = [1, 1]} : vector<4x768xf32> to vector<1x768xf32>
    %cst = arith.constant 5.000000e-01 : f32
    %10 = vector.broadcast %cst : f32 to vector<1x768xf32>
    %11 = arith.mulf %10, %5 : vector<1x768xf32>
    %12 = arith.addf %9, %11 : vector<1x768xf32>
    %13 = vector.extract_strided_slice %0 {offsets = [1, 0], sizes = [1, 768], strides = [1, 1]} : vector<4x768xf32> to vector<1x768xf32>
    %cst_4 = arith.constant 5.000000e-01 : f32
    %14 = vector.broadcast %cst_4 : f32 to vector<1x768xf32>
    %15 = arith.mulf %14, %8 : vector<1x768xf32>
    %16 = arith.addf %13, %15 : vector<1x768xf32>
    %17 = vector.extract_strided_slice %2 {offsets = [0, 0], sizes = [1, 768], strides = [1, 1]} : vector<4x768xf32> to vector<1x768xf32>
    %18 = arith.mulf %17, %5 : vector<1x768xf32>
    %19 = arith.addf %18, %12 : vector<1x768xf32>
    %20 = vector.extract_strided_slice %2 {offsets = [1, 0], sizes = [1, 768], strides = [1, 1]} : vector<4x768xf32> to vector<1x768xf32>
    %21 = arith.mulf %20, %8 : vector<1x768xf32>
    %22 = arith.addf %21, %16 : vector<1x768xf32>
    %23 = vector.extract_strided_slice %2 {offsets = [2, 0], sizes = [1, 768], strides = [1, 1]} : vector<4x768xf32> to vector<1x768xf32>
    %24 = math.exp %23 : vector<1x768xf32>
    %25 = arith.mulf %24, %5 : vector<1x768xf32>
    %26 = vector.extract_strided_slice %2 {offsets = [3, 0], sizes = [1, 768], strides = [1, 1]} : vector<4x768xf32> to vector<1x768xf32>
    %27 = math.exp %26 : vector<1x768xf32>
    %28 = arith.mulf %27, %8 : vector<1x768xf32>
    %cst_5 = arith.constant 5.000000e-01 : f32
    %29 = vector.broadcast %cst_5 : f32 to vector<1x768xf32>
    %30 = arith.mulf %29, %25 : vector<1x768xf32>
    %31 = arith.subf %19, %30 : vector<1x768xf32>
    %cst_6 = arith.constant 0.000000e+00 : f32
    %cst_7 = arith.constant 1.600000e+01 : f32
    %32 = vector.broadcast %cst_6 : f32 to vector<1x768xf32>
    %33 = arith.maximumf %32, %31 : vector<1x768xf32>
    %34 = vector.broadcast %cst_7 : f32 to vector<1x768xf32>
    %35 = arith.minimumf %34, %33 : vector<1x768xf32>
    %c0_8 = arith.constant 0 : index
    %c0_9 = arith.constant 0 : index
    %c0_10 = arith.constant 0 : index
    %36 = vector.load %arg3[%c0_8, %c0_9, %c0_10] : memref<1x4x768xf32, #tpu.memory_space<vmem>>, vector<1x1x768xf32>
    %37 = vector.shape_cast %36 : vector<1x1x768xf32> to vector<1x768xf32>
    %38 = vector.shape_cast %35 : vector<1x768xf32> to vector<1x1x768xf32>
    tpu.vector_store %arg3[%c0_8, %c0_9, %c0_10], %38 {strides = array<i32>} : memref<1x4x768xf32, #tpu.memory_space<vmem>>, vector<1x1x768xf32>,
    %cst_11 = arith.constant 5.000000e-01 : f32
    %39 = vector.broadcast %cst_11 : f32 to vector<1x768xf32>
    %40 = arith.mulf %39, %28 : vector<1x768xf32>
    %41 = arith.subf %22, %40 : vector<1x768xf32>
    %cst_12 = arith.constant 0.000000e+00 : f32
    %cst_13 = arith.constant 1.600000e+01 : f32
    %42 = vector.broadcast %cst_12 : f32 to vector<1x768xf32>
    %43 = arith.maximumf %42, %41 : vector<1x768xf32>
    %44 = vector.broadcast %cst_13 : f32 to vector<1x768xf32>
    %45 = arith.minimumf %44, %43 : vector<1x768xf32>
    %c0_14 = arith.constant 0 : index
    %c1 = arith.constant 1 : index
    %c0_15 = arith.constant 0 : index
    %46 = vector.load %arg3[%c0_14, %c1, %c0_15] : memref<1x4x768xf32, #tpu.memory_space<vmem>>, vector<1x1x768xf32>
    %47 = vector.shape_cast %46 : vector<1x1x768xf32> to vector<1x768xf32>
    %48 = vector.shape_cast %45 : vector<1x768xf32> to vector<1x1x768xf32>
    tpu.vector_store %arg3[%c0_14, %c1, %c0_15], %48 {strides = array<i32>} : memref<1x4x768xf32, #tpu.memory_space<vmem>>, vector<1x1x768xf32>,
    %cst_16 = arith.constant 5.000000e-01 : f32
    %49 = vector.broadcast %cst_16 : f32 to vector<1x768xf32>
    %50 = arith.mulf %49, %25 : vector<1x768xf32>
    %51 = arith.addf %19, %50 : vector<1x768xf32>
    %cst_17 = arith.constant 0.000000e+00 : f32
    %cst_18 = arith.constant 1.600000e+01 : f32
    %52 = vector.broadcast %cst_17 : f32 to vector<1x768xf32>
    %53 = arith.maximumf %52, %51 : vector<1x768xf32>
    %54 = vector.broadcast %cst_18 : f32 to vector<1x768xf32>
    %55 = arith.minimumf %54, %53 : vector<1x768xf32>
    %c0_19 = arith.constant 0 : index
    %c2 = arith.constant 2 : index
    %c0_20 = arith.constant 0 : index
    %56 = vector.load %arg3[%c0_19, %c2, %c0_20] : memref<1x4x768xf32, #tpu.memory_space<vmem>>, vector<1x1x768xf32>
    %57 = vector.shape_cast %56 : vector<1x1x768xf32> to vector<1x768xf32>
    %58 = vector.shape_cast %55 : vector<1x768xf32> to vector<1x1x768xf32>
    tpu.vector_store %arg3[%c0_19, %c2, %c0_20], %58 {strides = array<i32>} : memref<1x4x768xf32, #tpu.memory_space<vmem>>, vector<1x1x768xf32>,
    %cst_21 = arith.constant 5.000000e-01 : f32
    %59 = vector.broadcast %cst_21 : f32 to vector<1x768xf32>
    %60 = arith.mulf %59, %28 : vector<1x768xf32>
    %61 = arith.addf %22, %60 : vector<1x768xf32>
    %cst_22 = arith.constant 0.000000e+00 : f32
    %cst_23 = arith.constant 1.600000e+01 : f32
    %62 = vector.broadcast %cst_22 : f32 to vector<1x768xf32>
    %63 = arith.maximumf %62, %61 : vector<1x768xf32>
    %64 = vector.broadcast %cst_23 : f32 to vector<1x768xf32>
    %65 = arith.minimumf %64, %63 : vector<1x768xf32>
    %c0_24 = arith.constant 0 : index
    %c3 = arith.constant 3 : index
    %c0_25 = arith.constant 0 : index
    %66 = vector.load %arg3[%c0_24, %c3, %c0_25] : memref<1x4x768xf32, #tpu.memory_space<vmem>>, vector<1x1x768xf32>
    %67 = vector.shape_cast %66 : vector<1x1x768xf32> to vector<1x768xf32>
    %68 = vector.shape_cast %65 : vector<1x768xf32> to vector<1x1x768xf32>
    tpu.vector_store %arg3[%c0_24, %c3, %c0_25], %68 {strides = array<i32>} : memref<1x4x768xf32, #tpu.memory_space<vmem>>, vector<1x1x768xf32>,
    return
  }
  func.func @transform_0(%arg0: i32) -> (i32, i32) {
    %c0_i32 = arith.constant 0 : i32
    %c0_i32_0 = arith.constant 0 : i32
    %c0_i32_1 = arith.constant 0 : i32
    return %c0_i32, %c0_i32_0 : i32, i32
  }
  func.func @transform_1(%arg0: i32) -> (i32, i32, i32) {
    %c0_i32 = arith.constant 0 : i32
    %c0_i32_0 = arith.constant 0 : i32
    %c0_i32_1 = arith.constant 0 : i32
    return %arg0, %c0_i32, %c0_i32_0 : i32, i32, i32
  }
  func.func @transform_2(%arg0: i32) -> (i32, i32, i32) {
    %c0_i32 = arith.constant 0 : i32
    %c0_i32_0 = arith.constant 0 : i32
    %c0_i32_1 = arith.constant 0 : i32
    return %arg0, %c0_i32, %c0_i32_0 : i32, i32, i32
  }
}

module attributes {stable_mosaic.version = 11 : i64} {
  func.func @_head_kernel(%arg0: i32, %arg1: memref<64x6272xf32, #tpu.memory_space<vmem>>, %arg2: memref<6272x128xbf16, #tpu.memory_space<vmem>>, %arg3: memref<1x128xf32, #tpu.memory_space<vmem>>, %arg4: memref<128x128xbf16, #tpu.memory_space<vmem>>, %arg5: memref<1x128xf32, #tpu.memory_space<vmem>>, %arg6: memref<128x128xbf16, #tpu.memory_space<vmem>>, %arg7: memref<1x128xf32, #tpu.memory_space<vmem>>, %arg8: memref<64x128xf32, #tpu.memory_space<vmem>>) attributes {dimension_semantics = [#tpu.dimension_semantics<parallel>], iteration_bounds = array<i64: 1>, scalar_prefetch = 0 : i64, scratch_operands = 0 : i64, tpu.core_type = #tpu.core_type<tc>, window_params = [{pipeline_mode = #tpu.pipeline_mode<synchronous>, transform_indices = @transform_0, window_bounds = array<i64: 64, 6272>}, {pipeline_mode = #tpu.pipeline_mode<synchronous>, transform_indices = @transform_1, window_bounds = array<i64: 6272, 128>}, {pipeline_mode = #tpu.pipeline_mode<synchronous>, transform_indices = @transform_2, window_bounds = array<i64: 1, 128>}, {pipeline_mode = #tpu.pipeline_mode<synchronous>, transform_indices = @transform_3, window_bounds = array<i64: 128, 128>}, {pipeline_mode = #tpu.pipeline_mode<synchronous>, transform_indices = @transform_4, window_bounds = array<i64: 1, 128>}, {pipeline_mode = #tpu.pipeline_mode<synchronous>, transform_indices = @transform_5, window_bounds = array<i64: 128, 128>}, {pipeline_mode = #tpu.pipeline_mode<synchronous>, transform_indices = @transform_6, window_bounds = array<i64: 1, 128>}, {pipeline_mode = #tpu.pipeline_mode<synchronous>, transform_indices = @transform_7, window_bounds = array<i64: 64, 128>}]} {
    %c0 = arith.constant 0 : index
    %c0_0 = arith.constant 0 : index
    %0 = vector.load %arg1[%c0, %c0_0] : memref<64x6272xf32, #tpu.memory_space<vmem>>, vector<64x6272xf32>
    %1 = arith.truncf %0 : vector<64x6272xf32> to vector<64x6272xbf16>
    %c0_1 = arith.constant 0 : index
    %c0_2 = arith.constant 0 : index
    %2 = vector.load %arg2[%c0_1, %c0_2] : memref<6272x128xbf16, #tpu.memory_space<vmem>>, vector<6272x128xbf16>
    %cst = arith.constant dense<0.000000e+00> : vector<64x128xf32>
    %3 = tpu.matmul %1, %2, %cst {dimension_numbers = #tpu.dot_dimension_numbers<[1], [0], [0], [1], [0, 0, 1, 1], [], []>} : vector<64x6272xbf16>, vector<6272x128xbf16>, vector<64x128xf32> -> vector<64x128xf32>
    %c0_3 = arith.constant 0 : index
    %c0_4 = arith.constant 0 : index
    %4 = vector.load %arg3[%c0_3, %c0_4] : memref<1x128xf32, #tpu.memory_space<vmem>>, vector<1x128xf32>
    %5 = vector.shape_cast %4 : vector<1x128xf32> to vector<128xf32>
    %6 = vector.shape_cast %5 : vector<128xf32> to vector<1x128xf32>
    %7 = vector.broadcast %6 : vector<1x128xf32> to vector<64x128xf32>
    %8 = arith.addf %3, %7 : vector<64x128xf32>
    %cst_5 = arith.constant 0.000000e+00 : f32
    %9 = vector.broadcast %cst_5 : f32 to vector<64x128xf32>
    %10 = arith.maximumf %8, %9 : vector<64x128xf32>
    %11 = arith.truncf %10 : vector<64x128xf32> to vector<64x128xbf16>
    %c0_6 = arith.constant 0 : index
    %c0_7 = arith.constant 0 : index
    %12 = vector.load %arg4[%c0_6, %c0_7] : memref<128x128xbf16, #tpu.memory_space<vmem>>, vector<128x128xbf16>
    %cst_8 = arith.constant dense<0.000000e+00> : vector<64x128xf32>
    %13 = tpu.matmul %11, %12, %cst_8 {dimension_numbers = #tpu.dot_dimension_numbers<[1], [0], [0], [1], [0, 0, 1, 1], [], []>} : vector<64x128xbf16>, vector<128x128xbf16>, vector<64x128xf32> -> vector<64x128xf32>
    %c0_9 = arith.constant 0 : index
    %c0_10 = arith.constant 0 : index
    %14 = vector.load %arg5[%c0_9, %c0_10] : memref<1x128xf32, #tpu.memory_space<vmem>>, vector<1x128xf32>
    %15 = vector.shape_cast %14 : vector<1x128xf32> to vector<128xf32>
    %16 = vector.shape_cast %15 : vector<128xf32> to vector<1x128xf32>
    %17 = vector.broadcast %16 : vector<1x128xf32> to vector<64x128xf32>
    %18 = arith.addf %13, %17 : vector<64x128xf32>
    %cst_11 = arith.constant 0.000000e+00 : f32
    %19 = vector.broadcast %cst_11 : f32 to vector<64x128xf32>
    %20 = arith.maximumf %18, %19 : vector<64x128xf32>
    %21 = arith.truncf %20 : vector<64x128xf32> to vector<64x128xbf16>
    %c0_12 = arith.constant 0 : index
    %c0_13 = arith.constant 0 : index
    %22 = vector.load %arg6[%c0_12, %c0_13] : memref<128x128xbf16, #tpu.memory_space<vmem>>, vector<128x128xbf16>
    %cst_14 = arith.constant dense<0.000000e+00> : vector<64x128xf32>
    %23 = tpu.matmul %21, %22, %cst_14 {dimension_numbers = #tpu.dot_dimension_numbers<[1], [0], [0], [1], [0, 0, 1, 1], [], []>} : vector<64x128xbf16>, vector<128x128xbf16>, vector<64x128xf32> -> vector<64x128xf32>
    %c0_15 = arith.constant 0 : index
    %c0_16 = arith.constant 0 : index
    %24 = vector.load %arg7[%c0_15, %c0_16] : memref<1x128xf32, #tpu.memory_space<vmem>>, vector<1x128xf32>
    %25 = vector.shape_cast %24 : vector<1x128xf32> to vector<128xf32>
    %26 = vector.shape_cast %25 : vector<128xf32> to vector<1x128xf32>
    %27 = vector.broadcast %26 : vector<1x128xf32> to vector<64x128xf32>
    %28 = arith.addf %23, %27 : vector<64x128xf32>
    %c0_17 = arith.constant 0 : index
    %c0_18 = arith.constant 0 : index
    %29 = vector.load %arg8[%c0_17, %c0_18] : memref<64x128xf32, #tpu.memory_space<vmem>>, vector<64x128xf32>
    tpu.vector_store %arg8[%c0_17, %c0_18], %28 {strides = array<i32>} : memref<64x128xf32, #tpu.memory_space<vmem>>, vector<64x128xf32>,
    return
  }
  func.func @transform_0(%arg0: i32) -> (i32, i32) {
    %c0_i32 = arith.constant 0 : i32
    %c0_i32_0 = arith.constant 0 : i32
    %c0_i32_1 = arith.constant 0 : i32
    return %c0_i32, %c0_i32_0 : i32, i32
  }
  func.func @transform_1(%arg0: i32) -> (i32, i32) {
    %c0_i32 = arith.constant 0 : i32
    %c0_i32_0 = arith.constant 0 : i32
    %c0_i32_1 = arith.constant 0 : i32
    return %c0_i32, %c0_i32_0 : i32, i32
  }
  func.func @transform_2(%arg0: i32) -> (i32, i32) {
    %c0_i32 = arith.constant 0 : i32
    %c0_i32_0 = arith.constant 0 : i32
    %c0_i32_1 = arith.constant 0 : i32
    return %c0_i32, %c0_i32_0 : i32, i32
  }
  func.func @transform_3(%arg0: i32) -> (i32, i32) {
    %c0_i32 = arith.constant 0 : i32
    %c0_i32_0 = arith.constant 0 : i32
    %c0_i32_1 = arith.constant 0 : i32
    return %c0_i32, %c0_i32_0 : i32, i32
  }
  func.func @transform_4(%arg0: i32) -> (i32, i32) {
    %c0_i32 = arith.constant 0 : i32
    %c0_i32_0 = arith.constant 0 : i32
    %c0_i32_1 = arith.constant 0 : i32
    return %c0_i32, %c0_i32_0 : i32, i32
  }
  func.func @transform_5(%arg0: i32) -> (i32, i32) {
    %c0_i32 = arith.constant 0 : i32
    %c0_i32_0 = arith.constant 0 : i32
    %c0_i32_1 = arith.constant 0 : i32
    return %c0_i32, %c0_i32_0 : i32, i32
  }
  func.func @transform_6(%arg0: i32) -> (i32, i32) {
    %c0_i32 = arith.constant 0 : i32
    %c0_i32_0 = arith.constant 0 : i32
    %c0_i32_1 = arith.constant 0 : i32
    return %c0_i32, %c0_i32_0 : i32, i32
  }
  func.func @transform_7(%arg0: i32) -> (i32, i32) {
    %c0_i32 = arith.constant 0 : i32
    %c0_i32_0 = arith.constant 0 : i32
    %c0_i32_1 = arith.constant 0 : i32
    return %c0_i32, %c0_i32_0 : i32, i32
  }
}

</mosaic_0001>

<llo_original>
// kernel: sub.26
$region0: #{sub.26}
  %s0 = inlined_call_operand.vmem [shape: f32[16,16], index: 0, kind: input, shape index: {}]
  %s1 = inlined_call_operand.vmem [shape: f32[256], index: 1, kind: output, shape index: {}]
  $region1: #{sub.26} parent=0
    #allocation0 [shape = 'u8[4096]{0}', space=vmem, size = 0x1000, scoped, tag = 'scoped mem for output reshape']
    %s2 = smov 3
    %v3 = vld [vmem:[%s0] ss:$8 sm:%s2]
    %vm4 = vcmask 130048
    %5 = vst.msk [vmem:[#allocation0] sm:$0x3] %vm4, %v3
    %s6 = scalar_lea.vmem %s0, 7
    %s7 = smov 3
    %v8 = vld [vmem:[%s6] ss:$8 sm:%s7]
    %9 = vrot.lane.b32.xlu0 %v8, 112
    %v10 = vpop.permute.xlu0 %9
    %vm11 = vcmask 1048448
    %12 = vst.msk [vmem:[#allocation0] sm:$0x3] %vm11, %v10
    %s13 = scalar_lea.vmem %s0, 6
    %s14 = smov 3
    %v15 = vld [vmem:[%s13] ss:$8 sm:%s14]
    %16 = vrot.lane.b32.xlu0 %v15, 96
    %v17 = vpop.permute.xlu0 %16
    %vm18 = vcmask 917248
    %19 = vst.msk [vmem:[#allocation0] sm:$0x3] %vm18, %v17
    %s20 = scalar_lea.vmem %s0, 5
    %s21 = smov 3
    %v22 = vld [vmem:[%s20] ss:$8 sm:%s21]
    %23 = vrot.lane.b32.xlu0 %v22, 80
    %v24 = vpop.permute.xlu0 %23
    %vm25 = vcmask 786048
    %26 = vst.msk [vmem:[#allocation0] sm:$0x3] %vm25, %v24
    %s27 = scalar_lea.vmem %s0, 4
    %s28 = smov 3
    %v29 = vld [vmem:[%s27] ss:$8 sm:%s28]
    %30 = vrot.lane.b32.xlu0 %v29, 64
    %v31 = vpop.permute.xlu0 %30
    %vm32 = vcmask 654848
    %33 = vst.msk [vmem:[#allocation0] sm:$0x3] %vm32, %v31
    %s34 = scalar_lea.vmem %s0, 3
    %s35 = smov 3
    %v36 = vld [vmem:[%s34] ss:$8 sm:%s35]
    %37 = vrot.lane.b32.xlu0 %v36, 48
    %v38 = vpop.permute.xlu0 %37
    %vm39 = vcmask 523648
    %40 = vst.msk [vmem:[#allocation0] sm:$0x3] %vm39, %v38
    %s41 = scalar_lea.vmem %s0, 2
    %s42 = smov 3
    %v43 = vld [vmem:[%s41] ss:$8 sm:%s42]
    %44 = vrot.lane.b32.xlu0 %v43, 32
    %v45 = vpop.permute.xlu0 %44
    %vm46 = vcmask 392448
    %47 = vst.msk [vmem:[#allocation0] sm:$0x3] %vm46, %v45
    %s48 = scalar_lea.vmem %s0, 1
    %s49 = smov 3
    %v50 = vld [vmem:[%s48] ss:$8 sm:%s49]
    %51 = vrot.lane.b32.xlu0 %v50, 16
    %v52 = vpop.permute.xlu0 %51
    %vm53 = vcmask 261248
    %54 = vst.msk [vmem:[#allocation0] sm:$0x3] %vm53, %v52
    %s56 = sshllo.u32 0, 2
    %v58 = vld [vmem:[#allocation0] sm:%s56]
    %s59 = sshllo.u32 0, 2
    %60 = vst [vmem:[%s1] sm:%s59] %v58

// kernel: _lambda_.4
$region0: #{_lambda_.4}
  #allocation0 [shape = 'u32[]', space=smem, size = 0x4, offset = 0x4, fixed_abs, tag = 'smem constant byte address 0x4 - core index']
  #allocation1 [shape = 'u32[144,128]{1,0:T(1,128)}', space=vmem, size = 0x12000, scoped, tag = 'internal scratch']
  %s0 = inlined_call_operand.vmem [shape: f32[4,768], index: 0, kind: input, shape index: {}]
  %s1 = inlined_call_operand.vmem [shape: f32[2,4,768], index: 1, kind: input, shape index: {}]
  %s2 = inlined_call_operand.vmem [shape: f32[2,4,768], index: 2, kind: output, shape index: {}]
  %s3 = sld [smem:[#allocation0]]
  $region41: #{_lambda_.4} parent=0
    _
  %s5 = ssub.s32 1, %s3
  %s6 = scalar_select 0, %s5, %s3
  loop: start=0, step=1, limit=4
  $region2: #{_lambda_.4} parent=0 // loop_pre_header
    _
  $region3: #{_lambda_.4} parent=0 // loop_header
    %s8 = sphi 0, %s12
    %p9 = scmp.ge.s32.totalorder %s8, 4
    %s16 = sphi 0, %s16
    %s18 = sphi 0, %s16
    %s19 = sphi 0, %s18
    %s33 = sphi 0, %s19
    %s39 = sphi 0, %s41
    %s42 = sphi 0, %s39
    %s43 = sphi 0, %s42
    %s59 = sphi 0, %s43
    %s65 = sphi 0, %s67
    %s68 = sphi 0, %s65
    %s69 = sphi 0, %s68
    %s85 = sphi 0, %s69
  $region4: #{_lambda_.4} parent=0 // loop_header_branch
    %11 = sbr.rel (%p9) target = $region8
  $region5: #{_lambda_.4} parent=0 // loop_body
    %s13 = ssub.s32 %s8, 1
    %s14 = ssub.s32 %s8, 2
    %s15 = sadd.s32 %s8, 1
    %s17 = sadd.s32 %s16, 1
    %p20 = scmp.eq.s32.totalorder %s8, 1
    %p21 = scmp.ne.s32.totalorder %s16, %s18
    %p22 = scmp.eq.s32.totalorder %s8, 0
    %p23 = por %p21, %p22
    %p24 = scmp.ne.s32.totalorder %s16, %s18
    %p25 = scmp.eq.s32.totalorder %s13, 1
    %p26 = por %p24, %p25
    %p27 = scmp.ne.s32.totalorder %s18, %s19
    %p28 = scmp.eq.s32.totalorder %s13, 0
    %p29 = por %p27, %p28
    %p30 = scmp.ne.s32.totalorder %s18, %s19
    %p31 = scmp.eq.s32.totalorder %s14, 1
    %p32 = por %p30, %p31
    %p34 = scmp.ne.s32.totalorder %s19, %s33
    %p35 = scmp.eq.s32.totalorder %s14, 0
    %p36 = por %p34, %p35
    %s37 = ssub.s32 %s8, %s15
    %p38 = scmp.eq.s32.totalorder %s37, 0
    %s40 = sadd.s32 %s39, 1
    %s41 = scalar_select %p38, %s39, %s40
    %p44 = pneg %p38
    %p45 = scmp.eq.s32.totalorder %s8, 1
    %p46 = por %p44, %p45
    %p47 = scmp.ne.s32.totalorder %s39, %s42
    %p48 = scmp.eq.s32.totalorder %s8, 0
    %p49 = por %p47, %p48
    %p50 = scmp.ne.s32.totalorder %s39, %s42
    %p51 = scmp.eq.s32.totalorder %s13, 1
    %p52 = por %p50, %p51
    %p53 = scmp.ne.s32.totalorder %s42, %s43
    %p54 = scmp.eq.s32.totalorder %s13, 0
    %p55 = por %p53, %p54
    %p56 = scmp.ne.s32.totalorder %s42, %s43
    %p57 = scmp.eq.s32.totalorder %s14, 1
    %p58 = por %p56, %p57
    %p60 = scmp.ne.s32.totalorder %s43, %s59
    %p61 = scmp.eq.s32.totalorder %s14, 0
    %p62 = por %p60, %p61
    %s63 = ssub.s32 %s8, %s15
    %p64 = scmp.eq.s32.totalorder %s63, 0
    %s66 = sadd.s32 %s65, 1
    %s67 = scalar_select %p64, %s65, %s66
    %p70 = pneg %p64
    %p71 = scmp.eq.s32.totalorder %s8, 1
    %p72 = por %p70, %p71
    %p73 = scmp.ne.s32.totalorder %s65, %s68
    %p74 = scmp.eq.s32.totalorder %s8, 0
    %p75 = por %p73, %p74
    %p76 = scmp.ne.s32.totalorder %s65, %s68
    %p77 = scmp.eq.s32.totalorder %s13, 1
    %p78 = por %p76, %p77
    %p79 = scmp.ne.s32.totalorder %s68, %s69
    %p80 = scmp.eq.s32.totalorder %s13, 0
    %p81 = por %p79, %p80
    %p82 = scmp.ne.s32.totalorder %s68, %s69
    %p83 = scmp.eq.s32.totalorder %s14, 1
    %p84 = por %p82, %p83
    %p86 = scmp.ne.s32.totalorder %s69, %s85
    %p87 = scmp.eq.s32.totalorder %s14, 0
    %p88 = por %p86, %p87
    %p89 = scmp.le.s32.totalorder 1, %s8
    %p90 = scmp.lt.s32.totalorder %s8, 3
    %p91 = pnand %p89, %p90
    %p92 = pneg %p91
    // Predicated region
    $region9: #{_lambda_.4} parent=5 // pred_check
      _
    $region10: #{_lambda_.4} parent=5 // pred_check_branch
      %94 = sbr.rel (%p91) target = $region12
    $region11: #{_lambda_.4} parent=5 // pred_region
      %s95 = ssub.s32 %s8, 1
      // Predicated region
      $region13: #{_lambda_.4} parent=11 // pred_check
        %p96 = pneg %p29
      $region14: #{_lambda_.4} parent=11 // pred_check_branch
        %98 = sbr.rel (%p96) target = $region16
      $region15: #{_lambda_.4} parent=11 // pred_region
        _
      $region16: #{_lambda_.4} parent=11 // pred_fallthru
        _
    $region12: #{_lambda_.4} parent=5 // pred_fallthru
      _
    %p99 = scmp.lt.s32.totalorder %s8, 2
    // Predicated region
    $region17: #{_lambda_.4} parent=5 // pred_check
      %p100 = pneg %p99
    $region18: #{_lambda_.4} parent=5 // pred_check_branch
      %102 = sbr.rel (%p100) target = $region20
    $region19: #{_lambda_.4} parent=5 // pred_region
      // Predicated region
      $region21: #{_lambda_.4} parent=19 // pred_check
        %p103 = pneg %p49
      $region22: #{_lambda_.4} parent=19 // pred_check_branch
        %105 = sbr.rel (%p103) target = $region24
      $region23: #{_lambda_.4} parent=19 // pred_region
        %p106 = scmp.lt.s32.totalorder %s8, 1
        %s107 = scalar_select %p106, %s8, 1
        %s108 = smul.addr %s107, 6
        %s109 = smul.addr %s108, 4
        %s110 = scalar_lea.vmem %s1, %s109
      $region24: #{_lambda_.4} parent=19 // pred_fallthru
        _
    $region20: #{_lambda_.4} parent=5 // pred_fallthru
      _
    %p111 = scmp.le.s32.totalorder 1, %s8
    %p112 = scmp.lt.s32.totalorder %s8, 3
    %p113 = pnand %p111, %p112
    %p114 = pneg %p113
    // Predicated region
    $region25: #{_lambda_.4} parent=5 // pred_check
      _
    $region26: #{_lambda_.4} parent=5 // pred_check_branch
      %116 = sbr.rel (%p113) target = $region28
    $region27: #{_lambda_.4} parent=5 // pred_region
      %s117 = ssub.s32 %s8, 1
      %p118 = pneg %p29
      %p119 = pneg %p26
      %p120 = scmp.lt.s32.totalorder %s13, 1
      %s121 = scalar_select %p120, %s13, 1
      %s122 = smul.addr %s121, 6
      %s123 = smul.addr %s122, 4
      %s124 = scalar_lea.vmem %s1, %s123
      %p125 = pneg %p55
      %p126 = pneg %p52
      %p127 = pneg %p81
      %p128 = pneg %p78
      %p129 = scmp.lt.s32.totalorder %s13, 1
      %s130 = scalar_select %p129, %s13, 1
      %s131 = smul.addr %s130, 6
      %s132 = smul.addr %s131, 4
      %s133 = scalar_lea.vmem %s2, %s132
      %p134 = scmp.lt.s32.totalorder %s13, 1
      %s135 = scalar_select %p134, %s13, 1
      %s136 = smul.addr %s135, 6
      %s137 = smul.addr %s136, 4
      %s138 = scalar_lea.vmem %s1, %s137
      %p139 = scmp.lt.s32.totalorder %s13, 1
      %s140 = scalar_select %p139, %s13, 1
      %s141 = smul.addr %s140, 6
      %s142 = smul.addr %s141, 4
      %s143 = scalar_lea.vmem %s2, %s142
      %v144 = vld [vmem:[%s0] sm:$0xff]
      %v145 = vld [vmem:[%s0 + $0x8] sm:$0xff]
      %v146 = vld [vmem:[%s0 + $0x10] sm:$0xff]
      %v147 = vld [vmem:[%s138] sm:$0xff]
      %v148 = vld [vmem:[%s138 + $0x8] sm:$0xff]
      %v149 = vld [vmem:[%s138 + $0x10] sm:$0xff]
      %v153 = vrot.slane %v144, 6
      %v154 = vrot.slane %v145, 6
      %v155 = vrot.slane %v146, 6
      %v159 = vsub.f32 %v144, %v153
      %v160 = vsub.f32 %v145, %v154
      %v161 = vsub.f32 %v146, %v155
      %v162 = vmul.f32 %v159, 0.5
      %v163 = vmul.f32 %v160, 0.5
      %v164 = vmul.f32 %v161, 0.5
      %v168 = vrot.slane %v162, 6
      %v169 = vrot.slane %v168, 4
      %v170 = vrot.slane %v163, 6
      %v171 = vrot.slane %v170, 4
      %v172 = vrot.slane %v164, 6
      %v173 = vrot.slane %v172, 4
      %v177 = vadd.f32 %v144, %v169
      %v178 = vadd.f32 %v145, %v171
      %v179 = vadd.f32 %v146, %v173
      %v183 = vrot.slane %v159, 6
      %v184 = vrot.slane %v183, 4
      %v185 = vrot.slane %v160, 6
      %v186 = vrot.slane %v185, 4
      %v187 = vrot.slane %v161, 6
      %v188 = vrot.slane %v187, 4
      %v192 = vmul.f32 %v147, %v184
      %v193 = vmul.f32 %v148, %v186
      %v194 = vmul.f32 %v149, %v188
      %v195 = vadd.f32 %v192, %v177
      %v196 = vadd.f32 %v193, %v178
      %v197 = vadd.f32 %v194, %v179
      %v198 = vmul.f32 %v147, 1.442695
      %v199 = vpow.pop %v198
      %v200 = vmul.f32 %v148, 1.442695
      %v201 = vpow.pop %v200
      %v202 = vmul.f32 %v149, 1.442695
      %v203 = vpow.pop %v202
      %v204 = vmul.f32 %v199, %v159
      %v205 = vmul.f32 %v201, %v160
      %v206 = vmul.f32 %v203, %v161
      %v207 = vmul.f32 %v204, 0.5
      %v208 = vmul.f32 %v205, 0.5
      %v209 = vmul.f32 %v206, 0.5
      %v213 = vrot.slane %v207, 6
      %v214 = vrot.slane %v213, 4
      %v215 = vrot.slane %v208, 6
      %v216 = vrot.slane %v215, 4
      %v217 = vrot.slane %v209, 6
      %v218 = vrot.slane %v217, 4
      %v222 = vsub.f32 %v195, %v214
      %v223 = vsub.f32 %v196, %v216
      %v224 = vsub.f32 %v197, %v218
      %v225 = vmax.f32 %v222, 0.0
      %v226 = vmax.f32 %v223, 0.0
      %v227 = vmax.f32 %v224, 0.0
      %v228 = vmin.f32 %v225, 16.0
      %v229 = vmin.f32 %v226, 16.0
      %v230 = vmin.f32 %v227, 16.0
      %v235 = vunpack.c.l.s4 1966171168
      %v236 = vunpack.c.0.s8 %v235
      %v237 = vlaneseq
      %v238 = vshrl.u32 %v237, 7
      %v239 = vsub.s32 %v236, %v238
      %v240 = vrot.slane %v228, %v239
      %v242 = vunpack.c.l.s4 1966171168
      %v243 = vunpack.c.0.s8 %v242
      %v244 = vlaneseq
      %v245 = vshrl.u32 %v244, 7
      %v246 = vsub.s32 %v243, %v245
      %v247 = vrot.slane %v229, %v246
      %v249 = vunpack.c.l.s4 1966171168
      %v250 = vunpack.c.0.s8 %v249
      %v251 = vlaneseq
      %v252 = vshrl.u32 %v251, 7
      %v253 = vsub.s32 %v250, %v252
      %v254 = vrot.slane %v230, %v253
      %v255 = vcombine.low %v240, %v247
      %v257 = vunpack.c.l.s4 1966171168
      %v258 = vunpack.c.0.s8 %v257
      %v259 = vlaneseq
      %v260 = vshrl.u32 %v259, 7
      %v261 = vsub.s32 %v258, %v260
      %v262 = vrot.slane %v255, %v261
      %v264 = vunpack.c.l.s4 1966171168
      %v265 = vunpack.c.0.s8 %v264
      %v266 = vlaneseq
      %v267 = vshrl.u32 %v266, 7
      %v268 = vsub.s32 %v265, %v267
      %v269 = vrot.slane %v254, %v268
      %v270 = vcombine.low %v262, %v269
      %v272 = vlaneseq
      %vm273 = vcmp.ge.s32.totalorder %v272, 0
      %vm274 = vcmp.lt.s32.totalorder %v272, 768
      %vm275 = vmand %vm273, %vm274
      %276 = vst.msk [vmem:[%s143] ss:$4 sm:$0x3f] %vm275, %v270
      %v277 = vcombine.high %v240, %v247
      %v278 = vcombine.high %v254, %v254
      %v280 = vunpack.c.l.s4 1966171168
      %v281 = vunpack.c.0.s8 %v280
      %v282 = vlaneseq
      %v283 = vshrl.u32 %v282, 7
      %v284 = vsub.s32 %v281, %v283
      %v285 = vrot.slane %v277, %v284
      %v287 = vunpack.c.l.s4 1966171168
      %v288 = vunpack.c.0.s8 %v287
      %v289 = vlaneseq
      %v290 = vshrl.u32 %v289, 7
      %v291 = vsub.s32 %v288, %v290
      %v292 = vrot.slane %v278, %v291
      %v293 = vcombine.low %v285, %v292
      %s295 = scalar_lea.vmem %s143, 1
      %296 = vst.msk [vmem:[%s295] ss:$4 sm:$0x3f] %vm275, %v293
      %v297 = vadd.f32 %v195, %v214
      %v298 = vadd.f32 %v196, %v216
      %v299 = vadd.f32 %v197, %v218
      %v300 = vmax.f32 %v297, 0.0
      %v301 = vmax.f32 %v298, 0.0
      %v302 = vmax.f32 %v299, 0.0
      %v303 = vmin.f32 %v300, 16.0
      %v304 = vmin.f32 %v301, 16.0
      %v305 = vmin.f32 %v302, 16.0
      %v310 = vunpack.c.l.s4 1966171168
      %v311 = vunpack.c.0.s8 %v310
      %v312 = vlaneseq
      %v313 = vshrl.u32 %v312, 7
      %v314 = vsub.s32 %v311, %v313
      %v315 = vrot.slane %v303, %v314
      %v317 = vunpack.c.l.s4 1966171168
      %v318 = vunpack.c.0.s8 %v317
      %v319 = vlaneseq
      %v320 = vshrl.u32 %v319, 7
      %v321 = vsub.s32 %v318, %v320
      %v322 = vrot.slane %v304, %v321
      %v324 = vunpack.c.l.s4 1966171168
      %v325 = vunpack.c.0.s8 %v324
      %v326 = vlaneseq
      %v327 = vshrl.u32 %v326, 7
      %v328 = vsub.s32 %v325, %v327
      %v329 = vrot.slane %v305, %v328
      %v330 = vcombine.low %v315, %v322
      %v332 = vunpack.c.l.s4 1966171168
      %v333 = vunpack.c.0.s8 %v332
      %v334 = vlaneseq
      %v335 = vshrl.u32 %v334, 7
      %v336 = vsub.s32 %v333, %v335
      %v337 = vrot.slane %v330, %v336
      %v339 = vunpack.c.l.s4 1966171168
      %v340 = vunpack.c.0.s8 %v339
      %v341 = vlaneseq
      %v342 = vshrl.u32 %v341, 7
      %v343 = vsub.s32 %v340, %v342
      %v344 = vrot.slane %v329, %v343
      %v345 = vcombine.low %v337, %v344
      %s347 = scalar_lea.vmem %s143, 2
      %348 = vst.msk [vmem:[%s347] ss:$4 sm:$0x3f] %vm275, %v345
      %v349 = vcombine.high %v315, %v322
      %v350 = vcombine.high %v329, %v329
      %v352 = vunpack.c.l.s4 1966171168
      %v353 = vunpack.c.0.s8 %v352
      %v354 = vlaneseq
      %v355 = vshrl.u32 %v354, 7
      %v356 = vsub.s32 %v353, %v355
      %v357 = vrot.slane %v349, %v356
      %v359 = vunpack.c.l.s4 1966171168
      %v360 = vunpack.c.0.s8 %v359
      %v361 = vlaneseq
      %v362 = vshrl.u32 %v361, 7
      %v363 = vsub.s32 %v360, %v362
      %v364 = vrot.slane %v350, %v363
      %v365 = vcombine.low %v357, %v364
      %s367 = scalar_lea.vmem %s143, 3
      %368 = vst.msk [vmem:[%s367] ss:$4 sm:$0x3f] %vm275, %v365
      %p369 = scmp.lt.s32.totalorder %s13, 1
      %s370 = scalar_select %p369, %s13, 1
      %s371 = smul.addr %s370, 6
      %s372 = smul.addr %s371, 4
      %s373 = scalar_lea.vmem %s2, %s372
      // Predicated region
      $region29: #{_lambda_.4} parent=27 // pred_check
        %p374 = pneg %p78
      $region30: #{_lambda_.4} parent=27 // pred_check_branch
        %376 = sbr.rel (%p374) target = $region32
      $region31: #{_lambda_.4} parent=27 // pred_region
        _
      $region32: #{_lambda_.4} parent=27 // pred_fallthru
        _
    $region28: #{_lambda_.4} parent=5 // pred_fallthru
      _
    %p377 = scmp.le.s32.totalorder 2, %s8
    // Predicated region
    $region33: #{_lambda_.4} parent=5 // pred_check
      %p378 = pneg %p377
    $region34: #{_lambda_.4} parent=5 // pred_check_branch
      %380 = sbr.rel (%p378) target = $region36
    $region35: #{_lambda_.4} parent=5 // pred_region
      %s381 = ssub.s32 %s8, 2
      // Predicated region
      $region37: #{_lambda_.4} parent=35 // pred_check
        %p382 = pneg %p84
      $region38: #{_lambda_.4} parent=35 // pred_check_branch
        %384 = sbr.rel (%p382) target = $region40
      $region39: #{_lambda_.4} parent=35 // pred_region
        %p385 = scmp.lt.s32.totalorder %s14, 1
        %s386 = scalar_select %p385, %s14, 1
        %s387 = smul.addr %s386, 6
        %s388 = smul.addr %s387, 4
        %s389 = scalar_lea.vmem %s2, %s388
      $region40: #{_lambda_.4} parent=35 // pred_fallthru
        _
    $region36: #{_lambda_.4} parent=5 // pred_fallthru
      _
  $region6: #{_lambda_.4} parent=0 // loop_footer
    %s12 = sadd.s32 1, %s8
  $region7: #{_lambda_.4} parent=0 // loop_footer_branch
    %7 = sbr.rel target = $region3
  $region8: #{_lambda_.4} parent=0 // loop_exit
    _

// kernel: _lambda_.3
$region0: #{_lambda_.3}
  #allocation0 [shape = 'u32[]', space=smem, size = 0x4, offset = 0x4, fixed_abs, tag = 'smem constant byte address 0x4 - core index']
  #allocation1 [shape = 'u32[144,128]{1,0:T(1,128)}', space=vmem, size = 0x12000, scoped, tag = 'internal scratch']
  #allocation2 [shape = 'f32[18,18,128]{2,1,0:T(8,128)}', space=vmem, size = 0x36000, scoped, tag = 'scratch operand']
  %s0 = inlined_call_operand.vmem [shape: f32[2,18,18,128], index: 0, kind: input, shape index: {}]
  %s1 = inlined_call_operand.hbm [shape: bf16[1152,128], index: 1, kind: input, shape index: {}]
  %s2 = inlined_call_operand.vmem [shape: f32[1,128], index: 2, kind: input, shape index: {}, may-alias: {2,4,6}]
  %s3 = inlined_call_operand.hbm [shape: bf16[1152,128], index: 3, kind: input, shape index: {}]
  %s4 = inlined_call_operand.vmem [shape: f32[1,128], index: 4, kind: input, shape index: {}, may-alias: {2,4,6}]
  %s5 = inlined_call_operand.hbm [shape: bf16[128,128], index: 5, kind: input, shape index: {}]
  %s6 = inlined_call_operand.vmem [shape: f32[1,128], index: 6, kind: input, shape index: {}, may-alias: {2,4,6}]
  %s7 = inlined_call_operand.vmem [shape: f32[2,16,16,128], index: 7, kind: output, shape index: {0}]
  %s8 = inlined_call_operand.vmem [shape: f32[2,256,128], index: 8, kind: output, shape index: {1}]
  %9 = xla_tuple %s7, %s8
  %s10 = sld [smem:[#allocation0]]
  $region81: #{_lambda_.3} parent=0
    _
  %s12 = ssub.s32 1, %s10
  %s13 = scalar_select 0, %s12, %s10
  $region1: #{_lambda_.3} parent=0
    #allocation3 [shape = 'u8[294912]{0}', space=vmem, size = 0x48000, scoped, tag = 'input window, operand 1, single buffered']
    #allocation4 [shape = 's32[2]{0}', space=sflag, size = 0x8, scoped, tag = 'scoped memory for _lambda_.3']
    #allocation5 [shape = 'u8[294912]{0}', space=vmem, size = 0x48000, scoped, tag = 'input window, operand 3, single buffered']
    #allocation6 [shape = 's32[1]{0}', space=sflag, size = 0x4, scoped, tag = 'scoped memory for _lambda_.3']
    #allocation7 [shape = 'u8[32768]{0}', space=vmem, size = 0x8000, scoped, tag = 'input window, operand 5, single buffered']
    %14 = vsyncpa [#allocation4], 0
    %15 = vsyncpa [#allocation6], 0
    loop: start=0, step=1, limit=4
    $region2: #{_lambda_.3} parent=1 // loop_pre_header
      _
    $region3: #{_lambda_.3} parent=1 // loop_header
      %s17 = sphi 0, %s21
      %p18 = scmp.ge.s32.totalorder %s17, 4
      %s27 = sphi 0, %s29
      %s30 = sphi 0, %s27
      %s31 = sphi 0, %s30
      %s47 = sphi 0, %s31
      %s51 = sphi 0, %s51
      %s53 = sphi 0, %s51
      %s54 = sphi 0, %s53
      %s68 = sphi 0, %s54
      %s72 = sphi 0, %s72
      %s74 = sphi 0, %s72
      %s75 = sphi 0, %s74
      %s89 = sphi 0, %s75
      %s93 = sphi 0, %s93
      %s95 = sphi 0, %s93
      %s96 = sphi 0, %s95
      %s110 = sphi 0, %s96
      %s114 = sphi 0, %s114
      %s116 = sphi 0, %s114
      %s117 = sphi 0, %s116
      %s131 = sphi 0, %s117
      %s135 = sphi 0, %s135
      %s137 = sphi 0, %s135
      %s138 = sphi 0, %s137
      %s152 = sphi 0, %s138
      %s156 = sphi 0, %s156
      %s158 = sphi 0, %s156
      %s159 = sphi 0, %s158
      %s173 = sphi 0, %s159
      %s179 = sphi 0, %s181
      %s182 = sphi 0, %s179
      %s183 = sphi 0, %s182
      %s199 = sphi 0, %s183
      %s205 = sphi 0, %s207
      %s208 = sphi 0, %s205
      %s209 = sphi 0, %s208
      %s225 = sphi 0, %s209
    $region4: #{_lambda_.3} parent=1 // loop_header_branch
      %20 = sbr.rel (%p18) target = $region8
    $region5: #{_lambda_.3} parent=1 // loop_body
      %s22 = ssub.s32 %s17, 1
      %s23 = ssub.s32 %s17, 2
      %s24 = sadd.s32 %s17, 1
      %s25 = ssub.s32 %s17, %s24
      %p26 = scmp.eq.s32.totalorder %s25, 0
      %s28 = sadd.s32 %s27, 1
      %s29 = scalar_select %p26, %s27, %s28
      %p32 = pneg %p26
      %p33 = scmp.eq.s32.totalorder %s17, 1
      %p34 = por %p32, %p33
      %p35 = scmp.ne.s32.totalorder %s27, %s30
      %p36 = scmp.eq.s32.totalorder %s17, 0
      %p37 = por %p35, %p36
      %p38 = scmp.ne.s32.totalorder %s27, %s30
      %p39 = scmp.eq.s32.totalorder %s22, 1
      %p40 = por %p38, %p39
      %p41 = scmp.ne.s32.totalorder %s30, %s31
      %p42 = scmp.eq.s32.totalorder %s22, 0
      %p43 = por %p41, %p42
      %p44 = scmp.ne.s32.totalorder %s30, %s31
      %p45 = scmp.eq.s32.totalorder %s23, 1
      %p46 = por %p44, %p45
      %p48 = scmp.ne.s32.totalorder %s31, %s47
      %p49 = scmp.eq.s32.totalorder %s23, 0
      %p50 = por %p48, %p49
      %s52 = sadd.s32 %s51, 1
      %p55 = scmp.eq.s32.totalorder %s17, 1
      %p56 = scmp.ne.s32.totalorder %s51, %s53
      %p57 = scmp.eq.s32.totalorder %s17, 0
      %p58 = por %p56, %p57
      %p59 = scmp.ne.s32.totalorder %s51, %s53
      %p60 = scmp.eq.s32.totalorder %s22, 1
      %p61 = por %p59, %p60
      %p62 = scmp.ne.s32.totalorder %s53, %s54
      %p63 = scmp.eq.s32.totalorder %s22, 0
      %p64 = por %p62, %p63
      %p65 = scmp.ne.s32.totalorder %s53, %s54
      %p66 = scmp.eq.s32.totalorder %s23, 1
      %p67 = por %p65, %p66
      %p69 = scmp.ne.s32.totalorder %s54, %s68
      %p70 = scmp.eq.s32.totalorder %s23, 0
      %p71 = por %p69, %p70
      %s73 = sadd.s32 %s72, 1
      %p76 = scmp.eq.s32.totalorder %s17, 1
      %p77 = scmp.ne.s32.totalorder %s72, %s74
      %p78 = scmp.eq.s32.totalorder %s17, 0
      %p79 = por %p77, %p78
      %p80 = scmp.ne.s32.totalorder %s72, %s74
      %p81 = scmp.eq.s32.totalorder %s22, 1
      %p82 = por %p80, %p81
      %p83 = scmp.ne.s32.totalorder %s74, %s75
      %p84 = scmp.eq.s32.totalorder %s22, 0
      %p85 = por %p83, %p84
      %p86 = scmp.ne.s32.totalorder %s74, %s75
      %p87 = scmp.eq.s32.totalorder %s23, 1
      %p88 = por %p86, %p87
      %p90 = scmp.ne.s32.totalorder %s75, %s89
      %p91 = scmp.eq.s32.totalorder %s23, 0
      %p92 = por %p90, %p91
      %s94 = sadd.s32 %s93, 1
      %p97 = scmp.eq.s32.totalorder %s17, 1
      %p98 = scmp.ne.s32.totalorder %s93, %s95
      %p99 = scmp.eq.s32.totalorder %s17, 0
      %p100 = por %p98, %p99
      %p101 = scmp.ne.s32.totalorder %s93, %s95
      %p102 = scmp.eq.s32.totalorder %s22, 1
      %p103 = por %p101, %p102
      %p104 = scmp.ne.s32.totalorder %s95, %s96
      %p105 = scmp.eq.s32.totalorder %s22, 0
      %p106 = por %p104, %p105
      %p107 = scmp.ne.s32.totalorder %s95, %s96
      %p108 = scmp.eq.s32.totalorder %s23, 1
      %p109 = por %p107, %p108
      %p111 = scmp.ne.s32.totalorder %s96, %s110
      %p112 = scmp.eq.s32.totalorder %s23, 0
      %p113 = por %p111, %p112
      %s115 = sadd.s32 %s114, 1
      %p118 = scmp.eq.s32.totalorder %s17, 1
      %p119 = scmp.ne.s32.totalorder %s114, %s116
      %p120 = scmp.eq.s32.totalorder %s17, 0
      %p121 = por %p119, %p120
      %p122 = scmp.ne.s32.totalorder %s114, %s116
      %p123 = scmp.eq.s32.totalorder %s22, 1
      %p124 = por %p122, %p123
      %p125 = scmp.ne.s32.totalorder %s116, %s117
      %p126 = scmp.eq.s32.totalorder %s22, 0
      %p127 = por %p125, %p126
      %p128 = scmp.ne.s32.totalorder %s116, %s117
      %p129 = scmp.eq.s32.totalorder %s23, 1
      %p130 = por %p128, %p129
      %p132 = scmp.ne.s32.totalorder %s117, %s131
      %p133 = scmp.eq.s32.totalorder %s23, 0
      %p134 = por %p132, %p133
      %s136 = sadd.s32 %s135, 1
      %p139 = scmp.eq.s32.totalorder %s17, 1
      %p140 = scmp.ne.s32.totalorder %s135, %s137
      %p141 = scmp.eq.s32.totalorder %s17, 0
      %p142 = por %p140, %p141
      %p143 = scmp.ne.s32.totalorder %s135, %s137
      %p144 = scmp.eq.s32.totalorder %s22, 1
      %p145 = por %p143, %p144
      %p146 = scmp.ne.s32.totalorder %s137, %s138
      %p147 = scmp.eq.s32.totalorder %s22, 0
      %p148 = por %p146, %p147
      %p149 = scmp.ne.s32.totalorder %s137, %s138
      %p150 = scmp.eq.s32.totalorder %s23, 1
      %p151 = por %p149, %p150
      %p153 = scmp.ne.s32.totalorder %s138, %s152
      %p154 = scmp.eq.s32.totalorder %s23, 0
      %p155 = por %p153, %p154
      %s157 = sadd.s32 %s156, 1
      %p160 = scmp.eq.s32.totalorder %s17, 1
      %p161 = scmp.ne.s32.totalorder %s156, %s158
      %p162 = scmp.eq.s32.totalorder %s17, 0
      %p163 = por %p161, %p162
      %p164 = scmp.ne.s32.totalorder %s156, %s158
      %p165 = scmp.eq.s32.totalorder %s22, 1
      %p166 = por %p164, %p165
      %p167 = scmp.ne.s32.totalorder %s158, %s159
      %p168 = scmp.eq.s32.totalorder %s22, 0
      %p169 = por %p167, %p168
      %p170 = scmp.ne.s32.totalorder %s158, %s159
      %p171 = scmp.eq.s32.totalorder %s23, 1
      %p172 = por %p170, %p171
      %p174 = scmp.ne.s32.totalorder %s159, %s173
      %p175 = scmp.eq.s32.totalorder %s23, 0
      %p176 = por %p174, %p175
      %s177 = ssub.s32 %s17, %s24
      %p178 = scmp.eq.s32.totalorder %s177, 0
      %s180 = sadd.s32 %s179, 1
      %s181 = scalar_select %p178, %s179, %s180
      %p184 = pneg %p178
      %p185 = scmp.eq.s32.totalorder %s17, 1
      %p186 = por %p184, %p185
      %p187 = scmp.ne.s32.totalorder %s179, %s182
      %p188 = scmp.eq.s32.totalorder %s17, 0
      %p189 = por %p187, %p188
      %p190 = scmp.ne.s32.totalorder %s179, %s182
      %p191 = scmp.eq.s32.totalorder %s22, 1
      %p192 = por %p190, %p191
      %p193 = scmp.ne.s32.totalorder %s182, %s183
      %p194 = scmp.eq.s32.totalorder %s22, 0
      %p195 = por %p193, %p194
      %p196 = scmp.ne.s32.totalorder %s182, %s183
      %p197 = scmp.eq.s32.totalorder %s23, 1
      %p198 = por %p196, %p197
      %p200 = scmp.ne.s32.totalorder %s183, %s199
      %p201 = scmp.eq.s32.totalorder %s23, 0
      %p202 = por %p200, %p201
      %s203 = ssub.s32 %s17, %s24
      %p204 = scmp.eq.s32.totalorder %s203, 0
      %s206 = sadd.s32 %s205, 1
      %s207 = scalar_select %p204, %s205, %s206
      %p210 = pneg %p204
      %p211 = scmp.eq.s32.totalorder %s17, 1
      %p212 = por %p210, %p211
      %p213 = scmp.ne.s32.totalorder %s205, %s208
      %p214 = scmp.eq.s32.totalorder %s17, 0
      %p215 = por %p213, %p214
      %p216 = scmp.ne.s32.totalorder %s205, %s208
      %p217 = scmp.eq.s32.totalorder %s22, 1
      %p218 = por %p216, %p217
      %p219 = scmp.ne.s32.totalorder %s208, %s209
      %p220 = scmp.eq.s32.totalorder %s22, 0
      %p221 = por %p219, %p220
      %p222 = scmp.ne.s32.totalorder %s208, %s209
      %p223 = scmp.eq.s32.totalorder %s23, 1
      %p224 = por %p222, %p223
      %p226 = scmp.ne.s32.totalorder %s209, %s225
      %p227 = scmp.eq.s32.totalorder %s23, 0
      %p228 = por %p226, %p227
      %p229 = scmp.le.s32.totalorder 1, %s17
      %p230 = scmp.lt.s32.totalorder %s17, 3
      %p231 = pnand %p229, %p230
      %p232 = pneg %p231
      // Predicated region
      $region9: #{_lambda_.3} parent=5 // pred_check
        _
      $region10: #{_lambda_.3} parent=5 // pred_check_branch
        %234 = sbr.rel (%p231) target = $region12
      $region11: #{_lambda_.3} parent=5 // pred_region
        %s235 = ssub.s32 %s17, 1
        // Predicated region
        $region13: #{_lambda_.3} parent=11 // pred_check
          %p236 = pneg %p64
        $region14: #{_lambda_.3} parent=11 // pred_check_branch
          %238 = sbr.rel (%p236) target = $region16
        $region15: #{_lambda_.3} parent=11 // pred_region
          %s240 = ssub.s32 9216, 9216
          %241 = vsyncadd [#allocation4], %s240
          %s242 = sshll.u32 [#allocation3], 4
          %s243 = int_to_ptr.vmem [resolvable:$true] %s242
          %248 = dma.hbm_to_vmem [thread:$0]  %s1, 9216, %s243, [#allocation4], 64, 64, 4
        $region16: #{_lambda_.3} parent=11 // pred_fallthru
          _
        // Predicated region
        $region17: #{_lambda_.3} parent=11 // pred_check
          %p249 = pneg %p85
        $region18: #{_lambda_.3} parent=11 // pred_check_branch
          %251 = sbr.rel (%p249) target = $region20
        $region19: #{_lambda_.3} parent=11 // pred_region
          _
        $region20: #{_lambda_.3} parent=11 // pred_fallthru
          _
        // Predicated region
        $region21: #{_lambda_.3} parent=11 // pred_check
          %p252 = pneg %p106
        $region22: #{_lambda_.3} parent=11 // pred_check_branch
          %254 = sbr.rel (%p252) target = $region24
        $region23: #{_lambda_.3} parent=11 // pred_region
          %s256 = ssub.s32 9216, 9216
          %257 = vsyncadd [#allocation6], %s256
          %s258 = sshll.u32 [#allocation5], 4
          %s259 = int_to_ptr.vmem [resolvable:$true] %s258
          %264 = dma.hbm_to_vmem [thread:$0]  %s3, 9216, %s259, [#allocation6], 64, 64, 4
        $region24: #{_lambda_.3} parent=11 // pred_fallthru
          _
        // Predicated region
        $region25: #{_lambda_.3} parent=11 // pred_check
          %p265 = pneg %p127
        $region26: #{_lambda_.3} parent=11 // pred_check_branch
          %267 = sbr.rel (%p265) target = $region28
        $region27: #{_lambda_.3} parent=11 // pred_region
          _
        $region28: #{_lambda_.3} parent=11 // pred_fallthru
          _
        // Predicated region
        $region29: #{_lambda_.3} parent=11 // pred_check
          %p268 = pneg %p148
        $region30: #{_lambda_.3} parent=11 // pred_check_branch
          %270 = sbr.rel (%p268) target = $region32
        $region31: #{_lambda_.3} parent=11 // pred_region
          %s272 = ssub.s32 1024, 1024
          %273 = vsyncadd [#allocation6], %s272
          %s274 = sshll.u32 [#allocation7], 4
          %s275 = int_to_ptr.vmem [resolvable:$true] %s274
          %280 = dma.hbm_to_vmem [thread:$0]  %s5, 1024, %s275, [#allocation6], 64, 64, 4
        $region32: #{_lambda_.3} parent=11 // pred_fallthru
          _
        // Predicated region
        $region33: #{_lambda_.3} parent=11 // pred_check
          %p281 = pneg %p169
        $region34: #{_lambda_.3} parent=11 // pred_check_branch
          %283 = sbr.rel (%p281) target = $region36
        $region35: #{_lambda_.3} parent=11 // pred_region
          _
        $region36: #{_lambda_.3} parent=11 // pred_fallthru
          _
      $region12: #{_lambda_.3} parent=5 // pred_fallthru
        _
      %p284 = scmp.lt.s32.totalorder %s17, 2
      // Predicated region
      $region37: #{_lambda_.3} parent=5 // pred_check
        %p285 = pneg %p284
      $region38: #{_lambda_.3} parent=5 // pred_check_branch
        %287 = sbr.rel (%p285) target = $region40
      $region39: #{_lambda_.3} parent=5 // pred_region
        // Predicated region
        $region41: #{_lambda_.3} parent=39 // pred_check
          %p288 = pneg %p37
        $region42: #{_lambda_.3} parent=39 // pred_check_branch
          %290 = sbr.rel (%p288) target = $region44
        $region43: #{_lambda_.3} parent=39 // pred_region
          %p291 = scmp.lt.s32.totalorder %s17, 1
          %s292 = scalar_select %p291, %s17, 1
          %s293 = smul.addr %s292, 54
          %s294 = smul.addr %s293, 8
          %s295 = scalar_lea.vmem %s0, %s294
        $region44: #{_lambda_.3} parent=39 // pred_fallthru
          _
      $region40: #{_lambda_.3} parent=5 // pred_fallthru
        _
      %p296 = scmp.le.s32.totalorder 1, %s17
      %p297 = scmp.lt.s32.totalorder %s17, 3
      %p298 = pnand %p296, %p297
      %p299 = pneg %p298
      // Predicated region
      $region45: #{_lambda_.3} parent=5 // pred_check
        _
      $region46: #{_lambda_.3} parent=5 // pred_check_branch
        %301 = sbr.rel (%p298) target = $region48
      $region47: #{_lambda_.3} parent=5 // pred_region
        %s302 = ssub.s32 %s17, 1
        // Predicated region
        $region49: #{_lambda_.3} parent=47 // pred_check
          %p303 = pneg %p64
        $region50: #{_lambda_.3} parent=47 // pred_check_branch
          %305 = sbr.rel (%p303) target = $region52
        $region51: #{_lambda_.3} parent=47 // pred_region
          %306 = dma.done [#allocation4], 9216
        $region52: #{_lambda_.3} parent=47 // pred_fallthru
          _
        // Predicated region
        $region53: #{_lambda_.3} parent=47 // pred_check
          %p307 = pneg %p106
        $region54: #{_lambda_.3} parent=47 // pred_check_branch
          %309 = sbr.rel (%p307) target = $region56
        $region55: #{_lambda_.3} parent=47 // pred_region
          %310 = dma.done [#allocation6], 9216
        $region56: #{_lambda_.3} parent=47 // pred_fallthru
          _
        // Predicated region
        $region57: #{_lambda_.3} parent=47 // pred_check
          %p311 = pneg %p148
        $region58: #{_lambda_.3} parent=47 // pred_check_branch
          %313 = sbr.rel (%p311) target = $region60
        $region59: #{_lambda_.3} parent=47 // pred_region
          %314 = dma.done [#allocation6], 1024
        $region60: #{_lambda_.3} parent=47 // pred_fallthru
          _
        %p315 = scmp.lt.s32.totalorder %s22, 1
        %s316 = scalar_select %p315, %s22, 1
        %s317 = smul.addr %s316, 54
        %s318 = smul.addr %s317, 8
        %s319 = scalar_lea.vmem %s0, %s318
        %p320 = pneg %p43
        %p321 = pneg %p40
        %p322 = pneg %p64
        %p323 = pneg %p61
        %p324 = pneg %p85
        %p325 = pneg %p82
        %p326 = pneg %p106
        %p327 = pneg %p103
        %p328 = pneg %p127
        %p329 = pneg %p124
        %p330 = pneg %p148
        %p331 = pneg %p145
        %p332 = pneg %p169
        %p333 = pneg %p166
        %p334 = pneg %p195
        %p335 = pneg %p192
        %p336 = scmp.lt.s32.totalorder %s22, 1
        %s337 = scalar_select %p336, %s22, 1
        %s338 = smul.addr %s337, 32
        %s339 = smul.addr %s338, 8
        %s340 = scalar_lea.vmem %s7, %s339
        %p341 = pneg %p221
        %p342 = pneg %p218
        %p343 = scmp.lt.s32.totalorder %s22, 1
        %s344 = scalar_select %p343, %s22, 1
        %s345 = smul.addr %s344, 32
        %s346 = smul.addr %s345, 8
        %s347 = scalar_lea.vmem %s8, %s346
        %p348 = scmp.lt.s32.totalorder %s22, 1
        %s349 = scalar_select %p348, %s22, 1
        %s350 = smul.addr %s349, 54
        %s351 = smul.addr %s350, 8
        %s352 = scalar_lea.vmem %s0, %s351
        %p353 = scmp.lt.s32.totalorder %s22, 1
        %s354 = scalar_select %p353, %s22, 1
        %s355 = smul.addr %s354, 32
        %s356 = smul.addr %s355, 8
        %s357 = scalar_lea.vmem %s7, %s356
        %p358 = scmp.lt.s32.totalorder %s22, 1
        %s359 = scalar_select %p358, %s22, 1
        %s360 = smul.addr %s359, 32
        %s361 = smul.addr %s360, 8
        %s362 = scalar_lea.vmem %s8, %s361
        %v364 = vld [vmem:[%s352] sm:$0xff]
        %v365 = vld [vmem:[%s352 + $0x8] sm:$0xff]
        %v366 = vld [vmem:[%s352 + $0x10] sm:$0x3]
        %v367 = vld [vmem:[%s352 + $0x18] sm:$0xff]
        %v368 = vld [vmem:[%s352 + $0x20] sm:$0xff]
        %v369 = vld [vmem:[%s352 + $0x28] sm:$0x3]
        %v370 = vld [vmem:[%s352 + $0x30] sm:$0xff]
        %v371 = vld [vmem:[%s352 + $0x38] sm:$0xff]
        %v372 = vld [vmem:[%s352 + $0x40] sm:$0x3]
        %v373 = vld [vmem:[%s352 + $0x48] sm:$0xff]
        %v374 = vld [vmem:[%s352 + $0x50] sm:$0xff]
        %v375 = vld [vmem:[%s352 + $0x58] sm:$0x3]
        %v376 = vld [vmem:[%s352 + $0x60] sm:$0xff]
        %v377 = vld [vmem:[%s352 + $0x68] sm:$0xff]
        %v378 = vld [vmem:[%s352 + $0x70] sm:$0x3]
        %v379 = vld [vmem:[%s352 + $0x78] sm:$0xff]
        %v380 = vld [vmem:[%s352 + $0x80] sm:$0xff]
        %v381 = vld [vmem:[%s352 + $0x88] sm:$0x3]
        %v382 = vld [vmem:[%s352 + $0x90] sm:$0xff]
        %v383 = vld [vmem:[%s352 + $0x98] sm:$0xff]
        %v384 = vld [vmem:[%s352 + $0xa0] sm:$0x3]
        %v385 = vld [vmem:[%s352 + $0xa8] sm:$0xff]
        %v386 = vld [vmem:[%s352 + $0xb0] sm:$0xff]
        %v387 = vld [vmem:[%s352 + $0xb8] sm:$0x3]
        %v388 = vld [vmem:[%s352 + $0xc0] sm:$0xff]
        %v389 = vld [vmem:[%s352 + $0xc8] sm:$0xff]
        %v390 = vld [vmem:[%s352 + $0xd0] sm:$0x3]
        %v391 = vld [vmem:[%s352 + $0xd8] sm:$0xff]
        %v392 = vld [vmem:[%s352 + $0xe0] sm:$0xff]
        %v393 = vld [vmem:[%s352 + $0xe8] sm:$0x3]
        %v394 = vld [vmem:[%s352 + $0xf0] sm:$0xff]
        %v395 = vld [vmem:[%s352 + $0xf8] sm:$0xff]
        %v396 = vld [vmem:[%s352 + $0x100] sm:$0x3]
        %v397 = vld [vmem:[%s352 + $0x108] sm:$0xff]
        %v398 = vld [vmem:[%s352 + $0x110] sm:$0xff]
        %v399 = vld [vmem:[%s352 + $0x118] sm:$0x3]
        %v400 = vld [vmem:[%s352 + $0x120] sm:$0xff]
        %v401 = vld [vmem:[%s352 + $0x128] sm:$0xff]
        %v402 = vld [vmem:[%s352 + $0x130] sm:$0x3]
        %v403 = vld [vmem:[%s352 + $0x138] sm:$0xff]
        %v404 = vld [vmem:[%s352 + $0x140] sm:$0xff]
        %v405 = vld [vmem:[%s352 + $0x148] sm:$0x3]
        %v406 = vld [vmem:[%s352 + $0x150] sm:$0xff]
        %v407 = vld [vmem:[%s352 + $0x158] sm:$0xff]
        %v408 = vld [vmem:[%s352 + $0x160] sm:$0x3]
        %v409 = vld [vmem:[%s352 + $0x168] sm:$0xff]
        %v410 = vld [vmem:[%s352 + $0x170] sm:$0xff]
        %v411 = vld [vmem:[%s352 + $0x178] sm:$0x3]
        %v412 = vld [vmem:[%s352 + $0x180] sm:$0xff]
        %v413 = vld [vmem:[%s352 + $0x188] sm:$0xff]
        %v414 = vld [vmem:[%s352 + $0x190] sm:$0x3]
        %v415 = vld [vmem:[%s352 + $0x198] sm:$0xff]
        %v416 = vld [vmem:[%s352 + $0x1a0] sm:$0xff]
        %v417 = vld [vmem:[%s352 + $0x1a8] sm:$0x3]
        %v418 = vld [vmem:[%s2] sm:$0x1]
        %vm467 = vcmask 1046528
        %v468 = vrot.slane %v364, 1
        %v469 = vrot.slane %v365, 1
        %v470 = vsel %vm467, %v468, %v469
        %v471 = vrot.slane %v366, 1
        %v472 = vsel %vm467, %v469, %v471
        %v473 = vrot.slane %v367, 1
        %v474 = vrot.slane %v368, 1
        %v475 = vsel %vm467, %v473, %v474
        %v476 = vrot.slane %v369, 1
        %v477 = vsel %vm467, %v474, %v476
        %v478 = vrot.slane %v370, 1
        %v479 = vrot.slane %v371, 1
        %v480 = vsel %vm467, %v478, %v479
        %v481 = vrot.slane %v372, 1
        %v482 = vsel %vm467, %v479, %v481
        %v483 = vrot.slane %v373, 1
        %v484 = vrot.slane %v374, 1
        %v485 = vsel %vm467, %v483, %v484
        %v486 = vrot.slane %v375, 1
        %v487 = vsel %vm467, %v484, %v486
        %v488 = vrot.slane %v376, 1
        %v489 = vrot.slane %v377, 1
        %v490 = vsel %vm467, %v488, %v489
        %v491 = vrot.slane %v378, 1
        %v492 = vsel %vm467, %v489, %v491
        %v493 = vrot.slane %v379, 1
        %v494 = vrot.slane %v380, 1
        %v495 = vsel %vm467, %v493, %v494
        %v496 = vrot.slane %v381, 1
        %v497 = vsel %vm467, %v494, %v496
        %v498 = vrot.slane %v382, 1
        %v499 = vrot.slane %v383, 1
        %v500 = vsel %vm467, %v498, %v499
        %v501 = vrot.slane %v384, 1
        %v502 = vsel %vm467, %v499, %v501
        %v503 = vrot.slane %v385, 1
        %v504 = vrot.slane %v386, 1
        %v505 = vsel %vm467, %v503, %v504
        %v506 = vrot.slane %v387, 1
        %v507 = vsel %vm467, %v504, %v506
        %v508 = vrot.slane %v388, 1
        %v509 = vrot.slane %v389, 1
        %v510 = vsel %vm467, %v508, %v509
        %v511 = vrot.slane %v390, 1
        %v512 = vsel %vm467, %v509, %v511
        %v513 = vrot.slane %v391, 1
        %v514 = vrot.slane %v392, 1
        %v515 = vsel %vm467, %v513, %v514
        %v516 = vrot.slane %v393, 1
        %v517 = vsel %vm467, %v514, %v516
        %v518 = vrot.slane %v394, 1
        %v519 = vrot.slane %v395, 1
        %v520 = vsel %vm467, %v518, %v519
        %v521 = vrot.slane %v396, 1
        %v522 = vsel %vm467, %v519, %v521
        %v523 = vrot.slane %v397, 1
        %v524 = vrot.slane %v398, 1
        %v525 = vsel %vm467, %v523, %v524
        %v526 = vrot.slane %v399, 1
        %v527 = vsel %vm467, %v524, %v526
        %v528 = vrot.slane %v400, 1
        %v529 = vrot.slane %v401, 1
        %v530 = vsel %vm467, %v528, %v529
        %v531 = vrot.slane %v402, 1
        %v532 = vsel %vm467, %v529, %v531
        %v533 = vrot.slane %v403, 1
        %v534 = vrot.slane %v404, 1
        %v535 = vsel %vm467, %v533, %v534
        %v536 = vrot.slane %v405, 1
        %v537 = vsel %vm467, %v534, %v536
        %v538 = vrot.slane %v406, 1
        %v539 = vrot.slane %v407, 1
        %v540 = vsel %vm467, %v538, %v539
        %v541 = vrot.slane %v408, 1
        %v542 = vsel %vm467, %v539, %v541
        %v543 = vrot.slane %v409, 1
        %v544 = vrot.slane %v410, 1
        %v545 = vsel %vm467, %v543, %v544
        %v546 = vrot.slane %v411, 1
        %v547 = vsel %vm467, %v544, %v546
        %vm580 = vcmask 1045504
        %v581 = vrot.slane %v364, 2
        %v582 = vrot.slane %v365, 2
        %v583 = vsel %vm580, %v581, %v582
        %v584 = vrot.slane %v366, 2
        %v585 = vsel %vm580, %v582, %v584
        %v586 = vrot.slane %v367, 2
        %v587 = vrot.slane %v368, 2
        %v588 = vsel %vm580, %v586, %v587
        %v589 = vrot.slane %v369, 2
        %v590 = vsel %vm580, %v587, %v589
        %v591 = vrot.slane %v370, 2
        %v592 = vrot.slane %v371, 2
        %v593 = vsel %vm580, %v591, %v592
        %v594 = vrot.slane %v372, 2
        %v595 = vsel %vm580, %v592, %v594
        %v596 = vrot.slane %v373, 2
        %v597 = vrot.slane %v374, 2
        %v598 = vsel %vm580, %v596, %v597
        %v599 = vrot.slane %v375, 2
        %v600 = vsel %vm580, %v597, %v599
        %v601 = vrot.slane %v376, 2
        %v602 = vrot.slane %v377, 2
        %v603 = vsel %vm580, %v601, %v602
        %v604 = vrot.slane %v378, 2
        %v605 = vsel %vm580, %v602, %v604
        %v606 = vrot.slane %v379, 2
        %v607 = vrot.slane %v380, 2
        %v608 = vsel %vm580, %v606, %v607
        %v609 = vrot.slane %v381, 2
        %v610 = vsel %vm580, %v607, %v609
        %v611 = vrot.slane %v382, 2
        %v612 = vrot.slane %v383, 2
        %v613 = vsel %vm580, %v611, %v612
        %v614 = vrot.slane %v384, 2
        %v615 = vsel %vm580, %v612, %v614
        %v616 = vrot.slane %v385, 2
        %v617 = vrot.slane %v386, 2
        %v618 = vsel %vm580, %v616, %v617
        %v619 = vrot.slane %v387, 2
        %v620 = vsel %vm580, %v617, %v619
        %v621 = vrot.slane %v388, 2
        %v622 = vrot.slane %v389, 2
        %v623 = vsel %vm580, %v621, %v622
        %v624 = vrot.slane %v390, 2
        %v625 = vsel %vm580, %v622, %v624
        %v626 = vrot.slane %v391, 2
        %v627 = vrot.slane %v392, 2
        %v628 = vsel %vm580, %v626, %v627
        %v629 = vrot.slane %v393, 2
        %v630 = vsel %vm580, %v627, %v629
        %v631 = vrot.slane %v394, 2
        %v632 = vrot.slane %v395, 2
        %v633 = vsel %vm580, %v631, %v632
        %v634 = vrot.slane %v396, 2
        %v635 = vsel %vm580, %v632, %v634
        %v636 = vrot.slane %v397, 2
        %v637 = vrot.slane %v398, 2
        %v638 = vsel %vm580, %v636, %v637
        %v639 = vrot.slane %v399, 2
        %v640 = vsel %vm580, %v637, %v639
        %v641 = vrot.slane %v400, 2
        %v642 = vrot.slane %v401, 2
        %v643 = vsel %vm580, %v641, %v642
        %v644 = vrot.slane %v402, 2
        %v645 = vsel %vm580, %v642, %v644
        %v646 = vrot.slane %v403, 2
        %v647 = vrot.slane %v404, 2
        %v648 = vsel %vm580, %v646, %v647
        %v649 = vrot.slane %v405, 2
        %v650 = vsel %vm580, %v647, %v649
        %v651 = vrot.slane %v406, 2
        %v652 = vrot.slane %v407, 2
        %v653 = vsel %vm580, %v651, %v652
        %v654 = vrot.slane %v408, 2
        %v655 = vsel %vm580, %v652, %v654
        %v656 = vrot.slane %v409, 2
        %v657 = vrot.slane %v410, 2
        %v658 = vsel %vm580, %v656, %v657
        %v659 = vrot.slane %v411, 2
        %v660 = vsel %vm580, %v657, %v659
        %v696 = vrot.slane %v412, 1
        %v697 = vrot.slane %v413, 1
        %v698 = vsel %vm467, %v696, %v697
        %v699 = vrot.slane %v414, 1
        %v700 = vsel %vm467, %v697, %v699
        %v703 = vrot.slane %v412, 2
        %v704 = vrot.slane %v413, 2
        %v705 = vsel %vm580, %v703, %v704
        %v706 = vrot.slane %v414, 2
        %v707 = vsel %vm580, %v704, %v706
        %v713 = vrot.slane %v415, 1
        %v714 = vrot.slane %v416, 1
        %v715 = vsel %vm467, %v713, %v714
        %v716 = vrot.slane %v417, 1
        %v717 = vsel %vm467, %v714, %v716
        %v720 = vrot.slane %v415, 2
        %v721 = vrot.slane %v416, 2
        %v722 = vsel %vm580, %v720, %v721
        %v723 = vrot.slane %v417, 2
        %v724 = vsel %vm580, %v721, %v723
        %v727 = vpack.c.bf16 %v365, %v364
        %v728 = vpack.c.bf16 %v472, %v470
        %v729 = vpack.c.bf16 %v585, %v583
        %v730 = vpack.c.bf16 %v368, %v367
        %v731 = vpack.c.bf16 %v477, %v475
        %v732 = vpack.c.bf16 %v590, %v588
        %v733 = vpack.c.bf16 %v371, %v370
        %v734 = vpack.c.bf16 %v482, %v480
        %v735 = vpack.c.bf16 %v595, %v593
        %v736 = vpack.c.bf16 %v374, %v373
        %v737 = vpack.c.bf16 %v487, %v485
        %v738 = vpack.c.bf16 %v600, %v598
        %v739 = vpack.c.bf16 %v377, %v376
        %v740 = vpack.c.bf16 %v492, %v490
        %v741 = vpack.c.bf16 %v605, %v603
        %v742 = vpack.c.bf16 %v380, %v379
        %v743 = vpack.c.bf16 %v497, %v495
        %v744 = vpack.c.bf16 %v610, %v608
        %v745 = vpack.c.bf16 %v383, %v382
        %v746 = vpack.c.bf16 %v502, %v500
        %v747 = vpack.c.bf16 %v615, %v613
        %v748 = vpack.c.bf16 %v386, %v385
        %v749 = vpack.c.bf16 %v507, %v505
        %v750 = vpack.c.bf16 %v620, %v618
        %v751 = vpack.c.bf16 %v389, %v388
        %v752 = vpack.c.bf16 %v512, %v510
        %v753 = vpack.c.bf16 %v625, %v623
        %v754 = vpack.c.bf16 %v392, %v391
        %v755 = vpack.c.bf16 %v517, %v515
        %v756 = vpack.c.bf16 %v630, %v628
        %v757 = vpack.c.bf16 %v395, %v394
        %v758 = vpack.c.bf16 %v522, %v520
        %v759 = vpack.c.bf16 %v635, %v633
        %v760 = vpack.c.bf16 %v398, %v397
        %v761 = vpack.c.bf16 %v527, %v525
        %v762 = vpack.c.bf16 %v640, %v638
        %v763 = vpack.c.bf16 %v401, %v400
        %v764 = vpack.c.bf16 %v532, %v530
        %v765 = vpack.c.bf16 %v645, %v643
        %v766 = vpack.c.bf16 %v404, %v403
        %v767 = vpack.c.bf16 %v537, %v535
        %v768 = vpack.c.bf16 %v650, %v648
        %v769 = vpack.c.bf16 %v407, %v406
        %v770 = vpack.c.bf16 %v542, %v540
        %v771 = vpack.c.bf16 %v655, %v653
        %v772 = vpack.c.bf16 %v410, %v409
        %v773 = vpack.c.bf16 %v547, %v545
        %v774 = vpack.c.bf16 %v660, %v658
        %v775 = vpack.c.bf16 %v413, %v412
        %v776 = vpack.c.bf16 %v700, %v698
        %v777 = vpack.c.bf16 %v707, %v705
        %v778 = vpack.c.bf16 %v416, %v415
        %v779 = vpack.c.bf16 %v717, %v715
        %v780 = vpack.c.bf16 %v724, %v722
        %v781 = vld [vmem:[#allocation3] sm:$0xf]
        %v782 = vld [vmem:[#allocation3 + $0x4] sm:$0xf]
        %v783 = vld [vmem:[#allocation3 + $0x8] sm:$0xf]
        %v784 = vld [vmem:[#allocation3 + $0xc] sm:$0xf]
        %v785 = vld [vmem:[#allocation3 + $0x10] sm:$0xf]
        %v786 = vld [vmem:[#allocation3 + $0x14] sm:$0xf]
        %v787 = vld [vmem:[#allocation3 + $0x18] sm:$0xf]
        %v788 = vld [vmem:[#allocation3 + $0x1c] sm:$0xf]
        %v789 = vld [vmem:[#allocation3 + $0x20] sm:$0xf]
        %v790 = vld [vmem:[#allocation3 + $0x24] sm:$0xf]
        %v791 = vld [vmem:[#allocation3 + $0x28] sm:$0xf]
        %v792 = vld [vmem:[#allocation3 + $0x2c] sm:$0xf]
        %v793 = vld [vmem:[#allocation3 + $0x30] sm:$0xf]
        %v794 = vld [vmem:[#allocation3 + $0x34] sm:$0xf]
        %v795 = vld [vmem:[#allocation3 + $0x38] sm:$0xf]
        %v796 = vld [vmem:[#allocation3 + $0x3c] sm:$0xf]
        %v797 = vld [vmem:[#allocation3 + $0x40] sm:$0xf]
        %v798 = vld [vmem:[#allocation3 + $0x44] sm:$0xf]
        %v799 = vld [vmem:[#allocation3 + $0x48] sm:$0xf]
        %v800 = vld [vmem:[#allocation3 + $0x4c] sm:$0xf]
        %v801 = vld [vmem:[#allocation3 + $0x50] sm:$0xf]
        %v802 = vld [vmem:[#allocation3 + $0x54] sm:$0xf]
        %v803 = vld [vmem:[#allocation3 + $0x58] sm:$0xf]
        %v804 = vld [vmem:[#allocation3 + $0x5c] sm:$0xf]
        %v805 = vld [vmem:[#allocation3 + $0x60] sm:$0xf]
        %v806 = vld [vmem:[#allocation3 + $0x64] sm:$0xf]
        %v807 = vld [vmem:[#allocation3 + $0x68] sm:$0xf]
        %v808 = vld [vmem:[#allocation3 + $0x6c] sm:$0xf]
        %v809 = vld [vmem:[#allocation3 + $0x70] sm:$0xf]
        %v810 = vld [vmem:[#allocation3 + $0x74] sm:$0xf]
        %v811 = vld [vmem:[#allocation3 + $0x78] sm:$0xf]
        %v812 = vld [vmem:[#allocation3 + $0x7c] sm:$0xf]
        %v813 = vld [vmem:[#allocation3 + $0x80] sm:$0xf]
        %v814 = vld [vmem:[#allocation3 + $0x84] sm:$0xf]
        %v815 = vld [vmem:[#allocation3 + $0x88] sm:$0xf]
        %v816 = vld [vmem:[#allocation3 + $0x8c] sm:$0xf]
        %v817 = vld [vmem:[#allocation3 + $0x90] sm:$0xf]
        %v818 = vld [vmem:[#allocation3 + $0x94] sm:$0xf]
        %v819 = vld [vmem:[#allocation3 + $0x98] sm:$0xf]
        %v820 = vld [vmem:[#allocation3 + $0x9c] sm:$0xf]
        %v821 = vld [vmem:[#allocation3 + $0xa0] sm:$0xf]
        %v822 = vld [vmem:[#allocation3 + $0xa4] sm:$0xf]
        %v823 = vld [vmem:[#allocation3 + $0xa8] sm:$0xf]
        %v824 = vld [vmem:[#allocation3 + $0xac] sm:$0xf]
        %v825 = vld [vmem:[#allocation3 + $0xb0] sm:$0xf]
        %v826 = vld [vmem:[#allocation3 + $0xb4] sm:$0xf]
        %v827 = vld [vmem:[#allocation3 + $0xb8] sm:$0xf]
        %v828 = vld [vmem:[#allocation3 + $0xbc] sm:$0xf]
        %v829 = vld [vmem:[#allocation3 + $0xc0] sm:$0xf]
        %v830 = vld [vmem:[#allocation3 + $0xc4] sm:$0xf]
        %v831 = vld [vmem:[#allocation3 + $0xc8] sm:$0xf]
        %v832 = vld [vmem:[#allocation3 + $0xcc] sm:$0xf]
        %v833 = vld [vmem:[#allocation3 + $0xd0] sm:$0xf]
        %v834 = vld [vmem:[#allocation3 + $0xd4] sm:$0xf]
        %v835 = vld [vmem:[#allocation3 + $0xd8] sm:$0xf]
        %v836 = vld [vmem:[#allocation3 + $0xdc] sm:$0xf]
        %v837 = vld [vmem:[#allocation3 + $0xe0] sm:$0xf]
        %v838 = vld [vmem:[#allocation3 + $0xe4] sm:$0xf]
        %v839 = vld [vmem:[#allocation3 + $0xe8] sm:$0xf]
        %v840 = vld [vmem:[#allocation3 + $0xec] sm:$0xf]
        %v841 = vld [vmem:[#allocation3 + $0xf0] sm:$0xf]
        %v842 = vld [vmem:[#allocation3 + $0xf4] sm:$0xf]
        %v843 = vld [vmem:[#allocation3 + $0xf8] sm:$0xf]
        %v844 = vld [vmem:[#allocation3 + $0xfc] sm:$0xf]
        %v845 = vld [vmem:[#allocation3 + $0x100] sm:$0xf]
        %v846 = vld [vmem:[#allocation3 + $0x104] sm:$0xf]
        %v847 = vld [vmem:[#allocation3 + $0x108] sm:$0xf]
        %v848 = vld [vmem:[#allocation3 + $0x10c] sm:$0xf]
        %v849 = vld [vmem:[#allocation3 + $0x110] sm:$0xf]
        %v850 = vld [vmem:[#allocation3 + $0x114] sm:$0xf]
        %v851 = vld [vmem:[#allocation3 + $0x118] sm:$0xf]
        %v852 = vld [vmem:[#allocation3 + $0x11c] sm:$0xf]
        %v853 = vld [vmem:[#allocation3 + $0x120] sm:$0xf]
        %v854 = vld [vmem:[#allocation3 + $0x124] sm:$0xf]
        %v855 = vld [vmem:[#allocation3 + $0x128] sm:$0xf]
        %v856 = vld [vmem:[#allocation3 + $0x12c] sm:$0xf]
        %v857 = vld [vmem:[#allocation3 + $0x130] sm:$0xf]
        %v858 = vld [vmem:[#allocation3 + $0x134] sm:$0xf]
        %v859 = vld [vmem:[#allocation3 + $0x138] sm:$0xf]
        %v860 = vld [vmem:[#allocation3 + $0x13c] sm:$0xf]
        %v861 = vld [vmem:[#allocation3 + $0x140] sm:$0xf]
        %v862 = vld [vmem:[#allocation3 + $0x144] sm:$0xf]
        %v863 = vld [vmem:[#allocation3 + $0x148] sm:$0xf]
        %v864 = vld [vmem:[#allocation3 + $0x14c] sm:$0xf]
        %v865 = vld [vmem:[#allocation3 + $0x150] sm:$0xf]
        %v866 = vld [vmem:[#allocation3 + $0x154] sm:$0xf]
        %v867 = vld [vmem:[#allocation3 + $0x158] sm:$0xf]
        %v868 = vld [vmem:[#allocation3 + $0x15c] sm:$0xf]
        %v869 = vld [vmem:[#allocation3 + $0x160] sm:$0xf]
        %v870 = vld [vmem:[#allocation3 + $0x164] sm:$0xf]
        %v871 = vld [vmem:[#allocation3 + $0x168] sm:$0xf]
        %v872 = vld [vmem:[#allocation3 + $0x16c] sm:$0xf]
        %v873 = vld [vmem:[#allocation3 + $0x170] sm:$0xf]
        %v874 = vld [vmem:[#allocation3 + $0x174] sm:$0xf]
        %v875 = vld [vmem:[#allocation3 + $0x178] sm:$0xf]
        %v876 = vld [vmem:[#allocation3 + $0x17c] sm:$0xf]
        %v877 = vld [vmem:[#allocation3 + $0x180] sm:$0xf]
        %v878 = vld [vmem:[#allocation3 + $0x184] sm:$0xf]
        %v879 = vld [vmem:[#allocation3 + $0x188] sm:$0xf]
        %v880 = vld [vmem:[#allocation3 + $0x18c] sm:$0xf]
        %v881 = vld [vmem:[#allocation3 + $0x190] sm:$0xf]
        %v882 = vld [vmem:[#allocation3 + $0x194] sm:$0xf]
        %v883 = vld [vmem:[#allocation3 + $0x198] sm:$0xf]
        %v884 = vld [vmem:[#allocation3 + $0x19c] sm:$0xf]
        %v885 = vld [vmem:[#allocation3 + $0x1a0] sm:$0xf]
        %v886 = vld [vmem:[#allocation3 + $0x1a4] sm:$0xf]
        %v887 = vld [vmem:[#allocation3 + $0x1a8] sm:$0xf]
        %v888 = vld [vmem:[#allocation3 + $0x1ac] sm:$0xf]
        %v889 = vld [vmem:[#allocation3 + $0x1b0] sm:$0xf]
        %v890 = vld [vmem:[#allocation3 + $0x1b4] sm:$0xf]
        %v891 = vld [vmem:[#allocation3 + $0x1b8] sm:$0xf]
        %v892 = vld [vmem:[#allocation3 + $0x1bc] sm:$0xf]
        %v893 = vld [vmem:[#allocation3 + $0x1c0] sm:$0xf]
        %v894 = vld [vmem:[#allocation3 + $0x1c4] sm:$0xf]
        %v895 = vld [vmem:[#allocation3 + $0x1c8] sm:$0xf]
        %v896 = vld [vmem:[#allocation3 + $0x1cc] sm:$0xf]
        %v897 = vld [vmem:[#allocation3 + $0x1d0] sm:$0xf]
        %v898 = vld [vmem:[#allocation3 + $0x1d4] sm:$0xf]
        %v899 = vld [vmem:[#allocation3 + $0x1d8] sm:$0xf]
        %v900 = vld [vmem:[#allocation3 + $0x1dc] sm:$0xf]
        %v901 = vld [vmem:[#allocation3 + $0x1e0] sm:$0xf]
        %v902 = vld [vmem:[#allocation3 + $0x1e4] sm:$0xf]
        %v903 = vld [vmem:[#allocation3 + $0x1e8] sm:$0xf]
        %v904 = vld [vmem:[#allocation3 + $0x1ec] sm:$0xf]
        %v905 = vld [vmem:[#allocation3 + $0x1f0] sm:$0xf]
        %v906 = vld [vmem:[#allocation3 + $0x1f4] sm:$0xf]
        %v907 = vld [vmem:[#allocation3 + $0x1f8] sm:$0xf]
        %v908 = vld [vmem:[#allocation3 + $0x1fc] sm:$0xf]
        %v909 = vld [vmem:[#allocation3 + $0x200] sm:$0xf]
        %v910 = vld [vmem:[#allocation3 + $0x204] sm:$0xf]
        %v911 = vld [vmem:[#allocation3 + $0x208] sm:$0xf]
        %v912 = vld [vmem:[#allocation3 + $0x20c] sm:$0xf]
        %v913 = vld [vmem:[#allocation3 + $0x210] sm:$0xf]
        %v914 = vld [vmem:[#allocation3 + $0x214] sm:$0xf]
        %v915 = vld [vmem:[#allocation3 + $0x218] sm:$0xf]
        %v916 = vld [vmem:[#allocation3 + $0x21c] sm:$0xf]
        %v917 = vld [vmem:[#allocation3 + $0x220] sm:$0xf]
        %v918 = vld [vmem:[#allocation3 + $0x224] sm:$0xf]
        %v919 = vld [vmem:[#allocation3 + $0x228] sm:$0xf]
        %v920 = vld [vmem:[#allocation3 + $0x22c] sm:$0xf]
        %v921 = vld [vmem:[#allocation3 + $0x230] sm:$0xf]
        %v922 = vld [vmem:[#allocation3 + $0x234] sm:$0xf]
        %v923 = vld [vmem:[#allocation3 + $0x238] sm:$0xf]
        %v924 = vld [vmem:[#allocation3 + $0x23c] sm:$0xf]
        %v926 = vlaneseq
        %v927 = vshrl.u32 %v926, 7
        %v928 = vsub.s32 0, %v927
        %v929 = vrot.slane %v418, %v928
        %v1075 = vunpack.c.l.b16 %v781
        %v1076 = vunpack.c.l.b16 %v782
        %v1077 = vunpack.c.l.b16 %v783
        %v1078 = vunpack.c.l.b16 %v784
        %v1079 = vunpack.c.l.b16 %v785
        %v1080 = vunpack.c.l.b16 %v786
        %v1081 = vunpack.c.l.b16 %v787
        %v1082 = vunpack.c.l.b16 %v788
        %v1083 = vunpack.c.l.b16 %v789
        %v1084 = vunpack.c.l.b16 %v790
        %v1085 = vunpack.c.l.b16 %v791
        %v1086 = vunpack.c.l.b16 %v792
        %v1087 = vunpack.c.l.b16 %v793
        %v1088 = vunpack.c.l.b16 %v794
        %v1089 = vunpack.c.l.b16 %v795
        %v1090 = vunpack.c.l.b16 %v796
        %v1091 = vunpack.c.l.b16 %v797
        %v1092 = vunpack.c.l.b16 %v798
        %v1093 = vunpack.c.l.b16 %v799
        %v1094 = vunpack.c.l.b16 %v800
        %v1095 = vunpack.c.l.b16 %v801
        %v1096 = vunpack.c.l.b16 %v802
        %v1097 = vunpack.c.l.b16 %v803
        %v1098 = vunpack.c.l.b16 %v804
        %v1099 = vunpack.c.l.b16 %v805
        %v1100 = vunpack.c.l.b16 %v806
        %v1101 = vunpack.c.l.b16 %v807
        %v1102 = vunpack.c.l.b16 %v808
        %v1103 = vunpack.c.l.b16 %v809
        %v1104 = vunpack.c.l.b16 %v810
        %v1105 = vunpack.c.l.b16 %v811
        %v1106 = vunpack.c.l.b16 %v812
        %v1107 = vunpack.c.l.b16 %v813
        %v1108 = vunpack.c.l.b16 %v814
        %v1109 = vunpack.c.l.b16 %v815
        %v1110 = vunpack.c.l.b16 %v816
        %v1111 = vunpack.c.l.b16 %v817
        %v1112 = vunpack.c.l.b16 %v818
        %v1113 = vunpack.c.l.b16 %v819
        %v1114 = vunpack.c.l.b16 %v820
        %v1115 = vunpack.c.l.b16 %v821
        %v1116 = vunpack.c.l.b16 %v822
        %v1117 = vunpack.c.l.b16 %v823
        %v1118 = vunpack.c.l.b16 %v824
        %v1119 = vunpack.c.l.b16 %v825
        %v1120 = vunpack.c.l.b16 %v826
        %v1121 = vunpack.c.l.b16 %v827
        %v1122 = vunpack.c.l.b16 %v828
        %v1123 = vunpack.c.l.b16 %v829
        %v1124 = vunpack.c.l.b16 %v830
        %v1125 = vunpack.c.l.b16 %v831
        %v1126 = vunpack.c.l.b16 %v832
        %v1127 = vunpack.c.l.b16 %v833
        %v1128 = vunpack.c.l.b16 %v834
        %v1129 = vunpack.c.l.b16 %v835
        %v1130 = vunpack.c.l.b16 %v836
        %v1131 = vunpack.c.l.b16 %v837
        %v1132 = vunpack.c.l.b16 %v838
        %v1133 = vunpack.c.l.b16 %v839
        %v1134 = vunpack.c.l.b16 %v840
        %v1135 = vunpack.c.l.b16 %v841
        %v1136 = vunpack.c.l.b16 %v842
        %v1137 = vunpack.c.l.b16 %v843
        %v1138 = vunpack.c.l.b16 %v844
        %v1139 = vunpack.c.l.b16 %v845
        %v1140 = vunpack.c.l.b16 %v846
        %v1141 = vunpack.c.l.b16 %v847
        %v1142 = vunpack.c.l.b16 %v848
        %v1143 = vunpack.c.l.b16 %v849
        %v1144 = vunpack.c.l.b16 %v850
        %v1145 = vunpack.c.l.b16 %v851
        %v1146 = vunpack.c.l.b16 %v852
        %v1147 = vunpack.c.l.b16 %v853
        %v1148 = vunpack.c.l.b16 %v854
        %v1149 = vunpack.c.l.b16 %v855
        %v1150 = vunpack.c.l.b16 %v856
        %v1151 = vunpack.c.l.b16 %v857
        %v1152 = vunpack.c.l.b16 %v858
        %v1153 = vunpack.c.l.b16 %v859
        %v1154 = vunpack.c.l.b16 %v860
        %v1155 = vunpack.c.l.b16 %v861
        %v1156 = vunpack.c.l.b16 %v862
        %v1157 = vunpack.c.l.b16 %v863
        %v1158 = vunpack.c.l.b16 %v864
        %v1159 = vunpack.c.l.b16 %v865
        %v1160 = vunpack.c.l.b16 %v866
        %v1161 = vunpack.c.l.b16 %v867
        %v1162 = vunpack.c.l.b16 %v868
        %v1163 = vunpack.c.l.b16 %v869
        %v1164 = vunpack.c.l.b16 %v870
        %v1165 = vunpack.c.l.b16 %v871
        %v1166 = vunpack.c.l.b16 %v872
        %v1167 = vunpack.c.l.b16 %v873
        %v1168 = vunpack.c.l.b16 %v874
        %v1169 = vunpack.c.l.b16 %v875
        %v1170 = vunpack.c.l.b16 %v876
        %v1171 = vunpack.c.l.b16 %v877
        %v1172 = vunpack.c.l.b16 %v878
        %v1173 = vunpack.c.l.b16 %v879
        %v1174 = vunpack.c.l.b16 %v880
        %v1175 = vunpack.c.l.b16 %v881
        %v1176 = vunpack.c.l.b16 %v882
        %v1177 = vunpack.c.l.b16 %v883
        %v1178 = vunpack.c.l.b16 %v884
        %v1179 = vunpack.c.l.b16 %v885
        %v1180 = vunpack.c.l.b16 %v886
        %v1181 = vunpack.c.l.b16 %v887
        %v1182 = vunpack.c.l.b16 %v888
        %v1183 = vunpack.c.l.b16 %v889
        %v1184 = vunpack.c.l.b16 %v890
        %v1185 = vunpack.c.l.b16 %v891
        %v1186 = vunpack.c.l.b16 %v892
        %v1187 = vunpack.c.l.b16 %v893
        %v1188 = vunpack.c.l.b16 %v894
        %v1189 = vunpack.c.l.b16 %v895
        %v1190 = vunpack.c.l.b16 %v896
        %v1191 = vunpack.c.l.b16 %v897
        %v1192 = vunpack.c.l.b16 %v898
        %v1193 = vunpack.c.l.b16 %v899
        %v1194 = vunpack.c.l.b16 %v900
        %v1195 = vunpack.c.l.b16 %v901
        %v1196 = vunpack.c.l.b16 %v902
        %v1197 = vunpack.c.l.b16 %v903
        %v1198 = vunpack.c.l.b16 %v904
        %v1199 = vunpack.c.l.b16 %v905
        %v1200 = vunpack.c.l.b16 %v906
        %v1201 = vunpack.c.l.b16 %v907
        %v1202 = vunpack.c.l.b16 %v908
        %v1203 = vunpack.c.l.b16 %v909
        %v1204 = vunpack.c.l.b16 %v910
        %v1205 = vunpack.c.l.b16 %v911
        %v1206 = vunpack.c.l.b16 %v912
        %v1207 = vunpack.c.l.b16 %v913
        %v1208 = vunpack.c.l.b16 %v914
        %v1209 = vunpack.c.l.b16 %v915
        %v1210 = vunpack.c.l.b16 %v916
        %v1211 = vunpack.c.l.b16 %v917
        %v1212 = vunpack.c.l.b16 %v918
        %v1213 = vunpack.c.l.b16 %v919
        %v1214 = vunpack.c.l.b16 %v920
        %v1215 = vunpack.c.l.b16 %v921
        %v1216 = vunpack.c.l.b16 %v922
        %v1217 = vunpack.c.l.b16 %v923
        %v1218 = vunpack.c.l.b16 %v924
        %v1219 = vpack.c.b16 %v1076, %v1075
        %v1220 = vpack.c.b16 %v1078, %v1077
        %v1221 = vpack.c.b16 %v1080, %v1079
        %v1222 = vpack.c.b16 %v1082, %v1081
        %v1223 = vpack.c.b16 %v1084, %v1083
        %v1224 = vpack.c.b16 %v1086, %v1085
        %v1225 = vpack.c.b16 %v1088, %v1087
        %v1226 = vpack.c.b16 %v1090, %v1089
        %v1227 = vpack.c.b16 %v1092, %v1091
        %v1228 = vpack.c.b16 %v1094, %v1093
        %v1229 = vpack.c.b16 %v1096, %v1095
        %v1230 = vpack.c.b16 %v1098, %v1097
        %v1231 = vpack.c.b16 %v1100, %v1099
        %v1232 = vpack.c.b16 %v1102, %v1101
        %v1233 = vpack.c.b16 %v1104, %v1103
        %v1234 = vpack.c.b16 %v1106, %v1105
        %v1235 = vpack.c.b16 %v1108, %v1107
        %v1236 = vpack.c.b16 %v1110, %v1109
        %v1237 = vpack.c.b16 %v1112, %v1111
        %v1238 = vpack.c.b16 %v1114, %v1113
        %v1239 = vpack.c.b16 %v1116, %v1115
        %v1240 = vpack.c.b16 %v1118, %v1117
        %v1241 = vpack.c.b16 %v1120, %v1119
        %v1242 = vpack.c.b16 %v1122, %v1121
        %v1243 = vpack.c.b16 %v1124, %v1123
        %v1244 = vpack.c.b16 %v1126, %v1125
        %v1245 = vpack.c.b16 %v1128, %v1127
        %v1246 = vpack.c.b16 %v1130, %v1129
        %v1247 = vpack.c.b16 %v1132, %v1131
        %v1248 = vpack.c.b16 %v1134, %v1133
        %v1249 = vpack.c.b16 %v1136, %v1135
        %v1250 = vpack.c.b16 %v1138, %v1137
        %v1251 = vpack.c.b16 %v1140, %v1139
        %v1252 = vpack.c.b16 %v1142, %v1141
        %v1253 = vpack.c.b16 %v1144, %v1143
        %v1254 = vpack.c.b16 %v1146, %v1145
        %v1255 = vpack.c.b16 %v1148, %v1147
        %v1256 = vpack.c.b16 %v1150, %v1149
        %v1257 = vpack.c.b16 %v1152, %v1151
        %v1258 = vpack.c.b16 %v1154, %v1153
        %v1259 = vpack.c.b16 %v1156, %v1155
        %v1260 = vpack.c.b16 %v1158, %v1157
        %v1261 = vpack.c.b16 %v1160, %v1159
        %v1262 = vpack.c.b16 %v1162, %v1161
        %v1263 = vpack.c.b16 %v1164, %v1163
        %v1264 = vpack.c.b16 %v1166, %v1165
        %v1265 = vpack.c.b16 %v1168, %v1167
        %v1266 = vpack.c.b16 %v1170, %v1169
        %v1267 = vpack.c.b16 %v1172, %v1171
        %v1268 = vpack.c.b16 %v1174, %v1173
        %v1269 = vpack.c.b16 %v1176, %v1175
        %v1270 = vpack.c.b16 %v1178, %v1177
        %v1271 = vpack.c.b16 %v1180, %v1179
        %v1272 = vpack.c.b16 %v1182, %v1181
        %v1273 = vpack.c.b16 %v1184, %v1183
        %v1274 = vpack.c.b16 %v1186, %v1185
        %v1275 = vpack.c.b16 %v1188, %v1187
        %v1276 = vpack.c.b16 %v1190, %v1189
        %v1277 = vpack.c.b16 %v1192, %v1191
        %v1278 = vpack.c.b16 %v1194, %v1193
        %v1279 = vpack.c.b16 %v1196, %v1195
        %v1280 = vpack.c.b16 %v1198, %v1197
        %v1281 = vpack.c.b16 %v1200, %v1199
        %v1282 = vpack.c.b16 %v1202, %v1201
        %v1283 = vpack.c.b16 %v1204, %v1203
        %v1284 = vpack.c.b16 %v1206, %v1205
        %v1285 = vpack.c.b16 %v1208, %v1207
        %v1286 = vpack.c.b16 %v1210, %v1209
        %v1287 = vpack.c.b16 %v1212, %v1211
        %v1288 = vpack.c.b16 %v1214, %v1213
        %v1289 = vpack.c.b16 %v1216, %v1215
        %v1290 = vpack.c.b16 %v1218, %v1217
        %1363 = vmatprep.subr.bf16.mxu0 0
        %1364 = vmatpush1.bf16.msra.mxu0 %v1219
        %1365 = vmatprep.subr.bf16.mxu0 0
        %1366 = vmatpush1.bf16.msra.mxu0 %v1220
        %1367 = vmatprep.subr.bf16.mxu0 0
        %1368 = vmatpush1.bf16.msra.mxu0 %v1221
        %1369 = vmatprep.subr.bf16.mxu0 0
        %1370 = vmatpush1.bf16.msra.mxu0 %v1222
        %1371 = vmatprep.subr.bf16.mxu0 0
        %1372 = vmatpush1.bf16.msra.mxu0 %v1223
        %1373 = vmatprep.subr.bf16.mxu0 0
        %1374 = vmatpush1.bf16.msra.mxu0 %v1224
        %1375 = vmatprep.subr.bf16.mxu0 0
        %1376 = vmatpush1.bf16.msra.mxu0 %v1225
        %1377 = vmatprep.subr.bf16.mxu0 0
        %1378 = vmatpush1.bf16.msra.mxu0 %v1226
        %1379 = vmatprep.subr.bf16.mxu0 0
        %1380 = vmatpush1.bf16.msra.mxu0 %v1227
        %1381 = vmatprep.subr.bf16.mxu0 0
        %1382 = vmatpush1.bf16.msra.mxu0 %v1228
        %1383 = vmatprep.subr.bf16.mxu0 0
        %1384 = vmatpush1.bf16.msra.mxu0 %v1229
        %1385 = vmatprep.subr.bf16.mxu0 0
        %1386 = vmatpush1.bf16.msra.mxu0 %v1230
        %1387 = vmatprep.subr.bf16.mxu0 0
        %1388 = vmatpush1.bf16.msra.mxu0 %v1231
        %1389 = vmatprep.subr.bf16.mxu0 0
        %1390 = vmatpush1.bf16.msra.mxu0 %v1232
        %1391 = vmatprep.subr.bf16.mxu0 0
        %1392 = vmatpush1.bf16.msra.mxu0 %v1233
        %1393 = vmatprep.subr.bf16.mxu0 0
        %1394 = vmatpush1.bf16.msra.mxu0 %v1234
        %1395 = vmatprep.mubr.bf16.mxu0 %v728
        %1396 = vmatmul.mubr.bf16.gmra.mrb[0].mxu0 %v727
        %v1397 = vpop.f32.mrb[0].mxu0
        %v1398 = vadd.f32 %v929, %v1397
        %v1399 = vpop.f32.mrb[0].mxu0
        %v1400 = vpop.f32.mrb[0].mxu0
        %v1401 = vadd.f32 %v929, %v1400
        %v1402 = vpop.f32.mrb[0].mxu0
        %1403 = vmatprep.mubr.bf16.mxu0 %v731
        %1404 = vmatmul.mubr.bf16.gmra.mrb[0].mxu0 %v730
        %v1405 = vpop.f32.mrb[0].mxu0
        %v1406 = vadd.f32 %v929, %v1405
        %v1407 = vpop.f32.mrb[0].mxu0
        %v1408 = vpop.f32.mrb[0].mxu0
        %v1409 = vadd.f32 %v929, %v1408
        %v1410 = vpop.f32.mrb[0].mxu0
        %1411 = vmatprep.mubr.bf16.mxu0 %v734
        %1412 = vmatmul.mubr.bf16.gmra.mrb[0].mxu0 %v733
        %v1413 = vpop.f32.mrb[0].mxu0
        %v1414 = vadd.f32 %v929, %v1413
        %v1415 = vpop.f32.mrb[0].mxu0
        %v1416 = vpop.f32.mrb[0].mxu0
        %v1417 = vadd.f32 %v929, %v1416
        %v1418 = vpop.f32.mrb[0].mxu0
        %1419 = vmatprep.mubr.bf16.mxu0 %v737
        %1420 = vmatmul.mubr.bf16.gmra.mrb[0].mxu0 %v736
        %v1421 = vpop.f32.mrb[0].mxu0
        %v1422 = vadd.f32 %v929, %v1421
        %v1423 = vpop.f32.mrb[0].mxu0
        %v1424 = vpop.f32.mrb[0].mxu0
        %v1425 = vadd.f32 %v929, %v1424
        %v1426 = vpop.f32.mrb[0].mxu0
        %1427 = vmatprep.mubr.bf16.mxu0 %v740
        %1428 = vmatmul.mubr.bf16.gmra.mrb[0].mxu0 %v739
        %v1429 = vpop.f32.mrb[0].mxu0
        %v1430 = vadd.f32 %v929, %v1429
        %v1431 = vpop.f32.mrb[0].mxu0
        %v1432 = vpop.f32.mrb[0].mxu0
        %v1433 = vadd.f32 %v929, %v1432
        %v1434 = vpop.f32.mrb[0].mxu0
        %1435 = vmatprep.mubr.bf16.mxu0 %v743
        %1436 = vmatmul.mubr.bf16.gmra.mrb[0].mxu0 %v742
        %v1437 = vpop.f32.mrb[0].mxu0
        %v1438 = vadd.f32 %v929, %v1437
        %v1439 = vpop.f32.mrb[0].mxu0
        %v1440 = vpop.f32.mrb[0].mxu0
        %v1441 = vadd.f32 %v929, %v1440
        %v1442 = vpop.f32.mrb[0].mxu0
        %1443 = vmatprep.mubr.bf16.mxu0 %v746
        %1444 = vmatmul.mubr.bf16.gmra.mrb[0].mxu0 %v745
        %v1445 = vpop.f32.mrb[0].mxu0
        %v1446 = vadd.f32 %v929, %v1445
        %v1447 = vpop.f32.mrb[0].mxu0
        %v1448 = vpop.f32.mrb[0].mxu0
        %v1449 = vadd.f32 %v929, %v1448
        %v1450 = vpop.f32.mrb[0].mxu0
        %1451 = vmatprep.mubr.bf16.mxu0 %v749
        %1452 = vmatmul.mubr.bf16.gmra.mrb[0].mxu0 %v748
        %v1453 = vpop.f32.mrb[0].mxu0
        %v1454 = vadd.f32 %v929, %v1453
        %v1455 = vpop.f32.mrb[0].mxu0
        %v1456 = vpop.f32.mrb[0].mxu0
        %v1457 = vadd.f32 %v929, %v1456
        %v1458 = vpop.f32.mrb[0].mxu0
        %1459 = vmatprep.mubr.bf16.mxu0 %v752
        %1460 = vmatmul.mubr.bf16.gmra.mrb[0].mxu0 %v751
        %v1461 = vpop.f32.mrb[0].mxu0
        %v1462 = vadd.f32 %v929, %v1461
        %v1463 = vpop.f32.mrb[0].mxu0
        %v1464 = vpop.f32.mrb[0].mxu0
        %v1465 = vadd.f32 %v929, %v1464
        %v1466 = vpop.f32.mrb[0].mxu0
        %1467 = vmatprep.mubr.bf16.mxu0 %v755
        %1468 = vmatmul.mubr.bf16.gmra.mrb[0].mxu0 %v754
        %v1469 = vpop.f32.mrb[0].mxu0
        %v1470 = vadd.f32 %v929, %v1469
        %v1471 = vpop.f32.mrb[0].mxu0
        %v1472 = vpop.f32.mrb[0].mxu0
        %v1473 = vadd.f32 %v929, %v1472
        %v1474 = vpop.f32.mrb[0].mxu0
        %1475 = vmatprep.mubr.bf16.mxu0 %v758
        %1476 = vmatmul.mubr.bf16.gmra.mrb[0].mxu0 %v757
        %v1477 = vpop.f32.mrb[0].mxu0
        %v1478 = vadd.f32 %v929, %v1477
        %v1479 = vpop.f32.mrb[0].mxu0
        %v1480 = vpop.f32.mrb[0].mxu0
        %v1481 = vadd.f32 %v929, %v1480
        %v1482 = vpop.f32.mrb[0].mxu0
        %1483 = vmatprep.mubr.bf16.mxu0 %v761
        %1484 = vmatmul.mubr.bf16.gmra.mrb[0].mxu0 %v760
        %v1485 = vpop.f32.mrb[0].mxu0
        %v1486 = vadd.f32 %v929, %v1485
        %v1487 = vpop.f32.mrb[0].mxu0
        %v1488 = vpop.f32.mrb[0].mxu0
        %v1489 = vadd.f32 %v929, %v1488
        %v1490 = vpop.f32.mrb[0].mxu0
        %1491 = vmatprep.mubr.bf16.mxu0 %v764
        %1492 = vmatmul.mubr.bf16.gmra.mrb[0].mxu0 %v763
        %v1493 = vpop.f32.mrb[0].mxu0
        %v1494 = vadd.f32 %v929, %v1493
        %v1495 = vpop.f32.mrb[0].mxu0
        %v1496 = vpop.f32.mrb[0].mxu0
        %v1497 = vadd.f32 %v929, %v1496
        %v1498 = vpop.f32.mrb[0].mxu0
        %1499 = vmatprep.mubr.bf16.mxu0 %v767
        %1500 = vmatmul.mubr.bf16.gmra.mrb[0].mxu0 %v766
        %v1501 = vpop.f32.mrb[0].mxu0
        %v1502 = vadd.f32 %v929, %v1501
        %v1503 = vpop.f32.mrb[0].mxu0
        %v1504 = vpop.f32.mrb[0].mxu0
        %v1505 = vadd.f32 %v929, %v1504
        %v1506 = vpop.f32.mrb[0].mxu0
        %1507 = vmatprep.mubr.bf16.mxu0 %v770
        %1508 = vmatmul.mubr.bf16.gmra.mrb[0].mxu0 %v769
        %v1509 = vpop.f32.mrb[0].mxu0
        %v1510 = vadd.f32 %v929, %v1509
        %v1511 = vpop.f32.mrb[0].mxu0
        %v1512 = vpop.f32.mrb[0].mxu0
        %v1513 = vadd.f32 %v929, %v1512
        %v1514 = vpop.f32.mrb[0].mxu0
        %1515 = vmatprep.mubr.bf16.mxu0 %v773
        %1516 = vmatmul.mubr.bf16.gmra.mrb[0].mxu0 %v772
        %v1517 = vpop.f32.mrb[0].mxu0
        %v1518 = vadd.f32 %v929, %v1517
        %v1519 = vpop.f32.mrb[0].mxu0
        %v1520 = vpop.f32.mrb[0].mxu0
        %v1521 = vadd.f32 %v929, %v1520
        %v1522 = vpop.f32.mrb[0].mxu0
        %1523 = vdwg.mxu0
        %1524 = vmatprep.subr.bf16.mxu0 0
        %1525 = vmatpush1.bf16.msra.mxu0 %v1235
        %1526 = vmatprep.subr.bf16.mxu0 0
        %1527 = vmatpush1.bf16.msra.mxu0 %v1236
        %1528 = vmatprep.subr.bf16.mxu0 0
        %1529 = vmatpush1.bf16.msra.mxu0 %v1237
        %1530 = vmatprep.subr.bf16.mxu0 0
        %1531 = vmatpush1.bf16.msra.mxu0 %v1238
        %1532 = vmatprep.subr.bf16.mxu0 0
        %1533 = vmatpush1.bf16.msra.mxu0 %v1239
        %1534 = vmatprep.subr.bf16.mxu0 0
        %1535 = vmatpush1.bf16.msra.mxu0 %v1240
        %1536 = vmatprep.subr.bf16.mxu0 0
        %1537 = vmatpush1.bf16.msra.mxu0 %v1241
        %1538 = vmatprep.subr.bf16.mxu0 0
        %1539 = vmatpush1.bf16.msra.mxu0 %v1242
        %1540 = vmatprep.subr.bf16.mxu0 0
        %1541 = vmatpush1.bf16.msra.mxu0 %v1243
        %1542 = vmatprep.subr.bf16.mxu0 0
        %1543 = vmatpush1.bf16.msra.mxu0 %v1244
        %1544 = vmatprep.subr.bf16.mxu0 0
        %1545 = vmatpush1.bf16.msra.mxu0 %v1245
        %1546 = vmatprep.subr.bf16.mxu0 0
        %1547 = vmatpush1.bf16.msra.mxu0 %v1246
        %1548 = vmatprep.subr.bf16.mxu0 0
        %1549 = vmatpush1.bf16.msra.mxu0 %v1247
        %1550 = vmatprep.subr.bf16.mxu0 0
        %1551 = vmatpush1.bf16.msra.mxu0 %v1248
        %1552 = vmatprep.subr.bf16.mxu0 0
        %1553 = vmatpush1.bf16.msra.mxu0 %v1249
        %1554 = vmatprep.subr.bf16.mxu0 0
        %1555 = vmatpush1.bf16.msra.mxu0 %v1250
        %1556 = vmatprep.mubr.bf16.mxu0 %v730
        %1557 = vmatmul.mubr.bf16.gmra.mrb[0].mxu0 %v729
        %v1558 = vpop.f32.mrb[0].mxu0
        %v1559 = vadd.f32 %v1398, %v1558
        %v1560 = vpop.f32.mrb[0].mxu0
        %v1561 = vpop.f32.mrb[0].mxu0
        %v1562 = vadd.f32 %v1401, %v1561
        %v1563 = vpop.f32.mrb[0].mxu0
        %1564 = vmatprep.mubr.bf16.mxu0 %v733
        %1565 = vmatmul.mubr.bf16.gmra.mrb[0].mxu0 %v732
        %v1566 = vpop.f32.mrb[0].mxu0
        %v1567 = vadd.f32 %v1406, %v1566
        %v1568 = vpop.f32.mrb[0].mxu0
        %v1569 = vpop.f32.mrb[0].mxu0
        %v1570 = vadd.f32 %v1409, %v1569
        %v1571 = vpop.f32.mrb[0].mxu0
        %1572 = vmatprep.mubr.bf16.mxu0 %v736
        %1573 = vmatmul.mubr.bf16.gmra.mrb[0].mxu0 %v735
        %v1574 = vpop.f32.mrb[0].mxu0
        %v1575 = vadd.f32 %v1414, %v1574
        %v1576 = vpop.f32.mrb[0].mxu0
        %v1577 = vpop.f32.mrb[0].mxu0
        %v1578 = vadd.f32 %v1417, %v1577
        %v1579 = vpop.f32.mrb[0].mxu0
        %1580 = vmatprep.mubr.bf16.mxu0 %v739
        %1581 = vmatmul.mubr.bf16.gmra.mrb[0].mxu0 %v738
        %v1582 = vpop.f32.mrb[0].mxu0
        %v1583 = vadd.f32 %v1422, %v1582
        %v1584 = vpop.f32.mrb[0].mxu0
        %v1585 = vpop.f32.mrb[0].mxu0
        %v1586 = vadd.f32 %v1425, %v1585
        %v1587 = vpop.f32.mrb[0].mxu0
        %1588 = vmatprep.mubr.bf16.mxu0 %v742
        %1589 = vmatmul.mubr.bf16.gmra.mrb[0].mxu0 %v741
        %v1590 = vpop.f32.mrb[0].mxu0
        %v1591 = vadd.f32 %v1430, %v1590
        %v1592 = vpop.f32.mrb[0].mxu0
        %v1593 = vpop.f32.mrb[0].mxu0
        %v1594 = vadd.f32 %v1433, %v1593
        %v1595 = vpop.f32.mrb[0].mxu0
        %1596 = vmatprep.mubr.bf16.mxu0 %v745
        %1597 = vmatmul.mubr.bf16.gmra.mrb[0].mxu0 %v744
        %v1598 = vpop.f32.mrb[0].mxu0
        %v1599 = vadd.f32 %v1438, %v1598
        %v1600 = vpop.f32.mrb[0].mxu0
        %v1601 = vpop.f32.mrb[0].mxu0
        %v1602 = vadd.f32 %v1441, %v1601
        %v1603 = vpop.f32.mrb[0].mxu0
        %1604 = vmatprep.mubr.bf16.mxu0 %v748
        %1605 = vmatmul.mubr.bf16.gmra.mrb[0].mxu0 %v747
        %v1606 = vpop.f32.mrb[0].mxu0
        %v1607 = vadd.f32 %v1446, %v1606
        %v1608 = vpop.f32.mrb[0].mxu0
        %v1609 = vpop.f32.mrb[0].mxu0
        %v1610 = vadd.f32 %v1449, %v1609
        %v1611 = vpop.f32.mrb[0].mxu0
        %1612 = vmatprep.mubr.bf16.mxu0 %v751
        %1613 = vmatmul.mubr.bf16.gmra.mrb[0].mxu0 %v750
        %v1614 = vpop.f32.mrb[0].mxu0
        %v1615 = vadd.f32 %v1454, %v1614
        %v1616 = vpop.f32.mrb[0].mxu0
        %v1617 = vpop.f32.mrb[0].mxu0
        %v1618 = vadd.f32 %v1457, %v1617
        %v1619 = vpop.f32.mrb[0].mxu0
        %1620 = vmatprep.mubr.bf16.mxu0 %v754
        %1621 = vmatmul.mubr.bf16.gmra.mrb[0].mxu0 %v753
        %v1622 = vpop.f32.mrb[0].mxu0
        %v1623 = vadd.f32 %v1462, %v1622
        %v1624 = vpop.f32.mrb[0].mxu0
        %v1625 = vpop.f32.mrb[0].mxu0
        %v1626 = vadd.f32 %v1465, %v1625
        %v1627 = vpop.f32.mrb[0].mxu0
        %1628 = vmatprep.mubr.bf16.mxu0 %v757
        %1629 = vmatmul.mubr.bf16.gmra.mrb[0].mxu0 %v756
        %v1630 = vpop.f32.mrb[0].mxu0
        %v1631 = vadd.f32 %v1470, %v1630
        %v1632 = vpop.f32.mrb[0].mxu0
        %v1633 = vpop.f32.mrb[0].mxu0
        %v1634 = vadd.f32 %v1473, %v1633
        %v1635 = vpop.f32.mrb[0].mxu0
        %1636 = vmatprep.mubr.bf16.mxu0 %v760
        %1637 = vmatmul.mubr.bf16.gmra.mrb[0].mxu0 %v759
        %v1638 = vpop.f32.mrb[0].mxu0
        %v1639 = vadd.f32 %v1478, %v1638
        %v1640 = vpop.f32.mrb[0].mxu0
        %v1641 = vpop.f32.mrb[0].mxu0
        %v1642 = vadd.f32 %v1481, %v1641
        %v1643 = vpop.f32.mrb[0].mxu0
        %1644 = vmatprep.mubr.bf16.mxu0 %v763
        %1645 = vmatmul.mubr.bf16.gmra.mrb[0].mxu0 %v762
        %v1646 = vpop.f32.mrb[0].mxu0
        %v1647 = vadd.f32 %v1486, %v1646
        %v1648 = vpop.f32.mrb[0].mxu0
        %v1649 = vpop.f32.mrb[0].mxu0
        %v1650 = vadd.f32 %v1489, %v1649
        %v1651 = vpop.f32.mrb[0].mxu0
        %1652 = vmatprep.mubr.bf16.mxu0 %v766
        %1653 = vmatmul.mubr.bf16.gmra.mrb[0].mxu0 %v765
        %v1654 = vpop.f32.mrb[0].mxu0
        %v1655 = vadd.f32 %v1494, %v1654
        %v1656 = vpop.f32.mrb[0].mxu0
        %v1657 = vpop.f32.mrb[0].mxu0
        %v1658 = vadd.f32 %v1497, %v1657
        %v1659 = vpop.f32.mrb[0].mxu0
        %1660 = vmatprep.mubr.bf16.mxu0 %v769
        %1661 = vmatmul.mubr.bf16.gmra.mrb[0].mxu0 %v768
        %v1662 = vpop.f32.mrb[0].mxu0
        %v1663 = vadd.f32 %v1502, %v1662
        %v1664 = vpop.f32.mrb[0].mxu0
        %v1665 = vpop.f32.mrb[0].mxu0
        %v1666 = vadd.f32 %v1505, %v1665
        %v1667 = vpop.f32.mrb[0].mxu0
        %1668 = vmatprep.mubr.bf16.mxu0 %v772
        %1669 = vmatmul.mubr.bf16.gmra.mrb[0].mxu0 %v771
        %v1670 = vpop.f32.mrb[0].mxu0
        %v1671 = vadd.f32 %v1510, %v1670
        %v1672 = vpop.f32.mrb[0].mxu0
        %v1673 = vpop.f32.mrb[0].mxu0
        %v1674 = vadd.f32 %v1513, %v1673
        %v1675 = vpop.f32.mrb[0].mxu0
        %1676 = vmatprep.mubr.bf16.mxu0 %v775
        %1677 = vmatmul.mubr.bf16.gmra.mrb[0].mxu0 %v774
        %v1678 = vpop.f32.mrb[0].mxu0
        %v1679 = vadd.f32 %v1518, %v1678
        %v1680 = vpop.f32.mrb[0].mxu0
        %v1681 = vpop.f32.mrb[0].mxu0
        %v1682 = vadd.f32 %v1521, %v1681
        %v1683 = vpop.f32.mrb[0].mxu0
        %1684 = vdwg.mxu0
        %1685 = vmatprep.subr.bf16.mxu0 0
        %1686 = vmatpush1.bf16.msra.mxu0 %v1251
        %1687 = vmatprep.subr.bf16.mxu0 0
        %1688 = vmatpush1.bf16.msra.mxu0 %v1252
        %1689 = vmatprep.subr.bf16.mxu0 0
        %1690 = vmatpush1.bf16.msra.mxu0 %v1253
        %1691 = vmatprep.subr.bf16.mxu0 0
        %1692 = vmatpush1.bf16.msra.mxu0 %v1254
        %1693 = vmatprep.subr.bf16.mxu0 0
        %1694 = vmatpush1.bf16.msra.mxu0 %v1255
        %1695 = vmatprep.subr.bf16.mxu0 0
        %1696 = vmatpush1.bf16.msra.mxu0 %v1256
        %1697 = vmatprep.subr.bf16.mxu0 0
        %1698 = vmatpush1.bf16.msra.mxu0 %v1257
        %1699 = vmatprep.subr.bf16.mxu0 0
        %1700 = vmatpush1.bf16.msra.mxu0 %v1258
        %1701 = vmatprep.subr.bf16.mxu0 0
        %1702 = vmatpush1.bf16.msra.mxu0 %v1259
        %1703 = vmatprep.subr.bf16.mxu0 0
        %1704 = vmatpush1.bf16.msra.mxu0 %v1260
        %1705 = vmatprep.subr.bf16.mxu0 0
        %1706 = vmatpush1.bf16.msra.mxu0 %v1261
        %1707 = vmatprep.subr.bf16.mxu0 0
        %1708 = vmatpush1.bf16.msra.mxu0 %v1262
        %1709 = vmatprep.subr.bf16.mxu0 0
        %1710 = vmatpush1.bf16.msra.mxu0 %v1263
        %1711 = vmatprep.subr.bf16.mxu0 0
        %1712 = vmatpush1.bf16.msra.mxu0 %v1264
        %1713 = vmatprep.subr.bf16.mxu0 0
        %1714 = vmatpush1.bf16.msra.mxu0 %v1265
        %1715 = vmatprep.subr.bf16.mxu0 0
        %1716 = vmatpush1.bf16.msra.mxu0 %v1266
        %1717 = vmatprep.mubr.bf16.mxu0 %v732
        %1718 = vmatmul.mubr.bf16.gmra.mrb[0].mxu0 %v731
        %v1719 = vpop.f32.mrb[0].mxu0
        %v1720 = vadd.f32 %v1559, %v1719
        %v1721 = vpop.f32.mrb[0].mxu0
        %v1722 = vpop.f32.mrb[0].mxu0
        %v1723 = vadd.f32 %v1562, %v1722
        %v1724 = vpop.f32.mrb[0].mxu0
        %1725 = vmatprep.mubr.bf16.mxu0 %v735
        %1726 = vmatmul.mubr.bf16.gmra.mrb[0].mxu0 %v734
        %v1727 = vpop.f32.mrb[0].mxu0
        %v1728 = vadd.f32 %v1567, %v1727
        %v1729 = vpop.f32.mrb[0].mxu0
        %v1730 = vpop.f32.mrb[0].mxu0
        %v1731 = vadd.f32 %v1570, %v1730
        %v1732 = vpop.f32.mrb[0].mxu0
        %1733 = vmatprep.mubr.bf16.mxu0 %v738
        %1734 = vmatmul.mubr.bf16.gmra.mrb[0].mxu0 %v737
        %v1735 = vpop.f32.mrb[0].mxu0
        %v1736 = vadd.f32 %v1575, %v1735
        %v1737 = vpop.f32.mrb[0].mxu0
        %v1738 = vpop.f32.mrb[0].mxu0
        %v1739 = vadd.f32 %v1578, %v1738
        %v1740 = vpop.f32.mrb[0].mxu0
        %1741 = vmatprep.mubr.bf16.mxu0 %v741
        %1742 = vmatmul.mubr.bf16.gmra.mrb[0].mxu0 %v740
        %v1743 = vpop.f32.mrb[0].mxu0
        %v1744 = vadd.f32 %v1583, %v1743
        %v1745 = vpop.f32.mrb[0].mxu0
        %v1746 = vpop.f32.mrb[0].mxu0
        %v1747 = vadd.f32 %v1586, %v1746
        %v1748 = vpop.f32.mrb[0].mxu0
        %1749 = vmatprep.mubr.bf16.mxu0 %v744
        %1750 = vmatmul.mubr.bf16.gmra.mrb[0].mxu0 %v743
        %v1751 = vpop.f32.mrb[0].mxu0
        %v1752 = vadd.f32 %v1591, %v1751
        %v1753 = vpop.f32.mrb[0].mxu0
        %v1754 = vpop.f32.mrb[0].mxu0
        %v1755 = vadd.f32 %v1594, %v1754
        %v1756 = vpop.f32.mrb[0].mxu0
        %1757 = vmatprep.mubr.bf16.mxu0 %v747
        %1758 = vmatmul.mubr.bf16.gmra.mrb[0].mxu0 %v746
        %v1759 = vpop.f32.mrb[0].mxu0
        %v1760 = vadd.f32 %v1599, %v1759
        %v1761 = vpop.f32.mrb[0].mxu0
        %v1762 = vpop.f32.mrb[0].mxu0
        %v1763 = vadd.f32 %v1602, %v1762
        %v1764 = vpop.f32.mrb[0].mxu0
        %1765 = vmatprep.mubr.bf16.mxu0 %v750
        %1766 = vmatmul.mubr.bf16.gmra.mrb[0].mxu0 %v749
        %v1767 = vpop.f32.mrb[0].mxu0
        %v1768 = vadd.f32 %v1607, %v1767
        %v1769 = vpop.f32.mrb[0].mxu0
        %v1770 = vpop.f32.mrb[0].mxu0
        %v1771 = vadd.f32 %v1610, %v1770
        %v1772 = vpop.f32.mrb[0].mxu0
        %1773 = vmatprep.mubr.bf16.mxu0 %v753
        %1774 = vmatmul.mubr.bf16.gmra.mrb[0].mxu0 %v752
        %v1775 = vpop.f32.mrb[0].mxu0
        %v1776 = vadd.f32 %v1615, %v1775
        %v1777 = vpop.f32.mrb[0].mxu0
        %v1778 = vpop.f32.mrb[0].mxu0
        %v1779 = vadd.f32 %v1618, %v1778
        %v1780 = vpop.f32.mrb[0].mxu0
        %1781 = vmatprep.mubr.bf16.mxu0 %v756
        %1782 = vmatmul.mubr.bf16.gmra.mrb[0].mxu0 %v755
        %v1783 = vpop.f32.mrb[0].mxu0
        %v1784 = vadd.f32 %v1623, %v1783
        %v1785 = vpop.f32.mrb[0].mxu0
        %v1786 = vpop.f32.mrb[0].mxu0
        %v1787 = vadd.f32 %v1626, %v1786
        %v1788 = vpop.f32.mrb[0].mxu0
        %1789 = vmatprep.mubr.bf16.mxu0 %v759
        %1790 = vmatmul.mubr.bf16.gmra.mrb[0].mxu0 %v758
        %v1791 = vpop.f32.mrb[0].mxu0
        %v1792 = vadd.f32 %v1631, %v1791
        %v1793 = vpop.f32.mrb[0].mxu0
        %v1794 = vpop.f32.mrb[0].mxu0
        %v1795 = vadd.f32 %v1634, %v1794
        %v1796 = vpop.f32.mrb[0].mxu0
        %1797 = vmatprep.mubr.bf16.mxu0 %v762
        %1798 = vmatmul.mubr.bf16.gmra.mrb[0].mxu0 %v761
        %v1799 = vpop.f32.mrb[0].mxu0
        %v1800 = vadd.f32 %v1639, %v1799
        %v1801 = vpop.f32.mrb[0].mxu0
        %v1802 = vpop.f32.mrb[0].mxu0
        %v1803 = vadd.f32 %v1642, %v1802
        %v1804 = vpop.f32.mrb[0].mxu0
        %1805 = vmatprep.mubr.bf16.mxu0 %v765
        %1806 = vmatmul.mubr.bf16.gmra.mrb[0].mxu0 %v764
        %v1807 = vpop.f32.mrb[0].mxu0
        %v1808 = vadd.f32 %v1647, %v1807
        %v1809 = vpop.f32.mrb[0].mxu0
        %v1810 = vpop.f32.mrb[0].mxu0
        %v1811 = vadd.f32 %v1650, %v1810
        %v1812 = vpop.f32.mrb[0].mxu0
        %1813 = vmatprep.mubr.bf16.mxu0 %v768
        %1814 = vmatmul.mubr.bf16.gmra.mrb[0].mxu0 %v767
        %v1815 = vpop.f32.mrb[0].mxu0
        %v1816 = vadd.f32 %v1655, %v1815
        %v1817 = vpop.f32.mrb[0].mxu0
        %v1818 = vpop.f32.mrb[0].mxu0
        %v1819 = vadd.f32 %v1658, %v1818
        %v1820 = vpop.f32.mrb[0].mxu0
        %1821 = vmatprep.mubr.bf16.mxu0 %v771
        %1822 = vmatmul.mubr.bf16.gmra.mrb[0].mxu0 %v770
        %v1823 = vpop.f32.mrb[0].mxu0
        %v1824 = vadd.f32 %v1663, %v1823
        %v1825 = vpop.f32.mrb[0].mxu0
        %v1826 = vpop.f32.mrb[0].mxu0
        %v1827 = vadd.f32 %v1666, %v1826
        %v1828 = vpop.f32.mrb[0].mxu0
        %1829 = vmatprep.mubr.bf16.mxu0 %v774
        %1830 = vmatmul.mubr.bf16.gmra.mrb[0].mxu0 %v773
        %v1831 = vpop.f32.mrb[0].mxu0
        %v1832 = vadd.f32 %v1671, %v1831
        %v1833 = vpop.f32.mrb[0].mxu0
        %v1834 = vpop.f32.mrb[0].mxu0
        %v1835 = vadd.f32 %v1674, %v1834
        %v1836 = vpop.f32.mrb[0].mxu0
        %1837 = vmatprep.mubr.bf16.mxu0 %v777
        %1838 = vmatmul.mubr.bf16.gmra.mrb[0].mxu0 %v776
        %v1839 = vpop.f32.mrb[0].mxu0
        %v1840 = vadd.f32 %v1679, %v1839
        %v1841 = vpop.f32.mrb[0].mxu0
        %v1842 = vpop.f32.mrb[0].mxu0
        %v1843 = vadd.f32 %v1682, %v1842
        %v1844 = vpop.f32.mrb[0].mxu0
        %1845 = vdwg.mxu0
        %1846 = vmatprep.subr.bf16.mxu0 0
        %1847 = vmatpush1.bf16.msra.mxu0 %v1267
        %1848 = vmatprep.subr.bf16.mxu0 0
        %1849 = vmatpush1.bf16.msra.mxu0 %v1268
        %1850 = vmatprep.subr.bf16.mxu0 0
        %1851 = vmatpush1.bf16.msra.mxu0 %v1269
        %1852 = vmatprep.subr.bf16.mxu0 0
        %1853 = vmatpush1.bf16.msra.mxu0 %v1270
        %1854 = vmatprep.subr.bf16.mxu0 0
        %1855 = vmatpush1.bf16.msra.mxu0 %v1271
        %1856 = vmatprep.subr.bf16.mxu0 0
        %1857 = vmatpush1.bf16.msra.mxu0 %v1272
        %1858 = vmatprep.subr.bf16.mxu0 0
        %1859 = vmatpush1.bf16.msra.mxu0 %v1273
        %1860 = vmatprep.subr.bf16.mxu0 0
        %1861 = vmatpush1.bf16.msra.mxu0 %v1274
        %1862 = vmatprep.subr.bf16.mxu0 0
        %1863 = vmatpush1.bf16.msra.mxu0 %v1275
        %1864 = vmatprep.subr.bf16.mxu0 0
        %1865 = vmatpush1.bf16.msra.mxu0 %v1276
        %1866 = vmatprep.subr.bf16.mxu0 0
        %1867 = vmatpush1.bf16.msra.mxu0 %v1277
        %1868 = vmatprep.subr.bf16.mxu0 0
        %1869 = vmatpush1.bf16.msra.mxu0 %v1278
        %1870 = vmatprep.subr.bf16.mxu0 0
        %1871 = vmatpush1.bf16.msra.mxu0 %v1279
        %1872 = vmatprep.subr.bf16.mxu0 0
        %1873 = vmatpush1.bf16.msra.mxu0 %v1280
        %1874 = vmatprep.subr.bf16.mxu0 0
        %1875 = vmatpush1.bf16.msra.mxu0 %v1281
        %1876 = vmatprep.subr.bf16.mxu0 0
        %1877 = vmatpush1.bf16.msra.mxu0 %v1282
        %1878 = vmatprep.mubr.bf16.mxu0 %v734
        %1879 = vmatmul.mubr.bf16.gmra.mrb[0].mxu0 %v733
        %v1880 = vpop.f32.mrb[0].mxu0
        %v1881 = vadd.f32 %v1720, %v1880
        %v1882 = vpop.f32.mrb[0].mxu0
        %v1883 = vpop.f32.mrb[0].mxu0
        %v1884 = vadd.f32 %v1723, %v1883
        %v1885 = vpop.f32.mrb[0].mxu0
        %1886 = vmatprep.mubr.bf16.mxu0 %v737
        %1887 = vmatmul.mubr.bf16.gmra.mrb[0].mxu0 %v736
        %v1888 = vpop.f32.mrb[0].mxu0
        %v1889 = vadd.f32 %v1728, %v1888
        %v1890 = vpop.f32.mrb[0].mxu0
        %v1891 = vpop.f32.mrb[0].mxu0
        %v1892 = vadd.f32 %v1731, %v1891
        %v1893 = vpop.f32.mrb[0].mxu0
        %1894 = vmatprep.mubr.bf16.mxu0 %v740
        %1895 = vmatmul.mubr.bf16.gmra.mrb[0].mxu0 %v739
        %v1896 = vpop.f32.mrb[0].mxu0
        %v1897 = vadd.f32 %v1736, %v1896
        %v1898 = vpop.f32.mrb[0].mxu0
        %v1899 = vpop.f32.mrb[0].mxu0
        %v1900 = vadd.f32 %v1739, %v1899
        %v1901 = vpop.f32.mrb[0].mxu0
        %1902 = vmatprep.mubr.bf16.mxu0 %v743
        %1903 = vmatmul.mubr.bf16.gmra.mrb[0].mxu0 %v742
        %v1904 = vpop.f32.mrb[0].mxu0
        %v1905 = vadd.f32 %v1744, %v1904
        %v1906 = vpop.f32.mrb[0].mxu0
        %v1907 = vpop.f32.mrb[0].mxu0
        %v1908 = vadd.f32 %v1747, %v1907
        %v1909 = vpop.f32.mrb[0].mxu0
        %1910 = vmatprep.mubr.bf16.mxu0 %v746
        %1911 = vmatmul.mubr.bf16.gmra.mrb[0].mxu0 %v745
        %v1912 = vpop.f32.mrb[0].mxu0
        %v1913 = vadd.f32 %v1752, %v1912
        %v1914 = vpop.f32.mrb[0].mxu0
        %v1915 = vpop.f32.mrb[0].mxu0
        %v1916 = vadd.f32 %v1755, %v1915
        %v1917 = vpop.f32.mrb[0].mxu0
        %1918 = vmatprep.mubr.bf16.mxu0 %v749
        %1919 = vmatmul.mubr.bf16.gmra.mrb[0].mxu0 %v748
        %v1920 = vpop.f32.mrb[0].mxu0
        %v1921 = vadd.f32 %v1760, %v1920
        %v1922 = vpop.f32.mrb[0].mxu0
        %v1923 = vpop.f32.mrb[0].mxu0
        %v1924 = vadd.f32 %v1763, %v1923
        %v1925 = vpop.f32.mrb[0].mxu0
        %1926 = vmatprep.mubr.bf16.mxu0 %v752
        %1927 = vmatmul.mubr.bf16.gmra.mrb[0].mxu0 %v751
        %v1928 = vpop.f32.mrb[0].mxu0
        %v1929 = vadd.f32 %v1768, %v1928
        %v1930 = vpop.f32.mrb[0].mxu0
        %v1931 = vpop.f32.mrb[0].mxu0
        %v1932 = vadd.f32 %v1771, %v1931
        %v1933 = vpop.f32.mrb[0].mxu0
        %1934 = vmatprep.mubr.bf16.mxu0 %v755
        %1935 = vmatmul.mubr.bf16.gmra.mrb[0].mxu0 %v754
        %v1936 = vpop.f32.mrb[0].mxu0
        %v1937 = vadd.f32 %v1776, %v1936
        %v1938 = vpop.f32.mrb[0].mxu0
        %v1939 = vpop.f32.mrb[0].mxu0
        %v1940 = vadd.f32 %v1779, %v1939
        %v1941 = vpop.f32.mrb[0].mxu0
        %1942 = vmatprep.mubr.bf16.mxu0 %v758
        %1943 = vmatmul.mubr.bf16.gmra.mrb[0].mxu0 %v757
        %v1944 = vpop.f32.mrb[0].mxu0
        %v1945 = vadd.f32 %v1784, %v1944
        %v1946 = vpop.f32.mrb[0].mxu0
        %v1947 = vpop.f32.mrb[0].mxu0
        %v1948 = vadd.f32 %v1787, %v1947
        %v1949 = vpop.f32.mrb[0].mxu0
        %1950 = vmatprep.mubr.bf16.mxu0 %v761
        %1951 = vmatmul.mubr.bf16.gmra.mrb[0].mxu0 %v760
        %v1952 = vpop.f32.mrb[0].mxu0
        %v1953 = vadd.f32 %v1792, %v1952
        %v1954 = vpop.f32.mrb[0].mxu0
        %v1955 = vpop.f32.mrb[0].mxu0
        %v1956 = vadd.f32 %v1795, %v1955
        %v1957 = vpop.f32.mrb[0].mxu0
        %1958 = vmatprep.mubr.bf16.mxu0 %v764
        %1959 = vmatmul.mubr.bf16.gmra.mrb[0].mxu0 %v763
        %v1960 = vpop.f32.mrb[0].mxu0
        %v1961 = vadd.f32 %v1800, %v1960
        %v1962 = vpop.f32.mrb[0].mxu0
        %v1963 = vpop.f32.mrb[0].mxu0
        %v1964 = vadd.f32 %v1803, %v1963
        %v1965 = vpop.f32.mrb[0].mxu0
        %1966 = vmatprep.mubr.bf16.mxu0 %v767
        %1967 = vmatmul.mubr.bf16.gmra.mrb[0].mxu0 %v766
        %v1968 = vpop.f32.mrb[0].mxu0
        %v1969 = vadd.f32 %v1808, %v1968
        %v1970 = vpop.f32.mrb[0].mxu0
        %v1971 = vpop.f32.mrb[0].mxu0
        %v1972 = vadd.f32 %v1811, %v1971
        %v1973 = vpop.f32.mrb[0].mxu0
        %1974 = vmatprep.mubr.bf16.mxu0 %v770
        %1975 = vmatmul.mubr.bf16.gmra.mrb[0].mxu0 %v769
        %v1976 = vpop.f32.mrb[0].mxu0
        %v1977 = vadd.f32 %v1816, %v1976
        %v1978 = vpop.f32.mrb[0].mxu0
        %v1979 = vpop.f32.mrb[0].mxu0
        %v1980 = vadd.f32 %v1819, %v1979
        %v1981 = vpop.f32.mrb[0].mxu0
        %1982 = vmatprep.mubr.bf16.mxu0 %v773
        %1983 = vmatmul.mubr.bf16.gmra.mrb[0].mxu0 %v772
        %v1984 = vpop.f32.mrb[0].mxu0
        %v1985 = vadd.f32 %v1824, %v1984
        %v1986 = vpop.f32.mrb[0].mxu0
        %v1987 = vpop.f32.mrb[0].mxu0
        %v1988 = vadd.f32 %v1827, %v1987
        %v1989 = vpop.f32.mrb[0].mxu0
        %1990 = vmatprep.mubr.bf16.mxu0 %v776
        %1991 = vmatmul.mubr.bf16.gmra.mrb[0].mxu0 %v775
        %v1992 = vpop.f32.mrb[0].mxu0
        %v1993 = vadd.f32 %v1832, %v1992
        %v1994 = vpop.f32.mrb[0].mxu0
        %v1995 = vpop.f32.mrb[0].mxu0
        %v1996 = vadd.f32 %v1835, %v1995
        %v1997 = vpop.f32.mrb[0].mxu0
        %1998 = vmatprep.mubr.bf16.mxu0 %v779
        %1999 = vmatmul.mubr.bf16.gmra.mrb[0].mxu0 %v778
        %v2000 = vpop.f32.mrb[0].mxu0
        %v2001 = vadd.f32 %v1840, %v2000
        %v2002 = vpop.f32.mrb[0].mxu0
        %v2003 = vpop.f32.mrb[0].mxu0
        %v2004 = vadd.f32 %v1843, %v2003
        %v2005 = vpop.f32.mrb[0].mxu0
        %2006 = vdwg.mxu0
        %2007 = vmatprep.subr.bf16.mxu0 0
        %2008 = vmatpush1.bf16.msra.mxu0 %v1283
        %2009 = vmatprep.subr.bf16.mxu0 0
        %2010 = vmatpush1.bf16.msra.mxu0 %v1284
        %2011 = vmatprep.subr.bf16.mxu0 0
        %2012 = vmatpush1.bf16.msra.mxu0 %v1285
        %2013 = vmatprep.subr.bf16.mxu0 0
        %2014 = vmatpush1.bf16.msra.mxu0 %v1286
        %2015 = vmatprep.subr.bf16.mxu0 0
        %2016 = vmatpush1.bf16.msra.mxu0 %v1287
        %2017 = vmatprep.subr.bf16.mxu0 0
        %2018 = vmatpush1.bf16.msra.mxu0 %v1288
        %2019 = vmatprep.subr.bf16.mxu0 0
        %2020 = vmatpush1.bf16.msra.mxu0 %v1289
        %2021 = vmatprep.subr.bf16.mxu0 0
        %2022 = vmatpush1.bf16.msra.mxu0 %v1290
        %2023 = vmatprep.subr.bf16.mxu0 0
        %2024 = vmatpush1.bf16.msra.mxu0 0
        %2025 = vmatprep.subr.bf16.mxu0 0
        %2026 = vmatpush1.bf16.msra.mxu0 0
        %2027 = vmatprep.subr.bf16.mxu0 0
        %2028 = vmatpush1.bf16.msra.mxu0 0
        %2029 = vmatprep.subr.bf16.mxu0 0
        %2030 = vmatpush1.bf16.msra.mxu0 0
        %2031 = vmatprep.subr.bf16.mxu0 0
        %2032 = vmatpush1.bf16.msra.mxu0 0
        %2033 = vmatprep.subr.bf16.mxu0 0
        %2034 = vmatpush1.bf16.msra.mxu0 0
        %2035 = vmatprep.subr.bf16.mxu0 0
        %2036 = vmatpush1.bf16.msra.mxu0 0
        %2037 = vmatprep.subr.bf16.mxu0 0
        %2038 = vmatpush1.bf16.msra.mxu0 0
        %2039 = vmatprep.mubr.bf16.mxu0 0
        %2040 = vmatmul.mubr.bf16.gmra.mrb[0].mxu0 %v735
        %v2041 = vpop.f32.mrb[0].mxu0
        %v2042 = vadd.f32 %v1881, %v2041
        %v2043 = vpop.f32.mrb[0].mxu0
        %v2044 = vpop.f32.mrb[0].mxu0
        %v2045 = vadd.f32 %v1884, %v2044
        %v2046 = vpop.f32.mrb[0].mxu0
        %2047 = vmatprep.mubr.bf16.mxu0 0
        %2048 = vmatmul.mubr.bf16.gmra.mrb[0].mxu0 %v738
        %v2049 = vpop.f32.mrb[0].mxu0
        %v2050 = vadd.f32 %v1889, %v2049
        %v2051 = vpop.f32.mrb[0].mxu0
        %v2052 = vpop.f32.mrb[0].mxu0
        %v2053 = vadd.f32 %v1892, %v2052
        %v2054 = vpop.f32.mrb[0].mxu0
        %2055 = vmatprep.mubr.bf16.mxu0 0
        %2056 = vmatmul.mubr.bf16.gmra.mrb[0].mxu0 %v741
        %v2057 = vpop.f32.mrb[0].mxu0
        %v2058 = vadd.f32 %v1897, %v2057
        %v2059 = vpop.f32.mrb[0].mxu0
        %v2060 = vpop.f32.mrb[0].mxu0
        %v2061 = vadd.f32 %v1900, %v2060
        %v2062 = vpop.f32.mrb[0].mxu0
        %2063 = vmatprep.mubr.bf16.mxu0 0
        %2064 = vmatmul.mubr.bf16.gmra.mrb[0].mxu0 %v744
        %v2065 = vpop.f32.mrb[0].mxu0
        %v2066 = vadd.f32 %v1905, %v2065
        %v2067 = vpop.f32.mrb[0].mxu0
        %v2068 = vpop.f32.mrb[0].mxu0
        %v2069 = vadd.f32 %v1908, %v2068
        %v2070 = vpop.f32.mrb[0].mxu0
        %2071 = vmatprep.mubr.bf16.mxu0 0
        %2072 = vmatmul.mubr.bf16.gmra.mrb[0].mxu0 %v747
        %v2073 = vpop.f32.mrb[0].mxu0
        %v2074 = vadd.f32 %v1913, %v2073
        %v2075 = vpop.f32.mrb[0].mxu0
        %v2076 = vpop.f32.mrb[0].mxu0
        %v2077 = vadd.f32 %v1916, %v2076
        %v2078 = vpop.f32.mrb[0].mxu0
        %2079 = vmatprep.mubr.bf16.mxu0 0
        %2080 = vmatmul.mubr.bf16.gmra.mrb[0].mxu0 %v750
        %v2081 = vpop.f32.mrb[0].mxu0
        %v2082 = vadd.f32 %v1921, %v2081
        %v2083 = vpop.f32.mrb[0].mxu0
        %v2084 = vpop.f32.mrb[0].mxu0
        %v2085 = vadd.f32 %v1924, %v2084
        %v2086 = vpop.f32.mrb[0].mxu0
        %2087 = vmatprep.mubr.bf16.mxu0 0
        %2088 = vmatmul.mubr.bf16.gmra.mrb[0].mxu0 %v753
        %v2089 = vpop.f32.mrb[0].mxu0
        %v2090 = vadd.f32 %v1929, %v2089
        %v2091 = vpop.f32.mrb[0].mxu0
        %v2092 = vpop.f32.mrb[0].mxu0
        %v2093 = vadd.f32 %v1932, %v2092
        %v2094 = vpop.f32.mrb[0].mxu0
        %2095 = vmatprep.mubr.bf16.mxu0 0
        %2096 = vmatmul.mubr.bf16.gmra.mrb[0].mxu0 %v756
        %v2097 = vpop.f32.mrb[0].mxu0
        %v2098 = vadd.f32 %v1937, %v2097
        %v2099 = vpop.f32.mrb[0].mxu0
        %v2100 = vpop.f32.mrb[0].mxu0
        %v2101 = vadd.f32 %v1940, %v2100
        %v2102 = vpop.f32.mrb[0].mxu0
        %2103 = vmatprep.mubr.bf16.mxu0 0
        %2104 = vmatmul.mubr.bf16.gmra.mrb[0].mxu0 %v759
        %v2105 = vpop.f32.mrb[0].mxu0
        %v2106 = vadd.f32 %v1945, %v2105
        %v2107 = vpop.f32.mrb[0].mxu0
        %v2108 = vpop.f32.mrb[0].mxu0
        %v2109 = vadd.f32 %v1948, %v2108
        %v2110 = vpop.f32.mrb[0].mxu0
        %2111 = vmatprep.mubr.bf16.mxu0 0
        %2112 = vmatmul.mubr.bf16.gmra.mrb[0].mxu0 %v762
        %v2113 = vpop.f32.mrb[0].mxu0
        %v2114 = vadd.f32 %v1953, %v2113
        %v2115 = vpop.f32.mrb[0].mxu0
        %v2116 = vpop.f32.mrb[0].mxu0
        %v2117 = vadd.f32 %v1956, %v2116
        %v2118 = vpop.f32.mrb[0].mxu0
        %2119 = vmatprep.mubr.bf16.mxu0 0
        %2120 = vmatmul.mubr.bf16.gmra.mrb[0].mxu0 %v765
        %v2121 = vpop.f32.mrb[0].mxu0
        %v2122 = vadd.f32 %v1961, %v2121
        %v2123 = vpop.f32.mrb[0].mxu0
        %v2124 = vpop.f32.mrb[0].mxu0
        %v2125 = vadd.f32 %v1964, %v2124
        %v2126 = vpop.f32.mrb[0].mxu0
        %2127 = vmatprep.mubr.bf16.mxu0 0
        %2128 = vmatmul.mubr.bf16.gmra.mrb[0].mxu0 %v768
        %v2129 = vpop.f32.mrb[0].mxu0
        %v2130 = vadd.f32 %v1969, %v2129
        %v2131 = vpop.f32.mrb[0].mxu0
        %v2132 = vpop.f32.mrb[0].mxu0
        %v2133 = vadd.f32 %v1972, %v2132
        %v2134 = vpop.f32.mrb[0].mxu0
        %2135 = vmatprep.mubr.bf16.mxu0 0
        %2136 = vmatmul.mubr.bf16.gmra.mrb[0].mxu0 %v771
        %v2137 = vpop.f32.mrb[0].mxu0
        %v2138 = vadd.f32 %v1977, %v2137
        %v2139 = vpop.f32.mrb[0].mxu0
        %v2140 = vpop.f32.mrb[0].mxu0
        %v2141 = vadd.f32 %v1980, %v2140
        %v2142 = vpop.f32.mrb[0].mxu0
        %2143 = vmatprep.mubr.bf16.mxu0 0
        %2144 = vmatmul.mubr.bf16.gmra.mrb[0].mxu0 %v774
        %v2145 = vpop.f32.mrb[0].mxu0
        %v2146 = vadd.f32 %v1985, %v2145
        %v2147 = vpop.f32.mrb[0].mxu0
        %v2148 = vpop.f32.mrb[0].mxu0
        %v2149 = vadd.f32 %v1988, %v2148
        %v2150 = vpop.f32.mrb[0].mxu0
        %2151 = vmatprep.mubr.bf16.mxu0 0
        %2152 = vmatmul.mubr.bf16.gmra.mrb[0].mxu0 %v777
        %v2153 = vpop.f32.mrb[0].mxu0
        %v2154 = vadd.f32 %v1993, %v2153
        %v2155 = vpop.f32.mrb[0].mxu0
        %v2156 = vpop.f32.mrb[0].mxu0
        %v2157 = vadd.f32 %v1996, %v2156
        %v2158 = vpop.f32.mrb[0].mxu0
        %2159 = vmatprep.mubr.bf16.mxu0 0
        %2160 = vmatmul.mubr.bf16.gmra.mrb[0].mxu0 %v780
        %v2161 = vpop.f32.mrb[0].mxu0
        %v2162 = vadd.f32 %v2001, %v2161
        %v2163 = vpop.f32.mrb[0].mxu0
        %v2164 = vpop.f32.mrb[0].mxu0
        %v2165 = vadd.f32 %v2004, %v2164
        %v2166 = vpop.f32.mrb[0].mxu0
        %2167 = vdwg.mxu0
        %v2168 = vmax.f32 %v2042, 0.0
        %v2169 = vmax.f32 %v2045, 0.0
        %v2170 = vmax.f32 %v2050, 0.0
        %v2171 = vmax.f32 %v2053, 0.0
        %v2172 = vmax.f32 %v2058, 0.0
        %v2173 = vmax.f32 %v2061, 0.0
        %v2174 = vmax.f32 %v2066, 0.0
        %v2175 = vmax.f32 %v2069, 0.0
        %v2176 = vmax.f32 %v2074, 0.0
        %v2177 = vmax.f32 %v2077, 0.0
        %v2178 = vmax.f32 %v2082, 0.0
        %v2179 = vmax.f32 %v2085, 0.0
        %v2180 = vmax.f32 %v2090, 0.0
        %v2181 = vmax.f32 %v2093, 0.0
        %v2182 = vmax.f32 %v2098, 0.0
        %v2183 = vmax.f32 %v2101, 0.0
        %v2184 = vmax.f32 %v2106, 0.0
        %v2185 = vmax.f32 %v2109, 0.0
        %v2186 = vmax.f32 %v2114, 0.0
        %v2187 = vmax.f32 %v2117, 0.0
        %v2188 = vmax.f32 %v2122, 0.0
        %v2189 = vmax.f32 %v2125, 0.0
        %v2190 = vmax.f32 %v2130, 0.0
        %v2191 = vmax.f32 %v2133, 0.0
        %v2192 = vmax.f32 %v2138, 0.0
        %v2193 = vmax.f32 %v2141, 0.0
        %v2194 = vmax.f32 %v2146, 0.0
        %v2195 = vmax.f32 %v2149, 0.0
        %v2196 = vmax.f32 %v2154, 0.0
        %v2197 = vmax.f32 %v2157, 0.0
        %v2198 = vmax.f32 %v2162, 0.0
        %v2199 = vmax.f32 %v2165, 0.0
        %2200 = vst [vmem:[%s357] sm:$0xff] %v2168
        %2201 = vst [vmem:[%s357 + $0x8] sm:$0xff] %v2169
        %2202 = vst [vmem:[%s357 + $0x10] sm:$0xff] %v2170
        %2203 = vst [vmem:[%s357 + $0x18] sm:$0xff] %v2171
        %2204 = vst [vmem:[%s357 + $0x20] sm:$0xff] %v2172
        %2205 = vst [vmem:[%s357 + $0x28] sm:$0xff] %v2173
        %2206 = vst [vmem:[%s357 + $0x30] sm:$0xff] %v2174
        %2207 = vst [vmem:[%s357 + $0x38] sm:$0xff] %v2175
        %2208 = vst [vmem:[%s357 + $0x40] sm:$0xff] %v2176
        %2209 = vst [vmem:[%s357 + $0x48] sm:$0xff] %v2177
        %2210 = vst [vmem:[%s357 + $0x50] sm:$0xff] %v2178
        %2211 = vst [vmem:[%s357 + $0x58] sm:$0xff] %v2179
        %2212 = vst [vmem:[%s357 + $0x60] sm:$0xff] %v2180
        %2213 = vst [vmem:[%s357 + $0x68] sm:$0xff] %v2181
        %2214 = vst [vmem:[%s357 + $0x70] sm:$0xff] %v2182
        %2215 = vst [vmem:[%s357 + $0x78] sm:$0xff] %v2183
        %2216 = vst [vmem:[%s357 + $0x80] sm:$0xff] %v2184
        %2217 = vst [vmem:[%s357 + $0x88] sm:$0xff] %v2185
        %2218 = vst [vmem:[%s357 + $0x90] sm:$0xff] %v2186
        %2219 = vst [vmem:[%s357 + $0x98] sm:$0xff] %v2187
        %2220 = vst [vmem:[%s357 + $0xa0] sm:$0xff] %v2188
        %2221 = vst [vmem:[%s357 + $0xa8] sm:$0xff] %v2189
        %2222 = vst [vmem:[%s357 + $0xb0] sm:$0xff] %v2190
        %2223 = vst [vmem:[%s357 + $0xb8] sm:$0xff] %v2191
        %2224 = vst [vmem:[%s357 + $0xc0] sm:$0xff] %v2192
        %2225 = vst [vmem:[%s357 + $0xc8] sm:$0xff] %v2193
        %2226 = vst [vmem:[%s357 + $0xd0] sm:$0xff] %v2194
        %2227 = vst [vmem:[%s357 + $0xd8] sm:$0xff] %v2195
        %2228 = vst [vmem:[%s357 + $0xe0] sm:$0xff] %v2196
        %2229 = vst [vmem:[%s357 + $0xe8] sm:$0xff] %v2197
        %2230 = vst [vmem:[%s357 + $0xf0] sm:$0xff] %v2198
        %2231 = vst [vmem:[%s357 + $0xf8] sm:$0xff] %v2199
        %2232 = vst [vmem:[#allocation2] sm:$0xff] 0.0
        %2233 = vst [vmem:[#allocation2 + $0x8] sm:$0xff] 0.0
        %2234 = vst [vmem:[#allocation2 + $0x10] sm:$0x3] 0.0
        %2235 = vst [vmem:[#allocation2 + $0x18] sm:$0xff] 0.0
        %2236 = vst [vmem:[#allocation2 + $0x20] sm:$0xff] 0.0
        %2237 = vst [vmem:[#allocation2 + $0x28] sm:$0x3] 0.0
        %2238 = vst [vmem:[#allocation2 + $0x30] sm:$0xff] 0.0
        %2239 = vst [vmem:[#allocation2 + $0x38] sm:$0xff] 0.0
        %2240 = vst [vmem:[#allocation2 + $0x40] sm:$0x3] 0.0
        %2241 = vst [vmem:[#allocation2 + $0x48] sm:$0xff] 0.0
        %2242 = vst [vmem:[#allocation2 + $0x50] sm:$0xff] 0.0
        %2243 = vst [vmem:[#allocation2 + $0x58] sm:$0x3] 0.0
        %2244 = vst [vmem:[#allocation2 + $0x60] sm:$0xff] 0.0
        %2245 = vst [vmem:[#allocation2 + $0x68] sm:$0xff] 0.0
        %2246 = vst [vmem:[#allocation2 + $0x70] sm:$0x3] 0.0
        %2247 = vst [vmem:[#allocation2 + $0x78] sm:$0xff] 0.0
        %2248 = vst [vmem:[#allocation2 + $0x80] sm:$0xff] 0.0
        %2249 = vst [vmem:[#allocation2 + $0x88] sm:$0x3] 0.0
        %2250 = vst [vmem:[#allocation2 + $0x90] sm:$0xff] 0.0
        %2251 = vst [vmem:[#allocation2 + $0x98] sm:$0xff] 0.0
        %2252 = vst [vmem:[#allocation2 + $0xa0] sm:$0x3] 0.0
        %2253 = vst [vmem:[#allocation2 + $0xa8] sm:$0xff] 0.0
        %2254 = vst [vmem:[#allocation2 + $0xb0] sm:$0xff] 0.0
        %2255 = vst [vmem:[#allocation2 + $0xb8] sm:$0x3] 0.0
        %2256 = vst [vmem:[#allocation2 + $0xc0] sm:$0xff] 0.0
        %2257 = vst [vmem:[#allocation2 + $0xc8] sm:$0xff] 0.0
        %2258 = vst [vmem:[#allocation2 + $0xd0] sm:$0x3] 0.0
        %2259 = vst [vmem:[#allocation2 + $0xd8] sm:$0xff] 0.0
        %2260 = vst [vmem:[#allocation2 + $0xe0] sm:$0xff] 0.0
        %2261 = vst [vmem:[#allocation2 + $0xe8] sm:$0x3] 0.0
        %2262 = vst [vmem:[#allocation2 + $0xf0] sm:$0xff] 0.0
        %2263 = vst [vmem:[#allocation2 + $0xf8] sm:$0xff] 0.0
        %2264 = vst [vmem:[#allocation2 + $0x100] sm:$0x3] 0.0
        %2265 = vst [vmem:[#allocation2 + $0x108] sm:$0xff] 0.0
        %2266 = vst [vmem:[#allocation2 + $0x110] sm:$0xff] 0.0
        %2267 = vst [vmem:[#allocation2 + $0x118] sm:$0x3] 0.0
        %2268 = vst [vmem:[#allocation2 + $0x120] sm:$0xff] 0.0
        %2269 = vst [vmem:[#allocation2 + $0x128] sm:$0xff] 0.0
        %2270 = vst [vmem:[#allocation2 + $0x130] sm:$0x3] 0.0
        %2271 = vst [vmem:[#allocation2 + $0x138] sm:$0xff] 0.0
        %2272 = vst [vmem:[#allocation2 + $0x140] sm:$0xff] 0.0
        %2273 = vst [vmem:[#allocation2 + $0x148] sm:$0x3] 0.0
        %2274 = vst [vmem:[#allocation2 + $0x150] sm:$0xff] 0.0
        %2275 = vst [vmem:[#allocation2 + $0x158] sm:$0xff] 0.0
        %2276 = vst [vmem:[#allocation2 + $0x160] sm:$0x3] 0.0
        %2277 = vst [vmem:[#allocation2 + $0x168] sm:$0xff] 0.0
        %2278 = vst [vmem:[#allocation2 + $0x170] sm:$0xff] 0.0
        %2279 = vst [vmem:[#allocation2 + $0x178] sm:$0x3] 0.0
        %2280 = vst [vmem:[#allocation2 + $0x180] sm:$0xff] 0.0
        %2281 = vst [vmem:[#allocation2 + $0x188] sm:$0xff] 0.0
        %2282 = vst [vmem:[#allocation2 + $0x190] sm:$0x3] 0.0
        %2283 = vst [vmem:[#allocation2 + $0x198] sm:$0xff] 0.0
        %2284 = vst [vmem:[#allocation2 + $0x1a0] sm:$0xff] 0.0
        %2285 = vst [vmem:[#allocation2 + $0x1a8] sm:$0x3] 0.0
        %s2286 = scalar_lea.vmem [#allocation2], 24
        %2287 = vst [vmem:[%s2286 + $0x1] sm:$0xff] %v2168
        %2288 = vst [vmem:[%s2286 + $0x9] sm:$0xff] %v2169
        %2289 = vst [vmem:[%s2286 + $0x19] sm:$0xff] %v2170
        %2290 = vst [vmem:[%s2286 + $0x21] sm:$0xff] %v2171
        %2291 = vst [vmem:[%s2286 + $0x31] sm:$0xff] %v2172
        %2292 = vst [vmem:[%s2286 + $0x39] sm:$0xff] %v2173
        %2293 = vst [vmem:[%s2286 + $0x49] sm:$0xff] %v2174
        %2294 = vst [vmem:[%s2286 + $0x51] sm:$0xff] %v2175
        %2295 = vst [vmem:[%s2286 + $0x61] sm:$0xff] %v2176
        %2296 = vst [vmem:[%s2286 + $0x69] sm:$0xff] %v2177
        %2297 = vst [vmem:[%s2286 + $0x79] sm:$0xff] %v2178
        %2298 = vst [vmem:[%s2286 + $0x81] sm:$0xff] %v2179
        %2299 = vst [vmem:[%s2286 + $0x91] sm:$0xff] %v2180
        %2300 = vst [vmem:[%s2286 + $0x99] sm:$0xff] %v2181
        %2301 = vst [vmem:[%s2286 + $0xa9] sm:$0xff] %v2182
        %2302 = vst [vmem:[%s2286 + $0xb1] sm:$0xff] %v2183
        %2303 = vst [vmem:[%s2286 + $0xc1] sm:$0xff] %v2184
        %2304 = vst [vmem:[%s2286 + $0xc9] sm:$0xff] %v2185
        %2305 = vst [vmem:[%s2286 + $0xd9] sm:$0xff] %v2186
        %2306 = vst [vmem:[%s2286 + $0xe1] sm:$0xff] %v2187
        %2307 = vst [vmem:[%s2286 + $0xf1] sm:$0xff] %v2188
        %2308 = vst [vmem:[%s2286 + $0xf9] sm:$0xff] %v2189
        %2309 = vst [vmem:[%s2286 + $0x109] sm:$0xff] %v2190
        %2310 = vst [vmem:[%s2286 + $0x111] sm:$0xff] %v2191
        %2311 = vst [vmem:[%s2286 + $0x121] sm:$0xff] %v2192
        %2312 = vst [vmem:[%s2286 + $0x129] sm:$0xff] %v2193
        %2313 = vst [vmem:[%s2286 + $0x139] sm:$0xff] %v2194
        %2314 = vst [vmem:[%s2286 + $0x141] sm:$0xff] %v2195
        %2315 = vst [vmem:[%s2286 + $0x151] sm:$0xff] %v2196
        %2316 = vst [vmem:[%s2286 + $0x159] sm:$0xff] %v2197
        %2317 = vst [vmem:[%s2286 + $0x169] sm:$0xff] %v2198
        %2318 = vst [vmem:[%s2286 + $0x171] sm:$0xff] %v2199
        %v2319 = vld [vmem:[#allocation2] sm:$0xff]
        %v2320 = vld [vmem:[#allocation2 + $0x8] sm:$0xff]
        %v2321 = vld [vmem:[#allocation2 + $0x10] sm:$0x3]
        %v2322 = vld [vmem:[#allocation2 + $0x18] sm:$0xff]
        %v2323 = vld [vmem:[#allocation2 + $0x20] sm:$0xff]
        %v2324 = vld [vmem:[#allocation2 + $0x28] sm:$0x3]
        %v2325 = vld [vmem:[#allocation2 + $0x30] sm:$0xff]
        %v2326 = vld [vmem:[#allocation2 + $0x38] sm:$0xff]
        %v2327 = vld [vmem:[#allocation2 + $0x40] sm:$0x3]
        %v2328 = vld [vmem:[#allocation2 + $0x48] sm:$0xff]
        %v2329 = vld [vmem:[#allocation2 + $0x50] sm:$0xff]
        %v2330 = vld [vmem:[#allocation2 + $0x58] sm:$0x3]
        %v2331 = vld [vmem:[#allocation2 + $0x60] sm:$0xff]
        %v2332 = vld [vmem:[#allocation2 + $0x68] sm:$0xff]
        %v2333 = vld [vmem:[#allocation2 + $0x70] sm:$0x3]
        %v2334 = vld [vmem:[#allocation2 + $0x78] sm:$0xff]
        %v2335 = vld [vmem:[#allocation2 + $0x80] sm:$0xff]
        %v2336 = vld [vmem:[#allocation2 + $0x88] sm:$0x3]
        %v2337 = vld [vmem:[#allocation2 + $0x90] sm:$0xff]
        %v2338 = vld [vmem:[#allocation2 + $0x98] sm:$0xff]
        %v2339 = vld [vmem:[#allocation2 + $0xa0] sm:$0x3]
        %v2340 = vld [vmem:[#allocation2 + $0xa8] sm:$0xff]
        %v2341 = vld [vmem:[#allocation2 + $0xb0] sm:$0xff]
        %v2342 = vld [vmem:[#allocation2 + $0xb8] sm:$0x3]
        %v2343 = vld [vmem:[#allocation2 + $0xc0] sm:$0xff]
        %v2344 = vld [vmem:[#allocation2 + $0xc8] sm:$0xff]
        %v2345 = vld [vmem:[#allocation2 + $0xd0] sm:$0x3]
        %v2346 = vld [vmem:[#allocation2 + $0xd8] sm:$0xff]
        %v2347 = vld [vmem:[#allocation2 + $0xe0] sm:$0xff]
        %v2348 = vld [vmem:[#allocation2 + $0xe8] sm:$0x3]
        %v2349 = vld [vmem:[#allocation2 + $0xf0] sm:$0xff]
        %v2350 = vld [vmem:[#allocation2 + $0xf8] sm:$0xff]
        %v2351 = vld [vmem:[#allocation2 + $0x100] sm:$0x3]
        %v2352 = vld [vmem:[#allocation2 + $0x108] sm:$0xff]
        %v2353 = vld [vmem:[#allocation2 + $0x110] sm:$0xff]
        %v2354 = vld [vmem:[#allocation2 + $0x118] sm:$0x3]
        %v2355 = vld [vmem:[#allocation2 + $0x120] sm:$0xff]
        %v2356 = vld [vmem:[#allocation2 + $0x128] sm:$0xff]
        %v2357 = vld [vmem:[#allocation2 + $0x130] sm:$0x3]
        %v2358 = vld [vmem:[#allocation2 + $0x138] sm:$0xff]
        %v2359 = vld [vmem:[#allocation2 + $0x140] sm:$0xff]
        %v2360 = vld [vmem:[#allocation2 + $0x148] sm:$0x3]
        %v2361 = vld [vmem:[#allocation2 + $0x150] sm:$0xff]
        %v2362 = vld [vmem:[#allocation2 + $0x158] sm:$0xff]
        %v2363 = vld [vmem:[#allocation2 + $0x160] sm:$0x3]
        %v2364 = vld [vmem:[#allocation2 + $0x168] sm:$0xff]
        %v2365 = vld [vmem:[#allocation2 + $0x170] sm:$0xff]
        %v2366 = vld [vmem:[#allocation2 + $0x178] sm:$0x3]
        %v2367 = vld [vmem:[#allocation2 + $0x180] sm:$0xff]
        %v2368 = vld [vmem:[#allocation2 + $0x188] sm:$0xff]
        %v2369 = vld [vmem:[#allocation2 + $0x190] sm:$0x3]
        %v2370 = vld [vmem:[#allocation2 + $0x198] sm:$0xff]
        %v2371 = vld [vmem:[#allocation2 + $0x1a0] sm:$0xff]
        %v2372 = vld [vmem:[#allocation2 + $0x1a8] sm:$0x3]
        %v2373 = vld [vmem:[%s4] sm:$0x1]
        %v2422 = vrot.slane %v2319, 1
        %v2423 = vrot.slane %v2320, 1
        %v2424 = vsel %vm467, %v2422, %v2423
        %v2425 = vrot.slane %v2321, 1
        %v2426 = vsel %vm467, %v2423, %v2425
        %v2427 = vrot.slane %v2322, 1
        %v2428 = vrot.slane %v2323, 1
        %v2429 = vsel %vm467, %v2427, %v2428
        %v2430 = vrot.slane %v2324, 1
        %v2431 = vsel %vm467, %v2428, %v2430
        %v2432 = vrot.slane %v2325, 1
        %v2433 = vrot.slane %v2326, 1
        %v2434 = vsel %vm467, %v2432, %v2433
        %v2435 = vrot.slane %v2327, 1
        %v2436 = vsel %vm467, %v2433, %v2435
        %v2437 = vrot.slane %v2328, 1
        %v2438 = vrot.slane %v2329, 1
        %v2439 = vsel %vm467, %v2437, %v2438
        %v2440 = vrot.slane %v2330, 1
        %v2441 = vsel %vm467, %v2438, %v2440
        %v2442 = vrot.slane %v2331, 1
        %v2443 = vrot.slane %v2332, 1
        %v2444 = vsel %vm467, %v2442, %v2443
        %v2445 = vrot.slane %v2333, 1
        %v2446 = vsel %vm467, %v2443, %v2445
        %v2447 = vrot.slane %v2334, 1
        %v2448 = vrot.slane %v2335, 1
        %v2449 = vsel %vm467, %v2447, %v2448
        %v2450 = vrot.slane %v2336, 1
        %v2451 = vsel %vm467, %v2448, %v2450
        %v2452 = vrot.slane %v2337, 1
        %v2453 = vrot.slane %v2338, 1
        %v2454 = vsel %vm467, %v2452, %v2453
        %v2455 = vrot.slane %v2339, 1
        %v2456 = vsel %vm467, %v2453, %v2455
        %v2457 = vrot.slane %v2340, 1
        %v2458 = vrot.slane %v2341, 1
        %v2459 = vsel %vm467, %v2457, %v2458
        %v2460 = vrot.slane %v2342, 1
        %v2461 = vsel %vm467, %v2458, %v2460
        %v2462 = vrot.slane %v2343, 1
        %v2463 = vrot.slane %v2344, 1
        %v2464 = vsel %vm467, %v2462, %v2463
        %v2465 = vrot.slane %v2345, 1
        %v2466 = vsel %vm467, %v2463, %v2465
        %v2467 = vrot.slane %v2346, 1
        %v2468 = vrot.slane %v2347, 1
        %v2469 = vsel %vm467, %v2467, %v2468
        %v2470 = vrot.slane %v2348, 1
        %v2471 = vsel %vm467, %v2468, %v2470
        %v2472 = vrot.slane %v2349, 1
        %v2473 = vrot.slane %v2350, 1
        %v2474 = vsel %vm467, %v2472, %v2473
        %v2475 = vrot.slane %v2351, 1
        %v2476 = vsel %vm467, %v2473, %v2475
        %v2477 = vrot.slane %v2352, 1
        %v2478 = vrot.slane %v2353, 1
        %v2479 = vsel %vm467, %v2477, %v2478
        %v2480 = vrot.slane %v2354, 1
        %v2481 = vsel %vm467, %v2478, %v2480
        %v2482 = vrot.slane %v2355, 1
        %v2483 = vrot.slane %v2356, 1
        %v2484 = vsel %vm467, %v2482, %v2483
        %v2485 = vrot.slane %v2357, 1
        %v2486 = vsel %vm467, %v2483, %v2485
        %v2487 = vrot.slane %v2358, 1
        %v2488 = vrot.slane %v2359, 1
        %v2489 = vsel %vm467, %v2487, %v2488
        %v2490 = vrot.slane %v2360, 1
        %v2491 = vsel %vm467, %v2488, %v2490
        %v2492 = vrot.slane %v2361, 1
        %v2493 = vrot.slane %v2362, 1
        %v2494 = vsel %vm467, %v2492, %v2493
        %v2495 = vrot.slane %v2363, 1
        %v2496 = vsel %vm467, %v2493, %v2495
        %v2497 = vrot.slane %v2364, 1
        %v2498 = vrot.slane %v2365, 1
        %v2499 = vsel %vm467, %v2497, %v2498
        %v2500 = vrot.slane %v2366, 1
        %v2501 = vsel %vm467, %v2498, %v2500
        %v2534 = vrot.slane %v2319, 2
        %v2535 = vrot.slane %v2320, 2
        %v2536 = vsel %vm580, %v2534, %v2535
        %v2537 = vrot.slane %v2321, 2
        %v2538 = vsel %vm580, %v2535, %v2537
        %v2539 = vrot.slane %v2322, 2
        %v2540 = vrot.slane %v2323, 2
        %v2541 = vsel %vm580, %v2539, %v2540
        %v2542 = vrot.slane %v2324, 2
        %v2543 = vsel %vm580, %v2540, %v2542
        %v2544 = vrot.slane %v2325, 2
        %v2545 = vrot.slane %v2326, 2
        %v2546 = vsel %vm580, %v2544, %v2545
        %v2547 = vrot.slane %v2327, 2
        %v2548 = vsel %vm580, %v2545, %v2547
        %v2549 = vrot.slane %v2328, 2
        %v2550 = vrot.slane %v2329, 2
        %v2551 = vsel %vm580, %v2549, %v2550
        %v2552 = vrot.slane %v2330, 2
        %v2553 = vsel %vm580, %v2550, %v2552
        %v2554 = vrot.slane %v2331, 2
        %v2555 = vrot.slane %v2332, 2
        %v2556 = vsel %vm580, %v2554, %v2555
        %v2557 = vrot.slane %v2333, 2
        %v2558 = vsel %vm580, %v2555, %v2557
        %v2559 = vrot.slane %v2334, 2
        %v2560 = vrot.slane %v2335, 2
        %v2561 = vsel %vm580, %v2559, %v2560
        %v2562 = vrot.slane %v2336, 2
        %v2563 = vsel %vm580, %v2560, %v2562
        %v2564 = vrot.slane %v2337, 2
        %v2565 = vrot.slane %v2338, 2
        %v2566 = vsel %vm580, %v2564, %v2565
        %v2567 = vrot.slane %v2339, 2
        %v2568 = vsel %vm580, %v2565, %v2567
        %v2569 = vrot.slane %v2340, 2
        %v2570 = vrot.slane %v2341, 2
        %v2571 = vsel %vm580, %v2569, %v2570
        %v2572 = vrot.slane %v2342, 2
        %v2573 = vsel %vm580, %v2570, %v2572
        %v2574 = vrot.slane %v2343, 2
        %v2575 = vrot.slane %v2344, 2
        %v2576 = vsel %vm580, %v2574, %v2575
        %v2577 = vrot.slane %v2345, 2
        %v2578 = vsel %vm580, %v2575, %v2577
        %v2579 = vrot.slane %v2346, 2
        %v2580 = vrot.slane %v2347, 2
        %v2581 = vsel %vm580, %v2579, %v2580
        %v2582 = vrot.slane %v2348, 2
        %v2583 = vsel %vm580, %v2580, %v2582
        %v2584 = vrot.slane %v2349, 2
        %v2585 = vrot.slane %v2350, 2
        %v2586 = vsel %vm580, %v2584, %v2585
        %v2587 = vrot.slane %v2351, 2
        %v2588 = vsel %vm580, %v2585, %v2587
        %v2589 = vrot.slane %v2352, 2
        %v2590 = vrot.slane %v2353, 2
        %v2591 = vsel %vm580, %v2589, %v2590
        %v2592 = vrot.slane %v2354, 2
        %v2593 = vsel %vm580, %v2590, %v2592
        %v2594 = vrot.slane %v2355, 2
        %v2595 = vrot.slane %v2356, 2
        %v2596 = vsel %vm580, %v2594, %v2595
        %v2597 = vrot.slane %v2357, 2
        %v2598 = vsel %vm580, %v2595, %v2597
        %v2599 = vrot.slane %v2358, 2
        %v2600 = vrot.slane %v2359, 2
        %v2601 = vsel %vm580, %v2599, %v2600
        %v2602 = vrot.slane %v2360, 2
        %v2603 = vsel %vm580, %v2600, %v2602
        %v2604 = vrot.slane %v2361, 2
        %v2605 = vrot.slane %v2362, 2
        %v2606 = vsel %vm580, %v2604, %v2605
        %v2607 = vrot.slane %v2363, 2
        %v2608 = vsel %vm580, %v2605, %v2607
        %v2609 = vrot.slane %v2364, 2
        %v2610 = vrot.slane %v2365, 2
        %v2611 = vsel %vm580, %v2609, %v2610
        %v2612 = vrot.slane %v2366, 2
        %v2613 = vsel %vm580, %v2610, %v2612
        %v2649 = vrot.slane %v2367, 1
        %v2650 = vrot.slane %v2368, 1
        %v2651 = vsel %vm467, %v2649, %v2650
        %v2652 = vrot.slane %v2369, 1
        %v2653 = vsel %vm467, %v2650, %v2652
        %v2656 = vrot.slane %v2367, 2
        %v2657 = vrot.slane %v2368, 2
        %v2658 = vsel %vm580, %v2656, %v2657
        %v2659 = vrot.slane %v2369, 2
        %v2660 = vsel %vm580, %v2657, %v2659
        %v2666 = vrot.slane %v2370, 1
        %v2667 = vrot.slane %v2371, 1
        %v2668 = vsel %vm467, %v2666, %v2667
        %v2669 = vrot.slane %v2372, 1
        %v2670 = vsel %vm467, %v2667, %v2669
        %v2673 = vrot.slane %v2370, 2
        %v2674 = vrot.slane %v2371, 2
        %v2675 = vsel %vm580, %v2673, %v2674
        %v2676 = vrot.slane %v2372, 2
        %v2677 = vsel %vm580, %v2674, %v2676
        %v2680 = vpack.c.bf16 %v2320, %v2319
        %v2681 = vpack.c.bf16 %v2426, %v2424
        %v2682 = vpack.c.bf16 %v2538, %v2536
        %v2683 = vpack.c.bf16 %v2323, %v2322
        %v2684 = vpack.c.bf16 %v2431, %v2429
        %v2685 = vpack.c.bf16 %v2543, %v2541
        %v2686 = vpack.c.bf16 %v2326, %v2325
        %v2687 = vpack.c.bf16 %v2436, %v2434
        %v2688 = vpack.c.bf16 %v2548, %v2546
        %v2689 = vpack.c.bf16 %v2329, %v2328
        %v2690 = vpack.c.bf16 %v2441, %v2439
        %v2691 = vpack.c.bf16 %v2553, %v2551
        %v2692 = vpack.c.bf16 %v2332, %v2331
        %v2693 = vpack.c.bf16 %v2446, %v2444
        %v2694 = vpack.c.bf16 %v2558, %v2556
        %v2695 = vpack.c.bf16 %v2335, %v2334
        %v2696 = vpack.c.bf16 %v2451, %v2449
        %v2697 = vpack.c.bf16 %v2563, %v2561
        %v2698 = vpack.c.bf16 %v2338, %v2337
        %v2699 = vpack.c.bf16 %v2456, %v2454
        %v2700 = vpack.c.bf16 %v2568, %v2566
        %v2701 = vpack.c.bf16 %v2341, %v2340
        %v2702 = vpack.c.bf16 %v2461, %v2459
        %v2703 = vpack.c.bf16 %v2573, %v2571
        %v2704 = vpack.c.bf16 %v2344, %v2343
        %v2705 = vpack.c.bf16 %v2466, %v2464
        %v2706 = vpack.c.bf16 %v2578, %v2576
        %v2707 = vpack.c.bf16 %v2347, %v2346
        %v2708 = vpack.c.bf16 %v2471, %v2469
        %v2709 = vpack.c.bf16 %v2583, %v2581
        %v2710 = vpack.c.bf16 %v2350, %v2349
        %v2711 = vpack.c.bf16 %v2476, %v2474
        %v2712 = vpack.c.bf16 %v2588, %v2586
        %v2713 = vpack.c.bf16 %v2353, %v2352
        %v2714 = vpack.c.bf16 %v2481, %v2479
        %v2715 = vpack.c.bf16 %v2593, %v2591
        %v2716 = vpack.c.bf16 %v2356, %v2355
        %v2717 = vpack.c.bf16 %v2486, %v2484
        %v2718 = vpack.c.bf16 %v2598, %v2596
        %v2719 = vpack.c.bf16 %v2359, %v2358
        %v2720 = vpack.c.bf16 %v2491, %v2489
        %v2721 = vpack.c.bf16 %v2603, %v2601
        %v2722 = vpack.c.bf16 %v2362, %v2361
        %v2723 = vpack.c.bf16 %v2496, %v2494
        %v2724 = vpack.c.bf16 %v2608, %v2606
        %v2725 = vpack.c.bf16 %v2365, %v2364
        %v2726 = vpack.c.bf16 %v2501, %v2499
        %v2727 = vpack.c.bf16 %v2613, %v2611
        %v2728 = vpack.c.bf16 %v2368, %v2367
        %v2729 = vpack.c.bf16 %v2653, %v2651
        %v2730 = vpack.c.bf16 %v2660, %v2658
        %v2731 = vpack.c.bf16 %v2371, %v2370
        %v2732 = vpack.c.bf16 %v2670, %v2668
        %v2733 = vpack.c.bf16 %v2677, %v2675
        %v2734 = vld [vmem:[#allocation5] sm:$0xf]
        %v2735 = vld [vmem:[#allocation5 + $0x4] sm:$0xf]
        %v2736 = vld [vmem:[#allocation5 + $0x8] sm:$0xf]
        %v2737 = vld [vmem:[#allocation5 + $0xc] sm:$0xf]
        %v2738 = vld [vmem:[#allocation5 + $0x10] sm:$0xf]
        %v2739 = vld [vmem:[#allocation5 + $0x14] sm:$0xf]
        %v2740 = vld [vmem:[#allocation5 + $0x18] sm:$0xf]
        %v2741 = vld [vmem:[#allocation5 + $0x1c] sm:$0xf]
        %v2742 = vld [vmem:[#allocation5 + $0x20] sm:$0xf]
        %v2743 = vld [vmem:[#allocation5 + $0x24] sm:$0xf]
        %v2744 = vld [vmem:[#allocation5 + $0x28] sm:$0xf]
        %v2745 = vld [vmem:[#allocation5 + $0x2c] sm:$0xf]
        %v2746 = vld [vmem:[#allocation5 + $0x30] sm:$0xf]
        %v2747 = vld [vmem:[#allocation5 + $0x34] sm:$0xf]
        %v2748 = vld [vmem:[#allocation5 + $0x38] sm:$0xf]
        %v2749 = vld [vmem:[#allocation5 + $0x3c] sm:$0xf]
        %v2750 = vld [vmem:[#allocation5 + $0x40] sm:$0xf]
        %v2751 = vld [vmem:[#allocation5 + $0x44] sm:$0xf]
        %v2752 = vld [vmem:[#allocation5 + $0x48] sm:$0xf]
        %v2753 = vld [vmem:[#allocation5 + $0x4c] sm:$0xf]
        %v2754 = vld [vmem:[#allocation5 + $0x50] sm:$0xf]
        %v2755 = vld [vmem:[#allocation5 + $0x54] sm:$0xf]
        %v2756 = vld [vmem:[#allocation5 + $0x58] sm:$0xf]
        %v2757 = vld [vmem:[#allocation5 + $0x5c] sm:$0xf]
        %v2758 = vld [vmem:[#allocation5 + $0x60] sm:$0xf]
        %v2759 = vld [vmem:[#allocation5 + $0x64] sm:$0xf]
        %v2760 = vld [vmem:[#allocation5 + $0x68] sm:$0xf]
        %v2761 = vld [vmem:[#allocation5 + $0x6c] sm:$0xf]
        %v2762 = vld [vmem:[#allocation5 + $0x70] sm:$0xf]
        %v2763 = vld [vmem:[#allocation5 + $0x74] sm:$0xf]
        %v2764 = vld [vmem:[#allocation5 + $0x78] sm:$0xf]
        %v2765 = vld [vmem:[#allocation5 + $0x7c] sm:$0xf]
        %v2766 = vld [vmem:[#allocation5 + $0x80] sm:$0xf]
        %v2767 = vld [vmem:[#allocation5 + $0x84] sm:$0xf]
        %v2768 = vld [vmem:[#allocation5 + $0x88] sm:$0xf]
        %v2769 = vld [vmem:[#allocation5 + $0x8c] sm:$0xf]
        %v2770 = vld [vmem:[#allocation5 + $0x90] sm:$0xf]
        %v2771 = vld [vmem:[#allocation5 + $0x94] sm:$0xf]
        %v2772 = vld [vmem:[#allocation5 + $0x98] sm:$0xf]
        %v2773 = vld [vmem:[#allocation5 + $0x9c] sm:$0xf]
        %v2774 = vld [vmem:[#allocation5 + $0xa0] sm:$0xf]
        %v2775 = vld [vmem:[#allocation5 + $0xa4] sm:$0xf]
        %v2776 = vld [vmem:[#allocation5 + $0xa8] sm:$0xf]
        %v2777 = vld [vmem:[#allocation5 + $0xac] sm:$0xf]
        %v2778 = vld [vmem:[#allocation5 + $0xb0] sm:$0xf]
        %v2779 = vld [vmem:[#allocation5 + $0xb4] sm:$0xf]
        %v2780 = vld [vmem:[#allocation5 + $0xb8] sm:$0xf]
        %v2781 = vld [vmem:[#allocation5 + $0xbc] sm:$0xf]
        %v2782 = vld [vmem:[#allocation5 + $0xc0] sm:$0xf]
        %v2783 = vld [vmem:[#allocation5 + $0xc4] sm:$0xf]
        %v2784 = vld [vmem:[#allocation5 + $0xc8] sm:$0xf]
        %v2785 = vld [vmem:[#allocation5 + $0xcc] sm:$0xf]
        %v2786 = vld [vmem:[#allocation5 + $0xd0] sm:$0xf]
        %v2787 = vld [vmem:[#allocation5 + $0xd4] sm:$0xf]
        %v2788 = vld [vmem:[#allocation5 + $0xd8] sm:$0xf]
        %v2789 = vld [vmem:[#allocation5 + $0xdc] sm:$0xf]
        %v2790 = vld [vmem:[#allocation5 + $0xe0] sm:$0xf]
        %v2791 = vld [vmem:[#allocation5 + $0xe4] sm:$0xf]
        %v2792 = vld [vmem:[#allocation5 + $0xe8] sm:$0xf]
        %v2793 = vld [vmem:[#allocation5 + $0xec] sm:$0xf]
        %v2794 = vld [vmem:[#allocation5 + $0xf0] sm:$0xf]
        %v2795 = vld [vmem:[#allocation5 + $0xf4] sm:$0xf]
        %v2796 = vld [vmem:[#allocation5 + $0xf8] sm:$0xf]
        %v2797 = vld [vmem:[#allocation5 + $0xfc] sm:$0xf]
        %v2798 = vld [vmem:[#allocation5 + $0x100] sm:$0xf]
        %v2799 = vld [vmem:[#allocation5 + $0x104] sm:$0xf]
        %v2800 = vld [vmem:[#allocation5 + $0x108] sm:$0xf]
        %v2801 = vld [vmem:[#allocation5 + $0x10c] sm:$0xf]
        %v2802 = vld [vmem:[#allocation5 + $0x110] sm:$0xf]
        %v2803 = vld [vmem:[#allocation5 + $0x114] sm:$0xf]
        %v2804 = vld [vmem:[#allocation5 + $0x118] sm:$0xf]
        %v2805 = vld [vmem:[#allocation5 + $0x11c] sm:$0xf]
        %v2806 = vld [vmem:[#allocation5 + $0x120] sm:$0xf]
        %v2807 = vld [vmem:[#allocation5 + $0x124] sm:$0xf]
        %v2808 = vld [vmem:[#allocation5 + $0x128] sm:$0xf]
        %v2809 = vld [vmem:[#allocation5 + $0x12c] sm:$0xf]
        %v2810 = vld [vmem:[#allocation5 + $0x130] sm:$0xf]
        %v2811 = vld [vmem:[#allocation5 + $0x134] sm:$0xf]
        %v2812 = vld [vmem:[#allocation5 + $0x138] sm:$0xf]
        %v2813 = vld [vmem:[#allocation5 + $0x13c] sm:$0xf]
        %v2814 = vld [vmem:[#allocation5 + $0x140] sm:$0xf]
        %v2815 = vld [vmem:[#allocation5 + $0x144] sm:$0xf]
        %v2816 = vld [vmem:[#allocation5 + $0x148] sm:$0xf]
        %v2817 = vld [vmem:[#allocation5 + $0x14c] sm:$0xf]
        %v2818 = vld [vmem:[#allocation5 + $0x150] sm:$0xf]
        %v2819 = vld [vmem:[#allocation5 + $0x154] sm:$0xf]
        %v2820 = vld [vmem:[#allocation5 + $0x158] sm:$0xf]
        %v2821 = vld [vmem:[#allocation5 + $0x15c] sm:$0xf]
        %v2822 = vld [vmem:[#allocation5 + $0x160] sm:$0xf]
        %v2823 = vld [vmem:[#allocation5 + $0x164] sm:$0xf]
        %v2824 = vld [vmem:[#allocation5 + $0x168] sm:$0xf]
        %v2825 = vld [vmem:[#allocation5 + $0x16c] sm:$0xf]
        %v2826 = vld [vmem:[#allocation5 + $0x170] sm:$0xf]
        %v2827 = vld [vmem:[#allocation5 + $0x174] sm:$0xf]
        %v2828 = vld [vmem:[#allocation5 + $0x178] sm:$0xf]
        %v2829 = vld [vmem:[#allocation5 + $0x17c] sm:$0xf]
        %v2830 = vld [vmem:[#allocation5 + $0x180] sm:$0xf]
        %v2831 = vld [vmem:[#allocation5 + $0x184] sm:$0xf]
        %v2832 = vld [vmem:[#allocation5 + $0x188] sm:$0xf]
        %v2833 = vld [vmem:[#allocation5 + $0x18c] sm:$0xf]
        %v2834 = vld [vmem:[#allocation5 + $0x190] sm:$0xf]
        %v2835 = vld [vmem:[#allocation5 + $0x194] sm:$0xf]
        %v2836 = vld [vmem:[#allocation5 + $0x198] sm:$0xf]
        %v2837 = vld [vmem:[#allocation5 + $0x19c] sm:$0xf]
        %v2838 = vld [vmem:[#allocation5 + $0x1a0] sm:$0xf]
        %v2839 = vld [vmem:[#allocation5 + $0x1a4] sm:$0xf]
        %v2840 = vld [vmem:[#allocation5 + $0x1a8] sm:$0xf]
        %v2841 = vld [vmem:[#allocation5 + $0x1ac] sm:$0xf]
        %v2842 = vld [vmem:[#allocation5 + $0x1b0] sm:$0xf]
        %v2843 = vld [vmem:[#allocation5 + $0x1b4] sm:$0xf]
        %v2844 = vld [vmem:[#allocation5 + $0x1b8] sm:$0xf]
        %v2845 = vld [vmem:[#allocation5 + $0x1bc] sm:$0xf]
        %v2846 = vld [vmem:[#allocation5 + $0x1c0] sm:$0xf]
        %v2847 = vld [vmem:[#allocation5 + $0x1c4] sm:$0xf]
        %v2848 = vld [vmem:[#allocation5 + $0x1c8] sm:$0xf]
        %v2849 = vld [vmem:[#allocation5 + $0x1cc] sm:$0xf]
        %v2850 = vld [vmem:[#allocation5 + $0x1d0] sm:$0xf]
        %v2851 = vld [vmem:[#allocation5 + $0x1d4] sm:$0xf]
        %v2852 = vld [vmem:[#allocation5 + $0x1d8] sm:$0xf]
        %v2853 = vld [vmem:[#allocation5 + $0x1dc] sm:$0xf]
        %v2854 = vld [vmem:[#allocation5 + $0x1e0] sm:$0xf]
        %v2855 = vld [vmem:[#allocation5 + $0x1e4] sm:$0xf]
        %v2856 = vld [vmem:[#allocation5 + $0x1e8] sm:$0xf]
        %v2857 = vld [vmem:[#allocation5 + $0x1ec] sm:$0xf]
        %v2858 = vld [vmem:[#allocation5 + $0x1f0] sm:$0xf]
        %v2859 = vld [vmem:[#allocation5 + $0x1f4] sm:$0xf]
        %v2860 = vld [vmem:[#allocation5 + $0x1f8] sm:$0xf]
        %v2861 = vld [vmem:[#allocation5 + $0x1fc] sm:$0xf]
        %v2862 = vld [vmem:[#allocation5 + $0x200] sm:$0xf]
        %v2863 = vld [vmem:[#allocation5 + $0x204] sm:$0xf]
        %v2864 = vld [vmem:[#allocation5 + $0x208] sm:$0xf]
        %v2865 = vld [vmem:[#allocation5 + $0x20c] sm:$0xf]
        %v2866 = vld [vmem:[#allocation5 + $0x210] sm:$0xf]
        %v2867 = vld [vmem:[#allocation5 + $0x214] sm:$0xf]
        %v2868 = vld [vmem:[#allocation5 + $0x218] sm:$0xf]
        %v2869 = vld [vmem:[#allocation5 + $0x21c] sm:$0xf]
        %v2870 = vld [vmem:[#allocation5 + $0x220] sm:$0xf]
        %v2871 = vld [vmem:[#allocation5 + $0x224] sm:$0xf]
        %v2872 = vld [vmem:[#allocation5 + $0x228] sm:$0xf]
        %v2873 = vld [vmem:[#allocation5 + $0x22c] sm:$0xf]
        %v2874 = vld [vmem:[#allocation5 + $0x230] sm:$0xf]
        %v2875 = vld [vmem:[#allocation5 + $0x234] sm:$0xf]
        %v2876 = vld [vmem:[#allocation5 + $0x238] sm:$0xf]
        %v2877 = vld [vmem:[#allocation5 + $0x23c] sm:$0xf]
        %v2879 = vlaneseq
        %v2880 = vshrl.u32 %v2879, 7
        %v2881 = vsub.s32 0, %v2880
        %v2882 = vrot.slane %v2373, %v2881
        %v3028 = vunpack.c.l.b16 %v2734
        %v3029 = vunpack.c.l.b16 %v2735
        %v3030 = vunpack.c.l.b16 %v2736
        %v3031 = vunpack.c.l.b16 %v2737
        %v3032 = vunpack.c.l.b16 %v2738
        %v3033 = vunpack.c.l.b16 %v2739
        %v3034 = vunpack.c.l.b16 %v2740
        %v3035 = vunpack.c.l.b16 %v2741
        %v3036 = vunpack.c.l.b16 %v2742
        %v3037 = vunpack.c.l.b16 %v2743
        %v3038 = vunpack.c.l.b16 %v2744
        %v3039 = vunpack.c.l.b16 %v2745
        %v3040 = vunpack.c.l.b16 %v2746
        %v3041 = vunpack.c.l.b16 %v2747
        %v3042 = vunpack.c.l.b16 %v2748
        %v3043 = vunpack.c.l.b16 %v2749
        %v3044 = vunpack.c.l.b16 %v2750
        %v3045 = vunpack.c.l.b16 %v2751
        %v3046 = vunpack.c.l.b16 %v2752
        %v3047 = vunpack.c.l.b16 %v2753
        %v3048 = vunpack.c.l.b16 %v2754
        %v3049 = vunpack.c.l.b16 %v2755
        %v3050 = vunpack.c.l.b16 %v2756
        %v3051 = vunpack.c.l.b16 %v2757
        %v3052 = vunpack.c.l.b16 %v2758
        %v3053 = vunpack.c.l.b16 %v2759
        %v3054 = vunpack.c.l.b16 %v2760
        %v3055 = vunpack.c.l.b16 %v2761
        %v3056 = vunpack.c.l.b16 %v2762
        %v3057 = vunpack.c.l.b16 %v2763
        %v3058 = vunpack.c.l.b16 %v2764
        %v3059 = vunpack.c.l.b16 %v2765
        %v3060 = vunpack.c.l.b16 %v2766
        %v3061 = vunpack.c.l.b16 %v2767
        %v3062 = vunpack.c.l.b16 %v2768
        %v3063 = vunpack.c.l.b16 %v2769
        %v3064 = vunpack.c.l.b16 %v2770
        %v3065 = vunpack.c.l.b16 %v2771
        %v3066 = vunpack.c.l.b16 %v2772
        %v3067 = vunpack.c.l.b16 %v2773
        %v3068 = vunpack.c.l.b16 %v2774
        %v3069 = vunpack.c.l.b16 %v2775
        %v3070 = vunpack.c.l.b16 %v2776
        %v3071 = vunpack.c.l.b16 %v2777
        %v3072 = vunpack.c.l.b16 %v2778
        %v3073 = vunpack.c.l.b16 %v2779
        %v3074 = vunpack.c.l.b16 %v2780
        %v3075 = vunpack.c.l.b16 %v2781
        %v3076 = vunpack.c.l.b16 %v2782
        %v3077 = vunpack.c.l.b16 %v2783
        %v3078 = vunpack.c.l.b16 %v2784
        %v3079 = vunpack.c.l.b16 %v2785
        %v3080 = vunpack.c.l.b16 %v2786
        %v3081 = vunpack.c.l.b16 %v2787
        %v3082 = vunpack.c.l.b16 %v2788
        %v3083 = vunpack.c.l.b16 %v2789
        %v3084 = vunpack.c.l.b16 %v2790
        %v3085 = vunpack.c.l.b16 %v2791
        %v3086 = vunpack.c.l.b16 %v2792
        %v3087 = vunpack.c.l.b16 %v2793
        %v3088 = vunpack.c.l.b16 %v2794
        %v3089 = vunpack.c.l.b16 %v2795
        %v3090 = vunpack.c.l.b16 %v2796
        %v3091 = vunpack.c.l.b16 %v2797
        %v3092 = vunpack.c.l.b16 %v2798
        %v3093 = vunpack.c.l.b16 %v2799
        %v3094 = vunpack.c.l.b16 %v2800
        %v3095 = vunpack.c.l.b16 %v2801
        %v3096 = vunpack.c.l.b16 %v2802
        %v3097 = vunpack.c.l.b16 %v2803
        %v3098 = vunpack.c.l.b16 %v2804
        %v3099 = vunpack.c.l.b16 %v2805
        %v3100 = vunpack.c.l.b16 %v2806
        %v3101 = vunpack.c.l.b16 %v2807
        %v3102 = vunpack.c.l.b16 %v2808
        %v3103 = vunpack.c.l.b16 %v2809
        %v3104 = vunpack.c.l.b16 %v2810
        %v3105 = vunpack.c.l.b16 %v2811
        %v3106 = vunpack.c.l.b16 %v2812
        %v3107 = vunpack.c.l.b16 %v2813
        %v3108 = vunpack.c.l.b16 %v2814
        %v3109 = vunpack.c.l.b16 %v2815
        %v3110 = vunpack.c.l.b16 %v2816
        %v3111 = vunpack.c.l.b16 %v2817
        %v3112 = vunpack.c.l.b16 %v2818
        %v3113 = vunpack.c.l.b16 %v2819
        %v3114 = vunpack.c.l.b16 %v2820
        %v3115 = vunpack.c.l.b16 %v2821
        %v3116 = vunpack.c.l.b16 %v2822
        %v3117 = vunpack.c.l.b16 %v2823
        %v3118 = vunpack.c.l.b16 %v2824
        %v3119 = vunpack.c.l.b16 %v2825
        %v3120 = vunpack.c.l.b16 %v2826
        %v3121 = vunpack.c.l.b16 %v2827
        %v3122 = vunpack.c.l.b16 %v2828
        %v3123 = vunpack.c.l.b16 %v2829
        %v3124 = vunpack.c.l.b16 %v2830
        %v3125 = vunpack.c.l.b16 %v2831
        %v3126 = vunpack.c.l.b16 %v2832
        %v3127 = vunpack.c.l.b16 %v2833
        %v3128 = vunpack.c.l.b16 %v2834
        %v3129 = vunpack.c.l.b16 %v2835
        %v3130 = vunpack.c.l.b16 %v2836
        %v3131 = vunpack.c.l.b16 %v2837
        %v3132 = vunpack.c.l.b16 %v2838
        %v3133 = vunpack.c.l.b16 %v2839
        %v3134 = vunpack.c.l.b16 %v2840
        %v3135 = vunpack.c.l.b16 %v2841
        %v3136 = vunpack.c.l.b16 %v2842
        %v3137 = vunpack.c.l.b16 %v2843
        %v3138 = vunpack.c.l.b16 %v2844
        %v3139 = vunpack.c.l.b16 %v2845
        %v3140 = vunpack.c.l.b16 %v2846
        %v3141 = vunpack.c.l.b16 %v2847
        %v3142 = vunpack.c.l.b16 %v2848
        %v3143 = vunpack.c.l.b16 %v2849
        %v3144 = vunpack.c.l.b16 %v2850
        %v3145 = vunpack.c.l.b16 %v2851
        %v3146 = vunpack.c.l.b16 %v2852
        %v3147 = vunpack.c.l.b16 %v2853
        %v3148 = vunpack.c.l.b16 %v2854
        %v3149 = vunpack.c.l.b16 %v2855
        %v3150 = vunpack.c.l.b16 %v2856
        %v3151 = vunpack.c.l.b16 %v2857
        %v3152 = vunpack.c.l.b16 %v2858
        %v3153 = vunpack.c.l.b16 %v2859
        %v3154 = vunpack.c.l.b16 %v2860
        %v3155 = vunpack.c.l.b16 %v2861
        %v3156 = vunpack.c.l.b16 %v2862
        %v3157 = vunpack.c.l.b16 %v2863
        %v3158 = vunpack.c.l.b16 %v2864
        %v3159 = vunpack.c.l.b16 %v2865
        %v3160 = vunpack.c.l.b16 %v2866
        %v3161 = vunpack.c.l.b16 %v2867
        %v3162 = vunpack.c.l.b16 %v2868
        %v3163 = vunpack.c.l.b16 %v2869
        %v3164 = vunpack.c.l.b16 %v2870
        %v3165 = vunpack.c.l.b16 %v2871
        %v3166 = vunpack.c.l.b16 %v2872
        %v3167 = vunpack.c.l.b16 %v2873
        %v3168 = vunpack.c.l.b16 %v2874
        %v3169 = vunpack.c.l.b16 %v2875
        %v3170 = vunpack.c.l.b16 %v2876
        %v3171 = vunpack.c.l.b16 %v2877
        %v3172 = vpack.c.b16 %v3029, %v3028
        %v3173 = vpack.c.b16 %v3031, %v3030
        %v3174 = vpack.c.b16 %v3033, %v3032
        %v3175 = vpack.c.b16 %v3035, %v3034
        %v3176 = vpack.c.b16 %v3037, %v3036
        %v3177 = vpack.c.b16 %v3039, %v3038
        %v3178 = vpack.c.b16 %v3041, %v3040
        %v3179 = vpack.c.b16 %v3043, %v3042
        %v3180 = vpack.c.b16 %v3045, %v3044
        %v3181 = vpack.c.b16 %v3047, %v3046
        %v3182 = vpack.c.b16 %v3049, %v3048
        %v3183 = vpack.c.b16 %v3051, %v3050
        %v3184 = vpack.c.b16 %v3053, %v3052
        %v3185 = vpack.c.b16 %v3055, %v3054
        %v3186 = vpack.c.b16 %v3057, %v3056
        %v3187 = vpack.c.b16 %v3059, %v3058
        %v3188 = vpack.c.b16 %v3061, %v3060
        %v3189 = vpack.c.b16 %v3063, %v3062
        %v3190 = vpack.c.b16 %v3065, %v3064
        %v3191 = vpack.c.b16 %v3067, %v3066
        %v3192 = vpack.c.b16 %v3069, %v3068
        %v3193 = vpack.c.b16 %v3071, %v3070
        %v3194 = vpack.c.b16 %v3073, %v3072
        %v3195 = vpack.c.b16 %v3075, %v3074
        %v3196 = vpack.c.b16 %v3077, %v3076
        %v3197 = vpack.c.b16 %v3079, %v3078
        %v3198 = vpack.c.b16 %v3081, %v3080
        %v3199 = vpack.c.b16 %v3083, %v3082
        %v3200 = vpack.c.b16 %v3085, %v3084
        %v3201 = vpack.c.b16 %v3087, %v3086
        %v3202 = vpack.c.b16 %v3089, %v3088
        %v3203 = vpack.c.b16 %v3091, %v3090
        %v3204 = vpack.c.b16 %v3093, %v3092
        %v3205 = vpack.c.b16 %v3095, %v3094
        %v3206 = vpack.c.b16 %v3097, %v3096
        %v3207 = vpack.c.b16 %v3099, %v3098
        %v3208 = vpack.c.b16 %v3101, %v3100
        %v3209 = vpack.c.b16 %v3103, %v3102
        %v3210 = vpack.c.b16 %v3105, %v3104
        %v3211 = vpack.c.b16 %v3107, %v3106
        %v3212 = vpack.c.b16 %v3109, %v3108
        %v3213 = vpack.c.b16 %v3111, %v3110
        %v3214 = vpack.c.b16 %v3113, %v3112
        %v3215 = vpack.c.b16 %v3115, %v3114
        %v3216 = vpack.c.b16 %v3117, %v3116
        %v3217 = vpack.c.b16 %v3119, %v3118
        %v3218 = vpack.c.b16 %v3121, %v3120
        %v3219 = vpack.c.b16 %v3123, %v3122
        %v3220 = vpack.c.b16 %v3125, %v3124
        %v3221 = vpack.c.b16 %v3127, %v3126
        %v3222 = vpack.c.b16 %v3129, %v3128
        %v3223 = vpack.c.b16 %v3131, %v3130
        %v3224 = vpack.c.b16 %v3133, %v3132
        %v3225 = vpack.c.b16 %v3135, %v3134
        %v3226 = vpack.c.b16 %v3137, %v3136
        %v3227 = vpack.c.b16 %v3139, %v3138
        %v3228 = vpack.c.b16 %v3141, %v3140
        %v3229 = vpack.c.b16 %v3143, %v3142
        %v3230 = vpack.c.b16 %v3145, %v3144
        %v3231 = vpack.c.b16 %v3147, %v3146
        %v3232 = vpack.c.b16 %v3149, %v3148
        %v3233 = vpack.c.b16 %v3151, %v3150
        %v3234 = vpack.c.b16 %v3153, %v3152
        %v3235 = vpack.c.b16 %v3155, %v3154
        %v3236 = vpack.c.b16 %v3157, %v3156
        %v3237 = vpack.c.b16 %v3159, %v3158
        %v3238 = vpack.c.b16 %v3161, %v3160
        %v3239 = vpack.c.b16 %v3163, %v3162
        %v3240 = vpack.c.b16 %v3165, %v3164
        %v3241 = vpack.c.b16 %v3167, %v3166
        %v3242 = vpack.c.b16 %v3169, %v3168
        %v3243 = vpack.c.b16 %v3171, %v3170
        %3316 = vmatprep.subr.bf16.mxu0 0
        %3317 = vmatpush1.bf16.msra.mxu0 %v3172
        %3318 = vmatprep.subr.bf16.mxu0 0
        %3319 = vmatpush1.bf16.msra.mxu0 %v3173
        %3320 = vmatprep.subr.bf16.mxu0 0
        %3321 = vmatpush1.bf16.msra.mxu0 %v3174
        %3322 = vmatprep.subr.bf16.mxu0 0
        %3323 = vmatpush1.bf16.msra.mxu0 %v3175
        %3324 = vmatprep.subr.bf16.mxu0 0
        %3325 = vmatpush1.bf16.msra.mxu0 %v3176
        %3326 = vmatprep.subr.bf16.mxu0 0
        %3327 = vmatpush1.bf16.msra.mxu0 %v3177
        %3328 = vmatprep.subr.bf16.mxu0 0
        %3329 = vmatpush1.bf16.msra.mxu0 %v3178
        %3330 = vmatprep.subr.bf16.mxu0 0
        %3331 = vmatpush1.bf16.msra.mxu0 %v3179
        %3332 = vmatprep.subr.bf16.mxu0 0
        %3333 = vmatpush1.bf16.msra.mxu0 %v3180
        %3334 = vmatprep.subr.bf16.mxu0 0
        %3335 = vmatpush1.bf16.msra.mxu0 %v3181
        %3336 = vmatprep.subr.bf16.mxu0 0
        %3337 = vmatpush1.bf16.msra.mxu0 %v3182
        %3338 = vmatprep.subr.bf16.mxu0 0
        %3339 = vmatpush1.bf16.msra.mxu0 %v3183
        %3340 = vmatprep.subr.bf16.mxu0 0
        %3341 = vmatpush1.bf16.msra.mxu0 %v3184
        %3342 = vmatprep.subr.bf16.mxu0 0
        %3343 = vmatpush1.bf16.msra.mxu0 %v3185
        %3344 = vmatprep.subr.bf16.mxu0 0
        %3345 = vmatpush1.bf16.msra.mxu0 %v3186
        %3346 = vmatprep.subr.bf16.mxu0 0
        %3347 = vmatpush1.bf16.msra.mxu0 %v3187
        %3348 = vmatprep.mubr.bf16.mxu0 %v2681
        %3349 = vmatmul.mubr.bf16.gmra.mrb[0].mxu0 %v2680
        %v3350 = vpop.f32.mrb[0].mxu0
        %v3351 = vadd.f32 %v2882, %v3350
        %v3352 = vpop.f32.mrb[0].mxu0
        %v3353 = vpop.f32.mrb[0].mxu0
        %v3354 = vadd.f32 %v2882, %v3353
        %v3355 = vpop.f32.mrb[0].mxu0
        %3356 = vmatprep.mubr.bf16.mxu0 %v2684
        %3357 = vmatmul.mubr.bf16.gmra.mrb[0].mxu0 %v2683
        %v3358 = vpop.f32.mrb[0].mxu0
        %v3359 = vadd.f32 %v2882, %v3358
        %v3360 = vpop.f32.mrb[0].mxu0
        %v3361 = vpop.f32.mrb[0].mxu0
        %v3362 = vadd.f32 %v2882, %v3361
        %v3363 = vpop.f32.mrb[0].mxu0
        %3364 = vmatprep.mubr.bf16.mxu0 %v2687
        %3365 = vmatmul.mubr.bf16.gmra.mrb[0].mxu0 %v2686
        %v3366 = vpop.f32.mrb[0].mxu0
        %v3367 = vadd.f32 %v2882, %v3366
        %v3368 = vpop.f32.mrb[0].mxu0
        %v3369 = vpop.f32.mrb[0].mxu0
        %v3370 = vadd.f32 %v2882, %v3369
        %v3371 = vpop.f32.mrb[0].mxu0
        %3372 = vmatprep.mubr.bf16.mxu0 %v2690
        %3373 = vmatmul.mubr.bf16.gmra.mrb[0].mxu0 %v2689
        %v3374 = vpop.f32.mrb[0].mxu0
        %v3375 = vadd.f32 %v2882, %v3374
        %v3376 = vpop.f32.mrb[0].mxu0
        %v3377 = vpop.f32.mrb[0].mxu0
        %v3378 = vadd.f32 %v2882, %v3377
        %v3379 = vpop.f32.mrb[0].mxu0
        %3380 = vmatprep.mubr.bf16.mxu0 %v2693
        %3381 = vmatmul.mubr.bf16.gmra.mrb[0].mxu0 %v2692
        %v3382 = vpop.f32.mrb[0].mxu0
        %v3383 = vadd.f32 %v2882, %v3382
        %v3384 = vpop.f32.mrb[0].mxu0
        %v3385 = vpop.f32.mrb[0].mxu0
        %v3386 = vadd.f32 %v2882, %v3385
        %v3387 = vpop.f32.mrb[0].mxu0
        %3388 = vmatprep.mubr.bf16.mxu0 %v2696
        %3389 = vmatmul.mubr.bf16.gmra.mrb[0].mxu0 %v2695
        %v3390 = vpop.f32.mrb[0].mxu0
        %v3391 = vadd.f32 %v2882, %v3390
        %v3392 = vpop.f32.mrb[0].mxu0
        %v3393 = vpop.f32.mrb[0].mxu0
        %v3394 = vadd.f32 %v2882, %v3393
        %v3395 = vpop.f32.mrb[0].mxu0
        %3396 = vmatprep.mubr.bf16.mxu0 %v2699
        %3397 = vmatmul.mubr.bf16.gmra.mrb[0].mxu0 %v2698
        %v3398 = vpop.f32.mrb[0].mxu0
        %v3399 = vadd.f32 %v2882, %v3398
        %v3400 = vpop.f32.mrb[0].mxu0
        %v3401 = vpop.f32.mrb[0].mxu0
        %v3402 = vadd.f32 %v2882, %v3401
        %v3403 = vpop.f32.mrb[0].mxu0
        %3404 = vmatprep.mubr.bf16.mxu0 %v2702
        %3405 = vmatmul.mubr.bf16.gmra.mrb[0].mxu0 %v2701
        %v3406 = vpop.f32.mrb[0].mxu0
        %v3407 = vadd.f32 %v2882, %v3406
        %v3408 = vpop.f32.mrb[0].mxu0
        %v3409 = vpop.f32.mrb[0].mxu0
        %v3410 = vadd.f32 %v2882, %v3409
        %v3411 = vpop.f32.mrb[0].mxu0
        %3412 = vmatprep.mubr.bf16.mxu0 %v2705
        %3413 = vmatmul.mubr.bf16.gmra.mrb[0].mxu0 %v2704
        %v3414 = vpop.f32.mrb[0].mxu0
        %v3415 = vadd.f32 %v2882, %v3414
        %v3416 = vpop.f32.mrb[0].mxu0
        %v3417 = vpop.f32.mrb[0].mxu0
        %v3418 = vadd.f32 %v2882, %v3417
        %v3419 = vpop.f32.mrb[0].mxu0
        %3420 = vmatprep.mubr.bf16.mxu0 %v2708
        %3421 = vmatmul.mubr.bf16.gmra.mrb[0].mxu0 %v2707
        %v3422 = vpop.f32.mrb[0].mxu0
        %v3423 = vadd.f32 %v2882, %v3422
        %v3424 = vpop.f32.mrb[0].mxu0
        %v3425 = vpop.f32.mrb[0].mxu0
        %v3426 = vadd.f32 %v2882, %v3425
        %v3427 = vpop.f32.mrb[0].mxu0
        %3428 = vmatprep.mubr.bf16.mxu0 %v2711
        %3429 = vmatmul.mubr.bf16.gmra.mrb[0].mxu0 %v2710
        %v3430 = vpop.f32.mrb[0].mxu0
        %v3431 = vadd.f32 %v2882, %v3430
        %v3432 = vpop.f32.mrb[0].mxu0
        %v3433 = vpop.f32.mrb[0].mxu0
        %v3434 = vadd.f32 %v2882, %v3433
        %v3435 = vpop.f32.mrb[0].mxu0
        %3436 = vmatprep.mubr.bf16.mxu0 %v2714
        %3437 = vmatmul.mubr.bf16.gmra.mrb[0].mxu0 %v2713
        %v3438 = vpop.f32.mrb[0].mxu0
        %v3439 = vadd.f32 %v2882, %v3438
        %v3440 = vpop.f32.mrb[0].mxu0
        %v3441 = vpop.f32.mrb[0].mxu0
        %v3442 = vadd.f32 %v2882, %v3441
        %v3443 = vpop.f32.mrb[0].mxu0
        %3444 = vmatprep.mubr.bf16.mxu0 %v2717
        %3445 = vmatmul.mubr.bf16.gmra.mrb[0].mxu0 %v2716
        %v3446 = vpop.f32.mrb[0].mxu0
        %v3447 = vadd.f32 %v2882, %v3446
        %v3448 = vpop.f32.mrb[0].mxu0
        %v3449 = vpop.f32.mrb[0].mxu0
        %v3450 = vadd.f32 %v2882, %v3449
        %v3451 = vpop.f32.mrb[0].mxu0
        %3452 = vmatprep.mubr.bf16.mxu0 %v2720
        %3453 = vmatmul.mubr.bf16.gmra.mrb[0].mxu0 %v2719
        %v3454 = vpop.f32.mrb[0].mxu0
        %v3455 = vadd.f32 %v2882, %v3454
        %v3456 = vpop.f32.mrb[0].mxu0
        %v3457 = vpop.f32.mrb[0].mxu0
        %v3458 = vadd.f32 %v2882, %v3457
        %v3459 = vpop.f32.mrb[0].mxu0
        %3460 = vmatprep.mubr.bf16.mxu0 %v2723
        %3461 = vmatmul.mubr.bf16.gmra.mrb[0].mxu0 %v2722
        %v3462 = vpop.f32.mrb[0].mxu0
        %v3463 = vadd.f32 %v2882, %v3462
        %v3464 = vpop.f32.mrb[0].mxu0
        %v3465 = vpop.f32.mrb[0].mxu0
        %v3466 = vadd.f32 %v2882, %v3465
        %v3467 = vpop.f32.mrb[0].mxu0
        %3468 = vmatprep.mubr.bf16.mxu0 %v2726
        %3469 = vmatmul.mubr.bf16.gmra.mrb[0].mxu0 %v2725
        %v3470 = vpop.f32.mrb[0].mxu0
        %v3471 = vadd.f32 %v2882, %v3470
        %v3472 = vpop.f32.mrb[0].mxu0
        %v3473 = vpop.f32.mrb[0].mxu0
        %v3474 = vadd.f32 %v2882, %v3473
        %v3475 = vpop.f32.mrb[0].mxu0
        %3476 = vdwg.mxu0
        %3477 = vmatprep.subr.bf16.mxu0 0
        %3478 = vmatpush1.bf16.msra.mxu0 %v3188
        %3479 = vmatprep.subr.bf16.mxu0 0
        %3480 = vmatpush1.bf16.msra.mxu0 %v3189
        %3481 = vmatprep.subr.bf16.mxu0 0
        %3482 = vmatpush1.bf16.msra.mxu0 %v3190
        %3483 = vmatprep.subr.bf16.mxu0 0
        %3484 = vmatpush1.bf16.msra.mxu0 %v3191
        %3485 = vmatprep.subr.bf16.mxu0 0
        %3486 = vmatpush1.bf16.msra.mxu0 %v3192
        %3487 = vmatprep.subr.bf16.mxu0 0
        %3488 = vmatpush1.bf16.msra.mxu0 %v3193
        %3489 = vmatprep.subr.bf16.mxu0 0
        %3490 = vmatpush1.bf16.msra.mxu0 %v3194
        %3491 = vmatprep.subr.bf16.mxu0 0
        %3492 = vmatpush1.bf16.msra.mxu0 %v3195
        %3493 = vmatprep.subr.bf16.mxu0 0
        %3494 = vmatpush1.bf16.msra.mxu0 %v3196
        %3495 = vmatprep.subr.bf16.mxu0 0
        %3496 = vmatpush1.bf16.msra.mxu0 %v3197
        %3497 = vmatprep.subr.bf16.mxu0 0
        %3498 = vmatpush1.bf16.msra.mxu0 %v3198
        %3499 = vmatprep.subr.bf16.mxu0 0
        %3500 = vmatpush1.bf16.msra.mxu0 %v3199
        %3501 = vmatprep.subr.bf16.mxu0 0
        %3502 = vmatpush1.bf16.msra.mxu0 %v3200
        %3503 = vmatprep.subr.bf16.mxu0 0
        %3504 = vmatpush1.bf16.msra.mxu0 %v3201
        %3505 = vmatprep.subr.bf16.mxu0 0
        %3506 = vmatpush1.bf16.msra.mxu0 %v3202
        %3507 = vmatprep.subr.bf16.mxu0 0
        %3508 = vmatpush1.bf16.msra.mxu0 %v3203
        %3509 = vmatprep.mubr.bf16.mxu0 %v2683
        %3510 = vmatmul.mubr.bf16.gmra.mrb[0].mxu0 %v2682
        %v3511 = vpop.f32.mrb[0].mxu0
        %v3512 = vadd.f32 %v3351, %v3511
        %v3513 = vpop.f32.mrb[0].mxu0
        %v3514 = vpop.f32.mrb[0].mxu0
        %v3515 = vadd.f32 %v3354, %v3514
        %v3516 = vpop.f32.mrb[0].mxu0
        %3517 = vmatprep.mubr.bf16.mxu0 %v2686
        %3518 = vmatmul.mubr.bf16.gmra.mrb[0].mxu0 %v2685
        %v3519 = vpop.f32.mrb[0].mxu0
        %v3520 = vadd.f32 %v3359, %v3519
        %v3521 = vpop.f32.mrb[0].mxu0
        %v3522 = vpop.f32.mrb[0].mxu0
        %v3523 = vadd.f32 %v3362, %v3522
        %v3524 = vpop.f32.mrb[0].mxu0
        %3525 = vmatprep.mubr.bf16.mxu0 %v2689
        %3526 = vmatmul.mubr.bf16.gmra.mrb[0].mxu0 %v2688
        %v3527 = vpop.f32.mrb[0].mxu0
        %v3528 = vadd.f32 %v3367, %v3527
        %v3529 = vpop.f32.mrb[0].mxu0
        %v3530 = vpop.f32.mrb[0].mxu0
        %v3531 = vadd.f32 %v3370, %v3530
        %v3532 = vpop.f32.mrb[0].mxu0
        %3533 = vmatprep.mubr.bf16.mxu0 %v2692
        %3534 = vmatmul.mubr.bf16.gmra.mrb[0].mxu0 %v2691
        %v3535 = vpop.f32.mrb[0].mxu0
        %v3536 = vadd.f32 %v3375, %v3535
        %v3537 = vpop.f32.mrb[0].mxu0
        %v3538 = vpop.f32.mrb[0].mxu0
        %v3539 = vadd.f32 %v3378, %v3538
        %v3540 = vpop.f32.mrb[0].mxu0
        %3541 = vmatprep.mubr.bf16.mxu0 %v2695
        %3542 = vmatmul.mubr.bf16.gmra.mrb[0].mxu0 %v2694
        %v3543 = vpop.f32.mrb[0].mxu0
        %v3544 = vadd.f32 %v3383, %v3543
        %v3545 = vpop.f32.mrb[0].mxu0
        %v3546 = vpop.f32.mrb[0].mxu0
        %v3547 = vadd.f32 %v3386, %v3546
        %v3548 = vpop.f32.mrb[0].mxu0
        %3549 = vmatprep.mubr.bf16.mxu0 %v2698
        %3550 = vmatmul.mubr.bf16.gmra.mrb[0].mxu0 %v2697
        %v3551 = vpop.f32.mrb[0].mxu0
        %v3552 = vadd.f32 %v3391, %v3551
        %v3553 = vpop.f32.mrb[0].mxu0
        %v3554 = vpop.f32.mrb[0].mxu0
        %v3555 = vadd.f32 %v3394, %v3554
        %v3556 = vpop.f32.mrb[0].mxu0
        %3557 = vmatprep.mubr.bf16.mxu0 %v2701
        %3558 = vmatmul.mubr.bf16.gmra.mrb[0].mxu0 %v2700
        %v3559 = vpop.f32.mrb[0].mxu0
        %v3560 = vadd.f32 %v3399, %v3559
        %v3561 = vpop.f32.mrb[0].mxu0
        %v3562 = vpop.f32.mrb[0].mxu0
        %v3563 = vadd.f32 %v3402, %v3562
        %v3564 = vpop.f32.mrb[0].mxu0
        %3565 = vmatprep.mubr.bf16.mxu0 %v2704
        %3566 = vmatmul.mubr.bf16.gmra.mrb[0].mxu0 %v2703
        %v3567 = vpop.f32.mrb[0].mxu0
        %v3568 = vadd.f32 %v3407, %v3567
        %v3569 = vpop.f32.mrb[0].mxu0
        %v3570 = vpop.f32.mrb[0].mxu0
        %v3571 = vadd.f32 %v3410, %v3570
        %v3572 = vpop.f32.mrb[0].mxu0
        %3573 = vmatprep.mubr.bf16.mxu0 %v2707
        %3574 = vmatmul.mubr.bf16.gmra.mrb[0].mxu0 %v2706
        %v3575 = vpop.f32.mrb[0].mxu0
        %v3576 = vadd.f32 %v3415, %v3575
        %v3577 = vpop.f32.mrb[0].mxu0
        %v3578 = vpop.f32.mrb[0].mxu0
        %v3579 = vadd.f32 %v3418, %v3578
        %v3580 = vpop.f32.mrb[0].mxu0
        %3581 = vmatprep.mubr.bf16.mxu0 %v2710
        %3582 = vmatmul.mubr.bf16.gmra.mrb[0].mxu0 %v2709
        %v3583 = vpop.f32.mrb[0].mxu0
        %v3584 = vadd.f32 %v3423, %v3583
        %v3585 = vpop.f32.mrb[0].mxu0
        %v3586 = vpop.f32.mrb[0].mxu0
        %v3587 = vadd.f32 %v3426, %v3586
        %v3588 = vpop.f32.mrb[0].mxu0
        %3589 = vmatprep.mubr.bf16.mxu0 %v2713
        %3590 = vmatmul.mubr.bf16.gmra.mrb[0].mxu0 %v2712
        %v3591 = vpop.f32.mrb[0].mxu0
        %v3592 = vadd.f32 %v3431, %v3591
        %v3593 = vpop.f32.mrb[0].mxu0
        %v3594 = vpop.f32.mrb[0].mxu0
        %v3595 = vadd.f32 %v3434, %v3594
        %v3596 = vpop.f32.mrb[0].mxu0
        %3597 = vmatprep.mubr.bf16.mxu0 %v2716
        %3598 = vmatmul.mubr.bf16.gmra.mrb[0].mxu0 %v2715
        %v3599 = vpop.f32.mrb[0].mxu0
        %v3600 = vadd.f32 %v3439, %v3599
        %v3601 = vpop.f32.mrb[0].mxu0
        %v3602 = vpop.f32.mrb[0].mxu0
        %v3603 = vadd.f32 %v3442, %v3602
        %v3604 = vpop.f32.mrb[0].mxu0
        %3605 = vmatprep.mubr.bf16.mxu0 %v2719
        %3606 = vmatmul.mubr.bf16.gmra.mrb[0].mxu0 %v2718
        %v3607 = vpop.f32.mrb[0].mxu0
        %v3608 = vadd.f32 %v3447, %v3607
        %v3609 = vpop.f32.mrb[0].mxu0
        %v3610 = vpop.f32.mrb[0].mxu0
        %v3611 = vadd.f32 %v3450, %v3610
        %v3612 = vpop.f32.mrb[0].mxu0
        %3613 = vmatprep.mubr.bf16.mxu0 %v2722
        %3614 = vmatmul.mubr.bf16.gmra.mrb[0].mxu0 %v2721
        %v3615 = vpop.f32.mrb[0].mxu0
        %v3616 = vadd.f32 %v3455, %v3615
        %v3617 = vpop.f32.mrb[0].mxu0
        %v3618 = vpop.f32.mrb[0].mxu0
        %v3619 = vadd.f32 %v3458, %v3618
        %v3620 = vpop.f32.mrb[0].mxu0
        %3621 = vmatprep.mubr.bf16.mxu0 %v2725
        %3622 = vmatmul.mubr.bf16.gmra.mrb[0].mxu0 %v2724
        %v3623 = vpop.f32.mrb[0].mxu0
        %v3624 = vadd.f32 %v3463, %v3623
        %v3625 = vpop.f32.mrb[0].mxu0
        %v3626 = vpop.f32.mrb[0].mxu0
        %v3627 = vadd.f32 %v3466, %v3626
        %v3628 = vpop.f32.mrb[0].mxu0
        %3629 = vmatprep.mubr.bf16.mxu0 %v2728
        %3630 = vmatmul.mubr.bf16.gmra.mrb[0].mxu0 %v2727
        %v3631 = vpop.f32.mrb[0].mxu0
        %v3632 = vadd.f32 %v3471, %v3631
        %v3633 = vpop.f32.mrb[0].mxu0
        %v3634 = vpop.f32.mrb[0].mxu0
        %v3635 = vadd.f32 %v3474, %v3634
        %v3636 = vpop.f32.mrb[0].mxu0
        %3637 = vdwg.mxu0
        %3638 = vmatprep.subr.bf16.mxu0 0
        %3639 = vmatpush1.bf16.msra.mxu0 %v3204
        %3640 = vmatprep.subr.bf16.mxu0 0
        %3641 = vmatpush1.bf16.msra.mxu0 %v3205
        %3642 = vmatprep.subr.bf16.mxu0 0
        %3643 = vmatpush1.bf16.msra.mxu0 %v3206
        %3644 = vmatprep.subr.bf16.mxu0 0
        %3645 = vmatpush1.bf16.msra.mxu0 %v3207
        %3646 = vmatprep.subr.bf16.mxu0 0
        %3647 = vmatpush1.bf16.msra.mxu0 %v3208
        %3648 = vmatprep.subr.bf16.mxu0 0
        %3649 = vmatpush1.bf16.msra.mxu0 %v3209
        %3650 = vmatprep.subr.bf16.mxu0 0
        %3651 = vmatpush1.bf16.msra.mxu0 %v3210
        %3652 = vmatprep.subr.bf16.mxu0 0
        %3653 = vmatpush1.bf16.msra.mxu0 %v3211
        %3654 = vmatprep.subr.bf16.mxu0 0
        %3655 = vmatpush1.bf16.msra.mxu0 %v3212
        %3656 = vmatprep.subr.bf16.mxu0 0
        %3657 = vmatpush1.bf16.msra.mxu0 %v3213
        %3658 = vmatprep.subr.bf16.mxu0 0
        %3659 = vmatpush1.bf16.msra.mxu0 %v3214
        %3660 = vmatprep.subr.bf16.mxu0 0
        %3661 = vmatpush1.bf16.msra.mxu0 %v3215
        %3662 = vmatprep.subr.bf16.mxu0 0
        %3663 = vmatpush1.bf16.msra.mxu0 %v3216
        %3664 = vmatprep.subr.bf16.mxu0 0
        %3665 = vmatpush1.bf16.msra.mxu0 %v3217
        %3666 = vmatprep.subr.bf16.mxu0 0
        %3667 = vmatpush1.bf16.msra.mxu0 %v3218
        %3668 = vmatprep.subr.bf16.mxu0 0
        %3669 = vmatpush1.bf16.msra.mxu0 %v3219
        %3670 = vmatprep.mubr.bf16.mxu0 %v2685
        %3671 = vmatmul.mubr.bf16.gmra.mrb[0].mxu0 %v2684
        %v3672 = vpop.f32.mrb[0].mxu0
        %v3673 = vadd.f32 %v3512, %v3672
        %v3674 = vpop.f32.mrb[0].mxu0
        %v3675 = vpop.f32.mrb[0].mxu0
        %v3676 = vadd.f32 %v3515, %v3675
        %v3677 = vpop.f32.mrb[0].mxu0
        %3678 = vmatprep.mubr.bf16.mxu0 %v2688
        %3679 = vmatmul.mubr.bf16.gmra.mrb[0].mxu0 %v2687
        %v3680 = vpop.f32.mrb[0].mxu0
        %v3681 = vadd.f32 %v3520, %v3680
        %v3682 = vpop.f32.mrb[0].mxu0
        %v3683 = vpop.f32.mrb[0].mxu0
        %v3684 = vadd.f32 %v3523, %v3683
        %v3685 = vpop.f32.mrb[0].mxu0
        %3686 = vmatprep.mubr.bf16.mxu0 %v2691
        %3687 = vmatmul.mubr.bf16.gmra.mrb[0].mxu0 %v2690
        %v3688 = vpop.f32.mrb[0].mxu0
        %v3689 = vadd.f32 %v3528, %v3688
        %v3690 = vpop.f32.mrb[0].mxu0
        %v3691 = vpop.f32.mrb[0].mxu0
        %v3692 = vadd.f32 %v3531, %v3691
        %v3693 = vpop.f32.mrb[0].mxu0
        %3694 = vmatprep.mubr.bf16.mxu0 %v2694
        %3695 = vmatmul.mubr.bf16.gmra.mrb[0].mxu0 %v2693
        %v3696 = vpop.f32.mrb[0].mxu0
        %v3697 = vadd.f32 %v3536, %v3696
        %v3698 = vpop.f32.mrb[0].mxu0
        %v3699 = vpop.f32.mrb[0].mxu0
        %v3700 = vadd.f32 %v3539, %v3699
        %v3701 = vpop.f32.mrb[0].mxu0
        %3702 = vmatprep.mubr.bf16.mxu0 %v2697
        %3703 = vmatmul.mubr.bf16.gmra.mrb[0].mxu0 %v2696
        %v3704 = vpop.f32.mrb[0].mxu0
        %v3705 = vadd.f32 %v3544, %v3704
        %v3706 = vpop.f32.mrb[0].mxu0
        %v3707 = vpop.f32.mrb[0].mxu0
        %v3708 = vadd.f32 %v3547, %v3707
        %v3709 = vpop.f32.mrb[0].mxu0
        %3710 = vmatprep.mubr.bf16.mxu0 %v2700
        %3711 = vmatmul.mubr.bf16.gmra.mrb[0].mxu0 %v2699
        %v3712 = vpop.f32.mrb[0].mxu0
        %v3713 = vadd.f32 %v3552, %v3712
        %v3714 = vpop.f32.mrb[0].mxu0
        %v3715 = vpop.f32.mrb[0].mxu0
        %v3716 = vadd.f32 %v3555, %v3715
        %v3717 = vpop.f32.mrb[0].mxu0
        %3718 = vmatprep.mubr.bf16.mxu0 %v2703
        %3719 = vmatmul.mubr.bf16.gmra.mrb[0].mxu0 %v2702
        %v3720 = vpop.f32.mrb[0].mxu0
        %v3721 = vadd.f32 %v3560, %v3720
        %v3722 = vpop.f32.mrb[0].mxu0
        %v3723 = vpop.f32.mrb[0].mxu0
        %v3724 = vadd.f32 %v3563, %v3723
        %v3725 = vpop.f32.mrb[0].mxu0
        %3726 = vmatprep.mubr.bf16.mxu0 %v2706
        %3727 = vmatmul.mubr.bf16.gmra.mrb[0].mxu0 %v2705
        %v3728 = vpop.f32.mrb[0].mxu0
        %v3729 = vadd.f32 %v3568, %v3728
        %v3730 = vpop.f32.mrb[0].mxu0
        %v3731 = vpop.f32.mrb[0].mxu0
        %v3732 = vadd.f32 %v3571, %v3731
        %v3733 = vpop.f32.mrb[0].mxu0
        %3734 = vmatprep.mubr.bf16.mxu0 %v2709
        %3735 = vmatmul.mubr.bf16.gmra.mrb[0].mxu0 %v2708
        %v3736 = vpop.f32.mrb[0].mxu0
        %v3737 = vadd.f32 %v3576, %v3736
        %v3738 = vpop.f32.mrb[0].mxu0
        %v3739 = vpop.f32.mrb[0].mxu0
        %v3740 = vadd.f32 %v3579, %v3739
        %v3741 = vpop.f32.mrb[0].mxu0
        %3742 = vmatprep.mubr.bf16.mxu0 %v2712
        %3743 = vmatmul.mubr.bf16.gmra.mrb[0].mxu0 %v2711
        %v3744 = vpop.f32.mrb[0].mxu0
        %v3745 = vadd.f32 %v3584, %v3744
        %v3746 = vpop.f32.mrb[0].mxu0
        %v3747 = vpop.f32.mrb[0].mxu0
        %v3748 = vadd.f32 %v3587, %v3747
        %v3749 = vpop.f32.mrb[0].mxu0
        %3750 = vmatprep.mubr.bf16.mxu0 %v2715
        %3751 = vmatmul.mubr.bf16.gmra.mrb[0].mxu0 %v2714
        %v3752 = vpop.f32.mrb[0].mxu0
        %v3753 = vadd.f32 %v3592, %v3752
        %v3754 = vpop.f32.mrb[0].mxu0
        %v3755 = vpop.f32.mrb[0].mxu0
        %v3756 = vadd.f32 %v3595, %v3755
        %v3757 = vpop.f32.mrb[0].mxu0
        %3758 = vmatprep.mubr.bf16.mxu0 %v2718
        %3759 = vmatmul.mubr.bf16.gmra.mrb[0].mxu0 %v2717
        %v3760 = vpop.f32.mrb[0].mxu0
        %v3761 = vadd.f32 %v3600, %v3760
        %v3762 = vpop.f32.mrb[0].mxu0
        %v3763 = vpop.f32.mrb[0].mxu0
        %v3764 = vadd.f32 %v3603, %v3763
        %v3765 = vpop.f32.mrb[0].mxu0
        %3766 = vmatprep.mubr.bf16.mxu0 %v2721
        %3767 = vmatmul.mubr.bf16.gmra.mrb[0].mxu0 %v2720
        %v3768 = vpop.f32.mrb[0].mxu0
        %v3769 = vadd.f32 %v3608, %v3768
        %v3770 = vpop.f32.mrb[0].mxu0
        %v3771 = vpop.f32.mrb[0].mxu0
        %v3772 = vadd.f32 %v3611, %v3771
        %v3773 = vpop.f32.mrb[0].mxu0
        %3774 = vmatprep.mubr.bf16.mxu0 %v2724
        %3775 = vmatmul.mubr.bf16.gmra.mrb[0].mxu0 %v2723
        %v3776 = vpop.f32.mrb[0].mxu0
        %v3777 = vadd.f32 %v3616, %v3776
        %v3778 = vpop.f32.mrb[0].mxu0
        %v3779 = vpop.f32.mrb[0].mxu0
        %v3780 = vadd.f32 %v3619, %v3779
        %v3781 = vpop.f32.mrb[0].mxu0
        %3782 = vmatprep.mubr.bf16.mxu0 %v2727
        %3783 = vmatmul.mubr.bf16.gmra.mrb[0].mxu0 %v2726
        %v3784 = vpop.f32.mrb[0].mxu0
        %v3785 = vadd.f32 %v3624, %v3784
        %v3786 = vpop.f32.mrb[0].mxu0
        %v3787 = vpop.f32.mrb[0].mxu0
        %v3788 = vadd.f32 %v3627, %v3787
        %v3789 = vpop.f32.mrb[0].mxu0
        %3790 = vmatprep.mubr.bf16.mxu0 %v2730
        %3791 = vmatmul.mubr.bf16.gmra.mrb[0].mxu0 %v2729
        %v3792 = vpop.f32.mrb[0].mxu0
        %v3793 = vadd.f32 %v3632, %v3792
        %v3794 = vpop.f32.mrb[0].mxu0
        %v3795 = vpop.f32.mrb[0].mxu0
        %v3796 = vadd.f32 %v3635, %v3795
        %v3797 = vpop.f32.mrb[0].mxu0
        %3798 = vdwg.mxu0
        %3799 = vmatprep.subr.bf16.mxu0 0
        %3800 = vmatpush1.bf16.msra.mxu0 %v3220
        %3801 = vmatprep.subr.bf16.mxu0 0
        %3802 = vmatpush1.bf16.msra.mxu0 %v3221
        %3803 = vmatprep.subr.bf16.mxu0 0
        %3804 = vmatpush1.bf16.msra.mxu0 %v3222
        %3805 = vmatprep.subr.bf16.mxu0 0
        %3806 = vmatpush1.bf16.msra.mxu0 %v3223
        %3807 = vmatprep.subr.bf16.mxu0 0
        %3808 = vmatpush1.bf16.msra.mxu0 %v3224
        %3809 = vmatprep.subr.bf16.mxu0 0
        %3810 = vmatpush1.bf16.msra.mxu0 %v3225
        %3811 = vmatprep.subr.bf16.mxu0 0
        %3812 = vmatpush1.bf16.msra.mxu0 %v3226
        %3813 = vmatprep.subr.bf16.mxu0 0
        %3814 = vmatpush1.bf16.msra.mxu0 %v3227
        %3815 = vmatprep.subr.bf16.mxu0 0
        %3816 = vmatpush1.bf16.msra.mxu0 %v3228
        %3817 = vmatprep.subr.bf16.mxu0 0
        %3818 = vmatpush1.bf16.msra.mxu0 %v3229
        %3819 = vmatprep.subr.bf16.mxu0 0
        %3820 = vmatpush1.bf16.msra.mxu0 %v3230
        %3821 = vmatprep.subr.bf16.mxu0 0
        %3822 = vmatpush1.bf16.msra.mxu0 %v3231
        %3823 = vmatprep.subr.bf16.mxu0 0
        %3824 = vmatpush1.bf16.msra.mxu0 %v3232
        %3825 = vmatprep.subr.bf16.mxu0 0
        %3826 = vmatpush1.bf16.msra.mxu0 %v3233
        %3827 = vmatprep.subr.bf16.mxu0 0
        %3828 = vmatpush1.bf16.msra.mxu0 %v3234
        %3829 = vmatprep.subr.bf16.mxu0 0
        %3830 = vmatpush1.bf16.msra.mxu0 %v3235
        %3831 = vmatprep.mubr.bf16.mxu0 %v2687
        %3832 = vmatmul.mubr.bf16.gmra.mrb[0].mxu0 %v2686
        %v3833 = vpop.f32.mrb[0].mxu0
        %v3834 = vadd.f32 %v3673, %v3833
        %v3835 = vpop.f32.mrb[0].mxu0
        %v3836 = vpop.f32.mrb[0].mxu0
        %v3837 = vadd.f32 %v3676, %v3836
        %v3838 = vpop.f32.mrb[0].mxu0
        %3839 = vmatprep.mubr.bf16.mxu0 %v2690
        %3840 = vmatmul.mubr.bf16.gmra.mrb[0].mxu0 %v2689
        %v3841 = vpop.f32.mrb[0].mxu0
        %v3842 = vadd.f32 %v3681, %v3841
        %v3843 = vpop.f32.mrb[0].mxu0
        %v3844 = vpop.f32.mrb[0].mxu0
        %v3845 = vadd.f32 %v3684, %v3844
        %v3846 = vpop.f32.mrb[0].mxu0
        %3847 = vmatprep.mubr.bf16.mxu0 %v2693
        %3848 = vmatmul.mubr.bf16.gmra.mrb[0].mxu0 %v2692
        %v3849 = vpop.f32.mrb[0].mxu0
        %v3850 = vadd.f32 %v3689, %v3849
        %v3851 = vpop.f32.mrb[0].mxu0
        %v3852 = vpop.f32.mrb[0].mxu0
        %v3853 = vadd.f32 %v3692, %v3852
        %v3854 = vpop.f32.mrb[0].mxu0
        %3855 = vmatprep.mubr.bf16.mxu0 %v2696
        %3856 = vmatmul.mubr.bf16.gmra.mrb[0].mxu0 %v2695
        %v3857 = vpop.f32.mrb[0].mxu0
        %v3858 = vadd.f32 %v3697, %v3857
        %v3859 = vpop.f32.mrb[0].mxu0
        %v3860 = vpop.f32.mrb[0].mxu0
        %v3861 = vadd.f32 %v3700, %v3860
        %v3862 = vpop.f32.mrb[0].mxu0
        %3863 = vmatprep.mubr.bf16.mxu0 %v2699
        %3864 = vmatmul.mubr.bf16.gmra.mrb[0].mxu0 %v2698
        %v3865 = vpop.f32.mrb[0].mxu0
        %v3866 = vadd.f32 %v3705, %v3865
        %v3867 = vpop.f32.mrb[0].mxu0
        %v3868 = vpop.f32.mrb[0].mxu0
        %v3869 = vadd.f32 %v3708, %v3868
        %v3870 = vpop.f32.mrb[0].mxu0
        %3871 = vmatprep.mubr.bf16.mxu0 %v2702
        %3872 = vmatmul.mubr.bf16.gmra.mrb[0].mxu0 %v2701
        %v3873 = vpop.f32.mrb[0].mxu0
        %v3874 = vadd.f32 %v3713, %v3873
        %v3875 = vpop.f32.mrb[0].mxu0
        %v3876 = vpop.f32.mrb[0].mxu0
        %v3877 = vadd.f32 %v3716, %v3876
        %v3878 = vpop.f32.mrb[0].mxu0
        %3879 = vmatprep.mubr.bf16.mxu0 %v2705
        %3880 = vmatmul.mubr.bf16.gmra.mrb[0].mxu0 %v2704
        %v3881 = vpop.f32.mrb[0].mxu0
        %v3882 = vadd.f32 %v3721, %v3881
        %v3883 = vpop.f32.mrb[0].mxu0
        %v3884 = vpop.f32.mrb[0].mxu0
        %v3885 = vadd.f32 %v3724, %v3884
        %v3886 = vpop.f32.mrb[0].mxu0
        %3887 = vmatprep.mubr.bf16.mxu0 %v2708
        %3888 = vmatmul.mubr.bf16.gmra.mrb[0].mxu0 %v2707
        %v3889 = vpop.f32.mrb[0].mxu0
        %v3890 = vadd.f32 %v3729, %v3889
        %v3891 = vpop.f32.mrb[0].mxu0
        %v3892 = vpop.f32.mrb[0].mxu0
        %v3893 = vadd.f32 %v3732, %v3892
        %v3894 = vpop.f32.mrb[0].mxu0
        %3895 = vmatprep.mubr.bf16.mxu0 %v2711
        %3896 = vmatmul.mubr.bf16.gmra.mrb[0].mxu0 %v2710
        %v3897 = vpop.f32.mrb[0].mxu0
        %v3898 = vadd.f32 %v3737, %v3897
        %v3899 = vpop.f32.mrb[0].mxu0
        %v3900 = vpop.f32.mrb[0].mxu0
        %v3901 = vadd.f32 %v3740, %v3900
        %v3902 = vpop.f32.mrb[0].mxu0
        %3903 = vmatprep.mubr.bf16.mxu0 %v2714
        %3904 = vmatmul.mubr.bf16.gmra.mrb[0].mxu0 %v2713
        %v3905 = vpop.f32.mrb[0].mxu0
        %v3906 = vadd.f32 %v3745, %v3905
        %v3907 = vpop.f32.mrb[0].mxu0
        %v3908 = vpop.f32.mrb[0].mxu0
        %v3909 = vadd.f32 %v3748, %v3908
        %v3910 = vpop.f32.mrb[0].mxu0
        %3911 = vmatprep.mubr.bf16.mxu0 %v2717
        %3912 = vmatmul.mubr.bf16.gmra.mrb[0].mxu0 %v2716
        %v3913 = vpop.f32.mrb[0].mxu0
        %v3914 = vadd.f32 %v3753, %v3913
        %v3915 = vpop.f32.mrb[0].mxu0
        %v3916 = vpop.f32.mrb[0].mxu0
        %v3917 = vadd.f32 %v3756, %v3916
        %v3918 = vpop.f32.mrb[0].mxu0
        %3919 = vmatprep.mubr.bf16.mxu0 %v2720
        %3920 = vmatmul.mubr.bf16.gmra.mrb[0].mxu0 %v2719
        %v3921 = vpop.f32.mrb[0].mxu0
        %v3922 = vadd.f32 %v3761, %v3921
        %v3923 = vpop.f32.mrb[0].mxu0
        %v3924 = vpop.f32.mrb[0].mxu0
        %v3925 = vadd.f32 %v3764, %v3924
        %v3926 = vpop.f32.mrb[0].mxu0
        %3927 = vmatprep.mubr.bf16.mxu0 %v2723
        %3928 = vmatmul.mubr.bf16.gmra.mrb[0].mxu0 %v2722
        %v3929 = vpop.f32.mrb[0].mxu0
        %v3930 = vadd.f32 %v3769, %v3929
        %v3931 = vpop.f32.mrb[0].mxu0
        %v3932 = vpop.f32.mrb[0].mxu0
        %v3933 = vadd.f32 %v3772, %v3932
        %v3934 = vpop.f32.mrb[0].mxu0
        %3935 = vmatprep.mubr.bf16.mxu0 %v2726
        %3936 = vmatmul.mubr.bf16.gmra.mrb[0].mxu0 %v2725
        %v3937 = vpop.f32.mrb[0].mxu0
        %v3938 = vadd.f32 %v3777, %v3937
        %v3939 = vpop.f32.mrb[0].mxu0
        %v3940 = vpop.f32.mrb[0].mxu0
        %v3941 = vadd.f32 %v3780, %v3940
        %v3942 = vpop.f32.mrb[0].mxu0
        %3943 = vmatprep.mubr.bf16.mxu0 %v2729
        %3944 = vmatmul.mubr.bf16.gmra.mrb[0].mxu0 %v2728
        %v3945 = vpop.f32.mrb[0].mxu0
        %v3946 = vadd.f32 %v3785, %v3945
        %v3947 = vpop.f32.mrb[0].mxu0
        %v3948 = vpop.f32.mrb[0].mxu0
        %v3949 = vadd.f32 %v3788, %v3948
        %v3950 = vpop.f32.mrb[0].mxu0
        %3951 = vmatprep.mubr.bf16.mxu0 %v2732
        %3952 = vmatmul.mubr.bf16.gmra.mrb[0].mxu0 %v2731
        %v3953 = vpop.f32.mrb[0].mxu0
        %v3954 = vadd.f32 %v3793, %v3953
        %v3955 = vpop.f32.mrb[0].mxu0
        %v3956 = vpop.f32.mrb[0].mxu0
        %v3957 = vadd.f32 %v3796, %v3956
        %v3958 = vpop.f32.mrb[0].mxu0
        %3959 = vdwg.mxu0
        %3960 = vmatprep.subr.bf16.mxu0 0
        %3961 = vmatpush1.bf16.msra.mxu0 %v3236
        %3962 = vmatprep.subr.bf16.mxu0 0
        %3963 = vmatpush1.bf16.msra.mxu0 %v3237
        %3964 = vmatprep.subr.bf16.mxu0 0
        %3965 = vmatpush1.bf16.msra.mxu0 %v3238
        %3966 = vmatprep.subr.bf16.mxu0 0
        %3967 = vmatpush1.bf16.msra.mxu0 %v3239
        %3968 = vmatprep.subr.bf16.mxu0 0
        %3969 = vmatpush1.bf16.msra.mxu0 %v3240
        %3970 = vmatprep.subr.bf16.mxu0 0
        %3971 = vmatpush1.bf16.msra.mxu0 %v3241
        %3972 = vmatprep.subr.bf16.mxu0 0
        %3973 = vmatpush1.bf16.msra.mxu0 %v3242
        %3974 = vmatprep.subr.bf16.mxu0 0
        %3975 = vmatpush1.bf16.msra.mxu0 %v3243
        %3976 = vmatprep.subr.bf16.mxu0 0
        %3977 = vmatpush1.bf16.msra.mxu0 0
        %3978 = vmatprep.subr.bf16.mxu0 0
        %3979 = vmatpush1.bf16.msra.mxu0 0
        %3980 = vmatprep.subr.bf16.mxu0 0
        %3981 = vmatpush1.bf16.msra.mxu0 0
        %3982 = vmatprep.subr.bf16.mxu0 0
        %3983 = vmatpush1.bf16.msra.mxu0 0
        %3984 = vmatprep.subr.bf16.mxu0 0
        %3985 = vmatpush1.bf16.msra.mxu0 0
        %3986 = vmatprep.subr.bf16.mxu0 0
        %3987 = vmatpush1.bf16.msra.mxu0 0
        %3988 = vmatprep.subr.bf16.mxu0 0
        %3989 = vmatpush1.bf16.msra.mxu0 0
        %3990 = vmatprep.subr.bf16.mxu0 0
        %3991 = vmatpush1.bf16.msra.mxu0 0
        %3992 = vmatprep.mubr.bf16.mxu0 0
        %3993 = vmatmul.mubr.bf16.gmra.mrb[0].mxu0 %v2688
        %v3994 = vpop.f32.mrb[0].mxu0
        %v3995 = vadd.f32 %v3834, %v3994
        %v3996 = vpop.f32.mrb[0].mxu0
        %v3997 = vpop.f32.mrb[0].mxu0
        %v3998 = vadd.f32 %v3837, %v3997
        %v3999 = vpop.f32.mrb[0].mxu0
        %4000 = vmatprep.mubr.bf16.mxu0 0
        %4001 = vmatmul.mubr.bf16.gmra.mrb[0].mxu0 %v2691
        %v4002 = vpop.f32.mrb[0].mxu0
        %v4003 = vadd.f32 %v3842, %v4002
        %v4004 = vpop.f32.mrb[0].mxu0
        %v4005 = vpop.f32.mrb[0].mxu0
        %v4006 = vadd.f32 %v3845, %v4005
        %v4007 = vpop.f32.mrb[0].mxu0
        %4008 = vmatprep.mubr.bf16.mxu0 0
        %4009 = vmatmul.mubr.bf16.gmra.mrb[0].mxu0 %v2694
        %v4010 = vpop.f32.mrb[0].mxu0
        %v4011 = vadd.f32 %v3850, %v4010
        %v4012 = vpop.f32.mrb[0].mxu0
        %v4013 = vpop.f32.mrb[0].mxu0
        %v4014 = vadd.f32 %v3853, %v4013
        %v4015 = vpop.f32.mrb[0].mxu0
        %4016 = vmatprep.mubr.bf16.mxu0 0
        %4017 = vmatmul.mubr.bf16.gmra.mrb[0].mxu0 %v2697
        %v4018 = vpop.f32.mrb[0].mxu0
        %v4019 = vadd.f32 %v3858, %v4018
        %v4020 = vpop.f32.mrb[0].mxu0
        %v4021 = vpop.f32.mrb[0].mxu0
        %v4022 = vadd.f32 %v3861, %v4021
        %v4023 = vpop.f32.mrb[0].mxu0
        %4024 = vmatprep.mubr.bf16.mxu0 0
        %4025 = vmatmul.mubr.bf16.gmra.mrb[0].mxu0 %v2700
        %v4026 = vpop.f32.mrb[0].mxu0
        %v4027 = vadd.f32 %v3866, %v4026
        %v4028 = vpop.f32.mrb[0].mxu0
        %v4029 = vpop.f32.mrb[0].mxu0
        %v4030 = vadd.f32 %v3869, %v4029
        %v4031 = vpop.f32.mrb[0].mxu0
        %4032 = vmatprep.mubr.bf16.mxu0 0
        %4033 = vmatmul.mubr.bf16.gmra.mrb[0].mxu0 %v2703
        %v4034 = vpop.f32.mrb[0].mxu0
        %v4035 = vadd.f32 %v3874, %v4034
        %v4036 = vpop.f32.mrb[0].mxu0
        %v4037 = vpop.f32.mrb[0].mxu0
        %v4038 = vadd.f32 %v3877, %v4037
        %v4039 = vpop.f32.mrb[0].mxu0
        %4040 = vmatprep.mubr.bf16.mxu0 0
        %4041 = vmatmul.mubr.bf16.gmra.mrb[0].mxu0 %v2706
        %v4042 = vpop.f32.mrb[0].mxu0
        %v4043 = vadd.f32 %v3882, %v4042
        %v4044 = vpop.f32.mrb[0].mxu0
        %v4045 = vpop.f32.mrb[0].mxu0
        %v4046 = vadd.f32 %v3885, %v4045
        %v4047 = vpop.f32.mrb[0].mxu0
        %4048 = vmatprep.mubr.bf16.mxu0 0
        %4049 = vmatmul.mubr.bf16.gmra.mrb[0].mxu0 %v2709
        %v4050 = vpop.f32.mrb[0].mxu0
        %v4051 = vadd.f32 %v3890, %v4050
        %v4052 = vpop.f32.mrb[0].mxu0
        %v4053 = vpop.f32.mrb[0].mxu0
        %v4054 = vadd.f32 %v3893, %v4053
        %v4055 = vpop.f32.mrb[0].mxu0
        %4056 = vmatprep.mubr.bf16.mxu0 0
        %4057 = vmatmul.mubr.bf16.gmra.mrb[0].mxu0 %v2712
        %v4058 = vpop.f32.mrb[0].mxu0
        %v4059 = vadd.f32 %v3898, %v4058
        %v4060 = vpop.f32.mrb[0].mxu0
        %v4061 = vpop.f32.mrb[0].mxu0
        %v4062 = vadd.f32 %v3901, %v4061
        %v4063 = vpop.f32.mrb[0].mxu0
        %4064 = vmatprep.mubr.bf16.mxu0 0
        %4065 = vmatmul.mubr.bf16.gmra.mrb[0].mxu0 %v2715
        %v4066 = vpop.f32.mrb[0].mxu0
        %v4067 = vadd.f32 %v3906, %v4066
        %v4068 = vpop.f32.mrb[0].mxu0
        %v4069 = vpop.f32.mrb[0].mxu0
        %v4070 = vadd.f32 %v3909, %v4069
        %v4071 = vpop.f32.mrb[0].mxu0
        %4072 = vmatprep.mubr.bf16.mxu0 0
        %4073 = vmatmul.mubr.bf16.gmra.mrb[0].mxu0 %v2718
        %v4074 = vpop.f32.mrb[0].mxu0
        %v4075 = vadd.f32 %v3914, %v4074
        %v4076 = vpop.f32.mrb[0].mxu0
        %v4077 = vpop.f32.mrb[0].mxu0
        %v4078 = vadd.f32 %v3917, %v4077
        %v4079 = vpop.f32.mrb[0].mxu0
        %4080 = vmatprep.mubr.bf16.mxu0 0
        %4081 = vmatmul.mubr.bf16.gmra.mrb[0].mxu0 %v2721
        %v4082 = vpop.f32.mrb[0].mxu0
        %v4083 = vadd.f32 %v3922, %v4082
        %v4084 = vpop.f32.mrb[0].mxu0
        %v4085 = vpop.f32.mrb[0].mxu0
        %v4086 = vadd.f32 %v3925, %v4085
        %v4087 = vpop.f32.mrb[0].mxu0
        %4088 = vmatprep.mubr.bf16.mxu0 0
        %4089 = vmatmul.mubr.bf16.gmra.mrb[0].mxu0 %v2724
        %v4090 = vpop.f32.mrb[0].mxu0
        %v4091 = vadd.f32 %v3930, %v4090
        %v4092 = vpop.f32.mrb[0].mxu0
        %v4093 = vpop.f32.mrb[0].mxu0
        %v4094 = vadd.f32 %v3933, %v4093
        %v4095 = vpop.f32.mrb[0].mxu0
        %4096 = vmatprep.mubr.bf16.mxu0 0
        %4097 = vmatmul.mubr.bf16.gmra.mrb[0].mxu0 %v2727
        %v4098 = vpop.f32.mrb[0].mxu0
        %v4099 = vadd.f32 %v3938, %v4098
        %v4100 = vpop.f32.mrb[0].mxu0
        %v4101 = vpop.f32.mrb[0].mxu0
        %v4102 = vadd.f32 %v3941, %v4101
        %v4103 = vpop.f32.mrb[0].mxu0
        %4104 = vmatprep.mubr.bf16.mxu0 0
        %4105 = vmatmul.mubr.bf16.gmra.mrb[0].mxu0 %v2730
        %v4106 = vpop.f32.mrb[0].mxu0
        %v4107 = vadd.f32 %v3946, %v4106
        %v4108 = vpop.f32.mrb[0].mxu0
        %v4109 = vpop.f32.mrb[0].mxu0
        %v4110 = vadd.f32 %v3949, %v4109
        %v4111 = vpop.f32.mrb[0].mxu0
        %4112 = vmatprep.mubr.bf16.mxu0 0
        %4113 = vmatmul.mubr.bf16.gmra.mrb[0].mxu0 %v2733
        %v4114 = vpop.f32.mrb[0].mxu0
        %v4115 = vadd.f32 %v3954, %v4114
        %v4116 = vpop.f32.mrb[0].mxu0
        %v4117 = vpop.f32.mrb[0].mxu0
        %v4118 = vadd.f32 %v3957, %v4117
        %v4119 = vpop.f32.mrb[0].mxu0
        %4120 = vdwg.mxu0
        %v4121 = vmax.f32 %v3995, 0.0
        %v4122 = vmax.f32 %v3998, 0.0
        %v4123 = vmax.f32 %v4003, 0.0
        %v4124 = vmax.f32 %v4006, 0.0
        %v4125 = vmax.f32 %v4011, 0.0
        %v4126 = vmax.f32 %v4014, 0.0
        %v4127 = vmax.f32 %v4019, 0.0
        %v4128 = vmax.f32 %v4022, 0.0
        %v4129 = vmax.f32 %v4027, 0.0
        %v4130 = vmax.f32 %v4030, 0.0
        %v4131 = vmax.f32 %v4035, 0.0
        %v4132 = vmax.f32 %v4038, 0.0
        %v4133 = vmax.f32 %v4043, 0.0
        %v4134 = vmax.f32 %v4046, 0.0
        %v4135 = vmax.f32 %v4051, 0.0
        %v4136 = vmax.f32 %v4054, 0.0
        %v4137 = vmax.f32 %v4059, 0.0
        %v4138 = vmax.f32 %v4062, 0.0
        %v4139 = vmax.f32 %v4067, 0.0
        %v4140 = vmax.f32 %v4070, 0.0
        %v4141 = vmax.f32 %v4075, 0.0
        %v4142 = vmax.f32 %v4078, 0.0
        %v4143 = vmax.f32 %v4083, 0.0
        %v4144 = vmax.f32 %v4086, 0.0
        %v4145 = vmax.f32 %v4091, 0.0
        %v4146 = vmax.f32 %v4094, 0.0
        %v4147 = vmax.f32 %v4099, 0.0
        %v4148 = vmax.f32 %v4102, 0.0
        %v4149 = vmax.f32 %v4107, 0.0
        %v4150 = vmax.f32 %v4110, 0.0
        %v4151 = vmax.f32 %v4115, 0.0
        %v4152 = vmax.f32 %v4118, 0.0
        %v4153 = vpack.c.bf16 %v4122, %v4121
        %v4154 = vpack.c.bf16 %v4124, %v4123
        %v4155 = vpack.c.bf16 %v4126, %v4125
        %v4156 = vpack.c.bf16 %v4128, %v4127
        %v4157 = vpack.c.bf16 %v4130, %v4129
        %v4158 = vpack.c.bf16 %v4132, %v4131
        %v4159 = vpack.c.bf16 %v4134, %v4133
        %v4160 = vpack.c.bf16 %v4136, %v4135
        %v4161 = vpack.c.bf16 %v4138, %v4137
        %v4162 = vpack.c.bf16 %v4140, %v4139
        %v4163 = vpack.c.bf16 %v4142, %v4141
        %v4164 = vpack.c.bf16 %v4144, %v4143
        %v4165 = vpack.c.bf16 %v4146, %v4145
        %v4166 = vpack.c.bf16 %v4148, %v4147
        %v4167 = vpack.c.bf16 %v4150, %v4149
        %v4168 = vpack.c.bf16 %v4152, %v4151
        %v4169 = vld [vmem:[#allocation7] sm:$0xf]
        %v4170 = vld [vmem:[#allocation7 + $0x4] sm:$0xf]
        %v4171 = vld [vmem:[#allocation7 + $0x8] sm:$0xf]
        %v4172 = vld [vmem:[#allocation7 + $0xc] sm:$0xf]
        %v4173 = vld [vmem:[#allocation7 + $0x10] sm:$0xf]
        %v4174 = vld [vmem:[#allocation7 + $0x14] sm:$0xf]
        %v4175 = vld [vmem:[#allocation7 + $0x18] sm:$0xf]
        %v4176 = vld [vmem:[#allocation7 + $0x1c] sm:$0xf]
        %v4177 = vld [vmem:[#allocation7 + $0x20] sm:$0xf]
        %v4178 = vld [vmem:[#allocation7 + $0x24] sm:$0xf]
        %v4179 = vld [vmem:[#allocation7 + $0x28] sm:$0xf]
        %v4180 = vld [vmem:[#allocation7 + $0x2c] sm:$0xf]
        %v4181 = vld [vmem:[#allocation7 + $0x30] sm:$0xf]
        %v4182 = vld [vmem:[#allocation7 + $0x34] sm:$0xf]
        %v4183 = vld [vmem:[#allocation7 + $0x38] sm:$0xf]
        %v4184 = vld [vmem:[#allocation7 + $0x3c] sm:$0xf]
        %v4185 = vld [vmem:[%s6] sm:$0x1]
        %v4187 = vlaneseq
        %v4188 = vshrl.u32 %v4187, 7
        %v4189 = vsub.s32 0, %v4188
        %v4190 = vrot.slane %v4185, %v4189
        %v4208 = vunpack.c.l.b16 %v4169
        %v4209 = vunpack.c.l.b16 %v4170
        %v4210 = vunpack.c.l.b16 %v4171
        %v4211 = vunpack.c.l.b16 %v4172
        %v4212 = vunpack.c.l.b16 %v4173
        %v4213 = vunpack.c.l.b16 %v4174
        %v4214 = vunpack.c.l.b16 %v4175
        %v4215 = vunpack.c.l.b16 %v4176
        %v4216 = vunpack.c.l.b16 %v4177
        %v4217 = vunpack.c.l.b16 %v4178
        %v4218 = vunpack.c.l.b16 %v4179
        %v4219 = vunpack.c.l.b16 %v4180
        %v4220 = vunpack.c.l.b16 %v4181
        %v4221 = vunpack.c.l.b16 %v4182
        %v4222 = vunpack.c.l.b16 %v4183
        %v4223 = vunpack.c.l.b16 %v4184
        %v4224 = vpack.c.b16 %v4209, %v4208
        %v4225 = vpack.c.b16 %v4211, %v4210
        %v4226 = vpack.c.b16 %v4213, %v4212
        %v4227 = vpack.c.b16 %v4215, %v4214
        %v4228 = vpack.c.b16 %v4217, %v4216
        %v4229 = vpack.c.b16 %v4219, %v4218
        %v4230 = vpack.c.b16 %v4221, %v4220
        %v4231 = vpack.c.b16 %v4223, %v4222
        %4240 = vmatprep.subr.bf16.mxu0 0
        %4241 = vmatpush1.bf16.msra.mxu0 %v4224
        %4242 = vmatprep.subr.bf16.mxu0 0
        %4243 = vmatpush1.bf16.msra.mxu0 %v4225
        %4244 = vmatprep.subr.bf16.mxu0 0
        %4245 = vmatpush1.bf16.msra.mxu0 %v4226
        %4246 = vmatprep.subr.bf16.mxu0 0
        %4247 = vmatpush1.bf16.msra.mxu0 %v4227
        %4248 = vmatprep.subr.bf16.mxu0 0
        %4249 = vmatpush1.bf16.msra.mxu0 %v4228
        %4250 = vmatprep.subr.bf16.mxu0 0
        %4251 = vmatpush1.bf16.msra.mxu0 %v4229
        %4252 = vmatprep.subr.bf16.mxu0 0
        %4253 = vmatpush1.bf16.msra.mxu0 %v4230
        %4254 = vmatprep.subr.bf16.mxu0 0
        %4255 = vmatpush1.bf16.msra.mxu0 %v4231
        %4256 = vmatprep.subr.bf16.mxu0 0
        %4257 = vmatpush1.bf16.msra.mxu0 0
        %4258 = vmatprep.subr.bf16.mxu0 0
        %4259 = vmatpush1.bf16.msra.mxu0 0
        %4260 = vmatprep.subr.bf16.mxu0 0
        %4261 = vmatpush1.bf16.msra.mxu0 0
        %4262 = vmatprep.subr.bf16.mxu0 0
        %4263 = vmatpush1.bf16.msra.mxu0 0
        %4264 = vmatprep.subr.bf16.mxu0 0
        %4265 = vmatpush1.bf16.msra.mxu0 0
        %4266 = vmatprep.subr.bf16.mxu0 0
        %4267 = vmatpush1.bf16.msra.mxu0 0
        %4268 = vmatprep.subr.bf16.mxu0 0
        %4269 = vmatpush1.bf16.msra.mxu0 0
        %4270 = vmatprep.subr.bf16.mxu0 0
        %4271 = vmatpush1.bf16.msra.mxu0 0
        %4272 = vmatprep.mubr.bf16.mxu0 0
        %4273 = vmatmul.mubr.bf16.gmra.mrb[0].mxu0 %v4153
        %v4274 = vpop.f32.mrb[0].mxu0
        %v4275 = vadd.f32 %v4190, %v4274
        %v4276 = vpop.f32.mrb[0].mxu0
        %v4277 = vpop.f32.mrb[0].mxu0
        %v4278 = vadd.f32 %v4190, %v4277
        %v4279 = vpop.f32.mrb[0].mxu0
        %4280 = vmatprep.mubr.bf16.mxu0 0
        %4281 = vmatmul.mubr.bf16.gmra.mrb[0].mxu0 %v4154
        %v4282 = vpop.f32.mrb[0].mxu0
        %v4283 = vadd.f32 %v4190, %v4282
        %v4284 = vpop.f32.mrb[0].mxu0
        %v4285 = vpop.f32.mrb[0].mxu0
        %v4286 = vadd.f32 %v4190, %v4285
        %v4287 = vpop.f32.mrb[0].mxu0
        %4288 = vmatprep.mubr.bf16.mxu0 0
        %4289 = vmatmul.mubr.bf16.gmra.mrb[0].mxu0 %v4155
        %v4290 = vpop.f32.mrb[0].mxu0
        %v4291 = vadd.f32 %v4190, %v4290
        %v4292 = vpop.f32.mrb[0].mxu0
        %v4293 = vpop.f32.mrb[0].mxu0
        %v4294 = vadd.f32 %v4190, %v4293
        %v4295 = vpop.f32.mrb[0].mxu0
        %4296 = vmatprep.mubr.bf16.mxu0 0
        %4297 = vmatmul.mubr.bf16.gmra.mrb[0].mxu0 %v4156
        %v4298 = vpop.f32.mrb[0].mxu0
        %v4299 = vadd.f32 %v4190, %v4298
        %v4300 = vpop.f32.mrb[0].mxu0
        %v4301 = vpop.f32.mrb[0].mxu0
        %v4302 = vadd.f32 %v4190, %v4301
        %v4303 = vpop.f32.mrb[0].mxu0
        %4304 = vmatprep.mubr.bf16.mxu0 0
        %4305 = vmatmul.mubr.bf16.gmra.mrb[0].mxu0 %v4157
        %v4306 = vpop.f32.mrb[0].mxu0
        %v4307 = vadd.f32 %v4190, %v4306
        %v4308 = vpop.f32.mrb[0].mxu0
        %v4309 = vpop.f32.mrb[0].mxu0
        %v4310 = vadd.f32 %v4190, %v4309
        %v4311 = vpop.f32.mrb[0].mxu0
        %4312 = vmatprep.mubr.bf16.mxu0 0
        %4313 = vmatmul.mubr.bf16.gmra.mrb[0].mxu0 %v4158
        %v4314 = vpop.f32.mrb[0].mxu0
        %v4315 = vadd.f32 %v4190, %v4314
        %v4316 = vpop.f32.mrb[0].mxu0
        %v4317 = vpop.f32.mrb[0].mxu0
        %v4318 = vadd.f32 %v4190, %v4317
        %v4319 = vpop.f32.mrb[0].mxu0
        %4320 = vmatprep.mubr.bf16.mxu0 0
        %4321 = vmatmul.mubr.bf16.gmra.mrb[0].mxu0 %v4159
        %v4322 = vpop.f32.mrb[0].mxu0
        %v4323 = vadd.f32 %v4190, %v4322
        %v4324 = vpop.f32.mrb[0].mxu0
        %v4325 = vpop.f32.mrb[0].mxu0
        %v4326 = vadd.f32 %v4190, %v4325
        %v4327 = vpop.f32.mrb[0].mxu0
        %4328 = vmatprep.mubr.bf16.mxu0 0
        %4329 = vmatmul.mubr.bf16.gmra.mrb[0].mxu0 %v4160
        %v4330 = vpop.f32.mrb[0].mxu0
        %v4331 = vadd.f32 %v4190, %v4330
        %v4332 = vpop.f32.mrb[0].mxu0
        %v4333 = vpop.f32.mrb[0].mxu0
        %v4334 = vadd.f32 %v4190, %v4333
        %v4335 = vpop.f32.mrb[0].mxu0
        %4336 = vmatprep.mubr.bf16.mxu0 0
        %4337 = vmatmul.mubr.bf16.gmra.mrb[0].mxu0 %v4161
        %v4338 = vpop.f32.mrb[0].mxu0
        %v4339 = vadd.f32 %v4190, %v4338
        %v4340 = vpop.f32.mrb[0].mxu0
        %v4341 = vpop.f32.mrb[0].mxu0
        %v4342 = vadd.f32 %v4190, %v4341
        %v4343 = vpop.f32.mrb[0].mxu0
        %4344 = vmatprep.mubr.bf16.mxu0 0
        %4345 = vmatmul.mubr.bf16.gmra.mrb[0].mxu0 %v4162
        %v4346 = vpop.f32.mrb[0].mxu0
        %v4347 = vadd.f32 %v4190, %v4346
        %v4348 = vpop.f32.mrb[0].mxu0
        %v4349 = vpop.f32.mrb[0].mxu0
        %v4350 = vadd.f32 %v4190, %v4349
        %v4351 = vpop.f32.mrb[0].mxu0
        %4352 = vmatprep.mubr.bf16.mxu0 0
        %4353 = vmatmul.mubr.bf16.gmra.mrb[0].mxu0 %v4163
        %v4354 = vpop.f32.mrb[0].mxu0
        %v4355 = vadd.f32 %v4190, %v4354
        %v4356 = vpop.f32.mrb[0].mxu0
        %v4357 = vpop.f32.mrb[0].mxu0
        %v4358 = vadd.f32 %v4190, %v4357
        %v4359 = vpop.f32.mrb[0].mxu0
        %4360 = vmatprep.mubr.bf16.mxu0 0
        %4361 = vmatmul.mubr.bf16.gmra.mrb[0].mxu0 %v4164
        %v4362 = vpop.f32.mrb[0].mxu0
        %v4363 = vadd.f32 %v4190, %v4362
        %v4364 = vpop.f32.mrb[0].mxu0
        %v4365 = vpop.f32.mrb[0].mxu0
        %v4366 = vadd.f32 %v4190, %v4365
        %v4367 = vpop.f32.mrb[0].mxu0
        %4368 = vmatprep.mubr.bf16.mxu0 0
        %4369 = vmatmul.mubr.bf16.gmra.mrb[0].mxu0 %v4165
        %v4370 = vpop.f32.mrb[0].mxu0
        %v4371 = vadd.f32 %v4190, %v4370
        %v4372 = vpop.f32.mrb[0].mxu0
        %v4373 = vpop.f32.mrb[0].mxu0
        %v4374 = vadd.f32 %v4190, %v4373
        %v4375 = vpop.f32.mrb[0].mxu0
        %4376 = vmatprep.mubr.bf16.mxu0 0
        %4377 = vmatmul.mubr.bf16.gmra.mrb[0].mxu0 %v4166
        %v4378 = vpop.f32.mrb[0].mxu0
        %v4379 = vadd.f32 %v4190, %v4378
        %v4380 = vpop.f32.mrb[0].mxu0
        %v4381 = vpop.f32.mrb[0].mxu0
        %v4382 = vadd.f32 %v4190, %v4381
        %v4383 = vpop.f32.mrb[0].mxu0
        %4384 = vmatprep.mubr.bf16.mxu0 0
        %4385 = vmatmul.mubr.bf16.gmra.mrb[0].mxu0 %v4167
        %v4386 = vpop.f32.mrb[0].mxu0
        %v4387 = vadd.f32 %v4190, %v4386
        %v4388 = vpop.f32.mrb[0].mxu0
        %v4389 = vpop.f32.mrb[0].mxu0
        %v4390 = vadd.f32 %v4190, %v4389
        %v4391 = vpop.f32.mrb[0].mxu0
        %4392 = vmatprep.mubr.bf16.mxu0 0
        %4393 = vmatmul.mubr.bf16.gmra.mrb[0].mxu0 %v4168
        %v4394 = vpop.f32.mrb[0].mxu0
        %v4395 = vadd.f32 %v4190, %v4394
        %v4396 = vpop.f32.mrb[0].mxu0
        %v4397 = vpop.f32.mrb[0].mxu0
        %v4398 = vadd.f32 %v4190, %v4397
        %v4399 = vpop.f32.mrb[0].mxu0
        %4400 = vdwg.mxu0
        %4401 = vst [vmem:[%s362] sm:$0xff] %v4275
        %4402 = vst [vmem:[%s362 + $0x8] sm:$0xff] %v4278
        %4403 = vst [vmem:[%s362 + $0x10] sm:$0xff] %v4283
        %4404 = vst [vmem:[%s362 + $0x18] sm:$0xff] %v4286
        %4405 = vst [vmem:[%s362 + $0x20] sm:$0xff] %v4291
        %4406 = vst [vmem:[%s362 + $0x28] sm:$0xff] %v4294
        %4407 = vst [vmem:[%s362 + $0x30] sm:$0xff] %v4299
        %4408 = vst [vmem:[%s362 + $0x38] sm:$0xff] %v4302
        %4409 = vst [vmem:[%s362 + $0x40] sm:$0xff] %v4307
        %4410 = vst [vmem:[%s362 + $0x48] sm:$0xff] %v4310
        %4411 = vst [vmem:[%s362 + $0x50] sm:$0xff] %v4315
        %4412 = vst [vmem:[%s362 + $0x58] sm:$0xff] %v4318
        %4413 = vst [vmem:[%s362 + $0x60] sm:$0xff] %v4323
        %4414 = vst [vmem:[%s362 + $0x68] sm:$0xff] %v4326
        %4415 = vst [vmem:[%s362 + $0x70] sm:$0xff] %v4331
        %4416 = vst [vmem:[%s362 + $0x78] sm:$0xff] %v4334
        %4417 = vst [vmem:[%s362 + $0x80] sm:$0xff] %v4339
        %4418 = vst [vmem:[%s362 + $0x88] sm:$0xff] %v4342
        %4419 = vst [vmem:[%s362 + $0x90] sm:$0xff] %v4347
        %4420 = vst [vmem:[%s362 + $0x98] sm:$0xff] %v4350
        %4421 = vst [vmem:[%s362 + $0xa0] sm:$0xff] %v4355
        %4422 = vst [vmem:[%s362 + $0xa8] sm:$0xff] %v4358
        %4423 = vst [vmem:[%s362 + $0xb0] sm:$0xff] %v4363
        %4424 = vst [vmem:[%s362 + $0xb8] sm:$0xff] %v4366
        %4425 = vst [vmem:[%s362 + $0xc0] sm:$0xff] %v4371
        %4426 = vst [vmem:[%s362 + $0xc8] sm:$0xff] %v4374
        %4427 = vst [vmem:[%s362 + $0xd0] sm:$0xff] %v4379
        %4428 = vst [vmem:[%s362 + $0xd8] sm:$0xff] %v4382
        %4429 = vst [vmem:[%s362 + $0xe0] sm:$0xff] %v4387
        %4430 = vst [vmem:[%s362 + $0xe8] sm:$0xff] %v4390
        %4431 = vst [vmem:[%s362 + $0xf0] sm:$0xff] %v4395
        %4432 = vst [vmem:[%s362 + $0xf8] sm:$0xff] %v4398
        %p4433 = scmp.lt.s32.totalorder %s22, 1
        %s4434 = scalar_select %p4433, %s22, 1
        %s4435 = smul.addr %s4434, 32
        %s4436 = smul.addr %s4435, 8
        %s4437 = scalar_lea.vmem %s7, %s4436
        %p4438 = scmp.lt.s32.totalorder %s22, 1
        %s4439 = scalar_select %p4438, %s22, 1
        %s4440 = smul.addr %s4439, 32
        %s4441 = smul.addr %s4440, 8
        %s4442 = scalar_lea.vmem %s8, %s4441
        // Predicated region
        $region61: #{_lambda_.3} parent=47 // pred_check
          %p4443 = pneg %p192
        $region62: #{_lambda_.3} parent=47 // pred_check_branch
          %4445 = sbr.rel (%p4443) target = $region64
        $region63: #{_lambda_.3} parent=47 // pred_region
          _
        $region64: #{_lambda_.3} parent=47 // pred_fallthru
          _
        // Predicated region
        $region65: #{_lambda_.3} parent=47 // pred_check
          %p4446 = pneg %p218
        $region66: #{_lambda_.3} parent=47 // pred_check_branch
          %4448 = sbr.rel (%p4446) target = $region68
        $region67: #{_lambda_.3} parent=47 // pred_region
          _
        $region68: #{_lambda_.3} parent=47 // pred_fallthru
          _
      $region48: #{_lambda_.3} parent=5 // pred_fallthru
        _
      %p4449 = scmp.le.s32.totalorder 2, %s17
      // Predicated region
      $region69: #{_lambda_.3} parent=5 // pred_check
        %p4450 = pneg %p4449
      $region70: #{_lambda_.3} parent=5 // pred_check_branch
        %4452 = sbr.rel (%p4450) target = $region72
      $region71: #{_lambda_.3} parent=5 // pred_region
        %s4453 = ssub.s32 %s17, 2
        // Predicated region
        $region73: #{_lambda_.3} parent=71 // pred_check
          %p4454 = pneg %p198
        $region74: #{_lambda_.3} parent=71 // pred_check_branch
          %4456 = sbr.rel (%p4454) target = $region76
        $region75: #{_lambda_.3} parent=71 // pred_region
          %p4457 = scmp.lt.s32.totalorder %s23, 1
          %s4458 = scalar_select %p4457, %s23, 1
          %s4459 = smul.addr %s4458, 32
          %s4460 = smul.addr %s4459, 8
          %s4461 = scalar_lea.vmem %s7, %s4460
        $region76: #{_lambda_.3} parent=71 // pred_fallthru
          _
        // Predicated region
        $region77: #{_lambda_.3} parent=71 // pred_check
          %p4462 = pneg %p224
        $region78: #{_lambda_.3} parent=71 // pred_check_branch
          %4464 = sbr.rel (%p4462) target = $region80
        $region79: #{_lambda_.3} parent=71 // pred_region
          %p4465 = scmp.lt.s32.totalorder %s23, 1
          %s4466 = scalar_select %p4465, %s23, 1
          %s4467 = smul.addr %s4466, 32
          %s4468 = smul.addr %s4467, 8
          %s4469 = scalar_lea.vmem %s8, %s4468
        $region80: #{_lambda_.3} parent=71 // pred_fallthru
          _
      $region72: #{_lambda_.3} parent=5 // pred_fallthru
        _
    $region6: #{_lambda_.3} parent=1 // loop_footer
      %s21 = sadd.s32 1, %s17
    $region7: #{_lambda_.3} parent=1 // loop_footer_branch
      %16 = sbr.rel target = $region3
    $region8: #{_lambda_.3} parent=1 // loop_exit
      _
    %4470 = vsyncpa [#allocation4], 1
    %s4471 = scalar_lea.sflag [#allocation4], 1
    %4472 = vsyncpa %s4471, 1
    %4473 = vsyncpa [#allocation6], 1

// kernel: _lambda_.5
$region0: #{_lambda_.5}
  #allocation0 [shape = 'u32[]', space=smem, size = 0x4, offset = 0x4, fixed_abs, tag = 'smem constant byte address 0x4 - core index']
  #allocation1 [shape = 'u32[144,128]{1,0:T(1,128)}', space=vmem, size = 0x12000, scoped, tag = 'internal scratch']
  %s0 = inlined_call_operand.vmem [shape: f32[64,6272], index: 0, kind: input, shape index: {}]
  %s1 = inlined_call_operand.vmem [shape: bf16[6272,128], index: 1, kind: input, shape index: {}]
  %s2 = inlined_call_operand.vmem [shape: f32[1,128], index: 2, kind: input, shape index: {}, may-alias: {2,4,6}]
  %s3 = inlined_call_operand.vmem [shape: bf16[128,128], index: 3, kind: input, shape index: {}]
  %s4 = inlined_call_operand.vmem [shape: f32[1,128], index: 4, kind: input, shape index: {}, may-alias: {2,4,6}]
  %s5 = inlined_call_operand.vmem [shape: bf16[128,128], index: 5, kind: input, shape index: {}]
  %s6 = inlined_call_operand.vmem [shape: f32[1,128], index: 6, kind: input, shape index: {}, may-alias: {2,4,6}]
  %s7 = inlined_call_operand.vmem [shape: f32[64,128], index: 7, kind: output, shape index: {}]
  %s8 = sld [smem:[#allocation0]]
  $region38: #{_lambda_.5} parent=0
    _
  %s10 = ssub.s32 1, %s8
  %s11 = scalar_select 0, %s10, %s8
  // Predicated region
  $region2: #{_lambda_.5} parent=0 // pred_check
    _
  $region3: #{_lambda_.5} parent=0 // pred_check_branch
    %13 = sbr.rel (0) target = $region5
  $region4: #{_lambda_.5} parent=0 // pred_region
    _
  $region5: #{_lambda_.5} parent=0 // pred_fallthru
    _
  // Predicated region
  $region6: #{_lambda_.5} parent=0 // pred_check
    _
  $region7: #{_lambda_.5} parent=0 // pred_check_branch
    %15 = sbr.rel (0) target = $region9
  $region8: #{_lambda_.5} parent=0 // pred_region
    _
  $region9: #{_lambda_.5} parent=0 // pred_fallthru
    _
  // Predicated region
  $region10: #{_lambda_.5} parent=0 // pred_check
    _
  $region11: #{_lambda_.5} parent=0 // pred_check_branch
    %17 = sbr.rel (0) target = $region13
  $region12: #{_lambda_.5} parent=0 // pred_region
    _
  $region13: #{_lambda_.5} parent=0 // pred_fallthru
    _
  // Predicated region
  $region14: #{_lambda_.5} parent=0 // pred_check
    _
  $region15: #{_lambda_.5} parent=0 // pred_check_branch
    %19 = sbr.rel (0) target = $region17
  $region16: #{_lambda_.5} parent=0 // pred_region
    _
  $region17: #{_lambda_.5} parent=0 // pred_fallthru
    _
  // Predicated region
  $region18: #{_lambda_.5} parent=0 // pred_check
    _
  $region19: #{_lambda_.5} parent=0 // pred_check_branch
    %21 = sbr.rel (0) target = $region21
  $region20: #{_lambda_.5} parent=0 // pred_region
    _
  $region21: #{_lambda_.5} parent=0 // pred_fallthru
    _
  // Predicated region
  $region22: #{_lambda_.5} parent=0 // pred_check
    _
  $region23: #{_lambda_.5} parent=0 // pred_check_branch
    %23 = sbr.rel (0) target = $region25
  $region24: #{_lambda_.5} parent=0 // pred_region
    _
  $region25: #{_lambda_.5} parent=0 // pred_fallthru
    _
  // Predicated region
  $region26: #{_lambda_.5} parent=0 // pred_check
    _
  $region27: #{_lambda_.5} parent=0 // pred_check_branch
    %25 = sbr.rel (0) target = $region29
  $region28: #{_lambda_.5} parent=0 // pred_region
    _
  $region29: #{_lambda_.5} parent=0 // pred_fallthru
    _
  %v27 = vld [vmem:[%s0] sm:$0xff]
  %v28 = vld [vmem:[%s0 + $0x8] sm:$0xff]
  %v29 = vld [vmem:[%s0 + $0x10] sm:$0xff]
  %v30 = vld [vmem:[%s0 + $0x18] sm:$0xff]
  %v31 = vld [vmem:[%s0 + $0x20] sm:$0xff]
  %v32 = vld [vmem:[%s0 + $0x28] sm:$0xff]
  %v33 = vld [vmem:[%s0 + $0x30] sm:$0xff]
  %v34 = vld [vmem:[%s0 + $0x38] sm:$0xff]
  %v35 = vld [vmem:[%s0 + $0x40] sm:$0xff]
  %v36 = vld [vmem:[%s0 + $0x48] sm:$0xff]
  %v37 = vld [vmem:[%s0 + $0x50] sm:$0xff]
  %v38 = vld [vmem:[%s0 + $0x58] sm:$0xff]
  %v39 = vld [vmem:[%s0 + $0x60] sm:$0xff]
  %v40 = vld [vmem:[%s0 + $0x68] sm:$0xff]
  %v41 = vld [vmem:[%s0 + $0x70] sm:$0xff]
  %v42 = vld [vmem:[%s0 + $0x78] sm:$0xff]
  %v43 = vld [vmem:[%s0 + $0x80] sm:$0xff]
  %v44 = vld [vmem:[%s0 + $0x88] sm:$0xff]
  %v45 = vld [vmem:[%s0 + $0x90] sm:$0xff]
  %v46 = vld [vmem:[%s0 + $0x98] sm:$0xff]
  %v47 = vld [vmem:[%s0 + $0xa0] sm:$0xff]
  %v48 = vld [vmem:[%s0 + $0xa8] sm:$0xff]
  %v49 = vld [vmem:[%s0 + $0xb0] sm:$0xff]
  %v50 = vld [vmem:[%s0 + $0xb8] sm:$0xff]
  %v51 = vld [vmem:[%s0 + $0xc0] sm:$0xff]
  %v52 = vld [vmem:[%s0 + $0xc8] sm:$0xff]
  %v53 = vld [vmem:[%s0 + $0xd0] sm:$0xff]
  %v54 = vld [vmem:[%s0 + $0xd8] sm:$0xff]
  %v55 = vld [vmem:[%s0 + $0xe0] sm:$0xff]
  %v56 = vld [vmem:[%s0 + $0xe8] sm:$0xff]
  %v57 = vld [vmem:[%s0 + $0xf0] sm:$0xff]
  %v58 = vld [vmem:[%s0 + $0xf8] sm:$0xff]
  %v59 = vld [vmem:[%s0 + $0x100] sm:$0xff]
  %v60 = vld [vmem:[%s0 + $0x108] sm:$0xff]
  %v61 = vld [vmem:[%s0 + $0x110] sm:$0xff]
  %v62 = vld [vmem:[%s0 + $0x118] sm:$0xff]
  %v63 = vld [vmem:[%s0 + $0x120] sm:$0xff]
  %v64 = vld [vmem:[%s0 + $0x128] sm:$0xff]
  %v65 = vld [vmem:[%s0 + $0x130] sm:$0xff]
  %v66 = vld [vmem:[%s0 + $0x138] sm:$0xff]
  %v67 = vld [vmem:[%s0 + $0x140] sm:$0xff]
  %v68 = vld [vmem:[%s0 + $0x148] sm:$0xff]
  %v69 = vld [vmem:[%s0 + $0x150] sm:$0xff]
  %v70 = vld [vmem:[%s0 + $0x158] sm:$0xff]
  %v71 = vld [vmem:[%s0 + $0x160] sm:$0xff]
  %v72 = vld [vmem:[%s0 + $0x168] sm:$0xff]
  %v73 = vld [vmem:[%s0 + $0x170] sm:$0xff]
  %v74 = vld [vmem:[%s0 + $0x178] sm:$0xff]
  %v75 = vld [vmem:[%s0 + $0x180] sm:$0xff]
  %v76 = vld [vmem:[%s0 + $0x188] sm:$0xff]
  %v77 = vld [vmem:[%s0 + $0x190] sm:$0xff]
  %v78 = vld [vmem:[%s0 + $0x198] sm:$0xff]
  %v79 = vld [vmem:[%s0 + $0x1a0] sm:$0xff]
  %v80 = vld [vmem:[%s0 + $0x1a8] sm:$0xff]
  %v81 = vld [vmem:[%s0 + $0x1b0] sm:$0xff]
  %v82 = vld [vmem:[%s0 + $0x1b8] sm:$0xff]
  %v83 = vld [vmem:[%s0 + $0x1c0] sm:$0xff]
  %v84 = vld [vmem:[%s0 + $0x1c8] sm:$0xff]
  %v85 = vld [vmem:[%s0 + $0x1d0] sm:$0xff]
  %v86 = vld [vmem:[%s0 + $0x1d8] sm:$0xff]
  %v87 = vld [vmem:[%s0 + $0x1e0] sm:$0xff]
  %v88 = vld [vmem:[%s0 + $0x1e8] sm:$0xff]
  %v89 = vld [vmem:[%s0 + $0x1f0] sm:$0xff]
  %v90 = vld [vmem:[%s0 + $0x1f8] sm:$0xff]
  %v91 = vld [vmem:[%s0 + $0x200] sm:$0xff]
  %v92 = vld [vmem:[%s0 + $0x208] sm:$0xff]
  %v93 = vld [vmem:[%s0 + $0x210] sm:$0xff]
  %v94 = vld [vmem:[%s0 + $0x218] sm:$0xff]
  %v95 = vld [vmem:[%s0 + $0x220] sm:$0xff]
  %v96 = vld [vmem:[%s0 + $0x228] sm:$0xff]
  %v97 = vld [vmem:[%s0 + $0x230] sm:$0xff]
  %v98 = vld [vmem:[%s0 + $0x238] sm:$0xff]
  %v99 = vld [vmem:[%s0 + $0x240] sm:$0xff]
  %v100 = vld [vmem:[%s0 + $0x248] sm:$0xff]
  %v101 = vld [vmem:[%s0 + $0x250] sm:$0xff]
  %v102 = vld [vmem:[%s0 + $0x258] sm:$0xff]
  %v103 = vld [vmem:[%s0 + $0x260] sm:$0xff]
  %v104 = vld [vmem:[%s0 + $0x268] sm:$0xff]
  %v105 = vld [vmem:[%s0 + $0x270] sm:$0xff]
  %v106 = vld [vmem:[%s0 + $0x278] sm:$0xff]
  %v107 = vld [vmem:[%s0 + $0x280] sm:$0xff]
  %v108 = vld [vmem:[%s0 + $0x288] sm:$0xff]
  %v109 = vld [vmem:[%s0 + $0x290] sm:$0xff]
  %v110 = vld [vmem:[%s0 + $0x298] sm:$0xff]
  %v111 = vld [vmem:[%s0 + $0x2a0] sm:$0xff]
  %v112 = vld [vmem:[%s0 + $0x2a8] sm:$0xff]
  %v113 = vld [vmem:[%s0 + $0x2b0] sm:$0xff]
  %v114 = vld [vmem:[%s0 + $0x2b8] sm:$0xff]
  %v115 = vld [vmem:[%s0 + $0x2c0] sm:$0xff]
  %v116 = vld [vmem:[%s0 + $0x2c8] sm:$0xff]
  %v117 = vld [vmem:[%s0 + $0x2d0] sm:$0xff]
  %v118 = vld [vmem:[%s0 + $0x2d8] sm:$0xff]
  %v119 = vld [vmem:[%s0 + $0x2e0] sm:$0xff]
  %v120 = vld [vmem:[%s0 + $0x2e8] sm:$0xff]
  %v121 = vld [vmem:[%s0 + $0x2f0] sm:$0xff]
  %v122 = vld [vmem:[%s0 + $0x2f8] sm:$0xff]
  %v123 = vld [vmem:[%s0 + $0x300] sm:$0xff]
  %v124 = vld [vmem:[%s0 + $0x308] sm:$0xff]
  %v125 = vld [vmem:[%s0 + $0x310] sm:$0xff]
  %v126 = vld [vmem:[%s0 + $0x318] sm:$0xff]
  %v127 = vld [vmem:[%s0 + $0x320] sm:$0xff]
  %v128 = vld [vmem:[%s0 + $0x328] sm:$0xff]
  %v129 = vld [vmem:[%s0 + $0x330] sm:$0xff]
  %v130 = vld [vmem:[%s0 + $0x338] sm:$0xff]
  %v131 = vld [vmem:[%s0 + $0x340] sm:$0xff]
  %v132 = vld [vmem:[%s0 + $0x348] sm:$0xff]
  %v133 = vld [vmem:[%s0 + $0x350] sm:$0xff]
  %v134 = vld [vmem:[%s0 + $0x358] sm:$0xff]
  %v135 = vld [vmem:[%s0 + $0x360] sm:$0xff]
  %v136 = vld [vmem:[%s0 + $0x368] sm:$0xff]
  %v137 = vld [vmem:[%s0 + $0x370] sm:$0xff]
  %v138 = vld [vmem:[%s0 + $0x378] sm:$0xff]
  %v139 = vld [vmem:[%s0 + $0x380] sm:$0xff]
  %v140 = vld [vmem:[%s0 + $0x388] sm:$0xff]
  %v141 = vld [vmem:[%s0 + $0x390] sm:$0xff]
  %v142 = vld [vmem:[%s0 + $0x398] sm:$0xff]
  %v143 = vld [vmem:[%s0 + $0x3a0] sm:$0xff]
  %v144 = vld [vmem:[%s0 + $0x3a8] sm:$0xff]
  %v145 = vld [vmem:[%s0 + $0x3b0] sm:$0xff]
  %v146 = vld [vmem:[%s0 + $0x3b8] sm:$0xff]
  %v147 = vld [vmem:[%s0 + $0x3c0] sm:$0xff]
  %v148 = vld [vmem:[%s0 + $0x3c8] sm:$0xff]
  %v149 = vld [vmem:[%s0 + $0x3d0] sm:$0xff]
  %v150 = vld [vmem:[%s0 + $0x3d8] sm:$0xff]
  %v151 = vld [vmem:[%s0 + $0x3e0] sm:$0xff]
  %v152 = vld [vmem:[%s0 + $0x3e8] sm:$0xff]
  %v153 = vld [vmem:[%s0 + $0x3f0] sm:$0xff]
  %v154 = vld [vmem:[%s0 + $0x3f8] sm:$0xff]
  %v155 = vld [vmem:[%s0 + $0x400] sm:$0xff]
  %v156 = vld [vmem:[%s0 + $0x408] sm:$0xff]
  %v157 = vld [vmem:[%s0 + $0x410] sm:$0xff]
  %v158 = vld [vmem:[%s0 + $0x418] sm:$0xff]
  %v159 = vld [vmem:[%s0 + $0x420] sm:$0xff]
  %v160 = vld [vmem:[%s0 + $0x428] sm:$0xff]
  %v161 = vld [vmem:[%s0 + $0x430] sm:$0xff]
  %v162 = vld [vmem:[%s0 + $0x438] sm:$0xff]
  %v163 = vld [vmem:[%s0 + $0x440] sm:$0xff]
  %v164 = vld [vmem:[%s0 + $0x448] sm:$0xff]
  %v165 = vld [vmem:[%s0 + $0x450] sm:$0xff]
  %v166 = vld [vmem:[%s0 + $0x458] sm:$0xff]
  %v167 = vld [vmem:[%s0 + $0x460] sm:$0xff]
  %v168 = vld [vmem:[%s0 + $0x468] sm:$0xff]
  %v169 = vld [vmem:[%s0 + $0x470] sm:$0xff]
  %v170 = vld [vmem:[%s0 + $0x478] sm:$0xff]
  %v171 = vld [vmem:[%s0 + $0x480] sm:$0xff]
  %v172 = vld [vmem:[%s0 + $0x488] sm:$0xff]
  %v173 = vld [vmem:[%s0 + $0x490] sm:$0xff]
  %v174 = vld [vmem:[%s0 + $0x498] sm:$0xff]
  %v175 = vld [vmem:[%s0 + $0x4a0] sm:$0xff]
  %v176 = vld [vmem:[%s0 + $0x4a8] sm:$0xff]
  %v177 = vld [vmem:[%s0 + $0x4b0] sm:$0xff]
  %v178 = vld [vmem:[%s0 + $0x4b8] sm:$0xff]
  %v179 = vld [vmem:[%s0 + $0x4c0] sm:$0xff]
  %v180 = vld [vmem:[%s0 + $0x4c8] sm:$0xff]
  %v181 = vld [vmem:[%s0 + $0x4d0] sm:$0xff]
  %v182 = vld [vmem:[%s0 + $0x4d8] sm:$0xff]
  %v183 = vld [vmem:[%s0 + $0x4e0] sm:$0xff]
  %v184 = vld [vmem:[%s0 + $0x4e8] sm:$0xff]
  %v185 = vld [vmem:[%s0 + $0x4f0] sm:$0xff]
  %v186 = vld [vmem:[%s0 + $0x4f8] sm:$0xff]
  %v187 = vld [vmem:[%s0 + $0x500] sm:$0xff]
  %v188 = vld [vmem:[%s0 + $0x508] sm:$0xff]
  %v189 = vld [vmem:[%s0 + $0x510] sm:$0xff]
  %v190 = vld [vmem:[%s0 + $0x518] sm:$0xff]
  %v191 = vld [vmem:[%s0 + $0x520] sm:$0xff]
  %v192 = vld [vmem:[%s0 + $0x528] sm:$0xff]
  %v193 = vld [vmem:[%s0 + $0x530] sm:$0xff]
  %v194 = vld [vmem:[%s0 + $0x538] sm:$0xff]
  %v195 = vld [vmem:[%s0 + $0x540] sm:$0xff]
  %v196 = vld [vmem:[%s0 + $0x548] sm:$0xff]
  %v197 = vld [vmem:[%s0 + $0x550] sm:$0xff]
  %v198 = vld [vmem:[%s0 + $0x558] sm:$0xff]
  %v199 = vld [vmem:[%s0 + $0x560] sm:$0xff]
  %v200 = vld [vmem:[%s0 + $0x568] sm:$0xff]
  %v201 = vld [vmem:[%s0 + $0x570] sm:$0xff]
  %v202 = vld [vmem:[%s0 + $0x578] sm:$0xff]
  %v203 = vld [vmem:[%s0 + $0x580] sm:$0xff]
  %v204 = vld [vmem:[%s0 + $0x588] sm:$0xff]
  %v205 = vld [vmem:[%s0 + $0x590] sm:$0xff]
  %v206 = vld [vmem:[%s0 + $0x598] sm:$0xff]
  %v207 = vld [vmem:[%s0 + $0x5a0] sm:$0xff]
  %v208 = vld [vmem:[%s0 + $0x5a8] sm:$0xff]
  %v209 = vld [vmem:[%s0 + $0x5b0] sm:$0xff]
  %v210 = vld [vmem:[%s0 + $0x5b8] sm:$0xff]
  %v211 = vld [vmem:[%s0 + $0x5c0] sm:$0xff]
  %v212 = vld [vmem:[%s0 + $0x5c8] sm:$0xff]
  %v213 = vld [vmem:[%s0 + $0x5d0] sm:$0xff]
  %v214 = vld [vmem:[%s0 + $0x5d8] sm:$0xff]
  %v215 = vld [vmem:[%s0 + $0x5e0] sm:$0xff]
  %v216 = vld [vmem:[%s0 + $0x5e8] sm:$0xff]
  %v217 = vld [vmem:[%s0 + $0x5f0] sm:$0xff]
  %v218 = vld [vmem:[%s0 + $0x5f8] sm:$0xff]
  %v219 = vld [vmem:[%s0 + $0x600] sm:$0xff]
  %v220 = vld [vmem:[%s0 + $0x608] sm:$0xff]
  %v221 = vld [vmem:[%s0 + $0x610] sm:$0xff]
  %v222 = vld [vmem:[%s0 + $0x618] sm:$0xff]
  %v223 = vld [vmem:[%s0 + $0x620] sm:$0xff]
  %v224 = vld [vmem:[%s0 + $0x628] sm:$0xff]
  %v225 = vld [vmem:[%s0 + $0x630] sm:$0xff]
  %v226 = vld [vmem:[%s0 + $0x638] sm:$0xff]
  %v227 = vld [vmem:[%s0 + $0x640] sm:$0xff]
  %v228 = vld [vmem:[%s0 + $0x648] sm:$0xff]
  %v229 = vld [vmem:[%s0 + $0x650] sm:$0xff]
  %v230 = vld [vmem:[%s0 + $0x658] sm:$0xff]
  %v231 = vld [vmem:[%s0 + $0x660] sm:$0xff]
  %v232 = vld [vmem:[%s0 + $0x668] sm:$0xff]
  %v233 = vld [vmem:[%s0 + $0x670] sm:$0xff]
  %v234 = vld [vmem:[%s0 + $0x678] sm:$0xff]
  %v235 = vld [vmem:[%s0 + $0x680] sm:$0xff]
  %v236 = vld [vmem:[%s0 + $0x688] sm:$0xff]
  %v237 = vld [vmem:[%s0 + $0x690] sm:$0xff]
  %v238 = vld [vmem:[%s0 + $0x698] sm:$0xff]
  %v239 = vld [vmem:[%s0 + $0x6a0] sm:$0xff]
  %v240 = vld [vmem:[%s0 + $0x6a8] sm:$0xff]
  %v241 = vld [vmem:[%s0 + $0x6b0] sm:$0xff]
  %v242 = vld [vmem:[%s0 + $0x6b8] sm:$0xff]
  %v243 = vld [vmem:[%s0 + $0x6c0] sm:$0xff]
  %v244 = vld [vmem:[%s0 + $0x6c8] sm:$0xff]
  %v245 = vld [vmem:[%s0 + $0x6d0] sm:$0xff]
  %v246 = vld [vmem:[%s0 + $0x6d8] sm:$0xff]
  %v247 = vld [vmem:[%s0 + $0x6e0] sm:$0xff]
  %v248 = vld [vmem:[%s0 + $0x6e8] sm:$0xff]
  %v249 = vld [vmem:[%s0 + $0x6f0] sm:$0xff]
  %v250 = vld [vmem:[%s0 + $0x6f8] sm:$0xff]
  %v251 = vld [vmem:[%s0 + $0x700] sm:$0xff]
  %v252 = vld [vmem:[%s0 + $0x708] sm:$0xff]
  %v253 = vld [vmem:[%s0 + $0x710] sm:$0xff]
  %v254 = vld [vmem:[%s0 + $0x718] sm:$0xff]
  %v255 = vld [vmem:[%s0 + $0x720] sm:$0xff]
  %v256 = vld [vmem:[%s0 + $0x728] sm:$0xff]
  %v257 = vld [vmem:[%s0 + $0x730] sm:$0xff]
  %v258 = vld [vmem:[%s0 + $0x738] sm:$0xff]
  %v259 = vld [vmem:[%s0 + $0x740] sm:$0xff]
  %v260 = vld [vmem:[%s0 + $0x748] sm:$0xff]
  %v261 = vld [vmem:[%s0 + $0x750] sm:$0xff]
  %v262 = vld [vmem:[%s0 + $0x758] sm:$0xff]
  %v263 = vld [vmem:[%s0 + $0x760] sm:$0xff]
  %v264 = vld [vmem:[%s0 + $0x768] sm:$0xff]
  %v265 = vld [vmem:[%s0 + $0x770] sm:$0xff]
  %v266 = vld [vmem:[%s0 + $0x778] sm:$0xff]
  %v267 = vld [vmem:[%s0 + $0x780] sm:$0xff]
  %v268 = vld [vmem:[%s0 + $0x788] sm:$0xff]
  %v269 = vld [vmem:[%s0 + $0x790] sm:$0xff]
  %v270 = vld [vmem:[%s0 + $0x798] sm:$0xff]
  %v271 = vld [vmem:[%s0 + $0x7a0] sm:$0xff]
  %v272 = vld [vmem:[%s0 + $0x7a8] sm:$0xff]
  %v273 = vld [vmem:[%s0 + $0x7b0] sm:$0xff]
  %v274 = vld [vmem:[%s0 + $0x7b8] sm:$0xff]
  %v275 = vld [vmem:[%s0 + $0x7c0] sm:$0xff]
  %v276 = vld [vmem:[%s0 + $0x7c8] sm:$0xff]
  %v277 = vld [vmem:[%s0 + $0x7d0] sm:$0xff]
  %v278 = vld [vmem:[%s0 + $0x7d8] sm:$0xff]
  %v279 = vld [vmem:[%s0 + $0x7e0] sm:$0xff]
  %v280 = vld [vmem:[%s0 + $0x7e8] sm:$0xff]
  %v281 = vld [vmem:[%s0 + $0x7f0] sm:$0xff]
  %v282 = vld [vmem:[%s0 + $0x7f8] sm:$0xff]
  %v283 = vld [vmem:[%s0 + $0x800] sm:$0xff]
  %v284 = vld [vmem:[%s0 + $0x808] sm:$0xff]
  %v285 = vld [vmem:[%s0 + $0x810] sm:$0xff]
  %v286 = vld [vmem:[%s0 + $0x818] sm:$0xff]
  %v287 = vld [vmem:[%s0 + $0x820] sm:$0xff]
  %v288 = vld [vmem:[%s0 + $0x828] sm:$0xff]
  %v289 = vld [vmem:[%s0 + $0x830] sm:$0xff]
  %v290 = vld [vmem:[%s0 + $0x838] sm:$0xff]
  %v291 = vld [vmem:[%s0 + $0x840] sm:$0xff]
  %v292 = vld [vmem:[%s0 + $0x848] sm:$0xff]
  %v293 = vld [vmem:[%s0 + $0x850] sm:$0xff]
  %v294 = vld [vmem:[%s0 + $0x858] sm:$0xff]
  %v295 = vld [vmem:[%s0 + $0x860] sm:$0xff]
  %v296 = vld [vmem:[%s0 + $0x868] sm:$0xff]
  %v297 = vld [vmem:[%s0 + $0x870] sm:$0xff]
  %v298 = vld [vmem:[%s0 + $0x878] sm:$0xff]
  %v299 = vld [vmem:[%s0 + $0x880] sm:$0xff]
  %v300 = vld [vmem:[%s0 + $0x888] sm:$0xff]
  %v301 = vld [vmem:[%s0 + $0x890] sm:$0xff]
  %v302 = vld [vmem:[%s0 + $0x898] sm:$0xff]
  %v303 = vld [vmem:[%s0 + $0x8a0] sm:$0xff]
  %v304 = vld [vmem:[%s0 + $0x8a8] sm:$0xff]
  %v305 = vld [vmem:[%s0 + $0x8b0] sm:$0xff]
  %v306 = vld [vmem:[%s0 + $0x8b8] sm:$0xff]
  %v307 = vld [vmem:[%s0 + $0x8c0] sm:$0xff]
  %v308 = vld [vmem:[%s0 + $0x8c8] sm:$0xff]
  %v309 = vld [vmem:[%s0 + $0x8d0] sm:$0xff]
  %v310 = vld [vmem:[%s0 + $0x8d8] sm:$0xff]
  %v311 = vld [vmem:[%s0 + $0x8e0] sm:$0xff]
  %v312 = vld [vmem:[%s0 + $0x8e8] sm:$0xff]
  %v313 = vld [vmem:[%s0 + $0x8f0] sm:$0xff]
  %v314 = vld [vmem:[%s0 + $0x8f8] sm:$0xff]
  %v315 = vld [vmem:[%s0 + $0x900] sm:$0xff]
  %v316 = vld [vmem:[%s0 + $0x908] sm:$0xff]
  %v317 = vld [vmem:[%s0 + $0x910] sm:$0xff]
  %v318 = vld [vmem:[%s0 + $0x918] sm:$0xff]
  %v319 = vld [vmem:[%s0 + $0x920] sm:$0xff]
  %v320 = vld [vmem:[%s0 + $0x928] sm:$0xff]
  %v321 = vld [vmem:[%s0 + $0x930] sm:$0xff]
  %v322 = vld [vmem:[%s0 + $0x938] sm:$0xff]
  %v323 = vld [vmem:[%s0 + $0x940] sm:$0xff]
  %v324 = vld [vmem:[%s0 + $0x948] sm:$0xff]
  %v325 = vld [vmem:[%s0 + $0x950] sm:$0xff]
  %v326 = vld [vmem:[%s0 + $0x958] sm:$0xff]
  %v327 = vld [vmem:[%s0 + $0x960] sm:$0xff]
  %v328 = vld [vmem:[%s0 + $0x968] sm:$0xff]
  %v329 = vld [vmem:[%s0 + $0x970] sm:$0xff]
  %v330 = vld [vmem:[%s0 + $0x978] sm:$0xff]
  %v331 = vld [vmem:[%s0 + $0x980] sm:$0xff]
  %v332 = vld [vmem:[%s0 + $0x988] sm:$0xff]
  %v333 = vld [vmem:[%s0 + $0x990] sm:$0xff]
  %v334 = vld [vmem:[%s0 + $0x998] sm:$0xff]
  %v335 = vld [vmem:[%s0 + $0x9a0] sm:$0xff]
  %v336 = vld [vmem:[%s0 + $0x9a8] sm:$0xff]
  %v337 = vld [vmem:[%s0 + $0x9b0] sm:$0xff]
  %v338 = vld [vmem:[%s0 + $0x9b8] sm:$0xff]
  %v339 = vld [vmem:[%s0 + $0x9c0] sm:$0xff]
  %v340 = vld [vmem:[%s0 + $0x9c8] sm:$0xff]
  %v341 = vld [vmem:[%s0 + $0x9d0] sm:$0xff]
  %v342 = vld [vmem:[%s0 + $0x9d8] sm:$0xff]
  %v343 = vld [vmem:[%s0 + $0x9e0] sm:$0xff]
  %v344 = vld [vmem:[%s0 + $0x9e8] sm:$0xff]
  %v345 = vld [vmem:[%s0 + $0x9f0] sm:$0xff]
  %v346 = vld [vmem:[%s0 + $0x9f8] sm:$0xff]
  %v347 = vld [vmem:[%s0 + $0xa00] sm:$0xff]
  %v348 = vld [vmem:[%s0 + $0xa08] sm:$0xff]
  %v349 = vld [vmem:[%s0 + $0xa10] sm:$0xff]
  %v350 = vld [vmem:[%s0 + $0xa18] sm:$0xff]
  %v351 = vld [vmem:[%s0 + $0xa20] sm:$0xff]
  %v352 = vld [vmem:[%s0 + $0xa28] sm:$0xff]
  %v353 = vld [vmem:[%s0 + $0xa30] sm:$0xff]
  %v354 = vld [vmem:[%s0 + $0xa38] sm:$0xff]
  %v355 = vld [vmem:[%s0 + $0xa40] sm:$0xff]
  %v356 = vld [vmem:[%s0 + $0xa48] sm:$0xff]
  %v357 = vld [vmem:[%s0 + $0xa50] sm:$0xff]
  %v358 = vld [vmem:[%s0 + $0xa58] sm:$0xff]
  %v359 = vld [vmem:[%s0 + $0xa60] sm:$0xff]
  %v360 = vld [vmem:[%s0 + $0xa68] sm:$0xff]
  %v361 = vld [vmem:[%s0 + $0xa70] sm:$0xff]
  %v362 = vld [vmem:[%s0 + $0xa78] sm:$0xff]
  %v363 = vld [vmem:[%s0 + $0xa80] sm:$0xff]
  %v364 = vld [vmem:[%s0 + $0xa88] sm:$0xff]
  %v365 = vld [vmem:[%s0 + $0xa90] sm:$0xff]
  %v366 = vld [vmem:[%s0 + $0xa98] sm:$0xff]
  %v367 = vld [vmem:[%s0 + $0xaa0] sm:$0xff]
  %v368 = vld [vmem:[%s0 + $0xaa8] sm:$0xff]
  %v369 = vld [vmem:[%s0 + $0xab0] sm:$0xff]
  %v370 = vld [vmem:[%s0 + $0xab8] sm:$0xff]
  %v371 = vld [vmem:[%s0 + $0xac0] sm:$0xff]
  %v372 = vld [vmem:[%s0 + $0xac8] sm:$0xff]
  %v373 = vld [vmem:[%s0 + $0xad0] sm:$0xff]
  %v374 = vld [vmem:[%s0 + $0xad8] sm:$0xff]
  %v375 = vld [vmem:[%s0 + $0xae0] sm:$0xff]
  %v376 = vld [vmem:[%s0 + $0xae8] sm:$0xff]
  %v377 = vld [vmem:[%s0 + $0xaf0] sm:$0xff]
  %v378 = vld [vmem:[%s0 + $0xaf8] sm:$0xff]
  %v379 = vld [vmem:[%s0 + $0xb00] sm:$0xff]
  %v380 = vld [vmem:[%s0 + $0xb08] sm:$0xff]
  %v381 = vld [vmem:[%s0 + $0xb10] sm:$0xff]
  %v382 = vld [vmem:[%s0 + $0xb18] sm:$0xff]
  %v383 = vld [vmem:[%s0 + $0xb20] sm:$0xff]
  %v384 = vld [vmem:[%s0 + $0xb28] sm:$0xff]
  %v385 = vld [vmem:[%s0 + $0xb30] sm:$0xff]
  %v386 = vld [vmem:[%s0 + $0xb38] sm:$0xff]
  %v387 = vld [vmem:[%s0 + $0xb40] sm:$0xff]
  %v388 = vld [vmem:[%s0 + $0xb48] sm:$0xff]
  %v389 = vld [vmem:[%s0 + $0xb50] sm:$0xff]
  %v390 = vld [vmem:[%s0 + $0xb58] sm:$0xff]
  %v391 = vld [vmem:[%s0 + $0xb60] sm:$0xff]
  %v392 = vld [vmem:[%s0 + $0xb68] sm:$0xff]
  %v393 = vld [vmem:[%s0 + $0xb70] sm:$0xff]
  %v394 = vld [vmem:[%s0 + $0xb78] sm:$0xff]
  %v395 = vld [vmem:[%s0 + $0xb80] sm:$0xff]
  %v396 = vld [vmem:[%s0 + $0xb88] sm:$0xff]
  %v397 = vld [vmem:[%s0 + $0xb90] sm:$0xff]
  %v398 = vld [vmem:[%s0 + $0xb98] sm:$0xff]
  %v399 = vld [vmem:[%s0 + $0xba0] sm:$0xff]
  %v400 = vld [vmem:[%s0 + $0xba8] sm:$0xff]
  %v401 = vld [vmem:[%s0 + $0xbb0] sm:$0xff]
  %v402 = vld [vmem:[%s0 + $0xbb8] sm:$0xff]
  %v403 = vld [vmem:[%s0 + $0xbc0] sm:$0xff]
  %v404 = vld [vmem:[%s0 + $0xbc8] sm:$0xff]
  %v405 = vld [vmem:[%s0 + $0xbd0] sm:$0xff]
  %v406 = vld [vmem:[%s0 + $0xbd8] sm:$0xff]
  %v407 = vld [vmem:[%s0 + $0xbe0] sm:$0xff]
  %v408 = vld [vmem:[%s0 + $0xbe8] sm:$0xff]
  %v409 = vld [vmem:[%s0 + $0xbf0] sm:$0xff]
  %v410 = vld [vmem:[%s0 + $0xbf8] sm:$0xff]
  %v411 = vld [vmem:[%s0 + $0xc00] sm:$0xff]
  %v412 = vld [vmem:[%s0 + $0xc08] sm:$0xff]
  %v413 = vld [vmem:[%s0 + $0xc10] sm:$0xff]
  %v414 = vld [vmem:[%s0 + $0xc18] sm:$0xff]
  %v415 = vld [vmem:[%s0 + $0xc20] sm:$0xff]
  %v416 = vld [vmem:[%s0 + $0xc28] sm:$0xff]
  %v417 = vld [vmem:[%s0 + $0xc30] sm:$0xff]
  %v418 = vld [vmem:[%s0 + $0xc38] sm:$0xff]
  %v419 = vpack.c.bf16 %v76, %v27
  %v420 = vpack.c.bf16 %v77, %v28
  %v421 = vpack.c.bf16 %v78, %v29
  %v422 = vpack.c.bf16 %v79, %v30
  %v423 = vpack.c.bf16 %v80, %v31
  %v424 = vpack.c.bf16 %v81, %v32
  %v425 = vpack.c.bf16 %v82, %v33
  %v426 = vpack.c.bf16 %v83, %v34
  %v427 = vpack.c.bf16 %v84, %v35
  %v428 = vpack.c.bf16 %v85, %v36
  %v429 = vpack.c.bf16 %v86, %v37
  %v430 = vpack.c.bf16 %v87, %v38
  %v431 = vpack.c.bf16 %v88, %v39
  %v432 = vpack.c.bf16 %v89, %v40
  %v433 = vpack.c.bf16 %v90, %v41
  %v434 = vpack.c.bf16 %v91, %v42
  %v435 = vpack.c.bf16 %v92, %v43
  %v436 = vpack.c.bf16 %v93, %v44
  %v437 = vpack.c.bf16 %v94, %v45
  %v438 = vpack.c.bf16 %v95, %v46
  %v439 = vpack.c.bf16 %v96, %v47
  %v440 = vpack.c.bf16 %v97, %v48
  %v441 = vpack.c.bf16 %v98, %v49
  %v442 = vpack.c.bf16 %v99, %v50
  %v443 = vpack.c.bf16 %v100, %v51
  %v444 = vpack.c.bf16 %v101, %v52
  %v445 = vpack.c.bf16 %v102, %v53
  %v446 = vpack.c.bf16 %v103, %v54
  %v447 = vpack.c.bf16 %v104, %v55
  %v448 = vpack.c.bf16 %v105, %v56
  %v449 = vpack.c.bf16 %v106, %v57
  %v450 = vpack.c.bf16 %v107, %v58
  %v451 = vpack.c.bf16 %v108, %v59
  %v452 = vpack.c.bf16 %v109, %v60
  %v453 = vpack.c.bf16 %v110, %v61
  %v454 = vpack.c.bf16 %v111, %v62
  %v455 = vpack.c.bf16 %v112, %v63
  %v456 = vpack.c.bf16 %v113, %v64
  %v457 = vpack.c.bf16 %v114, %v65
  %v458 = vpack.c.bf16 %v115, %v66
  %v459 = vpack.c.bf16 %v116, %v67
  %v460 = vpack.c.bf16 %v117, %v68
  %v461 = vpack.c.bf16 %v118, %v69
  %v462 = vpack.c.bf16 %v119, %v70
  %v463 = vpack.c.bf16 %v120, %v71
  %v464 = vpack.c.bf16 %v121, %v72
  %v465 = vpack.c.bf16 %v122, %v73
  %v466 = vpack.c.bf16 %v123, %v74
  %v467 = vpack.c.bf16 %v124, %v75
  %v468 = vpack.c.bf16 %v174, %v125
  %v469 = vpack.c.bf16 %v175, %v126
  %v470 = vpack.c.bf16 %v176, %v127
  %v471 = vpack.c.bf16 %v177, %v128
  %v472 = vpack.c.bf16 %v178, %v129
  %v473 = vpack.c.bf16 %v179, %v130
  %v474 = vpack.c.bf16 %v180, %v131
  %v475 = vpack.c.bf16 %v181, %v132
  %v476 = vpack.c.bf16 %v182, %v133
  %v477 = vpack.c.bf16 %v183, %v134
  %v478 = vpack.c.bf16 %v184, %v135
  %v479 = vpack.c.bf16 %v185, %v136
  %v480 = vpack.c.bf16 %v186, %v137
  %v481 = vpack.c.bf16 %v187, %v138
  %v482 = vpack.c.bf16 %v188, %v139
  %v483 = vpack.c.bf16 %v189, %v140
  %v484 = vpack.c.bf16 %v190, %v141
  %v485 = vpack.c.bf16 %v191, %v142
  %v486 = vpack.c.bf16 %v192, %v143
  %v487 = vpack.c.bf16 %v193, %v144
  %v488 = vpack.c.bf16 %v194, %v145
  %v489 = vpack.c.bf16 %v195, %v146
  %v490 = vpack.c.bf16 %v196, %v147
  %v491 = vpack.c.bf16 %v197, %v148
  %v492 = vpack.c.bf16 %v198, %v149
  %v493 = vpack.c.bf16 %v199, %v150
  %v494 = vpack.c.bf16 %v200, %v151
  %v495 = vpack.c.bf16 %v201, %v152
  %v496 = vpack.c.bf16 %v202, %v153
  %v497 = vpack.c.bf16 %v203, %v154
  %v498 = vpack.c.bf16 %v204, %v155
  %v499 = vpack.c.bf16 %v205, %v156
  %v500 = vpack.c.bf16 %v206, %v157
  %v501 = vpack.c.bf16 %v207, %v158
  %v502 = vpack.c.bf16 %v208, %v159
  %v503 = vpack.c.bf16 %v209, %v160
  %v504 = vpack.c.bf16 %v210, %v161
  %v505 = vpack.c.bf16 %v211, %v162
  %v506 = vpack.c.bf16 %v212, %v163
  %v507 = vpack.c.bf16 %v213, %v164
  %v508 = vpack.c.bf16 %v214, %v165
  %v509 = vpack.c.bf16 %v215, %v166
  %v510 = vpack.c.bf16 %v216, %v167
  %v511 = vpack.c.bf16 %v217, %v168
  %v512 = vpack.c.bf16 %v218, %v169
  %v513 = vpack.c.bf16 %v219, %v170
  %v514 = vpack.c.bf16 %v220, %v171
  %v515 = vpack.c.bf16 %v221, %v172
  %v516 = vpack.c.bf16 %v222, %v173
  %v517 = vpack.c.bf16 %v272, %v223
  %v518 = vpack.c.bf16 %v273, %v224
  %v519 = vpack.c.bf16 %v274, %v225
  %v520 = vpack.c.bf16 %v275, %v226
  %v521 = vpack.c.bf16 %v276, %v227
  %v522 = vpack.c.bf16 %v277, %v228
  %v523 = vpack.c.bf16 %v278, %v229
  %v524 = vpack.c.bf16 %v279, %v230
  %v525 = vpack.c.bf16 %v280, %v231
  %v526 = vpack.c.bf16 %v281, %v232
  %v527 = vpack.c.bf16 %v282, %v233
  %v528 = vpack.c.bf16 %v283, %v234
  %v529 = vpack.c.bf16 %v284, %v235
  %v530 = vpack.c.bf16 %v285, %v236
  %v531 = vpack.c.bf16 %v286, %v237
  %v532 = vpack.c.bf16 %v287, %v238
  %v533 = vpack.c.bf16 %v288, %v239
  %v534 = vpack.c.bf16 %v289, %v240
  %v535 = vpack.c.bf16 %v290, %v241
  %v536 = vpack.c.bf16 %v291, %v242
  %v537 = vpack.c.bf16 %v292, %v243
  %v538 = vpack.c.bf16 %v293, %v244
  %v539 = vpack.c.bf16 %v294, %v245
  %v540 = vpack.c.bf16 %v295, %v246
  %v541 = vpack.c.bf16 %v296, %v247
  %v542 = vpack.c.bf16 %v297, %v248
  %v543 = vpack.c.bf16 %v298, %v249
  %v544 = vpack.c.bf16 %v299, %v250
  %v545 = vpack.c.bf16 %v300, %v251
  %v546 = vpack.c.bf16 %v301, %v252
  %v547 = vpack.c.bf16 %v302, %v253
  %v548 = vpack.c.bf16 %v303, %v254
  %v549 = vpack.c.bf16 %v304, %v255
  %v550 = vpack.c.bf16 %v305, %v256
  %v551 = vpack.c.bf16 %v306, %v257
  %v552 = vpack.c.bf16 %v307, %v258
  %v553 = vpack.c.bf16 %v308, %v259
  %v554 = vpack.c.bf16 %v309, %v260
  %v555 = vpack.c.bf16 %v310, %v261
  %v556 = vpack.c.bf16 %v311, %v262
  %v557 = vpack.c.bf16 %v312, %v263
  %v558 = vpack.c.bf16 %v313, %v264
  %v559 = vpack.c.bf16 %v314, %v265
  %v560 = vpack.c.bf16 %v315, %v266
  %v561 = vpack.c.bf16 %v316, %v267
  %v562 = vpack.c.bf16 %v317, %v268
  %v563 = vpack.c.bf16 %v318, %v269
  %v564 = vpack.c.bf16 %v319, %v270
  %v565 = vpack.c.bf16 %v320, %v271
  %v566 = vpack.c.bf16 %v370, %v321
  %v567 = vpack.c.bf16 %v371, %v322
  %v568 = vpack.c.bf16 %v372, %v323
  %v569 = vpack.c.bf16 %v373, %v324
  %v570 = vpack.c.bf16 %v374, %v325
  %v571 = vpack.c.bf16 %v375, %v326
  %v572 = vpack.c.bf16 %v376, %v327
  %v573 = vpack.c.bf16 %v377, %v328
  %v574 = vpack.c.bf16 %v378, %v329
  %v575 = vpack.c.bf16 %v379, %v330
  %v576 = vpack.c.bf16 %v380, %v331
  %v577 = vpack.c.bf16 %v381, %v332
  %v578 = vpack.c.bf16 %v382, %v333
  %v579 = vpack.c.bf16 %v383, %v334
  %v580 = vpack.c.bf16 %v384, %v335
  %v581 = vpack.c.bf16 %v385, %v336
  %v582 = vpack.c.bf16 %v386, %v337
  %v583 = vpack.c.bf16 %v387, %v338
  %v584 = vpack.c.bf16 %v388, %v339
  %v585 = vpack.c.bf16 %v389, %v340
  %v586 = vpack.c.bf16 %v390, %v341
  %v587 = vpack.c.bf16 %v391, %v342
  %v588 = vpack.c.bf16 %v392, %v343
  %v589 = vpack.c.bf16 %v393, %v344
  %v590 = vpack.c.bf16 %v394, %v345
  %v591 = vpack.c.bf16 %v395, %v346
  %v592 = vpack.c.bf16 %v396, %v347
  %v593 = vpack.c.bf16 %v397, %v348
  %v594 = vpack.c.bf16 %v398, %v349
  %v595 = vpack.c.bf16 %v399, %v350
  %v596 = vpack.c.bf16 %v400, %v351
  %v597 = vpack.c.bf16 %v401, %v352
  %v598 = vpack.c.bf16 %v402, %v353
  %v599 = vpack.c.bf16 %v403, %v354
  %v600 = vpack.c.bf16 %v404, %v355
  %v601 = vpack.c.bf16 %v405, %v356
  %v602 = vpack.c.bf16 %v406, %v357
  %v603 = vpack.c.bf16 %v407, %v358
  %v604 = vpack.c.bf16 %v408, %v359
  %v605 = vpack.c.bf16 %v409, %v360
  %v606 = vpack.c.bf16 %v410, %v361
  %v607 = vpack.c.bf16 %v411, %v362
  %v608 = vpack.c.bf16 %v412, %v363
  %v609 = vpack.c.bf16 %v413, %v364
  %v610 = vpack.c.bf16 %v414, %v365
  %v611 = vpack.c.bf16 %v415, %v366
  %v612 = vpack.c.bf16 %v416, %v367
  %v613 = vpack.c.bf16 %v417, %v368
  %v614 = vpack.c.bf16 %v418, %v369
  %v615 = vld [vmem:[%s1] sm:$0xf]
  %v616 = vld [vmem:[%s1 + $0x4] sm:$0xf]
  %v617 = vld [vmem:[%s1 + $0x8] sm:$0xf]
  %v618 = vld [vmem:[%s1 + $0xc] sm:$0xf]
  %v619 = vld [vmem:[%s1 + $0x10] sm:$0xf]
  %v620 = vld [vmem:[%s1 + $0x14] sm:$0xf]
  %v621 = vld [vmem:[%s1 + $0x18] sm:$0xf]
  %v622 = vld [vmem:[%s1 + $0x1c] sm:$0xf]
  %v623 = vld [vmem:[%s1 + $0x20] sm:$0xf]
  %v624 = vld [vmem:[%s1 + $0x24] sm:$0xf]
  %v625 = vld [vmem:[%s1 + $0x28] sm:$0xf]
  %v626 = vld [vmem:[%s1 + $0x2c] sm:$0xf]
  %v627 = vld [vmem:[%s1 + $0x30] sm:$0xf]
  %v628 = vld [vmem:[%s1 + $0x34] sm:$0xf]
  %v629 = vld [vmem:[%s1 + $0x38] sm:$0xf]
  %v630 = vld [vmem:[%s1 + $0x3c] sm:$0xf]
  %v631 = vld [vmem:[%s1 + $0x40] sm:$0xf]
  %v632 = vld [vmem:[%s1 + $0x44] sm:$0xf]
  %v633 = vld [vmem:[%s1 + $0x48] sm:$0xf]
  %v634 = vld [vmem:[%s1 + $0x4c] sm:$0xf]
  %v635 = vld [vmem:[%s1 + $0x50] sm:$0xf]
  %v636 = vld [vmem:[%s1 + $0x54] sm:$0xf]
  %v637 = vld [vmem:[%s1 + $0x58] sm:$0xf]
  %v638 = vld [vmem:[%s1 + $0x5c] sm:$0xf]
  %v639 = vld [vmem:[%s1 + $0x60] sm:$0xf]
  %v640 = vld [vmem:[%s1 + $0x64] sm:$0xf]
  %v641 = vld [vmem:[%s1 + $0x68] sm:$0xf]
  %v642 = vld [vmem:[%s1 + $0x6c] sm:$0xf]
  %v643 = vld [vmem:[%s1 + $0x70] sm:$0xf]
  %v644 = vld [vmem:[%s1 + $0x74] sm:$0xf]
  %v645 = vld [vmem:[%s1 + $0x78] sm:$0xf]
  %v646 = vld [vmem:[%s1 + $0x7c] sm:$0xf]
  %v647 = vld [vmem:[%s1 + $0x80] sm:$0xf]
  %v648 = vld [vmem:[%s1 + $0x84] sm:$0xf]
  %v649 = vld [vmem:[%s1 + $0x88] sm:$0xf]
  %v650 = vld [vmem:[%s1 + $0x8c] sm:$0xf]
  %v651 = vld [vmem:[%s1 + $0x90] sm:$0xf]
  %v652 = vld [vmem:[%s1 + $0x94] sm:$0xf]
  %v653 = vld [vmem:[%s1 + $0x98] sm:$0xf]
  %v654 = vld [vmem:[%s1 + $0x9c] sm:$0xf]
  %v655 = vld [vmem:[%s1 + $0xa0] sm:$0xf]
  %v656 = vld [vmem:[%s1 + $0xa4] sm:$0xf]
  %v657 = vld [vmem:[%s1 + $0xa8] sm:$0xf]
  %v658 = vld [vmem:[%s1 + $0xac] sm:$0xf]
  %v659 = vld [vmem:[%s1 + $0xb0] sm:$0xf]
  %v660 = vld [vmem:[%s1 + $0xb4] sm:$0xf]
  %v661 = vld [vmem:[%s1 + $0xb8] sm:$0xf]
  %v662 = vld [vmem:[%s1 + $0xbc] sm:$0xf]
  %v663 = vld [vmem:[%s1 + $0xc0] sm:$0xf]
  %v664 = vld [vmem:[%s1 + $0xc4] sm:$0xf]
  %v665 = vld [vmem:[%s1 + $0xc8] sm:$0xf]
  %v666 = vld [vmem:[%s1 + $0xcc] sm:$0xf]
  %v667 = vld [vmem:[%s1 + $0xd0] sm:$0xf]
  %v668 = vld [vmem:[%s1 + $0xd4] sm:$0xf]
  %v669 = vld [vmem:[%s1 + $0xd8] sm:$0xf]
  %v670 = vld [vmem:[%s1 + $0xdc] sm:$0xf]
  %v671 = vld [vmem:[%s1 + $0xe0] sm:$0xf]
  %v672 = vld [vmem:[%s1 + $0xe4] sm:$0xf]
  %v673 = vld [vmem:[%s1 + $0xe8] sm:$0xf]
  %v674 = vld [vmem:[%s1 + $0xec] sm:$0xf]
  %v675 = vld [vmem:[%s1 + $0xf0] sm:$0xf]
  %v676 = vld [vmem:[%s1 + $0xf4] sm:$0xf]
  %v677 = vld [vmem:[%s1 + $0xf8] sm:$0xf]
  %v678 = vld [vmem:[%s1 + $0xfc] sm:$0xf]
  %v679 = vld [vmem:[%s1 + $0x100] sm:$0xf]
  %v680 = vld [vmem:[%s1 + $0x104] sm:$0xf]
  %v681 = vld [vmem:[%s1 + $0x108] sm:$0xf]
  %v682 = vld [vmem:[%s1 + $0x10c] sm:$0xf]
  %v683 = vld [vmem:[%s1 + $0x110] sm:$0xf]
  %v684 = vld [vmem:[%s1 + $0x114] sm:$0xf]
  %v685 = vld [vmem:[%s1 + $0x118] sm:$0xf]
  %v686 = vld [vmem:[%s1 + $0x11c] sm:$0xf]
  %v687 = vld [vmem:[%s1 + $0x120] sm:$0xf]
  %v688 = vld [vmem:[%s1 + $0x124] sm:$0xf]
  %v689 = vld [vmem:[%s1 + $0x128] sm:$0xf]
  %v690 = vld [vmem:[%s1 + $0x12c] sm:$0xf]
  %v691 = vld [vmem:[%s1 + $0x130] sm:$0xf]
  %v692 = vld [vmem:[%s1 + $0x134] sm:$0xf]
  %v693 = vld [vmem:[%s1 + $0x138] sm:$0xf]
  %v694 = vld [vmem:[%s1 + $0x13c] sm:$0xf]
  %v695 = vld [vmem:[%s1 + $0x140] sm:$0xf]
  %v696 = vld [vmem:[%s1 + $0x144] sm:$0xf]
  %v697 = vld [vmem:[%s1 + $0x148] sm:$0xf]
  %v698 = vld [vmem:[%s1 + $0x14c] sm:$0xf]
  %v699 = vld [vmem:[%s1 + $0x150] sm:$0xf]
  %v700 = vld [vmem:[%s1 + $0x154] sm:$0xf]
  %v701 = vld [vmem:[%s1 + $0x158] sm:$0xf]
  %v702 = vld [vmem:[%s1 + $0x15c] sm:$0xf]
  %v703 = vld [vmem:[%s1 + $0x160] sm:$0xf]
  %v704 = vld [vmem:[%s1 + $0x164] sm:$0xf]
  %v705 = vld [vmem:[%s1 + $0x168] sm:$0xf]
  %v706 = vld [vmem:[%s1 + $0x16c] sm:$0xf]
  %v707 = vld [vmem:[%s1 + $0x170] sm:$0xf]
  %v708 = vld [vmem:[%s1 + $0x174] sm:$0xf]
  %v709 = vld [vmem:[%s1 + $0x178] sm:$0xf]
  %v710 = vld [vmem:[%s1 + $0x17c] sm:$0xf]
  %v711 = vld [vmem:[%s1 + $0x180] sm:$0xf]
  %v712 = vld [vmem:[%s1 + $0x184] sm:$0xf]
  %v713 = vld [vmem:[%s1 + $0x188] sm:$0xf]
  %v714 = vld [vmem:[%s1 + $0x18c] sm:$0xf]
  %v715 = vld [vmem:[%s1 + $0x190] sm:$0xf]
  %v716 = vld [vmem:[%s1 + $0x194] sm:$0xf]
  %v717 = vld [vmem:[%s1 + $0x198] sm:$0xf]
  %v718 = vld [vmem:[%s1 + $0x19c] sm:$0xf]
  %v719 = vld [vmem:[%s1 + $0x1a0] sm:$0xf]
  %v720 = vld [vmem:[%s1 + $0x1a4] sm:$0xf]
  %v721 = vld [vmem:[%s1 + $0x1a8] sm:$0xf]
  %v722 = vld [vmem:[%s1 + $0x1ac] sm:$0xf]
  %v723 = vld [vmem:[%s1 + $0x1b0] sm:$0xf]
  %v724 = vld [vmem:[%s1 + $0x1b4] sm:$0xf]
  %v725 = vld [vmem:[%s1 + $0x1b8] sm:$0xf]
  %v726 = vld [vmem:[%s1 + $0x1bc] sm:$0xf]
  %v727 = vld [vmem:[%s1 + $0x1c0] sm:$0xf]
  %v728 = vld [vmem:[%s1 + $0x1c4] sm:$0xf]
  %v729 = vld [vmem:[%s1 + $0x1c8] sm:$0xf]
  %v730 = vld [vmem:[%s1 + $0x1cc] sm:$0xf]
  %v731 = vld [vmem:[%s1 + $0x1d0] sm:$0xf]
  %v732 = vld [vmem:[%s1 + $0x1d4] sm:$0xf]
  %v733 = vld [vmem:[%s1 + $0x1d8] sm:$0xf]
  %v734 = vld [vmem:[%s1 + $0x1dc] sm:$0xf]
  %v735 = vld [vmem:[%s1 + $0x1e0] sm:$0xf]
  %v736 = vld [vmem:[%s1 + $0x1e4] sm:$0xf]
  %v737 = vld [vmem:[%s1 + $0x1e8] sm:$0xf]
  %v738 = vld [vmem:[%s1 + $0x1ec] sm:$0xf]
  %v739 = vld [vmem:[%s1 + $0x1f0] sm:$0xf]
  %v740 = vld [vmem:[%s1 + $0x1f4] sm:$0xf]
  %v741 = vld [vmem:[%s1 + $0x1f8] sm:$0xf]
  %v742 = vld [vmem:[%s1 + $0x1fc] sm:$0xf]
  %v743 = vld [vmem:[%s1 + $0x200] sm:$0xf]
  %v744 = vld [vmem:[%s1 + $0x204] sm:$0xf]
  %v745 = vld [vmem:[%s1 + $0x208] sm:$0xf]
  %v746 = vld [vmem:[%s1 + $0x20c] sm:$0xf]
  %v747 = vld [vmem:[%s1 + $0x210] sm:$0xf]
  %v748 = vld [vmem:[%s1 + $0x214] sm:$0xf]
  %v749 = vld [vmem:[%s1 + $0x218] sm:$0xf]
  %v750 = vld [vmem:[%s1 + $0x21c] sm:$0xf]
  %v751 = vld [vmem:[%s1 + $0x220] sm:$0xf]
  %v752 = vld [vmem:[%s1 + $0x224] sm:$0xf]
  %v753 = vld [vmem:[%s1 + $0x228] sm:$0xf]
  %v754 = vld [vmem:[%s1 + $0x22c] sm:$0xf]
  %v755 = vld [vmem:[%s1 + $0x230] sm:$0xf]
  %v756 = vld [vmem:[%s1 + $0x234] sm:$0xf]
  %v757 = vld [vmem:[%s1 + $0x238] sm:$0xf]
  %v758 = vld [vmem:[%s1 + $0x23c] sm:$0xf]
  %v759 = vld [vmem:[%s1 + $0x240] sm:$0xf]
  %v760 = vld [vmem:[%s1 + $0x244] sm:$0xf]
  %v761 = vld [vmem:[%s1 + $0x248] sm:$0xf]
  %v762 = vld [vmem:[%s1 + $0x24c] sm:$0xf]
  %v763 = vld [vmem:[%s1 + $0x250] sm:$0xf]
  %v764 = vld [vmem:[%s1 + $0x254] sm:$0xf]
  %v765 = vld [vmem:[%s1 + $0x258] sm:$0xf]
  %v766 = vld [vmem:[%s1 + $0x25c] sm:$0xf]
  %v767 = vld [vmem:[%s1 + $0x260] sm:$0xf]
  %v768 = vld [vmem:[%s1 + $0x264] sm:$0xf]
  %v769 = vld [vmem:[%s1 + $0x268] sm:$0xf]
  %v770 = vld [vmem:[%s1 + $0x26c] sm:$0xf]
  %v771 = vld [vmem:[%s1 + $0x270] sm:$0xf]
  %v772 = vld [vmem:[%s1 + $0x274] sm:$0xf]
  %v773 = vld [vmem:[%s1 + $0x278] sm:$0xf]
  %v774 = vld [vmem:[%s1 + $0x27c] sm:$0xf]
  %v775 = vld [vmem:[%s1 + $0x280] sm:$0xf]
  %v776 = vld [vmem:[%s1 + $0x284] sm:$0xf]
  %v777 = vld [vmem:[%s1 + $0x288] sm:$0xf]
  %v778 = vld [vmem:[%s1 + $0x28c] sm:$0xf]
  %v779 = vld [vmem:[%s1 + $0x290] sm:$0xf]
  %v780 = vld [vmem:[%s1 + $0x294] sm:$0xf]
  %v781 = vld [vmem:[%s1 + $0x298] sm:$0xf]
  %v782 = vld [vmem:[%s1 + $0x29c] sm:$0xf]
  %v783 = vld [vmem:[%s1 + $0x2a0] sm:$0xf]
  %v784 = vld [vmem:[%s1 + $0x2a4] sm:$0xf]
  %v785 = vld [vmem:[%s1 + $0x2a8] sm:$0xf]
  %v786 = vld [vmem:[%s1 + $0x2ac] sm:$0xf]
  %v787 = vld [vmem:[%s1 + $0x2b0] sm:$0xf]
  %v788 = vld [vmem:[%s1 + $0x2b4] sm:$0xf]
  %v789 = vld [vmem:[%s1 + $0x2b8] sm:$0xf]
  %v790 = vld [vmem:[%s1 + $0x2bc] sm:$0xf]
  %v791 = vld [vmem:[%s1 + $0x2c0] sm:$0xf]
  %v792 = vld [vmem:[%s1 + $0x2c4] sm:$0xf]
  %v793 = vld [vmem:[%s1 + $0x2c8] sm:$0xf]
  %v794 = vld [vmem:[%s1 + $0x2cc] sm:$0xf]
  %v795 = vld [vmem:[%s1 + $0x2d0] sm:$0xf]
  %v796 = vld [vmem:[%s1 + $0x2d4] sm:$0xf]
  %v797 = vld [vmem:[%s1 + $0x2d8] sm:$0xf]
  %v798 = vld [vmem:[%s1 + $0x2dc] sm:$0xf]
  %v799 = vld [vmem:[%s1 + $0x2e0] sm:$0xf]
  %v800 = vld [vmem:[%s1 + $0x2e4] sm:$0xf]
  %v801 = vld [vmem:[%s1 + $0x2e8] sm:$0xf]
  %v802 = vld [vmem:[%s1 + $0x2ec] sm:$0xf]
  %v803 = vld [vmem:[%s1 + $0x2f0] sm:$0xf]
  %v804 = vld [vmem:[%s1 + $0x2f4] sm:$0xf]
  %v805 = vld [vmem:[%s1 + $0x2f8] sm:$0xf]
  %v806 = vld [vmem:[%s1 + $0x2fc] sm:$0xf]
  %v807 = vld [vmem:[%s1 + $0x300] sm:$0xf]
  %v808 = vld [vmem:[%s1 + $0x304] sm:$0xf]
  %v809 = vld [vmem:[%s1 + $0x308] sm:$0xf]
  %v810 = vld [vmem:[%s1 + $0x30c] sm:$0xf]
  %v811 = vld [vmem:[%s1 + $0x310] sm:$0xf]
  %v812 = vld [vmem:[%s1 + $0x314] sm:$0xf]
  %v813 = vld [vmem:[%s1 + $0x318] sm:$0xf]
  %v814 = vld [vmem:[%s1 + $0x31c] sm:$0xf]
  %v815 = vld [vmem:[%s1 + $0x320] sm:$0xf]
  %v816 = vld [vmem:[%s1 + $0x324] sm:$0xf]
  %v817 = vld [vmem:[%s1 + $0x328] sm:$0xf]
  %v818 = vld [vmem:[%s1 + $0x32c] sm:$0xf]
  %v819 = vld [vmem:[%s1 + $0x330] sm:$0xf]
  %v820 = vld [vmem:[%s1 + $0x334] sm:$0xf]
  %v821 = vld [vmem:[%s1 + $0x338] sm:$0xf]
  %v822 = vld [vmem:[%s1 + $0x33c] sm:$0xf]
  %v823 = vld [vmem:[%s1 + $0x340] sm:$0xf]
  %v824 = vld [vmem:[%s1 + $0x344] sm:$0xf]
  %v825 = vld [vmem:[%s1 + $0x348] sm:$0xf]
  %v826 = vld [vmem:[%s1 + $0x34c] sm:$0xf]
  %v827 = vld [vmem:[%s1 + $0x350] sm:$0xf]
  %v828 = vld [vmem:[%s1 + $0x354] sm:$0xf]
  %v829 = vld [vmem:[%s1 + $0x358] sm:$0xf]
  %v830 = vld [vmem:[%s1 + $0x35c] sm:$0xf]
  %v831 = vld [vmem:[%s1 + $0x360] sm:$0xf]
  %v832 = vld [vmem:[%s1 + $0x364] sm:$0xf]
  %v833 = vld [vmem:[%s1 + $0x368] sm:$0xf]
  %v834 = vld [vmem:[%s1 + $0x36c] sm:$0xf]
  %v835 = vld [vmem:[%s1 + $0x370] sm:$0xf]
  %v836 = vld [vmem:[%s1 + $0x374] sm:$0xf]
  %v837 = vld [vmem:[%s1 + $0x378] sm:$0xf]
  %v838 = vld [vmem:[%s1 + $0x37c] sm:$0xf]
  %v839 = vld [vmem:[%s1 + $0x380] sm:$0xf]
  %v840 = vld [vmem:[%s1 + $0x384] sm:$0xf]
  %v841 = vld [vmem:[%s1 + $0x388] sm:$0xf]
  %v842 = vld [vmem:[%s1 + $0x38c] sm:$0xf]
  %v843 = vld [vmem:[%s1 + $0x390] sm:$0xf]
  %v844 = vld [vmem:[%s1 + $0x394] sm:$0xf]
  %v845 = vld [vmem:[%s1 + $0x398] sm:$0xf]
  %v846 = vld [vmem:[%s1 + $0x39c] sm:$0xf]
  %v847 = vld [vmem:[%s1 + $0x3a0] sm:$0xf]
  %v848 = vld [vmem:[%s1 + $0x3a4] sm:$0xf]
  %v849 = vld [vmem:[%s1 + $0x3a8] sm:$0xf]
  %v850 = vld [vmem:[%s1 + $0x3ac] sm:$0xf]
  %v851 = vld [vmem:[%s1 + $0x3b0] sm:$0xf]
  %v852 = vld [vmem:[%s1 + $0x3b4] sm:$0xf]
  %v853 = vld [vmem:[%s1 + $0x3b8] sm:$0xf]
  %v854 = vld [vmem:[%s1 + $0x3bc] sm:$0xf]
  %v855 = vld [vmem:[%s1 + $0x3c0] sm:$0xf]
  %v856 = vld [vmem:[%s1 + $0x3c4] sm:$0xf]
  %v857 = vld [vmem:[%s1 + $0x3c8] sm:$0xf]
  %v858 = vld [vmem:[%s1 + $0x3cc] sm:$0xf]
  %v859 = vld [vmem:[%s1 + $0x3d0] sm:$0xf]
  %v860 = vld [vmem:[%s1 + $0x3d4] sm:$0xf]
  %v861 = vld [vmem:[%s1 + $0x3d8] sm:$0xf]
  %v862 = vld [vmem:[%s1 + $0x3dc] sm:$0xf]
  %v863 = vld [vmem:[%s1 + $0x3e0] sm:$0xf]
  %v864 = vld [vmem:[%s1 + $0x3e4] sm:$0xf]
  %v865 = vld [vmem:[%s1 + $0x3e8] sm:$0xf]
  %v866 = vld [vmem:[%s1 + $0x3ec] sm:$0xf]
  %v867 = vld [vmem:[%s1 + $0x3f0] sm:$0xf]
  %v868 = vld [vmem:[%s1 + $0x3f4] sm:$0xf]
  %v869 = vld [vmem:[%s1 + $0x3f8] sm:$0xf]
  %v870 = vld [vmem:[%s1 + $0x3fc] sm:$0xf]
  %v871 = vld [vmem:[%s1 + $0x400] sm:$0xf]
  %v872 = vld [vmem:[%s1 + $0x404] sm:$0xf]
  %v873 = vld [vmem:[%s1 + $0x408] sm:$0xf]
  %v874 = vld [vmem:[%s1 + $0x40c] sm:$0xf]
  %v875 = vld [vmem:[%s1 + $0x410] sm:$0xf]
  %v876 = vld [vmem:[%s1 + $0x414] sm:$0xf]
  %v877 = vld [vmem:[%s1 + $0x418] sm:$0xf]
  %v878 = vld [vmem:[%s1 + $0x41c] sm:$0xf]
  %v879 = vld [vmem:[%s1 + $0x420] sm:$0xf]
  %v880 = vld [vmem:[%s1 + $0x424] sm:$0xf]
  %v881 = vld [vmem:[%s1 + $0x428] sm:$0xf]
  %v882 = vld [vmem:[%s1 + $0x42c] sm:$0xf]
  %v883 = vld [vmem:[%s1 + $0x430] sm:$0xf]
  %v884 = vld [vmem:[%s1 + $0x434] sm:$0xf]
  %v885 = vld [vmem:[%s1 + $0x438] sm:$0xf]
  %v886 = vld [vmem:[%s1 + $0x43c] sm:$0xf]
  %v887 = vld [vmem:[%s1 + $0x440] sm:$0xf]
  %v888 = vld [vmem:[%s1 + $0x444] sm:$0xf]
  %v889 = vld [vmem:[%s1 + $0x448] sm:$0xf]
  %v890 = vld [vmem:[%s1 + $0x44c] sm:$0xf]
  %v891 = vld [vmem:[%s1 + $0x450] sm:$0xf]
  %v892 = vld [vmem:[%s1 + $0x454] sm:$0xf]
  %v893 = vld [vmem:[%s1 + $0x458] sm:$0xf]
  %v894 = vld [vmem:[%s1 + $0x45c] sm:$0xf]
  %v895 = vld [vmem:[%s1 + $0x460] sm:$0xf]
  %v896 = vld [vmem:[%s1 + $0x464] sm:$0xf]
  %v897 = vld [vmem:[%s1 + $0x468] sm:$0xf]
  %v898 = vld [vmem:[%s1 + $0x46c] sm:$0xf]
  %v899 = vld [vmem:[%s1 + $0x470] sm:$0xf]
  %v900 = vld [vmem:[%s1 + $0x474] sm:$0xf]
  %v901 = vld [vmem:[%s1 + $0x478] sm:$0xf]
  %v902 = vld [vmem:[%s1 + $0x47c] sm:$0xf]
  %v903 = vld [vmem:[%s1 + $0x480] sm:$0xf]
  %v904 = vld [vmem:[%s1 + $0x484] sm:$0xf]
  %v905 = vld [vmem:[%s1 + $0x488] sm:$0xf]
  %v906 = vld [vmem:[%s1 + $0x48c] sm:$0xf]
  %v907 = vld [vmem:[%s1 + $0x490] sm:$0xf]
  %v908 = vld [vmem:[%s1 + $0x494] sm:$0xf]
  %v909 = vld [vmem:[%s1 + $0x498] sm:$0xf]
  %v910 = vld [vmem:[%s1 + $0x49c] sm:$0xf]
  %v911 = vld [vmem:[%s1 + $0x4a0] sm:$0xf]
  %v912 = vld [vmem:[%s1 + $0x4a4] sm:$0xf]
  %v913 = vld [vmem:[%s1 + $0x4a8] sm:$0xf]
  %v914 = vld [vmem:[%s1 + $0x4ac] sm:$0xf]
  %v915 = vld [vmem:[%s1 + $0x4b0] sm:$0xf]
  %v916 = vld [vmem:[%s1 + $0x4b4] sm:$0xf]
  %v917 = vld [vmem:[%s1 + $0x4b8] sm:$0xf]
  %v918 = vld [vmem:[%s1 + $0x4bc] sm:$0xf]
  %v919 = vld [vmem:[%s1 + $0x4c0] sm:$0xf]
  %v920 = vld [vmem:[%s1 + $0x4c4] sm:$0xf]
  %v921 = vld [vmem:[%s1 + $0x4c8] sm:$0xf]
  %v922 = vld [vmem:[%s1 + $0x4cc] sm:$0xf]
  %v923 = vld [vmem:[%s1 + $0x4d0] sm:$0xf]
  %v924 = vld [vmem:[%s1 + $0x4d4] sm:$0xf]
  %v925 = vld [vmem:[%s1 + $0x4d8] sm:$0xf]
  %v926 = vld [vmem:[%s1 + $0x4dc] sm:$0xf]
  %v927 = vld [vmem:[%s1 + $0x4e0] sm:$0xf]
  %v928 = vld [vmem:[%s1 + $0x4e4] sm:$0xf]
  %v929 = vld [vmem:[%s1 + $0x4e8] sm:$0xf]
  %v930 = vld [vmem:[%s1 + $0x4ec] sm:$0xf]
  %v931 = vld [vmem:[%s1 + $0x4f0] sm:$0xf]
  %v932 = vld [vmem:[%s1 + $0x4f4] sm:$0xf]
  %v933 = vld [vmem:[%s1 + $0x4f8] sm:$0xf]
  %v934 = vld [vmem:[%s1 + $0x4fc] sm:$0xf]
  %v935 = vld [vmem:[%s1 + $0x500] sm:$0xf]
  %v936 = vld [vmem:[%s1 + $0x504] sm:$0xf]
  %v937 = vld [vmem:[%s1 + $0x508] sm:$0xf]
  %v938 = vld [vmem:[%s1 + $0x50c] sm:$0xf]
  %v939 = vld [vmem:[%s1 + $0x510] sm:$0xf]
  %v940 = vld [vmem:[%s1 + $0x514] sm:$0xf]
  %v941 = vld [vmem:[%s1 + $0x518] sm:$0xf]
  %v942 = vld [vmem:[%s1 + $0x51c] sm:$0xf]
  %v943 = vld [vmem:[%s1 + $0x520] sm:$0xf]
  %v944 = vld [vmem:[%s1 + $0x524] sm:$0xf]
  %v945 = vld [vmem:[%s1 + $0x528] sm:$0xf]
  %v946 = vld [vmem:[%s1 + $0x52c] sm:$0xf]
  %v947 = vld [vmem:[%s1 + $0x530] sm:$0xf]
  %v948 = vld [vmem:[%s1 + $0x534] sm:$0xf]
  %v949 = vld [vmem:[%s1 + $0x538] sm:$0xf]
  %v950 = vld [vmem:[%s1 + $0x53c] sm:$0xf]
  %v951 = vld [vmem:[%s1 + $0x540] sm:$0xf]
  %v952 = vld [vmem:[%s1 + $0x544] sm:$0xf]
  %v953 = vld [vmem:[%s1 + $0x548] sm:$0xf]
  %v954 = vld [vmem:[%s1 + $0x54c] sm:$0xf]
  %v955 = vld [vmem:[%s1 + $0x550] sm:$0xf]
  %v956 = vld [vmem:[%s1 + $0x554] sm:$0xf]
  %v957 = vld [vmem:[%s1 + $0x558] sm:$0xf]
  %v958 = vld [vmem:[%s1 + $0x55c] sm:$0xf]
  %v959 = vld [vmem:[%s1 + $0x560] sm:$0xf]
  %v960 = vld [vmem:[%s1 + $0x564] sm:$0xf]
  %v961 = vld [vmem:[%s1 + $0x568] sm:$0xf]
  %v962 = vld [vmem:[%s1 + $0x56c] sm:$0xf]
  %v963 = vld [vmem:[%s1 + $0x570] sm:$0xf]
  %v964 = vld [vmem:[%s1 + $0x574] sm:$0xf]
  %v965 = vld [vmem:[%s1 + $0x578] sm:$0xf]
  %v966 = vld [vmem:[%s1 + $0x57c] sm:$0xf]
  %v967 = vld [vmem:[%s1 + $0x580] sm:$0xf]
  %v968 = vld [vmem:[%s1 + $0x584] sm:$0xf]
  %v969 = vld [vmem:[%s1 + $0x588] sm:$0xf]
  %v970 = vld [vmem:[%s1 + $0x58c] sm:$0xf]
  %v971 = vld [vmem:[%s1 + $0x590] sm:$0xf]
  %v972 = vld [vmem:[%s1 + $0x594] sm:$0xf]
  %v973 = vld [vmem:[%s1 + $0x598] sm:$0xf]
  %v974 = vld [vmem:[%s1 + $0x59c] sm:$0xf]
  %v975 = vld [vmem:[%s1 + $0x5a0] sm:$0xf]
  %v976 = vld [vmem:[%s1 + $0x5a4] sm:$0xf]
  %v977 = vld [vmem:[%s1 + $0x5a8] sm:$0xf]
  %v978 = vld [vmem:[%s1 + $0x5ac] sm:$0xf]
  %v979 = vld [vmem:[%s1 + $0x5b0] sm:$0xf]
  %v980 = vld [vmem:[%s1 + $0x5b4] sm:$0xf]
  %v981 = vld [vmem:[%s1 + $0x5b8] sm:$0xf]
  %v982 = vld [vmem:[%s1 + $0x5bc] sm:$0xf]
  %v983 = vld [vmem:[%s1 + $0x5c0] sm:$0xf]
  %v984 = vld [vmem:[%s1 + $0x5c4] sm:$0xf]
  %v985 = vld [vmem:[%s1 + $0x5c8] sm:$0xf]
  %v986 = vld [vmem:[%s1 + $0x5cc] sm:$0xf]
  %v987 = vld [vmem:[%s1 + $0x5d0] sm:$0xf]
  %v988 = vld [vmem:[%s1 + $0x5d4] sm:$0xf]
  %v989 = vld [vmem:[%s1 + $0x5d8] sm:$0xf]
  %v990 = vld [vmem:[%s1 + $0x5dc] sm:$0xf]
  %v991 = vld [vmem:[%s1 + $0x5e0] sm:$0xf]
  %v992 = vld [vmem:[%s1 + $0x5e4] sm:$0xf]
  %v993 = vld [vmem:[%s1 + $0x5e8] sm:$0xf]
  %v994 = vld [vmem:[%s1 + $0x5ec] sm:$0xf]
  %v995 = vld [vmem:[%s1 + $0x5f0] sm:$0xf]
  %v996 = vld [vmem:[%s1 + $0x5f4] sm:$0xf]
  %v997 = vld [vmem:[%s1 + $0x5f8] sm:$0xf]
  %v998 = vld [vmem:[%s1 + $0x5fc] sm:$0xf]
  %v999 = vld [vmem:[%s1 + $0x600] sm:$0xf]
  %v1000 = vld [vmem:[%s1 + $0x604] sm:$0xf]
  %v1001 = vld [vmem:[%s1 + $0x608] sm:$0xf]
  %v1002 = vld [vmem:[%s1 + $0x60c] sm:$0xf]
  %v1003 = vld [vmem:[%s1 + $0x610] sm:$0xf]
  %v1004 = vld [vmem:[%s1 + $0x614] sm:$0xf]
  %v1005 = vld [vmem:[%s1 + $0x618] sm:$0xf]
  %v1006 = vld [vmem:[%s1 + $0x61c] sm:$0xf]
  %v1007 = vld [vmem:[%s1 + $0x620] sm:$0xf]
  %v1008 = vld [vmem:[%s1 + $0x624] sm:$0xf]
  %v1009 = vld [vmem:[%s1 + $0x628] sm:$0xf]
  %v1010 = vld [vmem:[%s1 + $0x62c] sm:$0xf]
  %v1011 = vld [vmem:[%s1 + $0x630] sm:$0xf]
  %v1012 = vld [vmem:[%s1 + $0x634] sm:$0xf]
  %v1013 = vld [vmem:[%s1 + $0x638] sm:$0xf]
  %v1014 = vld [vmem:[%s1 + $0x63c] sm:$0xf]
  %v1015 = vld [vmem:[%s1 + $0x640] sm:$0xf]
  %v1016 = vld [vmem:[%s1 + $0x644] sm:$0xf]
  %v1017 = vld [vmem:[%s1 + $0x648] sm:$0xf]
  %v1018 = vld [vmem:[%s1 + $0x64c] sm:$0xf]
  %v1019 = vld [vmem:[%s1 + $0x650] sm:$0xf]
  %v1020 = vld [vmem:[%s1 + $0x654] sm:$0xf]
  %v1021 = vld [vmem:[%s1 + $0x658] sm:$0xf]
  %v1022 = vld [vmem:[%s1 + $0x65c] sm:$0xf]
  %v1023 = vld [vmem:[%s1 + $0x660] sm:$0xf]
  %v1024 = vld [vmem:[%s1 + $0x664] sm:$0xf]
  %v1025 = vld [vmem:[%s1 + $0x668] sm:$0xf]
  %v1026 = vld [vmem:[%s1 + $0x66c] sm:$0xf]
  %v1027 = vld [vmem:[%s1 + $0x670] sm:$0xf]
  %v1028 = vld [vmem:[%s1 + $0x674] sm:$0xf]
  %v1029 = vld [vmem:[%s1 + $0x678] sm:$0xf]
  %v1030 = vld [vmem:[%s1 + $0x67c] sm:$0xf]
  %v1031 = vld [vmem:[%s1 + $0x680] sm:$0xf]
  %v1032 = vld [vmem:[%s1 + $0x684] sm:$0xf]
  %v1033 = vld [vmem:[%s1 + $0x688] sm:$0xf]
  %v1034 = vld [vmem:[%s1 + $0x68c] sm:$0xf]
  %v1035 = vld [vmem:[%s1 + $0x690] sm:$0xf]
  %v1036 = vld [vmem:[%s1 + $0x694] sm:$0xf]
  %v1037 = vld [vmem:[%s1 + $0x698] sm:$0xf]
  %v1038 = vld [vmem:[%s1 + $0x69c] sm:$0xf]
  %v1039 = vld [vmem:[%s1 + $0x6a0] sm:$0xf]
  %v1040 = vld [vmem:[%s1 + $0x6a4] sm:$0xf]
  %v1041 = vld [vmem:[%s1 + $0x6a8] sm:$0xf]
  %v1042 = vld [vmem:[%s1 + $0x6ac] sm:$0xf]
  %v1043 = vld [vmem:[%s1 + $0x6b0] sm:$0xf]
  %v1044 = vld [vmem:[%s1 + $0x6b4] sm:$0xf]
  %v1045 = vld [vmem:[%s1 + $0x6b8] sm:$0xf]
  %v1046 = vld [vmem:[%s1 + $0x6bc] sm:$0xf]
  %v1047 = vld [vmem:[%s1 + $0x6c0] sm:$0xf]
  %v1048 = vld [vmem:[%s1 + $0x6c4] sm:$0xf]
  %v1049 = vld [vmem:[%s1 + $0x6c8] sm:$0xf]
  %v1050 = vld [vmem:[%s1 + $0x6cc] sm:$0xf]
  %v1051 = vld [vmem:[%s1 + $0x6d0] sm:$0xf]
  %v1052 = vld [vmem:[%s1 + $0x6d4] sm:$0xf]
  %v1053 = vld [vmem:[%s1 + $0x6d8] sm:$0xf]
  %v1054 = vld [vmem:[%s1 + $0x6dc] sm:$0xf]
  %v1055 = vld [vmem:[%s1 + $0x6e0] sm:$0xf]
  %v1056 = vld [vmem:[%s1 + $0x6e4] sm:$0xf]
  %v1057 = vld [vmem:[%s1 + $0x6e8] sm:$0xf]
  %v1058 = vld [vmem:[%s1 + $0x6ec] sm:$0xf]
  %v1059 = vld [vmem:[%s1 + $0x6f0] sm:$0xf]
  %v1060 = vld [vmem:[%s1 + $0x6f4] sm:$0xf]
  %v1061 = vld [vmem:[%s1 + $0x6f8] sm:$0xf]
  %v1062 = vld [vmem:[%s1 + $0x6fc] sm:$0xf]
  %v1063 = vld [vmem:[%s1 + $0x700] sm:$0xf]
  %v1064 = vld [vmem:[%s1 + $0x704] sm:$0xf]
  %v1065 = vld [vmem:[%s1 + $0x708] sm:$0xf]
  %v1066 = vld [vmem:[%s1 + $0x70c] sm:$0xf]
  %v1067 = vld [vmem:[%s1 + $0x710] sm:$0xf]
  %v1068 = vld [vmem:[%s1 + $0x714] sm:$0xf]
  %v1069 = vld [vmem:[%s1 + $0x718] sm:$0xf]
  %v1070 = vld [vmem:[%s1 + $0x71c] sm:$0xf]
  %v1071 = vld [vmem:[%s1 + $0x720] sm:$0xf]
  %v1072 = vld [vmem:[%s1 + $0x724] sm:$0xf]
  %v1073 = vld [vmem:[%s1 + $0x728] sm:$0xf]
  %v1074 = vld [vmem:[%s1 + $0x72c] sm:$0xf]
  %v1075 = vld [vmem:[%s1 + $0x730] sm:$0xf]
  %v1076 = vld [vmem:[%s1 + $0x734] sm:$0xf]
  %v1077 = vld [vmem:[%s1 + $0x738] sm:$0xf]
  %v1078 = vld [vmem:[%s1 + $0x73c] sm:$0xf]
  %v1079 = vld [vmem:[%s1 + $0x740] sm:$0xf]
  %v1080 = vld [vmem:[%s1 + $0x744] sm:$0xf]
  %v1081 = vld [vmem:[%s1 + $0x748] sm:$0xf]
  %v1082 = vld [vmem:[%s1 + $0x74c] sm:$0xf]
  %v1083 = vld [vmem:[%s1 + $0x750] sm:$0xf]
  %v1084 = vld [vmem:[%s1 + $0x754] sm:$0xf]
  %v1085 = vld [vmem:[%s1 + $0x758] sm:$0xf]
  %v1086 = vld [vmem:[%s1 + $0x75c] sm:$0xf]
  %v1087 = vld [vmem:[%s1 + $0x760] sm:$0xf]
  %v1088 = vld [vmem:[%s1 + $0x764] sm:$0xf]
  %v1089 = vld [vmem:[%s1 + $0x768] sm:$0xf]
  %v1090 = vld [vmem:[%s1 + $0x76c] sm:$0xf]
  %v1091 = vld [vmem:[%s1 + $0x770] sm:$0xf]
  %v1092 = vld [vmem:[%s1 + $0x774] sm:$0xf]
  %v1093 = vld [vmem:[%s1 + $0x778] sm:$0xf]
  %v1094 = vld [vmem:[%s1 + $0x77c] sm:$0xf]
  %v1095 = vld [vmem:[%s1 + $0x780] sm:$0xf]
  %v1096 = vld [vmem:[%s1 + $0x784] sm:$0xf]
  %v1097 = vld [vmem:[%s1 + $0x788] sm:$0xf]
  %v1098 = vld [vmem:[%s1 + $0x78c] sm:$0xf]
  %v1099 = vld [vmem:[%s1 + $0x790] sm:$0xf]
  %v1100 = vld [vmem:[%s1 + $0x794] sm:$0xf]
  %v1101 = vld [vmem:[%s1 + $0x798] sm:$0xf]
  %v1102 = vld [vmem:[%s1 + $0x79c] sm:$0xf]
  %v1103 = vld [vmem:[%s1 + $0x7a0] sm:$0xf]
  %v1104 = vld [vmem:[%s1 + $0x7a4] sm:$0xf]
  %v1105 = vld [vmem:[%s1 + $0x7a8] sm:$0xf]
  %v1106 = vld [vmem:[%s1 + $0x7ac] sm:$0xf]
  %v1107 = vld [vmem:[%s1 + $0x7b0] sm:$0xf]
  %v1108 = vld [vmem:[%s1 + $0x7b4] sm:$0xf]
  %v1109 = vld [vmem:[%s1 + $0x7b8] sm:$0xf]
  %v1110 = vld [vmem:[%s1 + $0x7bc] sm:$0xf]
  %v1111 = vld [vmem:[%s1 + $0x7c0] sm:$0xf]
  %v1112 = vld [vmem:[%s1 + $0x7c4] sm:$0xf]
  %v1113 = vld [vmem:[%s1 + $0x7c8] sm:$0xf]
  %v1114 = vld [vmem:[%s1 + $0x7cc] sm:$0xf]
  %v1115 = vld [vmem:[%s1 + $0x7d0] sm:$0xf]
  %v1116 = vld [vmem:[%s1 + $0x7d4] sm:$0xf]
  %v1117 = vld [vmem:[%s1 + $0x7d8] sm:$0xf]
  %v1118 = vld [vmem:[%s1 + $0x7dc] sm:$0xf]
  %v1119 = vld [vmem:[%s1 + $0x7e0] sm:$0xf]
  %v1120 = vld [vmem:[%s1 + $0x7e4] sm:$0xf]
  %v1121 = vld [vmem:[%s1 + $0x7e8] sm:$0xf]
  %v1122 = vld [vmem:[%s1 + $0x7ec] sm:$0xf]
  %v1123 = vld [vmem:[%s1 + $0x7f0] sm:$0xf]
  %v1124 = vld [vmem:[%s1 + $0x7f4] sm:$0xf]
  %v1125 = vld [vmem:[%s1 + $0x7f8] sm:$0xf]
  %v1126 = vld [vmem:[%s1 + $0x7fc] sm:$0xf]
  %v1127 = vld [vmem:[%s1 + $0x800] sm:$0xf]
  %v1128 = vld [vmem:[%s1 + $0x804] sm:$0xf]
  %v1129 = vld [vmem:[%s1 + $0x808] sm:$0xf]
  %v1130 = vld [vmem:[%s1 + $0x80c] sm:$0xf]
  %v1131 = vld [vmem:[%s1 + $0x810] sm:$0xf]
  %v1132 = vld [vmem:[%s1 + $0x814] sm:$0xf]
  %v1133 = vld [vmem:[%s1 + $0x818] sm:$0xf]
  %v1134 = vld [vmem:[%s1 + $0x81c] sm:$0xf]
  %v1135 = vld [vmem:[%s1 + $0x820] sm:$0xf]
  %v1136 = vld [vmem:[%s1 + $0x824] sm:$0xf]
  %v1137 = vld [vmem:[%s1 + $0x828] sm:$0xf]
  %v1138 = vld [vmem:[%s1 + $0x82c] sm:$0xf]
  %v1139 = vld [vmem:[%s1 + $0x830] sm:$0xf]
  %v1140 = vld [vmem:[%s1 + $0x834] sm:$0xf]
  %v1141 = vld [vmem:[%s1 + $0x838] sm:$0xf]
  %v1142 = vld [vmem:[%s1 + $0x83c] sm:$0xf]
  %v1143 = vld [vmem:[%s1 + $0x840] sm:$0xf]
  %v1144 = vld [vmem:[%s1 + $0x844] sm:$0xf]
  %v1145 = vld [vmem:[%s1 + $0x848] sm:$0xf]
  %v1146 = vld [vmem:[%s1 + $0x84c] sm:$0xf]
  %v1147 = vld [vmem:[%s1 + $0x850] sm:$0xf]
  %v1148 = vld [vmem:[%s1 + $0x854] sm:$0xf]
  %v1149 = vld [vmem:[%s1 + $0x858] sm:$0xf]
  %v1150 = vld [vmem:[%s1 + $0x85c] sm:$0xf]
  %v1151 = vld [vmem:[%s1 + $0x860] sm:$0xf]
  %v1152 = vld [vmem:[%s1 + $0x864] sm:$0xf]
  %v1153 = vld [vmem:[%s1 + $0x868] sm:$0xf]
  %v1154 = vld [vmem:[%s1 + $0x86c] sm:$0xf]
  %v1155 = vld [vmem:[%s1 + $0x870] sm:$0xf]
  %v1156 = vld [vmem:[%s1 + $0x874] sm:$0xf]
  %v1157 = vld [vmem:[%s1 + $0x878] sm:$0xf]
  %v1158 = vld [vmem:[%s1 + $0x87c] sm:$0xf]
  %v1159 = vld [vmem:[%s1 + $0x880] sm:$0xf]
  %v1160 = vld [vmem:[%s1 + $0x884] sm:$0xf]
  %v1161 = vld [vmem:[%s1 + $0x888] sm:$0xf]
  %v1162 = vld [vmem:[%s1 + $0x88c] sm:$0xf]
  %v1163 = vld [vmem:[%s1 + $0x890] sm:$0xf]
  %v1164 = vld [vmem:[%s1 + $0x894] sm:$0xf]
  %v1165 = vld [vmem:[%s1 + $0x898] sm:$0xf]
  %v1166 = vld [vmem:[%s1 + $0x89c] sm:$0xf]
  %v1167 = vld [vmem:[%s1 + $0x8a0] sm:$0xf]
  %v1168 = vld [vmem:[%s1 + $0x8a4] sm:$0xf]
  %v1169 = vld [vmem:[%s1 + $0x8a8] sm:$0xf]
  %v1170 = vld [vmem:[%s1 + $0x8ac] sm:$0xf]
  %v1171 = vld [vmem:[%s1 + $0x8b0] sm:$0xf]
  %v1172 = vld [vmem:[%s1 + $0x8b4] sm:$0xf]
  %v1173 = vld [vmem:[%s1 + $0x8b8] sm:$0xf]
  %v1174 = vld [vmem:[%s1 + $0x8bc] sm:$0xf]
  %v1175 = vld [vmem:[%s1 + $0x8c0] sm:$0xf]
  %v1176 = vld [vmem:[%s1 + $0x8c4] sm:$0xf]
  %v1177 = vld [vmem:[%s1 + $0x8c8] sm:$0xf]
  %v1178 = vld [vmem:[%s1 + $0x8cc] sm:$0xf]
  %v1179 = vld [vmem:[%s1 + $0x8d0] sm:$0xf]
  %v1180 = vld [vmem:[%s1 + $0x8d4] sm:$0xf]
  %v1181 = vld [vmem:[%s1 + $0x8d8] sm:$0xf]
  %v1182 = vld [vmem:[%s1 + $0x8dc] sm:$0xf]
  %v1183 = vld [vmem:[%s1 + $0x8e0] sm:$0xf]
  %v1184 = vld [vmem:[%s1 + $0x8e4] sm:$0xf]
  %v1185 = vld [vmem:[%s1 + $0x8e8] sm:$0xf]
  %v1186 = vld [vmem:[%s1 + $0x8ec] sm:$0xf]
  %v1187 = vld [vmem:[%s1 + $0x8f0] sm:$0xf]
  %v1188 = vld [vmem:[%s1 + $0x8f4] sm:$0xf]
  %v1189 = vld [vmem:[%s1 + $0x8f8] sm:$0xf]
  %v1190 = vld [vmem:[%s1 + $0x8fc] sm:$0xf]
  %v1191 = vld [vmem:[%s1 + $0x900] sm:$0xf]
  %v1192 = vld [vmem:[%s1 + $0x904] sm:$0xf]
  %v1193 = vld [vmem:[%s1 + $0x908] sm:$0xf]
  %v1194 = vld [vmem:[%s1 + $0x90c] sm:$0xf]
  %v1195 = vld [vmem:[%s1 + $0x910] sm:$0xf]
  %v1196 = vld [vmem:[%s1 + $0x914] sm:$0xf]
  %v1197 = vld [vmem:[%s1 + $0x918] sm:$0xf]
  %v1198 = vld [vmem:[%s1 + $0x91c] sm:$0xf]
  %v1199 = vld [vmem:[%s1 + $0x920] sm:$0xf]
  %v1200 = vld [vmem:[%s1 + $0x924] sm:$0xf]
  %v1201 = vld [vmem:[%s1 + $0x928] sm:$0xf]
  %v1202 = vld [vmem:[%s1 + $0x92c] sm:$0xf]
  %v1203 = vld [vmem:[%s1 + $0x930] sm:$0xf]
  %v1204 = vld [vmem:[%s1 + $0x934] sm:$0xf]
  %v1205 = vld [vmem:[%s1 + $0x938] sm:$0xf]
  %v1206 = vld [vmem:[%s1 + $0x93c] sm:$0xf]
  %v1207 = vld [vmem:[%s1 + $0x940] sm:$0xf]
  %v1208 = vld [vmem:[%s1 + $0x944] sm:$0xf]
  %v1209 = vld [vmem:[%s1 + $0x948] sm:$0xf]
  %v1210 = vld [vmem:[%s1 + $0x94c] sm:$0xf]
  %v1211 = vld [vmem:[%s1 + $0x950] sm:$0xf]
  %v1212 = vld [vmem:[%s1 + $0x954] sm:$0xf]
  %v1213 = vld [vmem:[%s1 + $0x958] sm:$0xf]
  %v1214 = vld [vmem:[%s1 + $0x95c] sm:$0xf]
  %v1215 = vld [vmem:[%s1 + $0x960] sm:$0xf]
  %v1216 = vld [vmem:[%s1 + $0x964] sm:$0xf]
  %v1217 = vld [vmem:[%s1 + $0x968] sm:$0xf]
  %v1218 = vld [vmem:[%s1 + $0x96c] sm:$0xf]
  %v1219 = vld [vmem:[%s1 + $0x970] sm:$0xf]
  %v1220 = vld [vmem:[%s1 + $0x974] sm:$0xf]
  %v1221 = vld [vmem:[%s1 + $0x978] sm:$0xf]
  %v1222 = vld [vmem:[%s1 + $0x97c] sm:$0xf]
  %v1223 = vld [vmem:[%s1 + $0x980] sm:$0xf]
  %v1224 = vld [vmem:[%s1 + $0x984] sm:$0xf]
  %v1225 = vld [vmem:[%s1 + $0x988] sm:$0xf]
  %v1226 = vld [vmem:[%s1 + $0x98c] sm:$0xf]
  %v1227 = vld [vmem:[%s1 + $0x990] sm:$0xf]
  %v1228 = vld [vmem:[%s1 + $0x994] sm:$0xf]
  %v1229 = vld [vmem:[%s1 + $0x998] sm:$0xf]
  %v1230 = vld [vmem:[%s1 + $0x99c] sm:$0xf]
  %v1231 = vld [vmem:[%s1 + $0x9a0] sm:$0xf]
  %v1232 = vld [vmem:[%s1 + $0x9a4] sm:$0xf]
  %v1233 = vld [vmem:[%s1 + $0x9a8] sm:$0xf]
  %v1234 = vld [vmem:[%s1 + $0x9ac] sm:$0xf]
  %v1235 = vld [vmem:[%s1 + $0x9b0] sm:$0xf]
  %v1236 = vld [vmem:[%s1 + $0x9b4] sm:$0xf]
  %v1237 = vld [vmem:[%s1 + $0x9b8] sm:$0xf]
  %v1238 = vld [vmem:[%s1 + $0x9bc] sm:$0xf]
  %v1239 = vld [vmem:[%s1 + $0x9c0] sm:$0xf]
  %v1240 = vld [vmem:[%s1 + $0x9c4] sm:$0xf]
  %v1241 = vld [vmem:[%s1 + $0x9c8] sm:$0xf]
  %v1242 = vld [vmem:[%s1 + $0x9cc] sm:$0xf]
  %v1243 = vld [vmem:[%s1 + $0x9d0] sm:$0xf]
  %v1244 = vld [vmem:[%s1 + $0x9d4] sm:$0xf]
  %v1245 = vld [vmem:[%s1 + $0x9d8] sm:$0xf]
  %v1246 = vld [vmem:[%s1 + $0x9dc] sm:$0xf]
  %v1247 = vld [vmem:[%s1 + $0x9e0] sm:$0xf]
  %v1248 = vld [vmem:[%s1 + $0x9e4] sm:$0xf]
  %v1249 = vld [vmem:[%s1 + $0x9e8] sm:$0xf]
  %v1250 = vld [vmem:[%s1 + $0x9ec] sm:$0xf]
  %v1251 = vld [vmem:[%s1 + $0x9f0] sm:$0xf]
  %v1252 = vld [vmem:[%s1 + $0x9f4] sm:$0xf]
  %v1253 = vld [vmem:[%s1 + $0x9f8] sm:$0xf]
  %v1254 = vld [vmem:[%s1 + $0x9fc] sm:$0xf]
  %v1255 = vld [vmem:[%s1 + $0xa00] sm:$0xf]
  %v1256 = vld [vmem:[%s1 + $0xa04] sm:$0xf]
  %v1257 = vld [vmem:[%s1 + $0xa08] sm:$0xf]
  %v1258 = vld [vmem:[%s1 + $0xa0c] sm:$0xf]
  %v1259 = vld [vmem:[%s1 + $0xa10] sm:$0xf]
  %v1260 = vld [vmem:[%s1 + $0xa14] sm:$0xf]
  %v1261 = vld [vmem:[%s1 + $0xa18] sm:$0xf]
  %v1262 = vld [vmem:[%s1 + $0xa1c] sm:$0xf]
  %v1263 = vld [vmem:[%s1 + $0xa20] sm:$0xf]
  %v1264 = vld [vmem:[%s1 + $0xa24] sm:$0xf]
  %v1265 = vld [vmem:[%s1 + $0xa28] sm:$0xf]
  %v1266 = vld [vmem:[%s1 + $0xa2c] sm:$0xf]
  %v1267 = vld [vmem:[%s1 + $0xa30] sm:$0xf]
  %v1268 = vld [vmem:[%s1 + $0xa34] sm:$0xf]
  %v1269 = vld [vmem:[%s1 + $0xa38] sm:$0xf]
  %v1270 = vld [vmem:[%s1 + $0xa3c] sm:$0xf]
  %v1271 = vld [vmem:[%s1 + $0xa40] sm:$0xf]
  %v1272 = vld [vmem:[%s1 + $0xa44] sm:$0xf]
  %v1273 = vld [vmem:[%s1 + $0xa48] sm:$0xf]
  %v1274 = vld [vmem:[%s1 + $0xa4c] sm:$0xf]
  %v1275 = vld [vmem:[%s1 + $0xa50] sm:$0xf]
  %v1276 = vld [vmem:[%s1 + $0xa54] sm:$0xf]
  %v1277 = vld [vmem:[%s1 + $0xa58] sm:$0xf]
  %v1278 = vld [vmem:[%s1 + $0xa5c] sm:$0xf]
  %v1279 = vld [vmem:[%s1 + $0xa60] sm:$0xf]
  %v1280 = vld [vmem:[%s1 + $0xa64] sm:$0xf]
  %v1281 = vld [vmem:[%s1 + $0xa68] sm:$0xf]
  %v1282 = vld [vmem:[%s1 + $0xa6c] sm:$0xf]
  %v1283 = vld [vmem:[%s1 + $0xa70] sm:$0xf]
  %v1284 = vld [vmem:[%s1 + $0xa74] sm:$0xf]
  %v1285 = vld [vmem:[%s1 + $0xa78] sm:$0xf]
  %v1286 = vld [vmem:[%s1 + $0xa7c] sm:$0xf]
  %v1287 = vld [vmem:[%s1 + $0xa80] sm:$0xf]
  %v1288 = vld [vmem:[%s1 + $0xa84] sm:$0xf]
  %v1289 = vld [vmem:[%s1 + $0xa88] sm:$0xf]
  %v1290 = vld [vmem:[%s1 + $0xa8c] sm:$0xf]
  %v1291 = vld [vmem:[%s1 + $0xa90] sm:$0xf]
  %v1292 = vld [vmem:[%s1 + $0xa94] sm:$0xf]
  %v1293 = vld [vmem:[%s1 + $0xa98] sm:$0xf]
  %v1294 = vld [vmem:[%s1 + $0xa9c] sm:$0xf]
  %v1295 = vld [vmem:[%s1 + $0xaa0] sm:$0xf]
  %v1296 = vld [vmem:[%s1 + $0xaa4] sm:$0xf]
  %v1297 = vld [vmem:[%s1 + $0xaa8] sm:$0xf]
  %v1298 = vld [vmem:[%s1 + $0xaac] sm:$0xf]
  %v1299 = vld [vmem:[%s1 + $0xab0] sm:$0xf]
  %v1300 = vld [vmem:[%s1 + $0xab4] sm:$0xf]
  %v1301 = vld [vmem:[%s1 + $0xab8] sm:$0xf]
  %v1302 = vld [vmem:[%s1 + $0xabc] sm:$0xf]
  %v1303 = vld [vmem:[%s1 + $0xac0] sm:$0xf]
  %v1304 = vld [vmem:[%s1 + $0xac4] sm:$0xf]
  %v1305 = vld [vmem:[%s1 + $0xac8] sm:$0xf]
  %v1306 = vld [vmem:[%s1 + $0xacc] sm:$0xf]
  %v1307 = vld [vmem:[%s1 + $0xad0] sm:$0xf]
  %v1308 = vld [vmem:[%s1 + $0xad4] sm:$0xf]
  %v1309 = vld [vmem:[%s1 + $0xad8] sm:$0xf]
  %v1310 = vld [vmem:[%s1 + $0xadc] sm:$0xf]
  %v1311 = vld [vmem:[%s1 + $0xae0] sm:$0xf]
  %v1312 = vld [vmem:[%s1 + $0xae4] sm:$0xf]
  %v1313 = vld [vmem:[%s1 + $0xae8] sm:$0xf]
  %v1314 = vld [vmem:[%s1 + $0xaec] sm:$0xf]
  %v1315 = vld [vmem:[%s1 + $0xaf0] sm:$0xf]
  %v1316 = vld [vmem:[%s1 + $0xaf4] sm:$0xf]
  %v1317 = vld [vmem:[%s1 + $0xaf8] sm:$0xf]
  %v1318 = vld [vmem:[%s1 + $0xafc] sm:$0xf]
  %v1319 = vld [vmem:[%s1 + $0xb00] sm:$0xf]
  %v1320 = vld [vmem:[%s1 + $0xb04] sm:$0xf]
  %v1321 = vld [vmem:[%s1 + $0xb08] sm:$0xf]
  %v1322 = vld [vmem:[%s1 + $0xb0c] sm:$0xf]
  %v1323 = vld [vmem:[%s1 + $0xb10] sm:$0xf]
  %v1324 = vld [vmem:[%s1 + $0xb14] sm:$0xf]
  %v1325 = vld [vmem:[%s1 + $0xb18] sm:$0xf]
  %v1326 = vld [vmem:[%s1 + $0xb1c] sm:$0xf]
  %v1327 = vld [vmem:[%s1 + $0xb20] sm:$0xf]
  %v1328 = vld [vmem:[%s1 + $0xb24] sm:$0xf]
  %v1329 = vld [vmem:[%s1 + $0xb28] sm:$0xf]
  %v1330 = vld [vmem:[%s1 + $0xb2c] sm:$0xf]
  %v1331 = vld [vmem:[%s1 + $0xb30] sm:$0xf]
  %v1332 = vld [vmem:[%s1 + $0xb34] sm:$0xf]
  %v1333 = vld [vmem:[%s1 + $0xb38] sm:$0xf]
  %v1334 = vld [vmem:[%s1 + $0xb3c] sm:$0xf]
  %v1335 = vld [vmem:[%s1 + $0xb40] sm:$0xf]
  %v1336 = vld [vmem:[%s1 + $0xb44] sm:$0xf]
  %v1337 = vld [vmem:[%s1 + $0xb48] sm:$0xf]
  %v1338 = vld [vmem:[%s1 + $0xb4c] sm:$0xf]
  %v1339 = vld [vmem:[%s1 + $0xb50] sm:$0xf]
  %v1340 = vld [vmem:[%s1 + $0xb54] sm:$0xf]
  %v1341 = vld [vmem:[%s1 + $0xb58] sm:$0xf]
  %v1342 = vld [vmem:[%s1 + $0xb5c] sm:$0xf]
  %v1343 = vld [vmem:[%s1 + $0xb60] sm:$0xf]
  %v1344 = vld [vmem:[%s1 + $0xb64] sm:$0xf]
  %v1345 = vld [vmem:[%s1 + $0xb68] sm:$0xf]
  %v1346 = vld [vmem:[%s1 + $0xb6c] sm:$0xf]
  %v1347 = vld [vmem:[%s1 + $0xb70] sm:$0xf]
  %v1348 = vld [vmem:[%s1 + $0xb74] sm:$0xf]
  %v1349 = vld [vmem:[%s1 + $0xb78] sm:$0xf]
  %v1350 = vld [vmem:[%s1 + $0xb7c] sm:$0xf]
  %v1351 = vld [vmem:[%s1 + $0xb80] sm:$0xf]
  %v1352 = vld [vmem:[%s1 + $0xb84] sm:$0xf]
  %v1353 = vld [vmem:[%s1 + $0xb88] sm:$0xf]
  %v1354 = vld [vmem:[%s1 + $0xb8c] sm:$0xf]
  %v1355 = vld [vmem:[%s1 + $0xb90] sm:$0xf]
  %v1356 = vld [vmem:[%s1 + $0xb94] sm:$0xf]
  %v1357 = vld [vmem:[%s1 + $0xb98] sm:$0xf]
  %v1358 = vld [vmem:[%s1 + $0xb9c] sm:$0xf]
  %v1359 = vld [vmem:[%s1 + $0xba0] sm:$0xf]
  %v1360 = vld [vmem:[%s1 + $0xba4] sm:$0xf]
  %v1361 = vld [vmem:[%s1 + $0xba8] sm:$0xf]
  %v1362 = vld [vmem:[%s1 + $0xbac] sm:$0xf]
  %v1363 = vld [vmem:[%s1 + $0xbb0] sm:$0xf]
  %v1364 = vld [vmem:[%s1 + $0xbb4] sm:$0xf]
  %v1365 = vld [vmem:[%s1 + $0xbb8] sm:$0xf]
  %v1366 = vld [vmem:[%s1 + $0xbbc] sm:$0xf]
  %v1367 = vld [vmem:[%s1 + $0xbc0] sm:$0xf]
  %v1368 = vld [vmem:[%s1 + $0xbc4] sm:$0xf]
  %v1369 = vld [vmem:[%s1 + $0xbc8] sm:$0xf]
  %v1370 = vld [vmem:[%s1 + $0xbcc] sm:$0xf]
  %v1371 = vld [vmem:[%s1 + $0xbd0] sm:$0xf]
  %v1372 = vld [vmem:[%s1 + $0xbd4] sm:$0xf]
  %v1373 = vld [vmem:[%s1 + $0xbd8] sm:$0xf]
  %v1374 = vld [vmem:[%s1 + $0xbdc] sm:$0xf]
  %v1375 = vld [vmem:[%s1 + $0xbe0] sm:$0xf]
  %v1376 = vld [vmem:[%s1 + $0xbe4] sm:$0xf]
  %v1377 = vld [vmem:[%s1 + $0xbe8] sm:$0xf]
  %v1378 = vld [vmem:[%s1 + $0xbec] sm:$0xf]
  %v1379 = vld [vmem:[%s1 + $0xbf0] sm:$0xf]
  %v1380 = vld [vmem:[%s1 + $0xbf4] sm:$0xf]
  %v1381 = vld [vmem:[%s1 + $0xbf8] sm:$0xf]
  %v1382 = vld [vmem:[%s1 + $0xbfc] sm:$0xf]
  %v1383 = vld [vmem:[%s1 + $0xc00] sm:$0xf]
  %v1384 = vld [vmem:[%s1 + $0xc04] sm:$0xf]
  %v1385 = vld [vmem:[%s1 + $0xc08] sm:$0xf]
  %v1386 = vld [vmem:[%s1 + $0xc0c] sm:$0xf]
  %v1387 = vld [vmem:[%s1 + $0xc10] sm:$0xf]
  %v1388 = vld [vmem:[%s1 + $0xc14] sm:$0xf]
  %v1389 = vld [vmem:[%s1 + $0xc18] sm:$0xf]
  %v1390 = vld [vmem:[%s1 + $0xc1c] sm:$0xf]
  %v1391 = vld [vmem:[%s1 + $0xc20] sm:$0xf]
  %v1392 = vld [vmem:[%s1 + $0xc24] sm:$0xf]
  %v1393 = vld [vmem:[%s1 + $0xc28] sm:$0xf]
  %v1394 = vld [vmem:[%s1 + $0xc2c] sm:$0xf]
  %v1395 = vld [vmem:[%s1 + $0xc30] sm:$0xf]
  %v1396 = vld [vmem:[%s1 + $0xc34] sm:$0xf]
  %v1397 = vld [vmem:[%s1 + $0xc38] sm:$0xf]
  %v1398 = vld [vmem:[%s1 + $0xc3c] sm:$0xf]
  %v1399 = vld [vmem:[%s2] sm:$0x1]
  %v1401 = vlaneseq
  %v1402 = vshrl.u32 %v1401, 7
  %v1403 = vsub.s32 0, %v1402
  %v1404 = vrot.slane %v1399, %v1403
  %v2190 = vunpack.c.l.b16 %v615
  %v2191 = vunpack.c.l.b16 %v616
  %v2192 = vunpack.c.l.b16 %v617
  %v2193 = vunpack.c.l.b16 %v618
  %v2194 = vunpack.c.l.b16 %v619
  %v2195 = vunpack.c.l.b16 %v620
  %v2196 = vunpack.c.l.b16 %v621
  %v2197 = vunpack.c.l.b16 %v622
  %v2198 = vunpack.c.l.b16 %v623
  %v2199 = vunpack.c.l.b16 %v624
  %v2200 = vunpack.c.l.b16 %v625
  %v2201 = vunpack.c.l.b16 %v626
  %v2202 = vunpack.c.l.b16 %v627
  %v2203 = vunpack.c.l.b16 %v628
  %v2204 = vunpack.c.l.b16 %v629
  %v2205 = vunpack.c.l.b16 %v630
  %v2206 = vunpack.c.l.b16 %v631
  %v2207 = vunpack.c.l.b16 %v632
  %v2208 = vunpack.c.l.b16 %v633
  %v2209 = vunpack.c.l.b16 %v634
  %v2210 = vunpack.c.l.b16 %v635
  %v2211 = vunpack.c.l.b16 %v636
  %v2212 = vunpack.c.l.b16 %v637
  %v2213 = vunpack.c.l.b16 %v638
  %v2214 = vunpack.c.l.b16 %v639
  %v2215 = vunpack.c.l.b16 %v640
  %v2216 = vunpack.c.l.b16 %v641
  %v2217 = vunpack.c.l.b16 %v642
  %v2218 = vunpack.c.l.b16 %v643
  %v2219 = vunpack.c.l.b16 %v644
  %v2220 = vunpack.c.l.b16 %v645
  %v2221 = vunpack.c.l.b16 %v646
  %v2222 = vunpack.c.l.b16 %v647
  %v2223 = vunpack.c.l.b16 %v648
  %v2224 = vunpack.c.l.b16 %v649
  %v2225 = vunpack.c.l.b16 %v650
  %v2226 = vunpack.c.l.b16 %v651
  %v2227 = vunpack.c.l.b16 %v652
  %v2228 = vunpack.c.l.b16 %v653
  %v2229 = vunpack.c.l.b16 %v654
  %v2230 = vunpack.c.l.b16 %v655
  %v2231 = vunpack.c.l.b16 %v656
  %v2232 = vunpack.c.l.b16 %v657
  %v2233 = vunpack.c.l.b16 %v658
  %v2234 = vunpack.c.l.b16 %v659
  %v2235 = vunpack.c.l.b16 %v660
  %v2236 = vunpack.c.l.b16 %v661
  %v2237 = vunpack.c.l.b16 %v662
  %v2238 = vunpack.c.l.b16 %v663
  %v2239 = vunpack.c.l.b16 %v664
  %v2240 = vunpack.c.l.b16 %v665
  %v2241 = vunpack.c.l.b16 %v666
  %v2242 = vunpack.c.l.b16 %v667
  %v2243 = vunpack.c.l.b16 %v668
  %v2244 = vunpack.c.l.b16 %v669
  %v2245 = vunpack.c.l.b16 %v670
  %v2246 = vunpack.c.l.b16 %v671
  %v2247 = vunpack.c.l.b16 %v672
  %v2248 = vunpack.c.l.b16 %v673
  %v2249 = vunpack.c.l.b16 %v674
  %v2250 = vunpack.c.l.b16 %v675
  %v2251 = vunpack.c.l.b16 %v676
  %v2252 = vunpack.c.l.b16 %v677
  %v2253 = vunpack.c.l.b16 %v678
  %v2254 = vunpack.c.l.b16 %v679
  %v2255 = vunpack.c.l.b16 %v680
  %v2256 = vunpack.c.l.b16 %v681
  %v2257 = vunpack.c.l.b16 %v682
  %v2258 = vunpack.c.l.b16 %v683
  %v2259 = vunpack.c.l.b16 %v684
  %v2260 = vunpack.c.l.b16 %v685
  %v2261 = vunpack.c.l.b16 %v686
  %v2262 = vunpack.c.l.b16 %v687
  %v2263 = vunpack.c.l.b16 %v688
  %v2264 = vunpack.c.l.b16 %v689
  %v2265 = vunpack.c.l.b16 %v690
  %v2266 = vunpack.c.l.b16 %v691
  %v2267 = vunpack.c.l.b16 %v692
  %v2268 = vunpack.c.l.b16 %v693
  %v2269 = vunpack.c.l.b16 %v694
  %v2270 = vunpack.c.l.b16 %v695
  %v2271 = vunpack.c.l.b16 %v696
  %v2272 = vunpack.c.l.b16 %v697
  %v2273 = vunpack.c.l.b16 %v698
  %v2274 = vunpack.c.l.b16 %v699
  %v2275 = vunpack.c.l.b16 %v700
  %v2276 = vunpack.c.l.b16 %v701
  %v2277 = vunpack.c.l.b16 %v702
  %v2278 = vunpack.c.l.b16 %v703
  %v2279 = vunpack.c.l.b16 %v704
  %v2280 = vunpack.c.l.b16 %v705
  %v2281 = vunpack.c.l.b16 %v706
  %v2282 = vunpack.c.l.b16 %v707
  %v2283 = vunpack.c.l.b16 %v708
  %v2284 = vunpack.c.l.b16 %v709
  %v2285 = vunpack.c.l.b16 %v710
  %v2286 = vunpack.c.l.b16 %v711
  %v2287 = vunpack.c.l.b16 %v712
  %v2288 = vunpack.c.l.b16 %v713
  %v2289 = vunpack.c.l.b16 %v714
  %v2290 = vunpack.c.l.b16 %v715
  %v2291 = vunpack.c.l.b16 %v716
  %v2292 = vunpack.c.l.b16 %v717
  %v2293 = vunpack.c.l.b16 %v718
  %v2294 = vunpack.c.l.b16 %v719
  %v2295 = vunpack.c.l.b16 %v720
  %v2296 = vunpack.c.l.b16 %v721
  %v2297 = vunpack.c.l.b16 %v722
  %v2298 = vunpack.c.l.b16 %v723
  %v2299 = vunpack.c.l.b16 %v724
  %v2300 = vunpack.c.l.b16 %v725
  %v2301 = vunpack.c.l.b16 %v726
  %v2302 = vunpack.c.l.b16 %v727
  %v2303 = vunpack.c.l.b16 %v728
  %v2304 = vunpack.c.l.b16 %v729
  %v2305 = vunpack.c.l.b16 %v730
  %v2306 = vunpack.c.l.b16 %v731
  %v2307 = vunpack.c.l.b16 %v732
  %v2308 = vunpack.c.l.b16 %v733
  %v2309 = vunpack.c.l.b16 %v734
  %v2310 = vunpack.c.l.b16 %v735
  %v2311 = vunpack.c.l.b16 %v736
  %v2312 = vunpack.c.l.b16 %v737
  %v2313 = vunpack.c.l.b16 %v738
  %v2314 = vunpack.c.l.b16 %v739
  %v2315 = vunpack.c.l.b16 %v740
  %v2316 = vunpack.c.l.b16 %v741
  %v2317 = vunpack.c.l.b16 %v742
  %v2318 = vunpack.c.l.b16 %v743
  %v2319 = vunpack.c.l.b16 %v744
  %v2320 = vunpack.c.l.b16 %v745
  %v2321 = vunpack.c.l.b16 %v746
  %v2322 = vunpack.c.l.b16 %v747
  %v2323 = vunpack.c.l.b16 %v748
  %v2324 = vunpack.c.l.b16 %v749
  %v2325 = vunpack.c.l.b16 %v750
  %v2326 = vunpack.c.l.b16 %v751
  %v2327 = vunpack.c.l.b16 %v752
  %v2328 = vunpack.c.l.b16 %v753
  %v2329 = vunpack.c.l.b16 %v754
  %v2330 = vunpack.c.l.b16 %v755
  %v2331 = vunpack.c.l.b16 %v756
  %v2332 = vunpack.c.l.b16 %v757
  %v2333 = vunpack.c.l.b16 %v758
  %v2334 = vunpack.c.l.b16 %v759
  %v2335 = vunpack.c.l.b16 %v760
  %v2336 = vunpack.c.l.b16 %v761
  %v2337 = vunpack.c.l.b16 %v762
  %v2338 = vunpack.c.l.b16 %v763
  %v2339 = vunpack.c.l.b16 %v764
  %v2340 = vunpack.c.l.b16 %v765
  %v2341 = vunpack.c.l.b16 %v766
  %v2342 = vunpack.c.l.b16 %v767
  %v2343 = vunpack.c.l.b16 %v768
  %v2344 = vunpack.c.l.b16 %v769
  %v2345 = vunpack.c.l.b16 %v770
  %v2346 = vunpack.c.l.b16 %v771
  %v2347 = vunpack.c.l.b16 %v772
  %v2348 = vunpack.c.l.b16 %v773
  %v2349 = vunpack.c.l.b16 %v774
  %v2350 = vunpack.c.l.b16 %v775
  %v2351 = vunpack.c.l.b16 %v776
  %v2352 = vunpack.c.l.b16 %v777
  %v2353 = vunpack.c.l.b16 %v778
  %v2354 = vunpack.c.l.b16 %v779
  %v2355 = vunpack.c.l.b16 %v780
  %v2356 = vunpack.c.l.b16 %v781
  %v2357 = vunpack.c.l.b16 %v782
  %v2358 = vunpack.c.l.b16 %v783
  %v2359 = vunpack.c.l.b16 %v784
  %v2360 = vunpack.c.l.b16 %v785
  %v2361 = vunpack.c.l.b16 %v786
  %v2362 = vunpack.c.l.b16 %v787
  %v2363 = vunpack.c.l.b16 %v788
  %v2364 = vunpack.c.l.b16 %v789
  %v2365 = vunpack.c.l.b16 %v790
  %v2366 = vunpack.c.l.b16 %v791
  %v2367 = vunpack.c.l.b16 %v792
  %v2368 = vunpack.c.l.b16 %v793
  %v2369 = vunpack.c.l.b16 %v794
  %v2370 = vunpack.c.l.b16 %v795
  %v2371 = vunpack.c.l.b16 %v796
  %v2372 = vunpack.c.l.b16 %v797
  %v2373 = vunpack.c.l.b16 %v798
  %v2374 = vunpack.c.l.b16 %v799
  %v2375 = vunpack.c.l.b16 %v800
  %v2376 = vunpack.c.l.b16 %v801
  %v2377 = vunpack.c.l.b16 %v802
  %v2378 = vunpack.c.l.b16 %v803
  %v2379 = vunpack.c.l.b16 %v804
  %v2380 = vunpack.c.l.b16 %v805
  %v2381 = vunpack.c.l.b16 %v806
  %v2382 = vunpack.c.l.b16 %v807
  %v2383 = vunpack.c.l.b16 %v808
  %v2384 = vunpack.c.l.b16 %v809
  %v2385 = vunpack.c.l.b16 %v810
  %v2386 = vunpack.c.l.b16 %v811
  %v2387 = vunpack.c.l.b16 %v812
  %v2388 = vunpack.c.l.b16 %v813
  %v2389 = vunpack.c.l.b16 %v814
  %v2390 = vunpack.c.l.b16 %v815
  %v2391 = vunpack.c.l.b16 %v816
  %v2392 = vunpack.c.l.b16 %v817
  %v2393 = vunpack.c.l.b16 %v818
  %v2394 = vunpack.c.l.b16 %v819
  %v2395 = vunpack.c.l.b16 %v820
  %v2396 = vunpack.c.l.b16 %v821
  %v2397 = vunpack.c.l.b16 %v822
  %v2398 = vunpack.c.l.b16 %v823
  %v2399 = vunpack.c.l.b16 %v824
  %v2400 = vunpack.c.l.b16 %v825
  %v2401 = vunpack.c.l.b16 %v826
  %v2402 = vunpack.c.l.b16 %v827
  %v2403 = vunpack.c.l.b16 %v828
  %v2404 = vunpack.c.l.b16 %v829
  %v2405 = vunpack.c.l.b16 %v830
  %v2406 = vunpack.c.l.b16 %v831
  %v2407 = vunpack.c.l.b16 %v832
  %v2408 = vunpack.c.l.b16 %v833
  %v2409 = vunpack.c.l.b16 %v834
  %v2410 = vunpack.c.l.b16 %v835
  %v2411 = vunpack.c.l.b16 %v836
  %v2412 = vunpack.c.l.b16 %v837
  %v2413 = vunpack.c.l.b16 %v838
  %v2414 = vunpack.c.l.b16 %v839
  %v2415 = vunpack.c.l.b16 %v840
  %v2416 = vunpack.c.l.b16 %v841
  %v2417 = vunpack.c.l.b16 %v842
  %v2418 = vunpack.c.l.b16 %v843
  %v2419 = vunpack.c.l.b16 %v844
  %v2420 = vunpack.c.l.b16 %v845
  %v2421 = vunpack.c.l.b16 %v846
  %v2422 = vunpack.c.l.b16 %v847
  %v2423 = vunpack.c.l.b16 %v848
  %v2424 = vunpack.c.l.b16 %v849
  %v2425 = vunpack.c.l.b16 %v850
  %v2426 = vunpack.c.l.b16 %v851
  %v2427 = vunpack.c.l.b16 %v852
  %v2428 = vunpack.c.l.b16 %v853
  %v2429 = vunpack.c.l.b16 %v854
  %v2430 = vunpack.c.l.b16 %v855
  %v2431 = vunpack.c.l.b16 %v856
  %v2432 = vunpack.c.l.b16 %v857
  %v2433 = vunpack.c.l.b16 %v858
  %v2434 = vunpack.c.l.b16 %v859
  %v2435 = vunpack.c.l.b16 %v860
  %v2436 = vunpack.c.l.b16 %v861
  %v2437 = vunpack.c.l.b16 %v862
  %v2438 = vunpack.c.l.b16 %v863
  %v2439 = vunpack.c.l.b16 %v864
  %v2440 = vunpack.c.l.b16 %v865
  %v2441 = vunpack.c.l.b16 %v866
  %v2442 = vunpack.c.l.b16 %v867
  %v2443 = vunpack.c.l.b16 %v868
  %v2444 = vunpack.c.l.b16 %v869
  %v2445 = vunpack.c.l.b16 %v870
  %v2446 = vunpack.c.l.b16 %v871
  %v2447 = vunpack.c.l.b16 %v872
  %v2448 = vunpack.c.l.b16 %v873
  %v2449 = vunpack.c.l.b16 %v874
  %v2450 = vunpack.c.l.b16 %v875
  %v2451 = vunpack.c.l.b16 %v876
  %v2452 = vunpack.c.l.b16 %v877
  %v2453 = vunpack.c.l.b16 %v878
  %v2454 = vunpack.c.l.b16 %v879
  %v2455 = vunpack.c.l.b16 %v880
  %v2456 = vunpack.c.l.b16 %v881
  %v2457 = vunpack.c.l.b16 %v882
  %v2458 = vunpack.c.l.b16 %v883
  %v2459 = vunpack.c.l.b16 %v884
  %v2460 = vunpack.c.l.b16 %v885
  %v2461 = vunpack.c.l.b16 %v886
  %v2462 = vunpack.c.l.b16 %v887
  %v2463 = vunpack.c.l.b16 %v888
  %v2464 = vunpack.c.l.b16 %v889
  %v2465 = vunpack.c.l.b16 %v890
  %v2466 = vunpack.c.l.b16 %v891
  %v2467 = vunpack.c.l.b16 %v892
  %v2468 = vunpack.c.l.b16 %v893
  %v2469 = vunpack.c.l.b16 %v894
  %v2470 = vunpack.c.l.b16 %v895
  %v2471 = vunpack.c.l.b16 %v896
  %v2472 = vunpack.c.l.b16 %v897
  %v2473 = vunpack.c.l.b16 %v898
  %v2474 = vunpack.c.l.b16 %v899
  %v2475 = vunpack.c.l.b16 %v900
  %v2476 = vunpack.c.l.b16 %v901
  %v2477 = vunpack.c.l.b16 %v902
  %v2478 = vunpack.c.l.b16 %v903
  %v2479 = vunpack.c.l.b16 %v904
  %v2480 = vunpack.c.l.b16 %v905
  %v2481 = vunpack.c.l.b16 %v906
  %v2482 = vunpack.c.l.b16 %v907
  %v2483 = vunpack.c.l.b16 %v908
  %v2484 = vunpack.c.l.b16 %v909
  %v2485 = vunpack.c.l.b16 %v910
  %v2486 = vunpack.c.l.b16 %v911
  %v2487 = vunpack.c.l.b16 %v912
  %v2488 = vunpack.c.l.b16 %v913
  %v2489 = vunpack.c.l.b16 %v914
  %v2490 = vunpack.c.l.b16 %v915
  %v2491 = vunpack.c.l.b16 %v916
  %v2492 = vunpack.c.l.b16 %v917
  %v2493 = vunpack.c.l.b16 %v918
  %v2494 = vunpack.c.l.b16 %v919
  %v2495 = vunpack.c.l.b16 %v920
  %v2496 = vunpack.c.l.b16 %v921
  %v2497 = vunpack.c.l.b16 %v922
  %v2498 = vunpack.c.l.b16 %v923
  %v2499 = vunpack.c.l.b16 %v924
  %v2500 = vunpack.c.l.b16 %v925
  %v2501 = vunpack.c.l.b16 %v926
  %v2502 = vunpack.c.l.b16 %v927
  %v2503 = vunpack.c.l.b16 %v928
  %v2504 = vunpack.c.l.b16 %v929
  %v2505 = vunpack.c.l.b16 %v930
  %v2506 = vunpack.c.l.b16 %v931
  %v2507 = vunpack.c.l.b16 %v932
  %v2508 = vunpack.c.l.b16 %v933
  %v2509 = vunpack.c.l.b16 %v934
  %v2510 = vunpack.c.l.b16 %v935
  %v2511 = vunpack.c.l.b16 %v936
  %v2512 = vunpack.c.l.b16 %v937
  %v2513 = vunpack.c.l.b16 %v938
  %v2514 = vunpack.c.l.b16 %v939
  %v2515 = vunpack.c.l.b16 %v940
  %v2516 = vunpack.c.l.b16 %v941
  %v2517 = vunpack.c.l.b16 %v942
  %v2518 = vunpack.c.l.b16 %v943
  %v2519 = vunpack.c.l.b16 %v944
  %v2520 = vunpack.c.l.b16 %v945
  %v2521 = vunpack.c.l.b16 %v946
  %v2522 = vunpack.c.l.b16 %v947
  %v2523 = vunpack.c.l.b16 %v948
  %v2524 = vunpack.c.l.b16 %v949
  %v2525 = vunpack.c.l.b16 %v950
  %v2526 = vunpack.c.l.b16 %v951
  %v2527 = vunpack.c.l.b16 %v952
  %v2528 = vunpack.c.l.b16 %v953
  %v2529 = vunpack.c.l.b16 %v954
  %v2530 = vunpack.c.l.b16 %v955
  %v2531 = vunpack.c.l.b16 %v956
  %v2532 = vunpack.c.l.b16 %v957
  %v2533 = vunpack.c.l.b16 %v958
  %v2534 = vunpack.c.l.b16 %v959
  %v2535 = vunpack.c.l.b16 %v960
  %v2536 = vunpack.c.l.b16 %v961
  %v2537 = vunpack.c.l.b16 %v962
  %v2538 = vunpack.c.l.b16 %v963
  %v2539 = vunpack.c.l.b16 %v964
  %v2540 = vunpack.c.l.b16 %v965
  %v2541 = vunpack.c.l.b16 %v966
  %v2542 = vunpack.c.l.b16 %v967
  %v2543 = vunpack.c.l.b16 %v968
  %v2544 = vunpack.c.l.b16 %v969
  %v2545 = vunpack.c.l.b16 %v970
  %v2546 = vunpack.c.l.b16 %v971
  %v2547 = vunpack.c.l.b16 %v972
  %v2548 = vunpack.c.l.b16 %v973
  %v2549 = vunpack.c.l.b16 %v974
  %v2550 = vunpack.c.l.b16 %v975
  %v2551 = vunpack.c.l.b16 %v976
  %v2552 = vunpack.c.l.b16 %v977
  %v2553 = vunpack.c.l.b16 %v978
  %v2554 = vunpack.c.l.b16 %v979
  %v2555 = vunpack.c.l.b16 %v980
  %v2556 = vunpack.c.l.b16 %v981
  %v2557 = vunpack.c.l.b16 %v982
  %v2558 = vunpack.c.l.b16 %v983
  %v2559 = vunpack.c.l.b16 %v984
  %v2560 = vunpack.c.l.b16 %v985
  %v2561 = vunpack.c.l.b16 %v986
  %v2562 = vunpack.c.l.b16 %v987
  %v2563 = vunpack.c.l.b16 %v988
  %v2564 = vunpack.c.l.b16 %v989
  %v2565 = vunpack.c.l.b16 %v990
  %v2566 = vunpack.c.l.b16 %v991
  %v2567 = vunpack.c.l.b16 %v992
  %v2568 = vunpack.c.l.b16 %v993
  %v2569 = vunpack.c.l.b16 %v994
  %v2570 = vunpack.c.l.b16 %v995
  %v2571 = vunpack.c.l.b16 %v996
  %v2572 = vunpack.c.l.b16 %v997
  %v2573 = vunpack.c.l.b16 %v998
  %v2574 = vunpack.c.l.b16 %v999
  %v2575 = vunpack.c.l.b16 %v1000
  %v2576 = vunpack.c.l.b16 %v1001
  %v2577 = vunpack.c.l.b16 %v1002
  %v2578 = vunpack.c.l.b16 %v1003
  %v2579 = vunpack.c.l.b16 %v1004
  %v2580 = vunpack.c.l.b16 %v1005
  %v2581 = vunpack.c.l.b16 %v1006
  %v2582 = vunpack.c.l.b16 %v1007
  %v2583 = vunpack.c.l.b16 %v1008
  %v2584 = vunpack.c.l.b16 %v1009
  %v2585 = vunpack.c.l.b16 %v1010
  %v2586 = vunpack.c.l.b16 %v1011
  %v2587 = vunpack.c.l.b16 %v1012
  %v2588 = vunpack.c.l.b16 %v1013
  %v2589 = vunpack.c.l.b16 %v1014
  %v2590 = vunpack.c.l.b16 %v1015
  %v2591 = vunpack.c.l.b16 %v1016
  %v2592 = vunpack.c.l.b16 %v1017
  %v2593 = vunpack.c.l.b16 %v1018
  %v2594 = vunpack.c.l.b16 %v1019
  %v2595 = vunpack.c.l.b16 %v1020
  %v2596 = vunpack.c.l.b16 %v1021
  %v2597 = vunpack.c.l.b16 %v1022
  %v2598 = vunpack.c.l.b16 %v1023
  %v2599 = vunpack.c.l.b16 %v1024
  %v2600 = vunpack.c.l.b16 %v1025
  %v2601 = vunpack.c.l.b16 %v1026
  %v2602 = vunpack.c.l.b16 %v1027
  %v2603 = vunpack.c.l.b16 %v1028
  %v2604 = vunpack.c.l.b16 %v1029
  %v2605 = vunpack.c.l.b16 %v1030
  %v2606 = vunpack.c.l.b16 %v1031
  %v2607 = vunpack.c.l.b16 %v1032
  %v2608 = vunpack.c.l.b16 %v1033
  %v2609 = vunpack.c.l.b16 %v1034
  %v2610 = vunpack.c.l.b16 %v1035
  %v2611 = vunpack.c.l.b16 %v1036
  %v2612 = vunpack.c.l.b16 %v1037
  %v2613 = vunpack.c.l.b16 %v1038
  %v2614 = vunpack.c.l.b16 %v1039
  %v2615 = vunpack.c.l.b16 %v1040
  %v2616 = vunpack.c.l.b16 %v1041
  %v2617 = vunpack.c.l.b16 %v1042
  %v2618 = vunpack.c.l.b16 %v1043
  %v2619 = vunpack.c.l.b16 %v1044
  %v2620 = vunpack.c.l.b16 %v1045
  %v2621 = vunpack.c.l.b16 %v1046
  %v2622 = vunpack.c.l.b16 %v1047
  %v2623 = vunpack.c.l.b16 %v1048
  %v2624 = vunpack.c.l.b16 %v1049
  %v2625 = vunpack.c.l.b16 %v1050
  %v2626 = vunpack.c.l.b16 %v1051
  %v2627 = vunpack.c.l.b16 %v1052
  %v2628 = vunpack.c.l.b16 %v1053
  %v2629 = vunpack.c.l.b16 %v1054
  %v2630 = vunpack.c.l.b16 %v1055
  %v2631 = vunpack.c.l.b16 %v1056
  %v2632 = vunpack.c.l.b16 %v1057
  %v2633 = vunpack.c.l.b16 %v1058
  %v2634 = vunpack.c.l.b16 %v1059
  %v2635 = vunpack.c.l.b16 %v1060
  %v2636 = vunpack.c.l.b16 %v1061
  %v2637 = vunpack.c.l.b16 %v1062
  %v2638 = vunpack.c.l.b16 %v1063
  %v2639 = vunpack.c.l.b16 %v1064
  %v2640 = vunpack.c.l.b16 %v1065
  %v2641 = vunpack.c.l.b16 %v1066
  %v2642 = vunpack.c.l.b16 %v1067
  %v2643 = vunpack.c.l.b16 %v1068
  %v2644 = vunpack.c.l.b16 %v1069
  %v2645 = vunpack.c.l.b16 %v1070
  %v2646 = vunpack.c.l.b16 %v1071
  %v2647 = vunpack.c.l.b16 %v1072
  %v2648 = vunpack.c.l.b16 %v1073
  %v2649 = vunpack.c.l.b16 %v1074
  %v2650 = vunpack.c.l.b16 %v1075
  %v2651 = vunpack.c.l.b16 %v1076
  %v2652 = vunpack.c.l.b16 %v1077
  %v2653 = vunpack.c.l.b16 %v1078
  %v2654 = vunpack.c.l.b16 %v1079
  %v2655 = vunpack.c.l.b16 %v1080
  %v2656 = vunpack.c.l.b16 %v1081
  %v2657 = vunpack.c.l.b16 %v1082
  %v2658 = vunpack.c.l.b16 %v1083
  %v2659 = vunpack.c.l.b16 %v1084
  %v2660 = vunpack.c.l.b16 %v1085
  %v2661 = vunpack.c.l.b16 %v1086
  %v2662 = vunpack.c.l.b16 %v1087
  %v2663 = vunpack.c.l.b16 %v1088
  %v2664 = vunpack.c.l.b16 %v1089
  %v2665 = vunpack.c.l.b16 %v1090
  %v2666 = vunpack.c.l.b16 %v1091
  %v2667 = vunpack.c.l.b16 %v1092
  %v2668 = vunpack.c.l.b16 %v1093
  %v2669 = vunpack.c.l.b16 %v1094
  %v2670 = vunpack.c.l.b16 %v1095
  %v2671 = vunpack.c.l.b16 %v1096
  %v2672 = vunpack.c.l.b16 %v1097
  %v2673 = vunpack.c.l.b16 %v1098
  %v2674 = vunpack.c.l.b16 %v1099
  %v2675 = vunpack.c.l.b16 %v1100
  %v2676 = vunpack.c.l.b16 %v1101
  %v2677 = vunpack.c.l.b16 %v1102
  %v2678 = vunpack.c.l.b16 %v1103
  %v2679 = vunpack.c.l.b16 %v1104
  %v2680 = vunpack.c.l.b16 %v1105
  %v2681 = vunpack.c.l.b16 %v1106
  %v2682 = vunpack.c.l.b16 %v1107
  %v2683 = vunpack.c.l.b16 %v1108
  %v2684 = vunpack.c.l.b16 %v1109
  %v2685 = vunpack.c.l.b16 %v1110
  %v2686 = vunpack.c.l.b16 %v1111
  %v2687 = vunpack.c.l.b16 %v1112
  %v2688 = vunpack.c.l.b16 %v1113
  %v2689 = vunpack.c.l.b16 %v1114
  %v2690 = vunpack.c.l.b16 %v1115
  %v2691 = vunpack.c.l.b16 %v1116
  %v2692 = vunpack.c.l.b16 %v1117
  %v2693 = vunpack.c.l.b16 %v1118
  %v2694 = vunpack.c.l.b16 %v1119
  %v2695 = vunpack.c.l.b16 %v1120
  %v2696 = vunpack.c.l.b16 %v1121
  %v2697 = vunpack.c.l.b16 %v1122
  %v2698 = vunpack.c.l.b16 %v1123
  %v2699 = vunpack.c.l.b16 %v1124
  %v2700 = vunpack.c.l.b16 %v1125
  %v2701 = vunpack.c.l.b16 %v1126
  %v2702 = vunpack.c.l.b16 %v1127
  %v2703 = vunpack.c.l.b16 %v1128
  %v2704 = vunpack.c.l.b16 %v1129
  %v2705 = vunpack.c.l.b16 %v1130
  %v2706 = vunpack.c.l.b16 %v1131
  %v2707 = vunpack.c.l.b16 %v1132
  %v2708 = vunpack.c.l.b16 %v1133
  %v2709 = vunpack.c.l.b16 %v1134
  %v2710 = vunpack.c.l.b16 %v1135
  %v2711 = vunpack.c.l.b16 %v1136
  %v2712 = vunpack.c.l.b16 %v1137
  %v2713 = vunpack.c.l.b16 %v1138
  %v2714 = vunpack.c.l.b16 %v1139
  %v2715 = vunpack.c.l.b16 %v1140
  %v2716 = vunpack.c.l.b16 %v1141
  %v2717 = vunpack.c.l.b16 %v1142
  %v2718 = vunpack.c.l.b16 %v1143
  %v2719 = vunpack.c.l.b16 %v1144
  %v2720 = vunpack.c.l.b16 %v1145
  %v2721 = vunpack.c.l.b16 %v1146
  %v2722 = vunpack.c.l.b16 %v1147
  %v2723 = vunpack.c.l.b16 %v1148
  %v2724 = vunpack.c.l.b16 %v1149
  %v2725 = vunpack.c.l.b16 %v1150
  %v2726 = vunpack.c.l.b16 %v1151
  %v2727 = vunpack.c.l.b16 %v1152
  %v2728 = vunpack.c.l.b16 %v1153
  %v2729 = vunpack.c.l.b16 %v1154
  %v2730 = vunpack.c.l.b16 %v1155
  %v2731 = vunpack.c.l.b16 %v1156
  %v2732 = vunpack.c.l.b16 %v1157
  %v2733 = vunpack.c.l.b16 %v1158
  %v2734 = vunpack.c.l.b16 %v1159
  %v2735 = vunpack.c.l.b16 %v1160
  %v2736 = vunpack.c.l.b16 %v1161
  %v2737 = vunpack.c.l.b16 %v1162
  %v2738 = vunpack.c.l.b16 %v1163
  %v2739 = vunpack.c.l.b16 %v1164
  %v2740 = vunpack.c.l.b16 %v1165
  %v2741 = vunpack.c.l.b16 %v1166
  %v2742 = vunpack.c.l.b16 %v1167
  %v2743 = vunpack.c.l.b16 %v1168
  %v2744 = vunpack.c.l.b16 %v1169
  %v2745 = vunpack.c.l.b16 %v1170
  %v2746 = vunpack.c.l.b16 %v1171
  %v2747 = vunpack.c.l.b16 %v1172
  %v2748 = vunpack.c.l.b16 %v1173
  %v2749 = vunpack.c.l.b16 %v1174
  %v2750 = vunpack.c.l.b16 %v1175
  %v2751 = vunpack.c.l.b16 %v1176
  %v2752 = vunpack.c.l.b16 %v1177
  %v2753 = vunpack.c.l.b16 %v1178
  %v2754 = vunpack.c.l.b16 %v1179
  %v2755 = vunpack.c.l.b16 %v1180
  %v2756 = vunpack.c.l.b16 %v1181
  %v2757 = vunpack.c.l.b16 %v1182
  %v2758 = vunpack.c.l.b16 %v1183
  %v2759 = vunpack.c.l.b16 %v1184
  %v2760 = vunpack.c.l.b16 %v1185
  %v2761 = vunpack.c.l.b16 %v1186
  %v2762 = vunpack.c.l.b16 %v1187
  %v2763 = vunpack.c.l.b16 %v1188
  %v2764 = vunpack.c.l.b16 %v1189
  %v2765 = vunpack.c.l.b16 %v1190
  %v2766 = vunpack.c.l.b16 %v1191
  %v2767 = vunpack.c.l.b16 %v1192
  %v2768 = vunpack.c.l.b16 %v1193
  %v2769 = vunpack.c.l.b16 %v1194
  %v2770 = vunpack.c.l.b16 %v1195
  %v2771 = vunpack.c.l.b16 %v1196
  %v2772 = vunpack.c.l.b16 %v1197
  %v2773 = vunpack.c.l.b16 %v1198
  %v2774 = vunpack.c.l.b16 %v1199
  %v2775 = vunpack.c.l.b16 %v1200
  %v2776 = vunpack.c.l.b16 %v1201
  %v2777 = vunpack.c.l.b16 %v1202
  %v2778 = vunpack.c.l.b16 %v1203
  %v2779 = vunpack.c.l.b16 %v1204
  %v2780 = vunpack.c.l.b16 %v1205
  %v2781 = vunpack.c.l.b16 %v1206
  %v2782 = vunpack.c.l.b16 %v1207
  %v2783 = vunpack.c.l.b16 %v1208
  %v2784 = vunpack.c.l.b16 %v1209
  %v2785 = vunpack.c.l.b16 %v1210
  %v2786 = vunpack.c.l.b16 %v1211
  %v2787 = vunpack.c.l.b16 %v1212
  %v2788 = vunpack.c.l.b16 %v1213
  %v2789 = vunpack.c.l.b16 %v1214
  %v2790 = vunpack.c.l.b16 %v1215
  %v2791 = vunpack.c.l.b16 %v1216
  %v2792 = vunpack.c.l.b16 %v1217
  %v2793 = vunpack.c.l.b16 %v1218
  %v2794 = vunpack.c.l.b16 %v1219
  %v2795 = vunpack.c.l.b16 %v1220
  %v2796 = vunpack.c.l.b16 %v1221
  %v2797 = vunpack.c.l.b16 %v1222
  %v2798 = vunpack.c.l.b16 %v1223
  %v2799 = vunpack.c.l.b16 %v1224
  %v2800 = vunpack.c.l.b16 %v1225
  %v2801 = vunpack.c.l.b16 %v1226
  %v2802 = vunpack.c.l.b16 %v1227
  %v2803 = vunpack.c.l.b16 %v1228
  %v2804 = vunpack.c.l.b16 %v1229
  %v2805 = vunpack.c.l.b16 %v1230
  %v2806 = vunpack.c.l.b16 %v1231
  %v2807 = vunpack.c.l.b16 %v1232
  %v2808 = vunpack.c.l.b16 %v1233
  %v2809 = vunpack.c.l.b16 %v1234
  %v2810 = vunpack.c.l.b16 %v1235
  %v2811 = vunpack.c.l.b16 %v1236
  %v2812 = vunpack.c.l.b16 %v1237
  %v2813 = vunpack.c.l.b16 %v1238
  %v2814 = vunpack.c.l.b16 %v1239
  %v2815 = vunpack.c.l.b16 %v1240
  %v2816 = vunpack.c.l.b16 %v1241
  %v2817 = vunpack.c.l.b16 %v1242
  %v2818 = vunpack.c.l.b16 %v1243
  %v2819 = vunpack.c.l.b16 %v1244
  %v2820 = vunpack.c.l.b16 %v1245
  %v2821 = vunpack.c.l.b16 %v1246
  %v2822 = vunpack.c.l.b16 %v1247
  %v2823 = vunpack.c.l.b16 %v1248
  %v2824 = vunpack.c.l.b16 %v1249
  %v2825 = vunpack.c.l.b16 %v1250
  %v2826 = vunpack.c.l.b16 %v1251
  %v2827 = vunpack.c.l.b16 %v1252
  %v2828 = vunpack.c.l.b16 %v1253
  %v2829 = vunpack.c.l.b16 %v1254
  %v2830 = vunpack.c.l.b16 %v1255
  %v2831 = vunpack.c.l.b16 %v1256
  %v2832 = vunpack.c.l.b16 %v1257
  %v2833 = vunpack.c.l.b16 %v1258
  %v2834 = vunpack.c.l.b16 %v1259
  %v2835 = vunpack.c.l.b16 %v1260
  %v2836 = vunpack.c.l.b16 %v1261
  %v2837 = vunpack.c.l.b16 %v1262
  %v2838 = vunpack.c.l.b16 %v1263
  %v2839 = vunpack.c.l.b16 %v1264
  %v2840 = vunpack.c.l.b16 %v1265
  %v2841 = vunpack.c.l.b16 %v1266
  %v2842 = vunpack.c.l.b16 %v1267
  %v2843 = vunpack.c.l.b16 %v1268
  %v2844 = vunpack.c.l.b16 %v1269
  %v2845 = vunpack.c.l.b16 %v1270
  %v2846 = vunpack.c.l.b16 %v1271
  %v2847 = vunpack.c.l.b16 %v1272
  %v2848 = vunpack.c.l.b16 %v1273
  %v2849 = vunpack.c.l.b16 %v1274
  %v2850 = vunpack.c.l.b16 %v1275
  %v2851 = vunpack.c.l.b16 %v1276
  %v2852 = vunpack.c.l.b16 %v1277
  %v2853 = vunpack.c.l.b16 %v1278
  %v2854 = vunpack.c.l.b16 %v1279
  %v2855 = vunpack.c.l.b16 %v1280
  %v2856 = vunpack.c.l.b16 %v1281
  %v2857 = vunpack.c.l.b16 %v1282
  %v2858 = vunpack.c.l.b16 %v1283
  %v2859 = vunpack.c.l.b16 %v1284
  %v2860 = vunpack.c.l.b16 %v1285
  %v2861 = vunpack.c.l.b16 %v1286
  %v2862 = vunpack.c.l.b16 %v1287
  %v2863 = vunpack.c.l.b16 %v1288
  %v2864 = vunpack.c.l.b16 %v1289
  %v2865 = vunpack.c.l.b16 %v1290
  %v2866 = vunpack.c.l.b16 %v1291
  %v2867 = vunpack.c.l.b16 %v1292
  %v2868 = vunpack.c.l.b16 %v1293
  %v2869 = vunpack.c.l.b16 %v1294
  %v2870 = vunpack.c.l.b16 %v1295
  %v2871 = vunpack.c.l.b16 %v1296
  %v2872 = vunpack.c.l.b16 %v1297
  %v2873 = vunpack.c.l.b16 %v1298
  %v2874 = vunpack.c.l.b16 %v1299
  %v2875 = vunpack.c.l.b16 %v1300
  %v2876 = vunpack.c.l.b16 %v1301
  %v2877 = vunpack.c.l.b16 %v1302
  %v2878 = vunpack.c.l.b16 %v1303
  %v2879 = vunpack.c.l.b16 %v1304
  %v2880 = vunpack.c.l.b16 %v1305
  %v2881 = vunpack.c.l.b16 %v1306
  %v2882 = vunpack.c.l.b16 %v1307
  %v2883 = vunpack.c.l.b16 %v1308
  %v2884 = vunpack.c.l.b16 %v1309
  %v2885 = vunpack.c.l.b16 %v1310
  %v2886 = vunpack.c.l.b16 %v1311
  %v2887 = vunpack.c.l.b16 %v1312
  %v2888 = vunpack.c.l.b16 %v1313
  %v2889 = vunpack.c.l.b16 %v1314
  %v2890 = vunpack.c.l.b16 %v1315
  %v2891 = vunpack.c.l.b16 %v1316
  %v2892 = vunpack.c.l.b16 %v1317
  %v2893 = vunpack.c.l.b16 %v1318
  %v2894 = vunpack.c.l.b16 %v1319
  %v2895 = vunpack.c.l.b16 %v1320
  %v2896 = vunpack.c.l.b16 %v1321
  %v2897 = vunpack.c.l.b16 %v1322
  %v2898 = vunpack.c.l.b16 %v1323
  %v2899 = vunpack.c.l.b16 %v1324
  %v2900 = vunpack.c.l.b16 %v1325
  %v2901 = vunpack.c.l.b16 %v1326
  %v2902 = vunpack.c.l.b16 %v1327
  %v2903 = vunpack.c.l.b16 %v1328
  %v2904 = vunpack.c.l.b16 %v1329
  %v2905 = vunpack.c.l.b16 %v1330
  %v2906 = vunpack.c.l.b16 %v1331
  %v2907 = vunpack.c.l.b16 %v1332
  %v2908 = vunpack.c.l.b16 %v1333
  %v2909 = vunpack.c.l.b16 %v1334
  %v2910 = vunpack.c.l.b16 %v1335
  %v2911 = vunpack.c.l.b16 %v1336
  %v2912 = vunpack.c.l.b16 %v1337
  %v2913 = vunpack.c.l.b16 %v1338
  %v2914 = vunpack.c.l.b16 %v1339
  %v2915 = vunpack.c.l.b16 %v1340
  %v2916 = vunpack.c.l.b16 %v1341
  %v2917 = vunpack.c.l.b16 %v1342
  %v2918 = vunpack.c.l.b16 %v1343
  %v2919 = vunpack.c.l.b16 %v1344
  %v2920 = vunpack.c.l.b16 %v1345
  %v2921 = vunpack.c.l.b16 %v1346
  %v2922 = vunpack.c.l.b16 %v1347
  %v2923 = vunpack.c.l.b16 %v1348
  %v2924 = vunpack.c.l.b16 %v1349
  %v2925 = vunpack.c.l.b16 %v1350
  %v2926 = vunpack.c.l.b16 %v1351
  %v2927 = vunpack.c.l.b16 %v1352
  %v2928 = vunpack.c.l.b16 %v1353
  %v2929 = vunpack.c.l.b16 %v1354
  %v2930 = vunpack.c.l.b16 %v1355
  %v2931 = vunpack.c.l.b16 %v1356
  %v2932 = vunpack.c.l.b16 %v1357
  %v2933 = vunpack.c.l.b16 %v1358
  %v2934 = vunpack.c.l.b16 %v1359
  %v2935 = vunpack.c.l.b16 %v1360
  %v2936 = vunpack.c.l.b16 %v1361
  %v2937 = vunpack.c.l.b16 %v1362
  %v2938 = vunpack.c.l.b16 %v1363
  %v2939 = vunpack.c.l.b16 %v1364
  %v2940 = vunpack.c.l.b16 %v1365
  %v2941 = vunpack.c.l.b16 %v1366
  %v2942 = vunpack.c.l.b16 %v1367
  %v2943 = vunpack.c.l.b16 %v1368
  %v2944 = vunpack.c.l.b16 %v1369
  %v2945 = vunpack.c.l.b16 %v1370
  %v2946 = vunpack.c.l.b16 %v1371
  %v2947 = vunpack.c.l.b16 %v1372
  %v2948 = vunpack.c.l.b16 %v1373
  %v2949 = vunpack.c.l.b16 %v1374
  %v2950 = vunpack.c.l.b16 %v1375
  %v2951 = vunpack.c.l.b16 %v1376
  %v2952 = vunpack.c.l.b16 %v1377
  %v2953 = vunpack.c.l.b16 %v1378
  %v2954 = vunpack.c.l.b16 %v1379
  %v2955 = vunpack.c.l.b16 %v1380
  %v2956 = vunpack.c.l.b16 %v1381
  %v2957 = vunpack.c.l.b16 %v1382
  %v2958 = vunpack.c.l.b16 %v1383
  %v2959 = vunpack.c.l.b16 %v1384
  %v2960 = vunpack.c.l.b16 %v1385
  %v2961 = vunpack.c.l.b16 %v1386
  %v2962 = vunpack.c.l.b16 %v1387
  %v2963 = vunpack.c.l.b16 %v1388
  %v2964 = vunpack.c.l.b16 %v1389
  %v2965 = vunpack.c.l.b16 %v1390
  %v2966 = vunpack.c.l.b16 %v1391
  %v2967 = vunpack.c.l.b16 %v1392
  %v2968 = vunpack.c.l.b16 %v1393
  %v2969 = vunpack.c.l.b16 %v1394
  %v2970 = vunpack.c.l.b16 %v1395
  %v2971 = vunpack.c.l.b16 %v1396
  %v2972 = vunpack.c.l.b16 %v1397
  %v2973 = vunpack.c.l.b16 %v1398
  %v2974 = vpack.c.b16 %v2191, %v2190
  %v2975 = vpack.c.b16 %v2193, %v2192
  %v2976 = vpack.c.b16 %v2195, %v2194
  %v2977 = vpack.c.b16 %v2197, %v2196
  %v2978 = vpack.c.b16 %v2199, %v2198
  %v2979 = vpack.c.b16 %v2201, %v2200
  %v2980 = vpack.c.b16 %v2203, %v2202
  %v2981 = vpack.c.b16 %v2205, %v2204
  %v2982 = vpack.c.b16 %v2207, %v2206
  %v2983 = vpack.c.b16 %v2209, %v2208
  %v2984 = vpack.c.b16 %v2211, %v2210
  %v2985 = vpack.c.b16 %v2213, %v2212
  %v2986 = vpack.c.b16 %v2215, %v2214
  %v2987 = vpack.c.b16 %v2217, %v2216
  %v2988 = vpack.c.b16 %v2219, %v2218
  %v2989 = vpack.c.b16 %v2221, %v2220
  %v2990 = vpack.c.b16 %v2223, %v2222
  %v2991 = vpack.c.b16 %v2225, %v2224
  %v2992 = vpack.c.b16 %v2227, %v2226
  %v2993 = vpack.c.b16 %v2229, %v2228
  %v2994 = vpack.c.b16 %v2231, %v2230
  %v2995 = vpack.c.b16 %v2233, %v2232
  %v2996 = vpack.c.b16 %v2235, %v2234
  %v2997 = vpack.c.b16 %v2237, %v2236
  %v2998 = vpack.c.b16 %v2239, %v2238
  %v2999 = vpack.c.b16 %v2241, %v2240
  %v3000 = vpack.c.b16 %v2243, %v2242
  %v3001 = vpack.c.b16 %v2245, %v2244
  %v3002 = vpack.c.b16 %v2247, %v2246
  %v3003 = vpack.c.b16 %v2249, %v2248
  %v3004 = vpack.c.b16 %v2251, %v2250
  %v3005 = vpack.c.b16 %v2253, %v2252
  %v3006 = vpack.c.b16 %v2255, %v2254
  %v3007 = vpack.c.b16 %v2257, %v2256
  %v3008 = vpack.c.b16 %v2259, %v2258
  %v3009 = vpack.c.b16 %v2261, %v2260
  %v3010 = vpack.c.b16 %v2263, %v2262
  %v3011 = vpack.c.b16 %v2265, %v2264
  %v3012 = vpack.c.b16 %v2267, %v2266
  %v3013 = vpack.c.b16 %v2269, %v2268
  %v3014 = vpack.c.b16 %v2271, %v2270
  %v3015 = vpack.c.b16 %v2273, %v2272
  %v3016 = vpack.c.b16 %v2275, %v2274
  %v3017 = vpack.c.b16 %v2277, %v2276
  %v3018 = vpack.c.b16 %v2279, %v2278
  %v3019 = vpack.c.b16 %v2281, %v2280
  %v3020 = vpack.c.b16 %v2283, %v2282
  %v3021 = vpack.c.b16 %v2285, %v2284
  %v3022 = vpack.c.b16 %v2287, %v2286
  %v3023 = vpack.c.b16 %v2289, %v2288
  %v3024 = vpack.c.b16 %v2291, %v2290
  %v3025 = vpack.c.b16 %v2293, %v2292
  %v3026 = vpack.c.b16 %v2295, %v2294
  %v3027 = vpack.c.b16 %v2297, %v2296
  %v3028 = vpack.c.b16 %v2299, %v2298
  %v3029 = vpack.c.b16 %v2301, %v2300
  %v3030 = vpack.c.b16 %v2303, %v2302
  %v3031 = vpack.c.b16 %v2305, %v2304
  %v3032 = vpack.c.b16 %v2307, %v2306
  %v3033 = vpack.c.b16 %v2309, %v2308
  %v3034 = vpack.c.b16 %v2311, %v2310
  %v3035 = vpack.c.b16 %v2313, %v2312
  %v3036 = vpack.c.b16 %v2315, %v2314
  %v3037 = vpack.c.b16 %v2317, %v2316
  %v3038 = vpack.c.b16 %v2319, %v2318
  %v3039 = vpack.c.b16 %v2321, %v2320
  %v3040 = vpack.c.b16 %v2323, %v2322
  %v3041 = vpack.c.b16 %v2325, %v2324
  %v3042 = vpack.c.b16 %v2327, %v2326
  %v3043 = vpack.c.b16 %v2329, %v2328
  %v3044 = vpack.c.b16 %v2331, %v2330
  %v3045 = vpack.c.b16 %v2333, %v2332
  %v3046 = vpack.c.b16 %v2335, %v2334
  %v3047 = vpack.c.b16 %v2337, %v2336
  %v3048 = vpack.c.b16 %v2339, %v2338
  %v3049 = vpack.c.b16 %v2341, %v2340
  %v3050 = vpack.c.b16 %v2343, %v2342
  %v3051 = vpack.c.b16 %v2345, %v2344
  %v3052 = vpack.c.b16 %v2347, %v2346
  %v3053 = vpack.c.b16 %v2349, %v2348
  %v3054 = vpack.c.b16 %v2351, %v2350
  %v3055 = vpack.c.b16 %v2353, %v2352
  %v3056 = vpack.c.b16 %v2355, %v2354
  %v3057 = vpack.c.b16 %v2357, %v2356
  %v3058 = vpack.c.b16 %v2359, %v2358
  %v3059 = vpack.c.b16 %v2361, %v2360
  %v3060 = vpack.c.b16 %v2363, %v2362
  %v3061 = vpack.c.b16 %v2365, %v2364
  %v3062 = vpack.c.b16 %v2367, %v2366
  %v3063 = vpack.c.b16 %v2369, %v2368
  %v3064 = vpack.c.b16 %v2371, %v2370
  %v3065 = vpack.c.b16 %v2373, %v2372
  %v3066 = vpack.c.b16 %v2375, %v2374
  %v3067 = vpack.c.b16 %v2377, %v2376
  %v3068 = vpack.c.b16 %v2379, %v2378
  %v3069 = vpack.c.b16 %v2381, %v2380
  %v3070 = vpack.c.b16 %v2383, %v2382
  %v3071 = vpack.c.b16 %v2385, %v2384
  %v3072 = vpack.c.b16 %v2387, %v2386
  %v3073 = vpack.c.b16 %v2389, %v2388
  %v3074 = vpack.c.b16 %v2391, %v2390
  %v3075 = vpack.c.b16 %v2393, %v2392
  %v3076 = vpack.c.b16 %v2395, %v2394
  %v3077 = vpack.c.b16 %v2397, %v2396
  %v3078 = vpack.c.b16 %v2399, %v2398
  %v3079 = vpack.c.b16 %v2401, %v2400
  %v3080 = vpack.c.b16 %v2403, %v2402
  %v3081 = vpack.c.b16 %v2405, %v2404
  %v3082 = vpack.c.b16 %v2407, %v2406
  %v3083 = vpack.c.b16 %v2409, %v2408
  %v3084 = vpack.c.b16 %v2411, %v2410
  %v3085 = vpack.c.b16 %v2413, %v2412
  %v3086 = vpack.c.b16 %v2415, %v2414
  %v3087 = vpack.c.b16 %v2417, %v2416
  %v3088 = vpack.c.b16 %v2419, %v2418
  %v3089 = vpack.c.b16 %v2421, %v2420
  %v3090 = vpack.c.b16 %v2423, %v2422
  %v3091 = vpack.c.b16 %v2425, %v2424
  %v3092 = vpack.c.b16 %v2427, %v2426
  %v3093 = vpack.c.b16 %v2429, %v2428
  %v3094 = vpack.c.b16 %v2431, %v2430
  %v3095 = vpack.c.b16 %v2433, %v2432
  %v3096 = vpack.c.b16 %v2435, %v2434
  %v3097 = vpack.c.b16 %v2437, %v2436
  %v3098 = vpack.c.b16 %v2439, %v2438
  %v3099 = vpack.c.b16 %v2441, %v2440
  %v3100 = vpack.c.b16 %v2443, %v2442
  %v3101 = vpack.c.b16 %v2445, %v2444
  %v3102 = vpack.c.b16 %v2447, %v2446
  %v3103 = vpack.c.b16 %v2449, %v2448
  %v3104 = vpack.c.b16 %v2451, %v2450
  %v3105 = vpack.c.b16 %v2453, %v2452
  %v3106 = vpack.c.b16 %v2455, %v2454
  %v3107 = vpack.c.b16 %v2457, %v2456
  %v3108 = vpack.c.b16 %v2459, %v2458
  %v3109 = vpack.c.b16 %v2461, %v2460
  %v3110 = vpack.c.b16 %v2463, %v2462
  %v3111 = vpack.c.b16 %v2465, %v2464
  %v3112 = vpack.c.b16 %v2467, %v2466
  %v3113 = vpack.c.b16 %v2469, %v2468
  %v3114 = vpack.c.b16 %v2471, %v2470
  %v3115 = vpack.c.b16 %v2473, %v2472
  %v3116 = vpack.c.b16 %v2475, %v2474
  %v3117 = vpack.c.b16 %v2477, %v2476
  %v3118 = vpack.c.b16 %v2479, %v2478
  %v3119 = vpack.c.b16 %v2481, %v2480
  %v3120 = vpack.c.b16 %v2483, %v2482
  %v3121 = vpack.c.b16 %v2485, %v2484
  %v3122 = vpack.c.b16 %v2487, %v2486
  %v3123 = vpack.c.b16 %v2489, %v2488
  %v3124 = vpack.c.b16 %v2491, %v2490
  %v3125 = vpack.c.b16 %v2493, %v2492
  %v3126 = vpack.c.b16 %v2495, %v2494
  %v3127 = vpack.c.b16 %v2497, %v2496
  %v3128 = vpack.c.b16 %v2499, %v2498
  %v3129 = vpack.c.b16 %v2501, %v2500
  %v3130 = vpack.c.b16 %v2503, %v2502
  %v3131 = vpack.c.b16 %v2505, %v2504
  %v3132 = vpack.c.b16 %v2507, %v2506
  %v3133 = vpack.c.b16 %v2509, %v2508
  %v3134 = vpack.c.b16 %v2511, %v2510
  %v3135 = vpack.c.b16 %v2513, %v2512
  %v3136 = vpack.c.b16 %v2515, %v2514
  %v3137 = vpack.c.b16 %v2517, %v2516
  %v3138 = vpack.c.b16 %v2519, %v2518
  %v3139 = vpack.c.b16 %v2521, %v2520
  %v3140 = vpack.c.b16 %v2523, %v2522
  %v3141 = vpack.c.b16 %v2525, %v2524
  %v3142 = vpack.c.b16 %v2527, %v2526
  %v3143 = vpack.c.b16 %v2529, %v2528
  %v3144 = vpack.c.b16 %v2531, %v2530
  %v3145 = vpack.c.b16 %v2533, %v2532
  %v3146 = vpack.c.b16 %v2535, %v2534
  %v3147 = vpack.c.b16 %v2537, %v2536
  %v3148 = vpack.c.b16 %v2539, %v2538
  %v3149 = vpack.c.b16 %v2541, %v2540
  %v3150 = vpack.c.b16 %v2543, %v2542
  %v3151 = vpack.c.b16 %v2545, %v2544
  %v3152 = vpack.c.b16 %v2547, %v2546
  %v3153 = vpack.c.b16 %v2549, %v2548
  %v3154 = vpack.c.b16 %v2551, %v2550
  %v3155 = vpack.c.b16 %v2553, %v2552
  %v3156 = vpack.c.b16 %v2555, %v2554
  %v3157 = vpack.c.b16 %v2557, %v2556
  %v3158 = vpack.c.b16 %v2559, %v2558
  %v3159 = vpack.c.b16 %v2561, %v2560
  %v3160 = vpack.c.b16 %v2563, %v2562
  %v3161 = vpack.c.b16 %v2565, %v2564
  %v3162 = vpack.c.b16 %v2567, %v2566
  %v3163 = vpack.c.b16 %v2569, %v2568
  %v3164 = vpack.c.b16 %v2571, %v2570
  %v3165 = vpack.c.b16 %v2573, %v2572
  %v3166 = vpack.c.b16 %v2575, %v2574
  %v3167 = vpack.c.b16 %v2577, %v2576
  %v3168 = vpack.c.b16 %v2579, %v2578
  %v3169 = vpack.c.b16 %v2581, %v2580
  %v3170 = vpack.c.b16 %v2583, %v2582
  %v3171 = vpack.c.b16 %v2585, %v2584
  %v3172 = vpack.c.b16 %v2587, %v2586
  %v3173 = vpack.c.b16 %v2589, %v2588
  %v3174 = vpack.c.b16 %v2591, %v2590
  %v3175 = vpack.c.b16 %v2593, %v2592
  %v3176 = vpack.c.b16 %v2595, %v2594
  %v3177 = vpack.c.b16 %v2597, %v2596
  %v3178 = vpack.c.b16 %v2599, %v2598
  %v3179 = vpack.c.b16 %v2601, %v2600
  %v3180 = vpack.c.b16 %v2603, %v2602
  %v3181 = vpack.c.b16 %v2605, %v2604
  %v3182 = vpack.c.b16 %v2607, %v2606
  %v3183 = vpack.c.b16 %v2609, %v2608
  %v3184 = vpack.c.b16 %v2611, %v2610
  %v3185 = vpack.c.b16 %v2613, %v2612
  %v3186 = vpack.c.b16 %v2615, %v2614
  %v3187 = vpack.c.b16 %v2617, %v2616
  %v3188 = vpack.c.b16 %v2619, %v2618
  %v3189 = vpack.c.b16 %v2621, %v2620
  %v3190 = vpack.c.b16 %v2623, %v2622
  %v3191 = vpack.c.b16 %v2625, %v2624
  %v3192 = vpack.c.b16 %v2627, %v2626
  %v3193 = vpack.c.b16 %v2629, %v2628
  %v3194 = vpack.c.b16 %v2631, %v2630
  %v3195 = vpack.c.b16 %v2633, %v2632
  %v3196 = vpack.c.b16 %v2635, %v2634
  %v3197 = vpack.c.b16 %v2637, %v2636
  %v3198 = vpack.c.b16 %v2639, %v2638
  %v3199 = vpack.c.b16 %v2641, %v2640
  %v3200 = vpack.c.b16 %v2643, %v2642
  %v3201 = vpack.c.b16 %v2645, %v2644
  %v3202 = vpack.c.b16 %v2647, %v2646
  %v3203 = vpack.c.b16 %v2649, %v2648
  %v3204 = vpack.c.b16 %v2651, %v2650
  %v3205 = vpack.c.b16 %v2653, %v2652
  %v3206 = vpack.c.b16 %v2655, %v2654
  %v3207 = vpack.c.b16 %v2657, %v2656
  %v3208 = vpack.c.b16 %v2659, %v2658
  %v3209 = vpack.c.b16 %v2661, %v2660
  %v3210 = vpack.c.b16 %v2663, %v2662
  %v3211 = vpack.c.b16 %v2665, %v2664
  %v3212 = vpack.c.b16 %v2667, %v2666
  %v3213 = vpack.c.b16 %v2669, %v2668
  %v3214 = vpack.c.b16 %v2671, %v2670
  %v3215 = vpack.c.b16 %v2673, %v2672
  %v3216 = vpack.c.b16 %v2675, %v2674
  %v3217 = vpack.c.b16 %v2677, %v2676
  %v3218 = vpack.c.b16 %v2679, %v2678
  %v3219 = vpack.c.b16 %v2681, %v2680
  %v3220 = vpack.c.b16 %v2683, %v2682
  %v3221 = vpack.c.b16 %v2685, %v2684
  %v3222 = vpack.c.b16 %v2687, %v2686
  %v3223 = vpack.c.b16 %v2689, %v2688
  %v3224 = vpack.c.b16 %v2691, %v2690
  %v3225 = vpack.c.b16 %v2693, %v2692
  %v3226 = vpack.c.b16 %v2695, %v2694
  %v3227 = vpack.c.b16 %v2697, %v2696
  %v3228 = vpack.c.b16 %v2699, %v2698
  %v3229 = vpack.c.b16 %v2701, %v2700
  %v3230 = vpack.c.b16 %v2703, %v2702
  %v3231 = vpack.c.b16 %v2705, %v2704
  %v3232 = vpack.c.b16 %v2707, %v2706
  %v3233 = vpack.c.b16 %v2709, %v2708
  %v3234 = vpack.c.b16 %v2711, %v2710
  %v3235 = vpack.c.b16 %v2713, %v2712
  %v3236 = vpack.c.b16 %v2715, %v2714
  %v3237 = vpack.c.b16 %v2717, %v2716
  %v3238 = vpack.c.b16 %v2719, %v2718
  %v3239 = vpack.c.b16 %v2721, %v2720
  %v3240 = vpack.c.b16 %v2723, %v2722
  %v3241 = vpack.c.b16 %v2725, %v2724
  %v3242 = vpack.c.b16 %v2727, %v2726
  %v3243 = vpack.c.b16 %v2729, %v2728
  %v3244 = vpack.c.b16 %v2731, %v2730
  %v3245 = vpack.c.b16 %v2733, %v2732
  %v3246 = vpack.c.b16 %v2735, %v2734
  %v3247 = vpack.c.b16 %v2737, %v2736
  %v3248 = vpack.c.b16 %v2739, %v2738
  %v3249 = vpack.c.b16 %v2741, %v2740
  %v3250 = vpack.c.b16 %v2743, %v2742
  %v3251 = vpack.c.b16 %v2745, %v2744
  %v3252 = vpack.c.b16 %v2747, %v2746
  %v3253 = vpack.c.b16 %v2749, %v2748
  %v3254 = vpack.c.b16 %v2751, %v2750
  %v3255 = vpack.c.b16 %v2753, %v2752
  %v3256 = vpack.c.b16 %v2755, %v2754
  %v3257 = vpack.c.b16 %v2757, %v2756
  %v3258 = vpack.c.b16 %v2759, %v2758
  %v3259 = vpack.c.b16 %v2761, %v2760
  %v3260 = vpack.c.b16 %v2763, %v2762
  %v3261 = vpack.c.b16 %v2765, %v2764
  %v3262 = vpack.c.b16 %v2767, %v2766
  %v3263 = vpack.c.b16 %v2769, %v2768
  %v3264 = vpack.c.b16 %v2771, %v2770
  %v3265 = vpack.c.b16 %v2773, %v2772
  %v3266 = vpack.c.b16 %v2775, %v2774
  %v3267 = vpack.c.b16 %v2777, %v2776
  %v3268 = vpack.c.b16 %v2779, %v2778
  %v3269 = vpack.c.b16 %v2781, %v2780
  %v3270 = vpack.c.b16 %v2783, %v2782
  %v3271 = vpack.c.b16 %v2785, %v2784
  %v3272 = vpack.c.b16 %v2787, %v2786
  %v3273 = vpack.c.b16 %v2789, %v2788
  %v3274 = vpack.c.b16 %v2791, %v2790
  %v3275 = vpack.c.b16 %v2793, %v2792
  %v3276 = vpack.c.b16 %v2795, %v2794
  %v3277 = vpack.c.b16 %v2797, %v2796
  %v3278 = vpack.c.b16 %v2799, %v2798
  %v3279 = vpack.c.b16 %v2801, %v2800
  %v3280 = vpack.c.b16 %v2803, %v2802
  %v3281 = vpack.c.b16 %v2805, %v2804
  %v3282 = vpack.c.b16 %v2807, %v2806
  %v3283 = vpack.c.b16 %v2809, %v2808
  %v3284 = vpack.c.b16 %v2811, %v2810
  %v3285 = vpack.c.b16 %v2813, %v2812
  %v3286 = vpack.c.b16 %v2815, %v2814
  %v3287 = vpack.c.b16 %v2817, %v2816
  %v3288 = vpack.c.b16 %v2819, %v2818
  %v3289 = vpack.c.b16 %v2821, %v2820
  %v3290 = vpack.c.b16 %v2823, %v2822
  %v3291 = vpack.c.b16 %v2825, %v2824
  %v3292 = vpack.c.b16 %v2827, %v2826
  %v3293 = vpack.c.b16 %v2829, %v2828
  %v3294 = vpack.c.b16 %v2831, %v2830
  %v3295 = vpack.c.b16 %v2833, %v2832
  %v3296 = vpack.c.b16 %v2835, %v2834
  %v3297 = vpack.c.b16 %v2837, %v2836
  %v3298 = vpack.c.b16 %v2839, %v2838
  %v3299 = vpack.c.b16 %v2841, %v2840
  %v3300 = vpack.c.b16 %v2843, %v2842
  %v3301 = vpack.c.b16 %v2845, %v2844
  %v3302 = vpack.c.b16 %v2847, %v2846
  %v3303 = vpack.c.b16 %v2849, %v2848
  %v3304 = vpack.c.b16 %v2851, %v2850
  %v3305 = vpack.c.b16 %v2853, %v2852
  %v3306 = vpack.c.b16 %v2855, %v2854
  %v3307 = vpack.c.b16 %v2857, %v2856
  %v3308 = vpack.c.b16 %v2859, %v2858
  %v3309 = vpack.c.b16 %v2861, %v2860
  %v3310 = vpack.c.b16 %v2863, %v2862
  %v3311 = vpack.c.b16 %v2865, %v2864
  %v3312 = vpack.c.b16 %v2867, %v2866
  %v3313 = vpack.c.b16 %v2869, %v2868
  %v3314 = vpack.c.b16 %v2871, %v2870
  %v3315 = vpack.c.b16 %v2873, %v2872
  %v3316 = vpack.c.b16 %v2875, %v2874
  %v3317 = vpack.c.b16 %v2877, %v2876
  %v3318 = vpack.c.b16 %v2879, %v2878
  %v3319 = vpack.c.b16 %v2881, %v2880
  %v3320 = vpack.c.b16 %v2883, %v2882
  %v3321 = vpack.c.b16 %v2885, %v2884
  %v3322 = vpack.c.b16 %v2887, %v2886
  %v3323 = vpack.c.b16 %v2889, %v2888
  %v3324 = vpack.c.b16 %v2891, %v2890
  %v3325 = vpack.c.b16 %v2893, %v2892
  %v3326 = vpack.c.b16 %v2895, %v2894
  %v3327 = vpack.c.b16 %v2897, %v2896
  %v3328 = vpack.c.b16 %v2899, %v2898
  %v3329 = vpack.c.b16 %v2901, %v2900
  %v3330 = vpack.c.b16 %v2903, %v2902
  %v3331 = vpack.c.b16 %v2905, %v2904
  %v3332 = vpack.c.b16 %v2907, %v2906
  %v3333 = vpack.c.b16 %v2909, %v2908
  %v3334 = vpack.c.b16 %v2911, %v2910
  %v3335 = vpack.c.b16 %v2913, %v2912
  %v3336 = vpack.c.b16 %v2915, %v2914
  %v3337 = vpack.c.b16 %v2917, %v2916
  %v3338 = vpack.c.b16 %v2919, %v2918
  %v3339 = vpack.c.b16 %v2921, %v2920
  %v3340 = vpack.c.b16 %v2923, %v2922
  %v3341 = vpack.c.b16 %v2925, %v2924
  %v3342 = vpack.c.b16 %v2927, %v2926
  %v3343 = vpack.c.b16 %v2929, %v2928
  %v3344 = vpack.c.b16 %v2931, %v2930
  %v3345 = vpack.c.b16 %v2933, %v2932
  %v3346 = vpack.c.b16 %v2935, %v2934
  %v3347 = vpack.c.b16 %v2937, %v2936
  %v3348 = vpack.c.b16 %v2939, %v2938
  %v3349 = vpack.c.b16 %v2941, %v2940
  %v3350 = vpack.c.b16 %v2943, %v2942
  %v3351 = vpack.c.b16 %v2945, %v2944
  %v3352 = vpack.c.b16 %v2947, %v2946
  %v3353 = vpack.c.b16 %v2949, %v2948
  %v3354 = vpack.c.b16 %v2951, %v2950
  %v3355 = vpack.c.b16 %v2953, %v2952
  %v3356 = vpack.c.b16 %v2955, %v2954
  %v3357 = vpack.c.b16 %v2957, %v2956
  %v3358 = vpack.c.b16 %v2959, %v2958
  %v3359 = vpack.c.b16 %v2961, %v2960
  %v3360 = vpack.c.b16 %v2963, %v2962
  %v3361 = vpack.c.b16 %v2965, %v2964
  %v3362 = vpack.c.b16 %v2967, %v2966
  %v3363 = vpack.c.b16 %v2969, %v2968
  %v3364 = vpack.c.b16 %v2971, %v2970
  %v3365 = vpack.c.b16 %v2973, %v2972
  %3758 = vmatprep.subr.bf16.mxu0 0
  %3759 = vmatpush1.bf16.msra.mxu0 %v2974
  %3760 = vmatprep.subr.bf16.mxu0 0
  %3761 = vmatpush1.bf16.msra.mxu0 %v2975
  %3762 = vmatprep.subr.bf16.mxu0 0
  %3763 = vmatpush1.bf16.msra.mxu0 %v2976
  %3764 = vmatprep.subr.bf16.mxu0 0
  %3765 = vmatpush1.bf16.msra.mxu0 %v2977
  %3766 = vmatprep.subr.bf16.mxu0 0
  %3767 = vmatpush1.bf16.msra.mxu0 %v2978
  %3768 = vmatprep.subr.bf16.mxu0 0
  %3769 = vmatpush1.bf16.msra.mxu0 %v2979
  %3770 = vmatprep.subr.bf16.mxu0 0
  %3771 = vmatpush1.bf16.msra.mxu0 %v2980
  %3772 = vmatprep.subr.bf16.mxu0 0
  %3773 = vmatpush1.bf16.msra.mxu0 %v2981
  %3774 = vmatprep.subr.bf16.mxu0 0
  %3775 = vmatpush1.bf16.msra.mxu0 %v2982
  %3776 = vmatprep.subr.bf16.mxu0 0
  %3777 = vmatpush1.bf16.msra.mxu0 %v2983
  %3778 = vmatprep.subr.bf16.mxu0 0
  %3779 = vmatpush1.bf16.msra.mxu0 %v2984
  %3780 = vmatprep.subr.bf16.mxu0 0
  %3781 = vmatpush1.bf16.msra.mxu0 %v2985
  %3782 = vmatprep.subr.bf16.mxu0 0
  %3783 = vmatpush1.bf16.msra.mxu0 %v2986
  %3784 = vmatprep.subr.bf16.mxu0 0
  %3785 = vmatpush1.bf16.msra.mxu0 %v2987
  %3786 = vmatprep.subr.bf16.mxu0 0
  %3787 = vmatpush1.bf16.msra.mxu0 %v2988
  %3788 = vmatprep.subr.bf16.mxu0 0
  %3789 = vmatpush1.bf16.msra.mxu0 %v2989
  %3790 = vmatprep.mubr.bf16.mxu0 %v420
  %3791 = vmatmul.mubr.bf16.gmra.mrb[0].mxu0 %v419
  %v3792 = vpop.f32.mrb[0].mxu0
  %v3793 = vadd.f32 %v1404, %v3792
  %v3794 = vpop.f32.mrb[0].mxu0
  %v3795 = vpop.f32.mrb[0].mxu0
  %v3796 = vadd.f32 %v1404, %v3795
  %v3797 = vpop.f32.mrb[0].mxu0
  %3798 = vmatprep.mubr.bf16.mxu0 %v469
  %3799 = vmatmul.mubr.bf16.gmra.mrb[0].mxu0 %v468
  %v3800 = vpop.f32.mrb[0].mxu0
  %v3801 = vadd.f32 %v1404, %v3800
  %v3802 = vpop.f32.mrb[0].mxu0
  %v3803 = vpop.f32.mrb[0].mxu0
  %v3804 = vadd.f32 %v1404, %v3803
  %v3805 = vpop.f32.mrb[0].mxu0
  %3806 = vmatprep.mubr.bf16.mxu0 %v518
  %3807 = vmatmul.mubr.bf16.gmra.mrb[0].mxu0 %v517
  %v3808 = vpop.f32.mrb[0].mxu0
  %v3809 = vadd.f32 %v1404, %v3808
  %v3810 = vpop.f32.mrb[0].mxu0
  %v3811 = vpop.f32.mrb[0].mxu0
  %v3812 = vadd.f32 %v1404, %v3811
  %v3813 = vpop.f32.mrb[0].mxu0
  %3814 = vmatprep.mubr.bf16.mxu0 %v567
  %3815 = vmatmul.mubr.bf16.gmra.mrb[0].mxu0 %v566
  %v3816 = vpop.f32.mrb[0].mxu0
  %v3817 = vadd.f32 %v1404, %v3816
  %v3818 = vpop.f32.mrb[0].mxu0
  %v3819 = vpop.f32.mrb[0].mxu0
  %v3820 = vadd.f32 %v1404, %v3819
  %v3821 = vpop.f32.mrb[0].mxu0
  %3822 = vdwg.mxu0
  %3823 = vmatprep.subr.bf16.mxu0 0
  %3824 = vmatpush1.bf16.msra.mxu0 %v2990
  %3825 = vmatprep.subr.bf16.mxu0 0
  %3826 = vmatpush1.bf16.msra.mxu0 %v2991
  %3827 = vmatprep.subr.bf16.mxu0 0
  %3828 = vmatpush1.bf16.msra.mxu0 %v2992
  %3829 = vmatprep.subr.bf16.mxu0 0
  %3830 = vmatpush1.bf16.msra.mxu0 %v2993
  %3831 = vmatprep.subr.bf16.mxu0 0
  %3832 = vmatpush1.bf16.msra.mxu0 %v2994
  %3833 = vmatprep.subr.bf16.mxu0 0
  %3834 = vmatpush1.bf16.msra.mxu0 %v2995
  %3835 = vmatprep.subr.bf16.mxu0 0
  %3836 = vmatpush1.bf16.msra.mxu0 %v2996
  %3837 = vmatprep.subr.bf16.mxu0 0
  %3838 = vmatpush1.bf16.msra.mxu0 %v2997
  %3839 = vmatprep.subr.bf16.mxu0 0
  %3840 = vmatpush1.bf16.msra.mxu0 %v2998
  %3841 = vmatprep.subr.bf16.mxu0 0
  %3842 = vmatpush1.bf16.msra.mxu0 %v2999
  %3843 = vmatprep.subr.bf16.mxu0 0
  %3844 = vmatpush1.bf16.msra.mxu0 %v3000
  %3845 = vmatprep.subr.bf16.mxu0 0
  %3846 = vmatpush1.bf16.msra.mxu0 %v3001
  %3847 = vmatprep.subr.bf16.mxu0 0
  %3848 = vmatpush1.bf16.msra.mxu0 %v3002
  %3849 = vmatprep.subr.bf16.mxu0 0
  %3850 = vmatpush1.bf16.msra.mxu0 %v3003
  %3851 = vmatprep.subr.bf16.mxu0 0
  %3852 = vmatpush1.bf16.msra.mxu0 %v3004
  %3853 = vmatprep.subr.bf16.mxu0 0
  %3854 = vmatpush1.bf16.msra.mxu0 %v3005
  %3855 = vmatprep.mubr.bf16.mxu0 %v422
  %3856 = vmatmul.mubr.bf16.gmra.mrb[0].mxu0 %v421
  %v3857 = vpop.f32.mrb[0].mxu0
  %v3858 = vadd.f32 %v3793, %v3857
  %v3859 = vpop.f32.mrb[0].mxu0
  %v3860 = vpop.f32.mrb[0].mxu0
  %v3861 = vadd.f32 %v3796, %v3860
  %v3862 = vpop.f32.mrb[0].mxu0
  %3863 = vmatprep.mubr.bf16.mxu0 %v471
  %3864 = vmatmul.mubr.bf16.gmra.mrb[0].mxu0 %v470
  %v3865 = vpop.f32.mrb[0].mxu0
  %v3866 = vadd.f32 %v3801, %v3865
  %v3867 = vpop.f32.mrb[0].mxu0
  %v3868 = vpop.f32.mrb[0].mxu0
  %v3869 = vadd.f32 %v3804, %v3868
  %v3870 = vpop.f32.mrb[0].mxu0
  %3871 = vmatprep.mubr.bf16.mxu0 %v520
  %3872 = vmatmul.mubr.bf16.gmra.mrb[0].mxu0 %v519
  %v3873 = vpop.f32.mrb[0].mxu0
  %v3874 = vadd.f32 %v3809, %v3873
  %v3875 = vpop.f32.mrb[0].mxu0
  %v3876 = vpop.f32.mrb[0].mxu0
  %v3877 = vadd.f32 %v3812, %v3876
  %v3878 = vpop.f32.mrb[0].mxu0
  %3879 = vmatprep.mubr.bf16.mxu0 %v569
  %3880 = vmatmul.mubr.bf16.gmra.mrb[0].mxu0 %v568
  %v3881 = vpop.f32.mrb[0].mxu0
  %v3882 = vadd.f32 %v3817, %v3881
  %v3883 = vpop.f32.mrb[0].mxu0
  %v3884 = vpop.f32.mrb[0].mxu0
  %v3885 = vadd.f32 %v3820, %v3884
  %v3886 = vpop.f32.mrb[0].mxu0
  %3887 = vdwg.mxu0
  %3888 = vmatprep.subr.bf16.mxu0 0
  %3889 = vmatpush1.bf16.msra.mxu0 %v3006
  %3890 = vmatprep.subr.bf16.mxu0 0
  %3891 = vmatpush1.bf16.msra.mxu0 %v3007
  %3892 = vmatprep.subr.bf16.mxu0 0
  %3893 = vmatpush1.bf16.msra.mxu0 %v3008
  %3894 = vmatprep.subr.bf16.mxu0 0
  %3895 = vmatpush1.bf16.msra.mxu0 %v3009
  %3896 = vmatprep.subr.bf16.mxu0 0
  %3897 = vmatpush1.bf16.msra.mxu0 %v3010
  %3898 = vmatprep.subr.bf16.mxu0 0
  %3899 = vmatpush1.bf16.msra.mxu0 %v3011
  %3900 = vmatprep.subr.bf16.mxu0 0
  %3901 = vmatpush1.bf16.msra.mxu0 %v3012
  %3902 = vmatprep.subr.bf16.mxu0 0
  %3903 = vmatpush1.bf16.msra.mxu0 %v3013
  %3904 = vmatprep.subr.bf16.mxu0 0
  %3905 = vmatpush1.bf16.msra.mxu0 %v3014
  %3906 = vmatprep.subr.bf16.mxu0 0
  %3907 = vmatpush1.bf16.msra.mxu0 %v3015
  %3908 = vmatprep.subr.bf16.mxu0 0
  %3909 = vmatpush1.bf16.msra.mxu0 %v3016
  %3910 = vmatprep.subr.bf16.mxu0 0
  %3911 = vmatpush1.bf16.msra.mxu0 %v3017
  %3912 = vmatprep.subr.bf16.mxu0 0
  %3913 = vmatpush1.bf16.msra.mxu0 %v3018
  %3914 = vmatprep.subr.bf16.mxu0 0
  %3915 = vmatpush1.bf16.msra.mxu0 %v3019
  %3916 = vmatprep.subr.bf16.mxu0 0
  %3917 = vmatpush1.bf16.msra.mxu0 %v3020
  %3918 = vmatprep.subr.bf16.mxu0 0
  %3919 = vmatpush1.bf16.msra.mxu0 %v3021
  %3920 = vmatprep.mubr.bf16.mxu0 %v424
  %3921 = vmatmul.mubr.bf16.gmra.mrb[0].mxu0 %v423
  %v3922 = vpop.f32.mrb[0].mxu0
  %v3923 = vadd.f32 %v3858, %v3922
  %v3924 = vpop.f32.mrb[0].mxu0
  %v3925 = vpop.f32.mrb[0].mxu0
  %v3926 = vadd.f32 %v3861, %v3925
  %v3927 = vpop.f32.mrb[0].mxu0
  %3928 = vmatprep.mubr.bf16.mxu0 %v473
  %3929 = vmatmul.mubr.bf16.gmra.mrb[0].mxu0 %v472
  %v3930 = vpop.f32.mrb[0].mxu0
  %v3931 = vadd.f32 %v3866, %v3930
  %v3932 = vpop.f32.mrb[0].mxu0
  %v3933 = vpop.f32.mrb[0].mxu0
  %v3934 = vadd.f32 %v3869, %v3933
  %v3935 = vpop.f32.mrb[0].mxu0
  %3936 = vmatprep.mubr.bf16.mxu0 %v522
  %3937 = vmatmul.mubr.bf16.gmra.mrb[0].mxu0 %v521
  %v3938 = vpop.f32.mrb[0].mxu0
  %v3939 = vadd.f32 %v3874, %v3938
  %v3940 = vpop.f32.mrb[0].mxu0
  %v3941 = vpop.f32.mrb[0].mxu0
  %v3942 = vadd.f32 %v3877, %v3941
  %v3943 = vpop.f32.mrb[0].mxu0
  %3944 = vmatprep.mubr.bf16.mxu0 %v571
  %3945 = vmatmul.mubr.bf16.gmra.mrb[0].mxu0 %v570
  %v3946 = vpop.f32.mrb[0].mxu0
  %v3947 = vadd.f32 %v3882, %v3946
  %v3948 = vpop.f32.mrb[0].mxu0
  %v3949 = vpop.f32.mrb[0].mxu0
  %v3950 = vadd.f32 %v3885, %v3949
  %v3951 = vpop.f32.mrb[0].mxu0
  %3952 = vdwg.mxu0
  %3953 = vmatprep.subr.bf16.mxu0 0
  %3954 = vmatpush1.bf16.msra.mxu0 %v3022
  %3955 = vmatprep.subr.bf16.mxu0 0
  %3956 = vmatpush1.bf16.msra.mxu0 %v3023
  %3957 = vmatprep.subr.bf16.mxu0 0
  %3958 = vmatpush1.bf16.msra.mxu0 %v3024
  %3959 = vmatprep.subr.bf16.mxu0 0
  %3960 = vmatpush1.bf16.msra.mxu0 %v3025
  %3961 = vmatprep.subr.bf16.mxu0 0
  %3962 = vmatpush1.bf16.msra.mxu0 %v3026
  %3963 = vmatprep.subr.bf16.mxu0 0
  %3964 = vmatpush1.bf16.msra.mxu0 %v3027
  %3965 = vmatprep.subr.bf16.mxu0 0
  %3966 = vmatpush1.bf16.msra.mxu0 %v3028
  %3967 = vmatprep.subr.bf16.mxu0 0
  %3968 = vmatpush1.bf16.msra.mxu0 %v3029
  %3969 = vmatprep.subr.bf16.mxu0 0
  %3970 = vmatpush1.bf16.msra.mxu0 %v3030
  %3971 = vmatprep.subr.bf16.mxu0 0
  %3972 = vmatpush1.bf16.msra.mxu0 %v3031
  %3973 = vmatprep.subr.bf16.mxu0 0
  %3974 = vmatpush1.bf16.msra.mxu0 %v3032
  %3975 = vmatprep.subr.bf16.mxu0 0
  %3976 = vmatpush1.bf16.msra.mxu0 %v3033
  %3977 = vmatprep.subr.bf16.mxu0 0
  %3978 = vmatpush1.bf16.msra.mxu0 %v3034
  %3979 = vmatprep.subr.bf16.mxu0 0
  %3980 = vmatpush1.bf16.msra.mxu0 %v3035
  %3981 = vmatprep.subr.bf16.mxu0 0
  %3982 = vmatpush1.bf16.msra.mxu0 %v3036
  %3983 = vmatprep.subr.bf16.mxu0 0
  %3984 = vmatpush1.bf16.msra.mxu0 %v3037
  %3985 = vmatprep.mubr.bf16.mxu0 %v426
  %3986 = vmatmul.mubr.bf16.gmra.mrb[0].mxu0 %v425
  %v3987 = vpop.f32.mrb[0].mxu0
  %v3988 = vadd.f32 %v3923, %v3987
  %v3989 = vpop.f32.mrb[0].mxu0
  %v3990 = vpop.f32.mrb[0].mxu0
  %v3991 = vadd.f32 %v3926, %v3990
  %v3992 = vpop.f32.mrb[0].mxu0
  %3993 = vmatprep.mubr.bf16.mxu0 %v475
  %3994 = vmatmul.mubr.bf16.gmra.mrb[0].mxu0 %v474
  %v3995 = vpop.f32.mrb[0].mxu0
  %v3996 = vadd.f32 %v3931, %v3995
  %v3997 = vpop.f32.mrb[0].mxu0
  %v3998 = vpop.f32.mrb[0].mxu0
  %v3999 = vadd.f32 %v3934, %v3998
  %v4000 = vpop.f32.mrb[0].mxu0
  %4001 = vmatprep.mubr.bf16.mxu0 %v524
  %4002 = vmatmul.mubr.bf16.gmra.mrb[0].mxu0 %v523
  %v4003 = vpop.f32.mrb[0].mxu0
  %v4004 = vadd.f32 %v3939, %v4003
  %v4005 = vpop.f32.mrb[0].mxu0
  %v4006 = vpop.f32.mrb[0].mxu0
  %v4007 = vadd.f32 %v3942, %v4006
  %v4008 = vpop.f32.mrb[0].mxu0
  %4009 = vmatprep.mubr.bf16.mxu0 %v573
  %4010 = vmatmul.mubr.bf16.gmra.mrb[0].mxu0 %v572
  %v4011 = vpop.f32.mrb[0].mxu0
  %v4012 = vadd.f32 %v3947, %v4011
  %v4013 = vpop.f32.mrb[0].mxu0
  %v4014 = vpop.f32.mrb[0].mxu0
  %v4015 = vadd.f32 %v3950, %v4014
  %v4016 = vpop.f32.mrb[0].mxu0
  %4017 = vdwg.mxu0
  %4018 = vmatprep.subr.bf16.mxu0 0
  %4019 = vmatpush1.bf16.msra.mxu0 %v3038
  %4020 = vmatprep.subr.bf16.mxu0 0
  %4021 = vmatpush1.bf16.msra.mxu0 %v3039
  %4022 = vmatprep.subr.bf16.mxu0 0
  %4023 = vmatpush1.bf16.msra.mxu0 %v3040
  %4024 = vmatprep.subr.bf16.mxu0 0
  %4025 = vmatpush1.bf16.msra.mxu0 %v3041
  %4026 = vmatprep.subr.bf16.mxu0 0
  %4027 = vmatpush1.bf16.msra.mxu0 %v3042
  %4028 = vmatprep.subr.bf16.mxu0 0
  %4029 = vmatpush1.bf16.msra.mxu0 %v3043
  %4030 = vmatprep.subr.bf16.mxu0 0
  %4031 = vmatpush1.bf16.msra.mxu0 %v3044
  %4032 = vmatprep.subr.bf16.mxu0 0
  %4033 = vmatpush1.bf16.msra.mxu0 %v3045
  %4034 = vmatprep.subr.bf16.mxu0 0
  %4035 = vmatpush1.bf16.msra.mxu0 %v3046
  %4036 = vmatprep.subr.bf16.mxu0 0
  %4037 = vmatpush1.bf16.msra.mxu0 %v3047
  %4038 = vmatprep.subr.bf16.mxu0 0
  %4039 = vmatpush1.bf16.msra.mxu0 %v3048
  %4040 = vmatprep.subr.bf16.mxu0 0
  %4041 = vmatpush1.bf16.msra.mxu0 %v3049
  %4042 = vmatprep.subr.bf16.mxu0 0
  %4043 = vmatpush1.bf16.msra.mxu0 %v3050
  %4044 = vmatprep.subr.bf16.mxu0 0
  %4045 = vmatpush1.bf16.msra.mxu0 %v3051
  %4046 = vmatprep.subr.bf16.mxu0 0
  %4047 = vmatpush1.bf16.msra.mxu0 %v3052
  %4048 = vmatprep.subr.bf16.mxu0 0
  %4049 = vmatpush1.bf16.msra.mxu0 %v3053
  %4050 = vmatprep.mubr.bf16.mxu0 %v428
  %4051 = vmatmul.mubr.bf16.gmra.mrb[0].mxu0 %v427
  %v4052 = vpop.f32.mrb[0].mxu0
  %v4053 = vadd.f32 %v3988, %v4052
  %v4054 = vpop.f32.mrb[0].mxu0
  %v4055 = vpop.f32.mrb[0].mxu0
  %v4056 = vadd.f32 %v3991, %v4055
  %v4057 = vpop.f32.mrb[0].mxu0
  %4058 = vmatprep.mubr.bf16.mxu0 %v477
  %4059 = vmatmul.mubr.bf16.gmra.mrb[0].mxu0 %v476
  %v4060 = vpop.f32.mrb[0].mxu0
  %v4061 = vadd.f32 %v3996, %v4060
  %v4062 = vpop.f32.mrb[0].mxu0
  %v4063 = vpop.f32.mrb[0].mxu0
  %v4064 = vadd.f32 %v3999, %v4063
  %v4065 = vpop.f32.mrb[0].mxu0
  %4066 = vmatprep.mubr.bf16.mxu0 %v526
  %4067 = vmatmul.mubr.bf16.gmra.mrb[0].mxu0 %v525
  %v4068 = vpop.f32.mrb[0].mxu0
  %v4069 = vadd.f32 %v4004, %v4068
  %v4070 = vpop.f32.mrb[0].mxu0
  %v4071 = vpop.f32.mrb[0].mxu0
  %v4072 = vadd.f32 %v4007, %v4071
  %v4073 = vpop.f32.mrb[0].mxu0
  %4074 = vmatprep.mubr.bf16.mxu0 %v575
  %4075 = vmatmul.mubr.bf16.gmra.mrb[0].mxu0 %v574
  %v4076 = vpop.f32.mrb[0].mxu0
  %v4077 = vadd.f32 %v4012, %v4076
  %v4078 = vpop.f32.mrb[0].mxu0
  %v4079 = vpop.f32.mrb[0].mxu0
  %v4080 = vadd.f32 %v4015, %v4079
  %v4081 = vpop.f32.mrb[0].mxu0
  %4082 = vdwg.mxu0
  %4083 = vmatprep.subr.bf16.mxu0 0
  %4084 = vmatpush1.bf16.msra.mxu0 %v3054
  %4085 = vmatprep.subr.bf16.mxu0 0
  %4086 = vmatpush1.bf16.msra.mxu0 %v3055
  %4087 = vmatprep.subr.bf16.mxu0 0
  %4088 = vmatpush1.bf16.msra.mxu0 %v3056
  %4089 = vmatprep.subr.bf16.mxu0 0
  %4090 = vmatpush1.bf16.msra.mxu0 %v3057
  %4091 = vmatprep.subr.bf16.mxu0 0
  %4092 = vmatpush1.bf16.msra.mxu0 %v3058
  %4093 = vmatprep.subr.bf16.mxu0 0
  %4094 = vmatpush1.bf16.msra.mxu0 %v3059
  %4095 = vmatprep.subr.bf16.mxu0 0
  %4096 = vmatpush1.bf16.msra.mxu0 %v3060
  %4097 = vmatprep.subr.bf16.mxu0 0
  %4098 = vmatpush1.bf16.msra.mxu0 %v3061
  %4099 = vmatprep.subr.bf16.mxu0 0
  %4100 = vmatpush1.bf16.msra.mxu0 %v3062
  %4101 = vmatprep.subr.bf16.mxu0 0
  %4102 = vmatpush1.bf16.msra.mxu0 %v3063
  %4103 = vmatprep.subr.bf16.mxu0 0
  %4104 = vmatpush1.bf16.msra.mxu0 %v3064
  %4105 = vmatprep.subr.bf16.mxu0 0
  %4106 = vmatpush1.bf16.msra.mxu0 %v3065
  %4107 = vmatprep.subr.bf16.mxu0 0
  %4108 = vmatpush1.bf16.msra.mxu0 %v3066
  %4109 = vmatprep.subr.bf16.mxu0 0
  %4110 = vmatpush1.bf16.msra.mxu0 %v3067
  %4111 = vmatprep.subr.bf16.mxu0 0
  %4112 = vmatpush1.bf16.msra.mxu0 %v3068
  %4113 = vmatprep.subr.bf16.mxu0 0
  %4114 = vmatpush1.bf16.msra.mxu0 %v3069
  %4115 = vmatprep.mubr.bf16.mxu0 %v430
  %4116 = vmatmul.mubr.bf16.gmra.mrb[0].mxu0 %v429
  %v4117 = vpop.f32.mrb[0].mxu0
  %v4118 = vadd.f32 %v4053, %v4117
  %v4119 = vpop.f32.mrb[0].mxu0
  %v4120 = vpop.f32.mrb[0].mxu0
  %v4121 = vadd.f32 %v4056, %v4120
  %v4122 = vpop.f32.mrb[0].mxu0
  %4123 = vmatprep.mubr.bf16.mxu0 %v479
  %4124 = vmatmul.mubr.bf16.gmra.mrb[0].mxu0 %v478
  %v4125 = vpop.f32.mrb[0].mxu0
  %v4126 = vadd.f32 %v4061, %v4125
  %v4127 = vpop.f32.mrb[0].mxu0
  %v4128 = vpop.f32.mrb[0].mxu0
  %v4129 = vadd.f32 %v4064, %v4128
  %v4130 = vpop.f32.mrb[0].mxu0
  %4131 = vmatprep.mubr.bf16.mxu0 %v528
  %4132 = vmatmul.mubr.bf16.gmra.mrb[0].mxu0 %v527
  %v4133 = vpop.f32.mrb[0].mxu0
  %v4134 = vadd.f32 %v4069, %v4133
  %v4135 = vpop.f32.mrb[0].mxu0
  %v4136 = vpop.f32.mrb[0].mxu0
  %v4137 = vadd.f32 %v4072, %v4136
  %v4138 = vpop.f32.mrb[0].mxu0
  %4139 = vmatprep.mubr.bf16.mxu0 %v577
  %4140 = vmatmul.mubr.bf16.gmra.mrb[0].mxu0 %v576
  %v4141 = vpop.f32.mrb[0].mxu0
  %v4142 = vadd.f32 %v4077, %v4141
  %v4143 = vpop.f32.mrb[0].mxu0
  %v4144 = vpop.f32.mrb[0].mxu0
  %v4145 = vadd.f32 %v4080, %v4144
  %v4146 = vpop.f32.mrb[0].mxu0
  %4147 = vdwg.mxu0
  %4148 = vmatprep.subr.bf16.mxu0 0
  %4149 = vmatpush1.bf16.msra.mxu0 %v3070
  %4150 = vmatprep.subr.bf16.mxu0 0
  %4151 = vmatpush1.bf16.msra.mxu0 %v3071
  %4152 = vmatprep.subr.bf16.mxu0 0
  %4153 = vmatpush1.bf16.msra.mxu0 %v3072
  %4154 = vmatprep.subr.bf16.mxu0 0
  %4155 = vmatpush1.bf16.msra.mxu0 %v3073
  %4156 = vmatprep.subr.bf16.mxu0 0
  %4157 = vmatpush1.bf16.msra.mxu0 %v3074
  %4158 = vmatprep.subr.bf16.mxu0 0
  %4159 = vmatpush1.bf16.msra.mxu0 %v3075
  %4160 = vmatprep.subr.bf16.mxu0 0
  %4161 = vmatpush1.bf16.msra.mxu0 %v3076
  %4162 = vmatprep.subr.bf16.mxu0 0
  %4163 = vmatpush1.bf16.msra.mxu0 %v3077
  %4164 = vmatprep.subr.bf16.mxu0 0
  %4165 = vmatpush1.bf16.msra.mxu0 %v3078
  %4166 = vmatprep.subr.bf16.mxu0 0
  %4167 = vmatpush1.bf16.msra.mxu0 %v3079
  %4168 = vmatprep.subr.bf16.mxu0 0
  %4169 = vmatpush1.bf16.msra.mxu0 %v3080
  %4170 = vmatprep.subr.bf16.mxu0 0
  %4171 = vmatpush1.bf16.msra.mxu0 %v3081
  %4172 = vmatprep.subr.bf16.mxu0 0
  %4173 = vmatpush1.bf16.msra.mxu0 %v3082
  %4174 = vmatprep.subr.bf16.mxu0 0
  %4175 = vmatpush1.bf16.msra.mxu0 %v3083
  %4176 = vmatprep.subr.bf16.mxu0 0
  %4177 = vmatpush1.bf16.msra.mxu0 %v3084
  %4178 = vmatprep.subr.bf16.mxu0 0
  %4179 = vmatpush1.bf16.msra.mxu0 %v3085
  %4180 = vmatprep.mubr.bf16.mxu0 %v432
  %4181 = vmatmul.mubr.bf16.gmra.mrb[0].mxu0 %v431
  %v4182 = vpop.f32.mrb[0].mxu0
  %v4183 = vadd.f32 %v4118, %v4182
  %v4184 = vpop.f32.mrb[0].mxu0
  %v4185 = vpop.f32.mrb[0].mxu0
  %v4186 = vadd.f32 %v4121, %v4185
  %v4187 = vpop.f32.mrb[0].mxu0
  %4188 = vmatprep.mubr.bf16.mxu0 %v481
  %4189 = vmatmul.mubr.bf16.gmra.mrb[0].mxu0 %v480
  %v4190 = vpop.f32.mrb[0].mxu0
  %v4191 = vadd.f32 %v4126, %v4190
  %v4192 = vpop.f32.mrb[0].mxu0
  %v4193 = vpop.f32.mrb[0].mxu0
  %v4194 = vadd.f32 %v4129, %v4193
  %v4195 = vpop.f32.mrb[0].mxu0
  %4196 = vmatprep.mubr.bf16.mxu0 %v530
  %4197 = vmatmul.mubr.bf16.gmra.mrb[0].mxu0 %v529
  %v4198 = vpop.f32.mrb[0].mxu0
  %v4199 = vadd.f32 %v4134, %v4198
  %v4200 = vpop.f32.mrb[0].mxu0
  %v4201 = vpop.f32.mrb[0].mxu0
  %v4202 = vadd.f32 %v4137, %v4201
  %v4203 = vpop.f32.mrb[0].mxu0
  %4204 = vmatprep.mubr.bf16.mxu0 %v579
  %4205 = vmatmul.mubr.bf16.gmra.mrb[0].mxu0 %v578
  %v4206 = vpop.f32.mrb[0].mxu0
  %v4207 = vadd.f32 %v4142, %v4206
  %v4208 = vpop.f32.mrb[0].mxu0
  %v4209 = vpop.f32.mrb[0].mxu0
  %v4210 = vadd.f32 %v4145, %v4209
  %v4211 = vpop.f32.mrb[0].mxu0
  %4212 = vdwg.mxu0
  %4213 = vmatprep.subr.bf16.mxu0 0
  %4214 = vmatpush1.bf16.msra.mxu0 %v3086
  %4215 = vmatprep.subr.bf16.mxu0 0
  %4216 = vmatpush1.bf16.msra.mxu0 %v3087
  %4217 = vmatprep.subr.bf16.mxu0 0
  %4218 = vmatpush1.bf16.msra.mxu0 %v3088
  %4219 = vmatprep.subr.bf16.mxu0 0
  %4220 = vmatpush1.bf16.msra.mxu0 %v3089
  %4221 = vmatprep.subr.bf16.mxu0 0
  %4222 = vmatpush1.bf16.msra.mxu0 %v3090
  %4223 = vmatprep.subr.bf16.mxu0 0
  %4224 = vmatpush1.bf16.msra.mxu0 %v3091
  %4225 = vmatprep.subr.bf16.mxu0 0
  %4226 = vmatpush1.bf16.msra.mxu0 %v3092
  %4227 = vmatprep.subr.bf16.mxu0 0
  %4228 = vmatpush1.bf16.msra.mxu0 %v3093
  %4229 = vmatprep.subr.bf16.mxu0 0
  %4230 = vmatpush1.bf16.msra.mxu0 %v3094
  %4231 = vmatprep.subr.bf16.mxu0 0
  %4232 = vmatpush1.bf16.msra.mxu0 %v3095
  %4233 = vmatprep.subr.bf16.mxu0 0
  %4234 = vmatpush1.bf16.msra.mxu0 %v3096
  %4235 = vmatprep.subr.bf16.mxu0 0
  %4236 = vmatpush1.bf16.msra.mxu0 %v3097
  %4237 = vmatprep.subr.bf16.mxu0 0
  %4238 = vmatpush1.bf16.msra.mxu0 %v3098
  %4239 = vmatprep.subr.bf16.mxu0 0
  %4240 = vmatpush1.bf16.msra.mxu0 %v3099
  %4241 = vmatprep.subr.bf16.mxu0 0
  %4242 = vmatpush1.bf16.msra.mxu0 %v3100
  %4243 = vmatprep.subr.bf16.mxu0 0
  %4244 = vmatpush1.bf16.msra.mxu0 %v3101
  %4245 = vmatprep.mubr.bf16.mxu0 %v434
  %4246 = vmatmul.mubr.bf16.gmra.mrb[0].mxu0 %v433
  %v4247 = vpop.f32.mrb[0].mxu0
  %v4248 = vadd.f32 %v4183, %v4247
  %v4249 = vpop.f32.mrb[0].mxu0
  %v4250 = vpop.f32.mrb[0].mxu0
  %v4251 = vadd.f32 %v4186, %v4250
  %v4252 = vpop.f32.mrb[0].mxu0
  %4253 = vmatprep.mubr.bf16.mxu0 %v483
  %4254 = vmatmul.mubr.bf16.gmra.mrb[0].mxu0 %v482
  %v4255 = vpop.f32.mrb[0].mxu0
  %v4256 = vadd.f32 %v4191, %v4255
  %v4257 = vpop.f32.mrb[0].mxu0
  %v4258 = vpop.f32.mrb[0].mxu0
  %v4259 = vadd.f32 %v4194, %v4258
  %v4260 = vpop.f32.mrb[0].mxu0
  %4261 = vmatprep.mubr.bf16.mxu0 %v532
  %4262 = vmatmul.mubr.bf16.gmra.mrb[0].mxu0 %v531
  %v4263 = vpop.f32.mrb[0].mxu0
  %v4264 = vadd.f32 %v4199, %v4263
  %v4265 = vpop.f32.mrb[0].mxu0
  %v4266 = vpop.f32.mrb[0].mxu0
  %v4267 = vadd.f32 %v4202, %v4266
  %v4268 = vpop.f32.mrb[0].mxu0
  %4269 = vmatprep.mubr.bf16.mxu0 %v581
  %4270 = vmatmul.mubr.bf16.gmra.mrb[0].mxu0 %v580
  %v4271 = vpop.f32.mrb[0].mxu0
  %v4272 = vadd.f32 %v4207, %v4271
  %v4273 = vpop.f32.mrb[0].mxu0
  %v4274 = vpop.f32.mrb[0].mxu0
  %v4275 = vadd.f32 %v4210, %v4274
  %v4276 = vpop.f32.mrb[0].mxu0
  %4277 = vdwg.mxu0
  %4278 = vmatprep.subr.bf16.mxu0 0
  %4279 = vmatpush1.bf16.msra.mxu0 %v3102
  %4280 = vmatprep.subr.bf16.mxu0 0
  %4281 = vmatpush1.bf16.msra.mxu0 %v3103
  %4282 = vmatprep.subr.bf16.mxu0 0
  %4283 = vmatpush1.bf16.msra.mxu0 %v3104
  %4284 = vmatprep.subr.bf16.mxu0 0
  %4285 = vmatpush1.bf16.msra.mxu0 %v3105
  %4286 = vmatprep.subr.bf16.mxu0 0
  %4287 = vmatpush1.bf16.msra.mxu0 %v3106
  %4288 = vmatprep.subr.bf16.mxu0 0
  %4289 = vmatpush1.bf16.msra.mxu0 %v3107
  %4290 = vmatprep.subr.bf16.mxu0 0
  %4291 = vmatpush1.bf16.msra.mxu0 %v3108
  %4292 = vmatprep.subr.bf16.mxu0 0
  %4293 = vmatpush1.bf16.msra.mxu0 %v3109
  %4294 = vmatprep.subr.bf16.mxu0 0
  %4295 = vmatpush1.bf16.msra.mxu0 %v3110
  %4296 = vmatprep.subr.bf16.mxu0 0
  %4297 = vmatpush1.bf16.msra.mxu0 %v3111
  %4298 = vmatprep.subr.bf16.mxu0 0
  %4299 = vmatpush1.bf16.msra.mxu0 %v3112
  %4300 = vmatprep.subr.bf16.mxu0 0
  %4301 = vmatpush1.bf16.msra.mxu0 %v3113
  %4302 = vmatprep.subr.bf16.mxu0 0
  %4303 = vmatpush1.bf16.msra.mxu0 %v3114
  %4304 = vmatprep.subr.bf16.mxu0 0
  %4305 = vmatpush1.bf16.msra.mxu0 %v3115
  %4306 = vmatprep.subr.bf16.mxu0 0
  %4307 = vmatpush1.bf16.msra.mxu0 %v3116
  %4308 = vmatprep.subr.bf16.mxu0 0
  %4309 = vmatpush1.bf16.msra.mxu0 %v3117
  %4310 = vmatprep.mubr.bf16.mxu0 %v436
  %4311 = vmatmul.mubr.bf16.gmra.mrb[0].mxu0 %v435
  %v4312 = vpop.f32.mrb[0].mxu0
  %v4313 = vadd.f32 %v4248, %v4312
  %v4314 = vpop.f32.mrb[0].mxu0
  %v4315 = vpop.f32.mrb[0].mxu0
  %v4316 = vadd.f32 %v4251, %v4315
  %v4317 = vpop.f32.mrb[0].mxu0
  %4318 = vmatprep.mubr.bf16.mxu0 %v485
  %4319 = vmatmul.mubr.bf16.gmra.mrb[0].mxu0 %v484
  %v4320 = vpop.f32.mrb[0].mxu0
  %v4321 = vadd.f32 %v4256, %v4320
  %v4322 = vpop.f32.mrb[0].mxu0
  %v4323 = vpop.f32.mrb[0].mxu0
  %v4324 = vadd.f32 %v4259, %v4323
  %v4325 = vpop.f32.mrb[0].mxu0
  %4326 = vmatprep.mubr.bf16.mxu0 %v534
  %4327 = vmatmul.mubr.bf16.gmra.mrb[0].mxu0 %v533
  %v4328 = vpop.f32.mrb[0].mxu0
  %v4329 = vadd.f32 %v4264, %v4328
  %v4330 = vpop.f32.mrb[0].mxu0
  %v4331 = vpop.f32.mrb[0].mxu0
  %v4332 = vadd.f32 %v4267, %v4331
  %v4333 = vpop.f32.mrb[0].mxu0
  %4334 = vmatprep.mubr.bf16.mxu0 %v583
  %4335 = vmatmul.mubr.bf16.gmra.mrb[0].mxu0 %v582
  %v4336 = vpop.f32.mrb[0].mxu0
  %v4337 = vadd.f32 %v4272, %v4336
  %v4338 = vpop.f32.mrb[0].mxu0
  %v4339 = vpop.f32.mrb[0].mxu0
  %v4340 = vadd.f32 %v4275, %v4339
  %v4341 = vpop.f32.mrb[0].mxu0
  %4342 = vdwg.mxu0
  %4343 = vmatprep.subr.bf16.mxu0 0
  %4344 = vmatpush1.bf16.msra.mxu0 %v3118
  %4345 = vmatprep.subr.bf16.mxu0 0
  %4346 = vmatpush1.bf16.msra.mxu0 %v3119
  %4347 = vmatprep.subr.bf16.mxu0 0
  %4348 = vmatpush1.bf16.msra.mxu0 %v3120
  %4349 = vmatprep.subr.bf16.mxu0 0
  %4350 = vmatpush1.bf16.msra.mxu0 %v3121
  %4351 = vmatprep.subr.bf16.mxu0 0
  %4352 = vmatpush1.bf16.msra.mxu0 %v3122
  %4353 = vmatprep.subr.bf16.mxu0 0
  %4354 = vmatpush1.bf16.msra.mxu0 %v3123
  %4355 = vmatprep.subr.bf16.mxu0 0
  %4356 = vmatpush1.bf16.msra.mxu0 %v3124
  %4357 = vmatprep.subr.bf16.mxu0 0
  %4358 = vmatpush1.bf16.msra.mxu0 %v3125
  %4359 = vmatprep.subr.bf16.mxu0 0
  %4360 = vmatpush1.bf16.msra.mxu0 %v3126
  %4361 = vmatprep.subr.bf16.mxu0 0
  %4362 = vmatpush1.bf16.msra.mxu0 %v3127
  %4363 = vmatprep.subr.bf16.mxu0 0
  %4364 = vmatpush1.bf16.msra.mxu0 %v3128
  %4365 = vmatprep.subr.bf16.mxu0 0
  %4366 = vmatpush1.bf16.msra.mxu0 %v3129
  %4367 = vmatprep.subr.bf16.mxu0 0
  %4368 = vmatpush1.bf16.msra.mxu0 %v3130
  %4369 = vmatprep.subr.bf16.mxu0 0
  %4370 = vmatpush1.bf16.msra.mxu0 %v3131
  %4371 = vmatprep.subr.bf16.mxu0 0
  %4372 = vmatpush1.bf16.msra.mxu0 %v3132
  %4373 = vmatprep.subr.bf16.mxu0 0
  %4374 = vmatpush1.bf16.msra.mxu0 %v3133
  %4375 = vmatprep.mubr.bf16.mxu0 %v438
  %4376 = vmatmul.mubr.bf16.gmra.mrb[0].mxu0 %v437
  %v4377 = vpop.f32.mrb[0].mxu0
  %v4378 = vadd.f32 %v4313, %v4377
  %v4379 = vpop.f32.mrb[0].mxu0
  %v4380 = vpop.f32.mrb[0].mxu0
  %v4381 = vadd.f32 %v4316, %v4380
  %v4382 = vpop.f32.mrb[0].mxu0
  %4383 = vmatprep.mubr.bf16.mxu0 %v487
  %4384 = vmatmul.mubr.bf16.gmra.mrb[0].mxu0 %v486
  %v4385 = vpop.f32.mrb[0].mxu0
  %v4386 = vadd.f32 %v4321, %v4385
  %v4387 = vpop.f32.mrb[0].mxu0
  %v4388 = vpop.f32.mrb[0].mxu0
  %v4389 = vadd.f32 %v4324, %v4388
  %v4390 = vpop.f32.mrb[0].mxu0
  %4391 = vmatprep.mubr.bf16.mxu0 %v536
  %4392 = vmatmul.mubr.bf16.gmra.mrb[0].mxu0 %v535
  %v4393 = vpop.f32.mrb[0].mxu0
  %v4394 = vadd.f32 %v4329, %v4393
  %v4395 = vpop.f32.mrb[0].mxu0
  %v4396 = vpop.f32.mrb[0].mxu0
  %v4397 = vadd.f32 %v4332, %v4396
  %v4398 = vpop.f32.mrb[0].mxu0
  %4399 = vmatprep.mubr.bf16.mxu0 %v585
  %4400 = vmatmul.mubr.bf16.gmra.mrb[0].mxu0 %v584
  %v4401 = vpop.f32.mrb[0].mxu0
  %v4402 = vadd.f32 %v4337, %v4401
  %v4403 = vpop.f32.mrb[0].mxu0
  %v4404 = vpop.f32.mrb[0].mxu0
  %v4405 = vadd.f32 %v4340, %v4404
  %v4406 = vpop.f32.mrb[0].mxu0
  %4407 = vdwg.mxu0
  %4408 = vmatprep.subr.bf16.mxu0 0
  %4409 = vmatpush1.bf16.msra.mxu0 %v3134
  %4410 = vmatprep.subr.bf16.mxu0 0
  %4411 = vmatpush1.bf16.msra.mxu0 %v3135
  %4412 = vmatprep.subr.bf16.mxu0 0
  %4413 = vmatpush1.bf16.msra.mxu0 %v3136
  %4414 = vmatprep.subr.bf16.mxu0 0
  %4415 = vmatpush1.bf16.msra.mxu0 %v3137
  %4416 = vmatprep.subr.bf16.mxu0 0
  %4417 = vmatpush1.bf16.msra.mxu0 %v3138
  %4418 = vmatprep.subr.bf16.mxu0 0
  %4419 = vmatpush1.bf16.msra.mxu0 %v3139
  %4420 = vmatprep.subr.bf16.mxu0 0
  %4421 = vmatpush1.bf16.msra.mxu0 %v3140
  %4422 = vmatprep.subr.bf16.mxu0 0
  %4423 = vmatpush1.bf16.msra.mxu0 %v3141
  %4424 = vmatprep.subr.bf16.mxu0 0
  %4425 = vmatpush1.bf16.msra.mxu0 %v3142
  %4426 = vmatprep.subr.bf16.mxu0 0
  %4427 = vmatpush1.bf16.msra.mxu0 %v3143
  %4428 = vmatprep.subr.bf16.mxu0 0
  %4429 = vmatpush1.bf16.msra.mxu0 %v3144
  %4430 = vmatprep.subr.bf16.mxu0 0
  %4431 = vmatpush1.bf16.msra.mxu0 %v3145
  %4432 = vmatprep.subr.bf16.mxu0 0
  %4433 = vmatpush1.bf16.msra.mxu0 %v3146
  %4434 = vmatprep.subr.bf16.mxu0 0
  %4435 = vmatpush1.bf16.msra.mxu0 %v3147
  %4436 = vmatprep.subr.bf16.mxu0 0
  %4437 = vmatpush1.bf16.msra.mxu0 %v3148
  %4438 = vmatprep.subr.bf16.mxu0 0
  %4439 = vmatpush1.bf16.msra.mxu0 %v3149
  %4440 = vmatprep.mubr.bf16.mxu0 %v440
  %4441 = vmatmul.mubr.bf16.gmra.mrb[0].mxu0 %v439
  %v4442 = vpop.f32.mrb[0].mxu0
  %v4443 = vadd.f32 %v4378, %v4442
  %v4444 = vpop.f32.mrb[0].mxu0
  %v4445 = vpop.f32.mrb[0].mxu0
  %v4446 = vadd.f32 %v4381, %v4445
  %v4447 = vpop.f32.mrb[0].mxu0
  %4448 = vmatprep.mubr.bf16.mxu0 %v489
  %4449 = vmatmul.mubr.bf16.gmra.mrb[0].mxu0 %v488
  %v4450 = vpop.f32.mrb[0].mxu0
  %v4451 = vadd.f32 %v4386, %v4450
  %v4452 = vpop.f32.mrb[0].mxu0
  %v4453 = vpop.f32.mrb[0].mxu0
  %v4454 = vadd.f32 %v4389, %v4453
  %v4455 = vpop.f32.mrb[0].mxu0
  %4456 = vmatprep.mubr.bf16.mxu0 %v538
  %4457 = vmatmul.mubr.bf16.gmra.mrb[0].mxu0 %v537
  %v4458 = vpop.f32.mrb[0].mxu0
  %v4459 = vadd.f32 %v4394, %v4458
  %v4460 = vpop.f32.mrb[0].mxu0
  %v4461 = vpop.f32.mrb[0].mxu0
  %v4462 = vadd.f32 %v4397, %v4461
  %v4463 = vpop.f32.mrb[0].mxu0
  %4464 = vmatprep.mubr.bf16.mxu0 %v587
  %4465 = vmatmul.mubr.bf16.gmra.mrb[0].mxu0 %v586
  %v4466 = vpop.f32.mrb[0].mxu0
  %v4467 = vadd.f32 %v4402, %v4466
  %v4468 = vpop.f32.mrb[0].mxu0
  %v4469 = vpop.f32.mrb[0].mxu0
  %v4470 = vadd.f32 %v4405, %v4469
  %v4471 = vpop.f32.mrb[0].mxu0
  %4472 = vdwg.mxu0
  %4473 = vmatprep.subr.bf16.mxu0 0
  %4474 = vmatpush1.bf16.msra.mxu0 %v3150
  %4475 = vmatprep.subr.bf16.mxu0 0
  %4476 = vmatpush1.bf16.msra.mxu0 %v3151
  %4477 = vmatprep.subr.bf16.mxu0 0
  %4478 = vmatpush1.bf16.msra.mxu0 %v3152
  %4479 = vmatprep.subr.bf16.mxu0 0
  %4480 = vmatpush1.bf16.msra.mxu0 %v3153
  %4481 = vmatprep.subr.bf16.mxu0 0
  %4482 = vmatpush1.bf16.msra.mxu0 %v3154
  %4483 = vmatprep.subr.bf16.mxu0 0
  %4484 = vmatpush1.bf16.msra.mxu0 %v3155
  %4485 = vmatprep.subr.bf16.mxu0 0
  %4486 = vmatpush1.bf16.msra.mxu0 %v3156
  %4487 = vmatprep.subr.bf16.mxu0 0
  %4488 = vmatpush1.bf16.msra.mxu0 %v3157
  %4489 = vmatprep.subr.bf16.mxu0 0
  %4490 = vmatpush1.bf16.msra.mxu0 %v3158
  %4491 = vmatprep.subr.bf16.mxu0 0
  %4492 = vmatpush1.bf16.msra.mxu0 %v3159
  %4493 = vmatprep.subr.bf16.mxu0 0
  %4494 = vmatpush1.bf16.msra.mxu0 %v3160
  %4495 = vmatprep.subr.bf16.mxu0 0
  %4496 = vmatpush1.bf16.msra.mxu0 %v3161
  %4497 = vmatprep.subr.bf16.mxu0 0
  %4498 = vmatpush1.bf16.msra.mxu0 %v3162
  %4499 = vmatprep.subr.bf16.mxu0 0
  %4500 = vmatpush1.bf16.msra.mxu0 %v3163
  %4501 = vmatprep.subr.bf16.mxu0 0
  %4502 = vmatpush1.bf16.msra.mxu0 %v3164
  %4503 = vmatprep.subr.bf16.mxu0 0
  %4504 = vmatpush1.bf16.msra.mxu0 %v3165
  %4505 = vmatprep.mubr.bf16.mxu0 %v442
  %4506 = vmatmul.mubr.bf16.gmra.mrb[0].mxu0 %v441
  %v4507 = vpop.f32.mrb[0].mxu0
  %v4508 = vadd.f32 %v4443, %v4507
  %v4509 = vpop.f32.mrb[0].mxu0
  %v4510 = vpop.f32.mrb[0].mxu0
  %v4511 = vadd.f32 %v4446, %v4510
  %v4512 = vpop.f32.mrb[0].mxu0
  %4513 = vmatprep.mubr.bf16.mxu0 %v491
  %4514 = vmatmul.mubr.bf16.gmra.mrb[0].mxu0 %v490
  %v4515 = vpop.f32.mrb[0].mxu0
  %v4516 = vadd.f32 %v4451, %v4515
  %v4517 = vpop.f32.mrb[0].mxu0
  %v4518 = vpop.f32.mrb[0].mxu0
  %v4519 = vadd.f32 %v4454, %v4518
  %v4520 = vpop.f32.mrb[0].mxu0
  %4521 = vmatprep.mubr.bf16.mxu0 %v540
  %4522 = vmatmul.mubr.bf16.gmra.mrb[0].mxu0 %v539
  %v4523 = vpop.f32.mrb[0].mxu0
  %v4524 = vadd.f32 %v4459, %v4523
  %v4525 = vpop.f32.mrb[0].mxu0
  %v4526 = vpop.f32.mrb[0].mxu0
  %v4527 = vadd.f32 %v4462, %v4526
  %v4528 = vpop.f32.mrb[0].mxu0
  %4529 = vmatprep.mubr.bf16.mxu0 %v589
  %4530 = vmatmul.mubr.bf16.gmra.mrb[0].mxu0 %v588
  %v4531 = vpop.f32.mrb[0].mxu0
  %v4532 = vadd.f32 %v4467, %v4531
  %v4533 = vpop.f32.mrb[0].mxu0
  %v4534 = vpop.f32.mrb[0].mxu0
  %v4535 = vadd.f32 %v4470, %v4534
  %v4536 = vpop.f32.mrb[0].mxu0
  %4537 = vdwg.mxu0
  %4538 = vmatprep.subr.bf16.mxu0 0
  %4539 = vmatpush1.bf16.msra.mxu0 %v3166
  %4540 = vmatprep.subr.bf16.mxu0 0
  %4541 = vmatpush1.bf16.msra.mxu0 %v3167
  %4542 = vmatprep.subr.bf16.mxu0 0
  %4543 = vmatpush1.bf16.msra.mxu0 %v3168
  %4544 = vmatprep.subr.bf16.mxu0 0
  %4545 = vmatpush1.bf16.msra.mxu0 %v3169
  %4546 = vmatprep.subr.bf16.mxu0 0
  %4547 = vmatpush1.bf16.msra.mxu0 %v3170
  %4548 = vmatprep.subr.bf16.mxu0 0
  %4549 = vmatpush1.bf16.msra.mxu0 %v3171
  %4550 = vmatprep.subr.bf16.mxu0 0
  %4551 = vmatpush1.bf16.msra.mxu0 %v3172
  %4552 = vmatprep.subr.bf16.mxu0 0
  %4553 = vmatpush1.bf16.msra.mxu0 %v3173
  %4554 = vmatprep.subr.bf16.mxu0 0
  %4555 = vmatpush1.bf16.msra.mxu0 %v3174
  %4556 = vmatprep.subr.bf16.mxu0 0
  %4557 = vmatpush1.bf16.msra.mxu0 %v3175
  %4558 = vmatprep.subr.bf16.mxu0 0
  %4559 = vmatpush1.bf16.msra.mxu0 %v3176
  %4560 = vmatprep.subr.bf16.mxu0 0
  %4561 = vmatpush1.bf16.msra.mxu0 %v3177
  %4562 = vmatprep.subr.bf16.mxu0 0
  %4563 = vmatpush1.bf16.msra.mxu0 %v3178
  %4564 = vmatprep.subr.bf16.mxu0 0
  %4565 = vmatpush1.bf16.msra.mxu0 %v3179
  %4566 = vmatprep.subr.bf16.mxu0 0
  %4567 = vmatpush1.bf16.msra.mxu0 %v3180
  %4568 = vmatprep.subr.bf16.mxu0 0
  %4569 = vmatpush1.bf16.msra.mxu0 %v3181
  %4570 = vmatprep.mubr.bf16.mxu0 %v444
  %4571 = vmatmul.mubr.bf16.gmra.mrb[0].mxu0 %v443
  %v4572 = vpop.f32.mrb[0].mxu0
  %v4573 = vadd.f32 %v4508, %v4572
  %v4574 = vpop.f32.mrb[0].mxu0
  %v4575 = vpop.f32.mrb[0].mxu0
  %v4576 = vadd.f32 %v4511, %v4575
  %v4577 = vpop.f32.mrb[0].mxu0
  %4578 = vmatprep.mubr.bf16.mxu0 %v493
  %4579 = vmatmul.mubr.bf16.gmra.mrb[0].mxu0 %v492
  %v4580 = vpop.f32.mrb[0].mxu0
  %v4581 = vadd.f32 %v4516, %v4580
  %v4582 = vpop.f32.mrb[0].mxu0
  %v4583 = vpop.f32.mrb[0].mxu0
  %v4584 = vadd.f32 %v4519, %v4583
  %v4585 = vpop.f32.mrb[0].mxu0
  %4586 = vmatprep.mubr.bf16.mxu0 %v542
  %4587 = vmatmul.mubr.bf16.gmra.mrb[0].mxu0 %v541
  %v4588 = vpop.f32.mrb[0].mxu0
  %v4589 = vadd.f32 %v4524, %v4588
  %v4590 = vpop.f32.mrb[0].mxu0
  %v4591 = vpop.f32.mrb[0].mxu0
  %v4592 = vadd.f32 %v4527, %v4591
  %v4593 = vpop.f32.mrb[0].mxu0
  %4594 = vmatprep.mubr.bf16.mxu0 %v591
  %4595 = vmatmul.mubr.bf16.gmra.mrb[0].mxu0 %v590
  %v4596 = vpop.f32.mrb[0].mxu0
  %v4597 = vadd.f32 %v4532, %v4596
  %v4598 = vpop.f32.mrb[0].mxu0
  %v4599 = vpop.f32.mrb[0].mxu0
  %v4600 = vadd.f32 %v4535, %v4599
  %v4601 = vpop.f32.mrb[0].mxu0
  %4602 = vdwg.mxu0
  %4603 = vmatprep.subr.bf16.mxu0 0
  %4604 = vmatpush1.bf16.msra.mxu0 %v3182
  %4605 = vmatprep.subr.bf16.mxu0 0
  %4606 = vmatpush1.bf16.msra.mxu0 %v3183
  %4607 = vmatprep.subr.bf16.mxu0 0
  %4608 = vmatpush1.bf16.msra.mxu0 %v3184
  %4609 = vmatprep.subr.bf16.mxu0 0
  %4610 = vmatpush1.bf16.msra.mxu0 %v3185
  %4611 = vmatprep.subr.bf16.mxu0 0
  %4612 = vmatpush1.bf16.msra.mxu0 %v3186
  %4613 = vmatprep.subr.bf16.mxu0 0
  %4614 = vmatpush1.bf16.msra.mxu0 %v3187
  %4615 = vmatprep.subr.bf16.mxu0 0
  %4616 = vmatpush1.bf16.msra.mxu0 %v3188
  %4617 = vmatprep.subr.bf16.mxu0 0
  %4618 = vmatpush1.bf16.msra.mxu0 %v3189
  %4619 = vmatprep.subr.bf16.mxu0 0
  %4620 = vmatpush1.bf16.msra.mxu0 %v3190
  %4621 = vmatprep.subr.bf16.mxu0 0
  %4622 = vmatpush1.bf16.msra.mxu0 %v3191
  %4623 = vmatprep.subr.bf16.mxu0 0
  %4624 = vmatpush1.bf16.msra.mxu0 %v3192
  %4625 = vmatprep.subr.bf16.mxu0 0
  %4626 = vmatpush1.bf16.msra.mxu0 %v3193
  %4627 = vmatprep.subr.bf16.mxu0 0
  %4628 = vmatpush1.bf16.msra.mxu0 %v3194
  %4629 = vmatprep.subr.bf16.mxu0 0
  %4630 = vmatpush1.bf16.msra.mxu0 %v3195
  %4631 = vmatprep.subr.bf16.mxu0 0
  %4632 = vmatpush1.bf16.msra.mxu0 %v3196
  %4633 = vmatprep.subr.bf16.mxu0 0
  %4634 = vmatpush1.bf16.msra.mxu0 %v3197
  %4635 = vmatprep.mubr.bf16.mxu0 %v446
  %4636 = vmatmul.mubr.bf16.gmra.mrb[0].mxu0 %v445
  %v4637 = vpop.f32.mrb[0].mxu0
  %v4638 = vadd.f32 %v4573, %v4637
  %v4639 = vpop.f32.mrb[0].mxu0
  %v4640 = vpop.f32.mrb[0].mxu0
  %v4641 = vadd.f32 %v4576, %v4640
  %v4642 = vpop.f32.mrb[0].mxu0
  %4643 = vmatprep.mubr.bf16.mxu0 %v495
  %4644 = vmatmul.mubr.bf16.gmra.mrb[0].mxu0 %v494
  %v4645 = vpop.f32.mrb[0].mxu0
  %v4646 = vadd.f32 %v4581, %v4645
  %v4647 = vpop.f32.mrb[0].mxu0
  %v4648 = vpop.f32.mrb[0].mxu0
  %v4649 = vadd.f32 %v4584, %v4648
  %v4650 = vpop.f32.mrb[0].mxu0
  %4651 = vmatprep.mubr.bf16.mxu0 %v544
  %4652 = vmatmul.mubr.bf16.gmra.mrb[0].mxu0 %v543
  %v4653 = vpop.f32.mrb[0].mxu0
  %v4654 = vadd.f32 %v4589, %v4653
  %v4655 = vpop.f32.mrb[0].mxu0
  %v4656 = vpop.f32.mrb[0].mxu0
  %v4657 = vadd.f32 %v4592, %v4656
  %v4658 = vpop.f32.mrb[0].mxu0
  %4659 = vmatprep.mubr.bf16.mxu0 %v593
  %4660 = vmatmul.mubr.bf16.gmra.mrb[0].mxu0 %v592
  %v4661 = vpop.f32.mrb[0].mxu0
  %v4662 = vadd.f32 %v4597, %v4661
  %v4663 = vpop.f32.mrb[0].mxu0
  %v4664 = vpop.f32.mrb[0].mxu0
  %v4665 = vadd.f32 %v4600, %v4664
  %v4666 = vpop.f32.mrb[0].mxu0
  %4667 = vdwg.mxu0
  %4668 = vmatprep.subr.bf16.mxu0 0
  %4669 = vmatpush1.bf16.msra.mxu0 %v3198
  %4670 = vmatprep.subr.bf16.mxu0 0
  %4671 = vmatpush1.bf16.msra.mxu0 %v3199
  %4672 = vmatprep.subr.bf16.mxu0 0
  %4673 = vmatpush1.bf16.msra.mxu0 %v3200
  %4674 = vmatprep.subr.bf16.mxu0 0
  %4675 = vmatpush1.bf16.msra.mxu0 %v3201
  %4676 = vmatprep.subr.bf16.mxu0 0
  %4677 = vmatpush1.bf16.msra.mxu0 %v3202
  %4678 = vmatprep.subr.bf16.mxu0 0
  %4679 = vmatpush1.bf16.msra.mxu0 %v3203
  %4680 = vmatprep.subr.bf16.mxu0 0
  %4681 = vmatpush1.bf16.msra.mxu0 %v3204
  %4682 = vmatprep.subr.bf16.mxu0 0
  %4683 = vmatpush1.bf16.msra.mxu0 %v3205
  %4684 = vmatprep.subr.bf16.mxu0 0
  %4685 = vmatpush1.bf16.msra.mxu0 %v3206
  %4686 = vmatprep.subr.bf16.mxu0 0
  %4687 = vmatpush1.bf16.msra.mxu0 %v3207
  %4688 = vmatprep.subr.bf16.mxu0 0
  %4689 = vmatpush1.bf16.msra.mxu0 %v3208
  %4690 = vmatprep.subr.bf16.mxu0 0
  %4691 = vmatpush1.bf16.msra.mxu0 %v3209
  %4692 = vmatprep.subr.bf16.mxu0 0
  %4693 = vmatpush1.bf16.msra.mxu0 %v3210
  %4694 = vmatprep.subr.bf16.mxu0 0
  %4695 = vmatpush1.bf16.msra.mxu0 %v3211
  %4696 = vmatprep.subr.bf16.mxu0 0
  %4697 = vmatpush1.bf16.msra.mxu0 %v3212
  %4698 = vmatprep.subr.bf16.mxu0 0
  %4699 = vmatpush1.bf16.msra.mxu0 %v3213
  %4700 = vmatprep.mubr.bf16.mxu0 %v448
  %4701 = vmatmul.mubr.bf16.gmra.mrb[0].mxu0 %v447
  %v4702 = vpop.f32.mrb[0].mxu0
  %v4703 = vadd.f32 %v4638, %v4702
  %v4704 = vpop.f32.mrb[0].mxu0
  %v4705 = vpop.f32.mrb[0].mxu0
  %v4706 = vadd.f32 %v4641, %v4705
  %v4707 = vpop.f32.mrb[0].mxu0
  %4708 = vmatprep.mubr.bf16.mxu0 %v497
  %4709 = vmatmul.mubr.bf16.gmra.mrb[0].mxu0 %v496
  %v4710 = vpop.f32.mrb[0].mxu0
  %v4711 = vadd.f32 %v4646, %v4710
  %v4712 = vpop.f32.mrb[0].mxu0
  %v4713 = vpop.f32.mrb[0].mxu0
  %v4714 = vadd.f32 %v4649, %v4713
  %v4715 = vpop.f32.mrb[0].mxu0
  %4716 = vmatprep.mubr.bf16.mxu0 %v546
  %4717 = vmatmul.mubr.bf16.gmra.mrb[0].mxu0 %v545
  %v4718 = vpop.f32.mrb[0].mxu0
  %v4719 = vadd.f32 %v4654, %v4718
  %v4720 = vpop.f32.mrb[0].mxu0
  %v4721 = vpop.f32.mrb[0].mxu0
  %v4722 = vadd.f32 %v4657, %v4721
  %v4723 = vpop.f32.mrb[0].mxu0
  %4724 = vmatprep.mubr.bf16.mxu0 %v595
  %4725 = vmatmul.mubr.bf16.gmra.mrb[0].mxu0 %v594
  %v4726 = vpop.f32.mrb[0].mxu0
  %v4727 = vadd.f32 %v4662, %v4726
  %v4728 = vpop.f32.mrb[0].mxu0
  %v4729 = vpop.f32.mrb[0].mxu0
  %v4730 = vadd.f32 %v4665, %v4729
  %v4731 = vpop.f32.mrb[0].mxu0
  %4732 = vdwg.mxu0
  %4733 = vmatprep.subr.bf16.mxu0 0
  %4734 = vmatpush1.bf16.msra.mxu0 %v3214
  %4735 = vmatprep.subr.bf16.mxu0 0
  %4736 = vmatpush1.bf16.msra.mxu0 %v3215
  %4737 = vmatprep.subr.bf16.mxu0 0
  %4738 = vmatpush1.bf16.msra.mxu0 %v3216
  %4739 = vmatprep.subr.bf16.mxu0 0
  %4740 = vmatpush1.bf16.msra.mxu0 %v3217
  %4741 = vmatprep.subr.bf16.mxu0 0
  %4742 = vmatpush1.bf16.msra.mxu0 %v3218
  %4743 = vmatprep.subr.bf16.mxu0 0
  %4744 = vmatpush1.bf16.msra.mxu0 %v3219
  %4745 = vmatprep.subr.bf16.mxu0 0
  %4746 = vmatpush1.bf16.msra.mxu0 %v3220
  %4747 = vmatprep.subr.bf16.mxu0 0
  %4748 = vmatpush1.bf16.msra.mxu0 %v3221
  %4749 = vmatprep.subr.bf16.mxu0 0
  %4750 = vmatpush1.bf16.msra.mxu0 %v3222
  %4751 = vmatprep.subr.bf16.mxu0 0
  %4752 = vmatpush1.bf16.msra.mxu0 %v3223
  %4753 = vmatprep.subr.bf16.mxu0 0
  %4754 = vmatpush1.bf16.msra.mxu0 %v3224
  %4755 = vmatprep.subr.bf16.mxu0 0
  %4756 = vmatpush1.bf16.msra.mxu0 %v3225
  %4757 = vmatprep.subr.bf16.mxu0 0
  %4758 = vmatpush1.bf16.msra.mxu0 %v3226
  %4759 = vmatprep.subr.bf16.mxu0 0
  %4760 = vmatpush1.bf16.msra.mxu0 %v3227
  %4761 = vmatprep.subr.bf16.mxu0 0
  %4762 = vmatpush1.bf16.msra.mxu0 %v3228
  %4763 = vmatprep.subr.bf16.mxu0 0
  %4764 = vmatpush1.bf16.msra.mxu0 %v3229
  %4765 = vmatprep.mubr.bf16.mxu0 %v450
  %4766 = vmatmul.mubr.bf16.gmra.mrb[0].mxu0 %v449
  %v4767 = vpop.f32.mrb[0].mxu0
  %v4768 = vadd.f32 %v4703, %v4767
  %v4769 = vpop.f32.mrb[0].mxu0
  %v4770 = vpop.f32.mrb[0].mxu0
  %v4771 = vadd.f32 %v4706, %v4770
  %v4772 = vpop.f32.mrb[0].mxu0
  %4773 = vmatprep.mubr.bf16.mxu0 %v499
  %4774 = vmatmul.mubr.bf16.gmra.mrb[0].mxu0 %v498
  %v4775 = vpop.f32.mrb[0].mxu0
  %v4776 = vadd.f32 %v4711, %v4775
  %v4777 = vpop.f32.mrb[0].mxu0
  %v4778 = vpop.f32.mrb[0].mxu0
  %v4779 = vadd.f32 %v4714, %v4778
  %v4780 = vpop.f32.mrb[0].mxu0
  %4781 = vmatprep.mubr.bf16.mxu0 %v548
  %4782 = vmatmul.mubr.bf16.gmra.mrb[0].mxu0 %v547
  %v4783 = vpop.f32.mrb[0].mxu0
  %v4784 = vadd.f32 %v4719, %v4783
  %v4785 = vpop.f32.mrb[0].mxu0
  %v4786 = vpop.f32.mrb[0].mxu0
  %v4787 = vadd.f32 %v4722, %v4786
  %v4788 = vpop.f32.mrb[0].mxu0
  %4789 = vmatprep.mubr.bf16.mxu0 %v597
  %4790 = vmatmul.mubr.bf16.gmra.mrb[0].mxu0 %v596
  %v4791 = vpop.f32.mrb[0].mxu0
  %v4792 = vadd.f32 %v4727, %v4791
  %v4793 = vpop.f32.mrb[0].mxu0
  %v4794 = vpop.f32.mrb[0].mxu0
  %v4795 = vadd.f32 %v4730, %v4794
  %v4796 = vpop.f32.mrb[0].mxu0
  %4797 = vdwg.mxu0
  %4798 = vmatprep.subr.bf16.mxu0 0
  %4799 = vmatpush1.bf16.msra.mxu0 %v3230
  %4800 = vmatprep.subr.bf16.mxu0 0
  %4801 = vmatpush1.bf16.msra.mxu0 %v3231
  %4802 = vmatprep.subr.bf16.mxu0 0
  %4803 = vmatpush1.bf16.msra.mxu0 %v3232
  %4804 = vmatprep.subr.bf16.mxu0 0
  %4805 = vmatpush1.bf16.msra.mxu0 %v3233
  %4806 = vmatprep.subr.bf16.mxu0 0
  %4807 = vmatpush1.bf16.msra.mxu0 %v3234
  %4808 = vmatprep.subr.bf16.mxu0 0
  %4809 = vmatpush1.bf16.msra.mxu0 %v3235
  %4810 = vmatprep.subr.bf16.mxu0 0
  %4811 = vmatpush1.bf16.msra.mxu0 %v3236
  %4812 = vmatprep.subr.bf16.mxu0 0
  %4813 = vmatpush1.bf16.msra.mxu0 %v3237
  %4814 = vmatprep.subr.bf16.mxu0 0
  %4815 = vmatpush1.bf16.msra.mxu0 %v3238
  %4816 = vmatprep.subr.bf16.mxu0 0
  %4817 = vmatpush1.bf16.msra.mxu0 %v3239
  %4818 = vmatprep.subr.bf16.mxu0 0
  %4819 = vmatpush1.bf16.msra.mxu0 %v3240
  %4820 = vmatprep.subr.bf16.mxu0 0
  %4821 = vmatpush1.bf16.msra.mxu0 %v3241
  %4822 = vmatprep.subr.bf16.mxu0 0
  %4823 = vmatpush1.bf16.msra.mxu0 %v3242
  %4824 = vmatprep.subr.bf16.mxu0 0
  %4825 = vmatpush1.bf16.msra.mxu0 %v3243
  %4826 = vmatprep.subr.bf16.mxu0 0
  %4827 = vmatpush1.bf16.msra.mxu0 %v3244
  %4828 = vmatprep.subr.bf16.mxu0 0
  %4829 = vmatpush1.bf16.msra.mxu0 %v3245
  %4830 = vmatprep.mubr.bf16.mxu0 %v452
  %4831 = vmatmul.mubr.bf16.gmra.mrb[0].mxu0 %v451
  %v4832 = vpop.f32.mrb[0].mxu0
  %v4833 = vadd.f32 %v4768, %v4832
  %v4834 = vpop.f32.mrb[0].mxu0
  %v4835 = vpop.f32.mrb[0].mxu0
  %v4836 = vadd.f32 %v4771, %v4835
  %v4837 = vpop.f32.mrb[0].mxu0
  %4838 = vmatprep.mubr.bf16.mxu0 %v501
  %4839 = vmatmul.mubr.bf16.gmra.mrb[0].mxu0 %v500
  %v4840 = vpop.f32.mrb[0].mxu0
  %v4841 = vadd.f32 %v4776, %v4840
  %v4842 = vpop.f32.mrb[0].mxu0
  %v4843 = vpop.f32.mrb[0].mxu0
  %v4844 = vadd.f32 %v4779, %v4843
  %v4845 = vpop.f32.mrb[0].mxu0
  %4846 = vmatprep.mubr.bf16.mxu0 %v550
  %4847 = vmatmul.mubr.bf16.gmra.mrb[0].mxu0 %v549
  %v4848 = vpop.f32.mrb[0].mxu0
  %v4849 = vadd.f32 %v4784, %v4848
  %v4850 = vpop.f32.mrb[0].mxu0
  %v4851 = vpop.f32.mrb[0].mxu0
  %v4852 = vadd.f32 %v4787, %v4851
  %v4853 = vpop.f32.mrb[0].mxu0
  %4854 = vmatprep.mubr.bf16.mxu0 %v599
  %4855 = vmatmul.mubr.bf16.gmra.mrb[0].mxu0 %v598
  %v4856 = vpop.f32.mrb[0].mxu0
  %v4857 = vadd.f32 %v4792, %v4856
  %v4858 = vpop.f32.mrb[0].mxu0
  %v4859 = vpop.f32.mrb[0].mxu0
  %v4860 = vadd.f32 %v4795, %v4859
  %v4861 = vpop.f32.mrb[0].mxu0
  %4862 = vdwg.mxu0
  %4863 = vmatprep.subr.bf16.mxu0 0
  %4864 = vmatpush1.bf16.msra.mxu0 %v3246
  %4865 = vmatprep.subr.bf16.mxu0 0
  %4866 = vmatpush1.bf16.msra.mxu0 %v3247
  %4867 = vmatprep.subr.bf16.mxu0 0
  %4868 = vmatpush1.bf16.msra.mxu0 %v3248
  %4869 = vmatprep.subr.bf16.mxu0 0
  %4870 = vmatpush1.bf16.msra.mxu0 %v3249
  %4871 = vmatprep.subr.bf16.mxu0 0
  %4872 = vmatpush1.bf16.msra.mxu0 %v3250
  %4873 = vmatprep.subr.bf16.mxu0 0
  %4874 = vmatpush1.bf16.msra.mxu0 %v3251
  %4875 = vmatprep.subr.bf16.mxu0 0
  %4876 = vmatpush1.bf16.msra.mxu0 %v3252
  %4877 = vmatprep.subr.bf16.mxu0 0
  %4878 = vmatpush1.bf16.msra.mxu0 %v3253
  %4879 = vmatprep.subr.bf16.mxu0 0
  %4880 = vmatpush1.bf16.msra.mxu0 %v3254
  %4881 = vmatprep.subr.bf16.mxu0 0
  %4882 = vmatpush1.bf16.msra.mxu0 %v3255
  %4883 = vmatprep.subr.bf16.mxu0 0
  %4884 = vmatpush1.bf16.msra.mxu0 %v3256
  %4885 = vmatprep.subr.bf16.mxu0 0
  %4886 = vmatpush1.bf16.msra.mxu0 %v3257
  %4887 = vmatprep.subr.bf16.mxu0 0
  %4888 = vmatpush1.bf16.msra.mxu0 %v3258
  %4889 = vmatprep.subr.bf16.mxu0 0
  %4890 = vmatpush1.bf16.msra.mxu0 %v3259
  %4891 = vmatprep.subr.bf16.mxu0 0
  %4892 = vmatpush1.bf16.msra.mxu0 %v3260
  %4893 = vmatprep.subr.bf16.mxu0 0
  %4894 = vmatpush1.bf16.msra.mxu0 %v3261
  %4895 = vmatprep.mubr.bf16.mxu0 %v454
  %4896 = vmatmul.mubr.bf16.gmra.mrb[0].mxu0 %v453
  %v4897 = vpop.f32.mrb[0].mxu0
  %v4898 = vadd.f32 %v4833, %v4897
  %v4899 = vpop.f32.mrb[0].mxu0
  %v4900 = vpop.f32.mrb[0].mxu0
  %v4901 = vadd.f32 %v4836, %v4900
  %v4902 = vpop.f32.mrb[0].mxu0
  %4903 = vmatprep.mubr.bf16.mxu0 %v503
  %4904 = vmatmul.mubr.bf16.gmra.mrb[0].mxu0 %v502
  %v4905 = vpop.f32.mrb[0].mxu0
  %v4906 = vadd.f32 %v4841, %v4905
  %v4907 = vpop.f32.mrb[0].mxu0
  %v4908 = vpop.f32.mrb[0].mxu0
  %v4909 = vadd.f32 %v4844, %v4908
  %v4910 = vpop.f32.mrb[0].mxu0
  %4911 = vmatprep.mubr.bf16.mxu0 %v552
  %4912 = vmatmul.mubr.bf16.gmra.mrb[0].mxu0 %v551
  %v4913 = vpop.f32.mrb[0].mxu0
  %v4914 = vadd.f32 %v4849, %v4913
  %v4915 = vpop.f32.mrb[0].mxu0
  %v4916 = vpop.f32.mrb[0].mxu0
  %v4917 = vadd.f32 %v4852, %v4916
  %v4918 = vpop.f32.mrb[0].mxu0
  %4919 = vmatprep.mubr.bf16.mxu0 %v601
  %4920 = vmatmul.mubr.bf16.gmra.mrb[0].mxu0 %v600
  %v4921 = vpop.f32.mrb[0].mxu0
  %v4922 = vadd.f32 %v4857, %v4921
  %v4923 = vpop.f32.mrb[0].mxu0
  %v4924 = vpop.f32.mrb[0].mxu0
  %v4925 = vadd.f32 %v4860, %v4924
  %v4926 = vpop.f32.mrb[0].mxu0
  %4927 = vdwg.mxu0
  %4928 = vmatprep.subr.bf16.mxu0 0
  %4929 = vmatpush1.bf16.msra.mxu0 %v3262
  %4930 = vmatprep.subr.bf16.mxu0 0
  %4931 = vmatpush1.bf16.msra.mxu0 %v3263
  %4932 = vmatprep.subr.bf16.mxu0 0
  %4933 = vmatpush1.bf16.msra.mxu0 %v3264
  %4934 = vmatprep.subr.bf16.mxu0 0
  %4935 = vmatpush1.bf16.msra.mxu0 %v3265
  %4936 = vmatprep.subr.bf16.mxu0 0
  %4937 = vmatpush1.bf16.msra.mxu0 %v3266
  %4938 = vmatprep.subr.bf16.mxu0 0
  %4939 = vmatpush1.bf16.msra.mxu0 %v3267
  %4940 = vmatprep.subr.bf16.mxu0 0
  %4941 = vmatpush1.bf16.msra.mxu0 %v3268
  %4942 = vmatprep.subr.bf16.mxu0 0
  %4943 = vmatpush1.bf16.msra.mxu0 %v3269
  %4944 = vmatprep.subr.bf16.mxu0 0
  %4945 = vmatpush1.bf16.msra.mxu0 %v3270
  %4946 = vmatprep.subr.bf16.mxu0 0
  %4947 = vmatpush1.bf16.msra.mxu0 %v3271
  %4948 = vmatprep.subr.bf16.mxu0 0
  %4949 = vmatpush1.bf16.msra.mxu0 %v3272
  %4950 = vmatprep.subr.bf16.mxu0 0
  %4951 = vmatpush1.bf16.msra.mxu0 %v3273
  %4952 = vmatprep.subr.bf16.mxu0 0
  %4953 = vmatpush1.bf16.msra.mxu0 %v3274
  %4954 = vmatprep.subr.bf16.mxu0 0
  %4955 = vmatpush1.bf16.msra.mxu0 %v3275
  %4956 = vmatprep.subr.bf16.mxu0 0
  %4957 = vmatpush1.bf16.msra.mxu0 %v3276
  %4958 = vmatprep.subr.bf16.mxu0 0
  %4959 = vmatpush1.bf16.msra.mxu0 %v3277
  %4960 = vmatprep.mubr.bf16.mxu0 %v456
  %4961 = vmatmul.mubr.bf16.gmra.mrb[0].mxu0 %v455
  %v4962 = vpop.f32.mrb[0].mxu0
  %v4963 = vadd.f32 %v4898, %v4962
  %v4964 = vpop.f32.mrb[0].mxu0
  %v4965 = vpop.f32.mrb[0].mxu0
  %v4966 = vadd.f32 %v4901, %v4965
  %v4967 = vpop.f32.mrb[0].mxu0
  %4968 = vmatprep.mubr.bf16.mxu0 %v505
  %4969 = vmatmul.mubr.bf16.gmra.mrb[0].mxu0 %v504
  %v4970 = vpop.f32.mrb[0].mxu0
  %v4971 = vadd.f32 %v4906, %v4970
  %v4972 = vpop.f32.mrb[0].mxu0
  %v4973 = vpop.f32.mrb[0].mxu0
  %v4974 = vadd.f32 %v4909, %v4973
  %v4975 = vpop.f32.mrb[0].mxu0
  %4976 = vmatprep.mubr.bf16.mxu0 %v554
  %4977 = vmatmul.mubr.bf16.gmra.mrb[0].mxu0 %v553
  %v4978 = vpop.f32.mrb[0].mxu0
  %v4979 = vadd.f32 %v4914, %v4978
  %v4980 = vpop.f32.mrb[0].mxu0
  %v4981 = vpop.f32.mrb[0].mxu0
  %v4982 = vadd.f32 %v4917, %v4981
  %v4983 = vpop.f32.mrb[0].mxu0
  %4984 = vmatprep.mubr.bf16.mxu0 %v603
  %4985 = vmatmul.mubr.bf16.gmra.mrb[0].mxu0 %v602
  %v4986 = vpop.f32.mrb[0].mxu0
  %v4987 = vadd.f32 %v4922, %v4986
  %v4988 = vpop.f32.mrb[0].mxu0
  %v4989 = vpop.f32.mrb[0].mxu0
  %v4990 = vadd.f32 %v4925, %v4989
  %v4991 = vpop.f32.mrb[0].mxu0
  %4992 = vdwg.mxu0
  %4993 = vmatprep.subr.bf16.mxu0 0
  %4994 = vmatpush1.bf16.msra.mxu0 %v3278
  %4995 = vmatprep.subr.bf16.mxu0 0
  %4996 = vmatpush1.bf16.msra.mxu0 %v3279
  %4997 = vmatprep.subr.bf16.mxu0 0
  %4998 = vmatpush1.bf16.msra.mxu0 %v3280
  %4999 = vmatprep.subr.bf16.mxu0 0
  %5000 = vmatpush1.bf16.msra.mxu0 %v3281
  %5001 = vmatprep.subr.bf16.mxu0 0
  %5002 = vmatpush1.bf16.msra.mxu0 %v3282
  %5003 = vmatprep.subr.bf16.mxu0 0
  %5004 = vmatpush1.bf16.msra.mxu0 %v3283
  %5005 = vmatprep.subr.bf16.mxu0 0
  %5006 = vmatpush1.bf16.msra.mxu0 %v3284
  %5007 = vmatprep.subr.bf16.mxu0 0
  %5008 = vmatpush1.bf16.msra.mxu0 %v3285
  %5009 = vmatprep.subr.bf16.mxu0 0
  %5010 = vmatpush1.bf16.msra.mxu0 %v3286
  %5011 = vmatprep.subr.bf16.mxu0 0
  %5012 = vmatpush1.bf16.msra.mxu0 %v3287
  %5013 = vmatprep.subr.bf16.mxu0 0
  %5014 = vmatpush1.bf16.msra.mxu0 %v3288
  %5015 = vmatprep.subr.bf16.mxu0 0
  %5016 = vmatpush1.bf16.msra.mxu0 %v3289
  %5017 = vmatprep.subr.bf16.mxu0 0
  %5018 = vmatpush1.bf16.msra.mxu0 %v3290
  %5019 = vmatprep.subr.bf16.mxu0 0
  %5020 = vmatpush1.bf16.msra.mxu0 %v3291
  %5021 = vmatprep.subr.bf16.mxu0 0
  %5022 = vmatpush1.bf16.msra.mxu0 %v3292
  %5023 = vmatprep.subr.bf16.mxu0 0
  %5024 = vmatpush1.bf16.msra.mxu0 %v3293
  %5025 = vmatprep.mubr.bf16.mxu0 %v458
  %5026 = vmatmul.mubr.bf16.gmra.mrb[0].mxu0 %v457
  %v5027 = vpop.f32.mrb[0].mxu0
  %v5028 = vadd.f32 %v4963, %v5027
  %v5029 = vpop.f32.mrb[0].mxu0
  %v5030 = vpop.f32.mrb[0].mxu0
  %v5031 = vadd.f32 %v4966, %v5030
  %v5032 = vpop.f32.mrb[0].mxu0
  %5033 = vmatprep.mubr.bf16.mxu0 %v507
  %5034 = vmatmul.mubr.bf16.gmra.mrb[0].mxu0 %v506
  %v5035 = vpop.f32.mrb[0].mxu0
  %v5036 = vadd.f32 %v4971, %v5035
  %v5037 = vpop.f32.mrb[0].mxu0
  %v5038 = vpop.f32.mrb[0].mxu0
  %v5039 = vadd.f32 %v4974, %v5038
  %v5040 = vpop.f32.mrb[0].mxu0
  %5041 = vmatprep.mubr.bf16.mxu0 %v556
  %5042 = vmatmul.mubr.bf16.gmra.mrb[0].mxu0 %v555
  %v5043 = vpop.f32.mrb[0].mxu0
  %v5044 = vadd.f32 %v4979, %v5043
  %v5045 = vpop.f32.mrb[0].mxu0
  %v5046 = vpop.f32.mrb[0].mxu0
  %v5047 = vadd.f32 %v4982, %v5046
  %v5048 = vpop.f32.mrb[0].mxu0
  %5049 = vmatprep.mubr.bf16.mxu0 %v605
  %5050 = vmatmul.mubr.bf16.gmra.mrb[0].mxu0 %v604
  %v5051 = vpop.f32.mrb[0].mxu0
  %v5052 = vadd.f32 %v4987, %v5051
  %v5053 = vpop.f32.mrb[0].mxu0
  %v5054 = vpop.f32.mrb[0].mxu0
  %v5055 = vadd.f32 %v4990, %v5054
  %v5056 = vpop.f32.mrb[0].mxu0
  %5057 = vdwg.mxu0
  %5058 = vmatprep.subr.bf16.mxu0 0
  %5059 = vmatpush1.bf16.msra.mxu0 %v3294
  %5060 = vmatprep.subr.bf16.mxu0 0
  %5061 = vmatpush1.bf16.msra.mxu0 %v3295
  %5062 = vmatprep.subr.bf16.mxu0 0
  %5063 = vmatpush1.bf16.msra.mxu0 %v3296
  %5064 = vmatprep.subr.bf16.mxu0 0
  %5065 = vmatpush1.bf16.msra.mxu0 %v3297
  %5066 = vmatprep.subr.bf16.mxu0 0
  %5067 = vmatpush1.bf16.msra.mxu0 %v3298
  %5068 = vmatprep.subr.bf16.mxu0 0
  %5069 = vmatpush1.bf16.msra.mxu0 %v3299
  %5070 = vmatprep.subr.bf16.mxu0 0
  %5071 = vmatpush1.bf16.msra.mxu0 %v3300
  %5072 = vmatprep.subr.bf16.mxu0 0
  %5073 = vmatpush1.bf16.msra.mxu0 %v3301
  %5074 = vmatprep.subr.bf16.mxu0 0
  %5075 = vmatpush1.bf16.msra.mxu0 %v3302
  %5076 = vmatprep.subr.bf16.mxu0 0
  %5077 = vmatpush1.bf16.msra.mxu0 %v3303
  %5078 = vmatprep.subr.bf16.mxu0 0
  %5079 = vmatpush1.bf16.msra.mxu0 %v3304
  %5080 = vmatprep.subr.bf16.mxu0 0
  %5081 = vmatpush1.bf16.msra.mxu0 %v3305
  %5082 = vmatprep.subr.bf16.mxu0 0
  %5083 = vmatpush1.bf16.msra.mxu0 %v3306
  %5084 = vmatprep.subr.bf16.mxu0 0
  %5085 = vmatpush1.bf16.msra.mxu0 %v3307
  %5086 = vmatprep.subr.bf16.mxu0 0
  %5087 = vmatpush1.bf16.msra.mxu0 %v3308
  %5088 = vmatprep.subr.bf16.mxu0 0
  %5089 = vmatpush1.bf16.msra.mxu0 %v3309
  %5090 = vmatprep.mubr.bf16.mxu0 %v460
  %5091 = vmatmul.mubr.bf16.gmra.mrb[0].mxu0 %v459
  %v5092 = vpop.f32.mrb[0].mxu0
  %v5093 = vadd.f32 %v5028, %v5092
  %v5094 = vpop.f32.mrb[0].mxu0
  %v5095 = vpop.f32.mrb[0].mxu0
  %v5096 = vadd.f32 %v5031, %v5095
  %v5097 = vpop.f32.mrb[0].mxu0
  %5098 = vmatprep.mubr.bf16.mxu0 %v509
  %5099 = vmatmul.mubr.bf16.gmra.mrb[0].mxu0 %v508
  %v5100 = vpop.f32.mrb[0].mxu0
  %v5101 = vadd.f32 %v5036, %v5100
  %v5102 = vpop.f32.mrb[0].mxu0
  %v5103 = vpop.f32.mrb[0].mxu0
  %v5104 = vadd.f32 %v5039, %v5103
  %v5105 = vpop.f32.mrb[0].mxu0
  %5106 = vmatprep.mubr.bf16.mxu0 %v558
  %5107 = vmatmul.mubr.bf16.gmra.mrb[0].mxu0 %v557
  %v5108 = vpop.f32.mrb[0].mxu0
  %v5109 = vadd.f32 %v5044, %v5108
  %v5110 = vpop.f32.mrb[0].mxu0
  %v5111 = vpop.f32.mrb[0].mxu0
  %v5112 = vadd.f32 %v5047, %v5111
  %v5113 = vpop.f32.mrb[0].mxu0
  %5114 = vmatprep.mubr.bf16.mxu0 %v607
  %5115 = vmatmul.mubr.bf16.gmra.mrb[0].mxu0 %v606
  %v5116 = vpop.f32.mrb[0].mxu0
  %v5117 = vadd.f32 %v5052, %v5116
  %v5118 = vpop.f32.mrb[0].mxu0
  %v5119 = vpop.f32.mrb[0].mxu0
  %v5120 = vadd.f32 %v5055, %v5119
  %v5121 = vpop.f32.mrb[0].mxu0
  %5122 = vdwg.mxu0
  %5123 = vmatprep.subr.bf16.mxu0 0
  %5124 = vmatpush1.bf16.msra.mxu0 %v3310
  %5125 = vmatprep.subr.bf16.mxu0 0
  %5126 = vmatpush1.bf16.msra.mxu0 %v3311
  %5127 = vmatprep.subr.bf16.mxu0 0
  %5128 = vmatpush1.bf16.msra.mxu0 %v3312
  %5129 = vmatprep.subr.bf16.mxu0 0
  %5130 = vmatpush1.bf16.msra.mxu0 %v3313
  %5131 = vmatprep.subr.bf16.mxu0 0
  %5132 = vmatpush1.bf16.msra.mxu0 %v3314
  %5133 = vmatprep.subr.bf16.mxu0 0
  %5134 = vmatpush1.bf16.msra.mxu0 %v3315
  %5135 = vmatprep.subr.bf16.mxu0 0
  %5136 = vmatpush1.bf16.msra.mxu0 %v3316
  %5137 = vmatprep.subr.bf16.mxu0 0
  %5138 = vmatpush1.bf16.msra.mxu0 %v3317
  %5139 = vmatprep.subr.bf16.mxu0 0
  %5140 = vmatpush1.bf16.msra.mxu0 %v3318
  %5141 = vmatprep.subr.bf16.mxu0 0
  %5142 = vmatpush1.bf16.msra.mxu0 %v3319
  %5143 = vmatprep.subr.bf16.mxu0 0
  %5144 = vmatpush1.bf16.msra.mxu0 %v3320
  %5145 = vmatprep.subr.bf16.mxu0 0
  %5146 = vmatpush1.bf16.msra.mxu0 %v3321
  %5147 = vmatprep.subr.bf16.mxu0 0
  %5148 = vmatpush1.bf16.msra.mxu0 %v3322
  %5149 = vmatprep.subr.bf16.mxu0 0
  %5150 = vmatpush1.bf16.msra.mxu0 %v3323
  %5151 = vmatprep.subr.bf16.mxu0 0
  %5152 = vmatpush1.bf16.msra.mxu0 %v3324
  %5153 = vmatprep.subr.bf16.mxu0 0
  %5154 = vmatpush1.bf16.msra.mxu0 %v3325
  %5155 = vmatprep.mubr.bf16.mxu0 %v462
  %5156 = vmatmul.mubr.bf16.gmra.mrb[0].mxu0 %v461
  %v5157 = vpop.f32.mrb[0].mxu0
  %v5158 = vadd.f32 %v5093, %v5157
  %v5159 = vpop.f32.mrb[0].mxu0
  %v5160 = vpop.f32.mrb[0].mxu0
  %v5161 = vadd.f32 %v5096, %v5160
  %v5162 = vpop.f32.mrb[0].mxu0
  %5163 = vmatprep.mubr.bf16.mxu0 %v511
  %5164 = vmatmul.mubr.bf16.gmra.mrb[0].mxu0 %v510
  %v5165 = vpop.f32.mrb[0].mxu0
  %v5166 = vadd.f32 %v5101, %v5165
  %v5167 = vpop.f32.mrb[0].mxu0
  %v5168 = vpop.f32.mrb[0].mxu0
  %v5169 = vadd.f32 %v5104, %v5168
  %v5170 = vpop.f32.mrb[0].mxu0
  %5171 = vmatprep.mubr.bf16.mxu0 %v560
  %5172 = vmatmul.mubr.bf16.gmra.mrb[0].mxu0 %v559
  %v5173 = vpop.f32.mrb[0].mxu0
  %v5174 = vadd.f32 %v5109, %v5173
  %v5175 = vpop.f32.mrb[0].mxu0
  %v5176 = vpop.f32.mrb[0].mxu0
  %v5177 = vadd.f32 %v5112, %v5176
  %v5178 = vpop.f32.mrb[0].mxu0
  %5179 = vmatprep.mubr.bf16.mxu0 %v609
  %5180 = vmatmul.mubr.bf16.gmra.mrb[0].mxu0 %v608
  %v5181 = vpop.f32.mrb[0].mxu0
  %v5182 = vadd.f32 %v5117, %v5181
  %v5183 = vpop.f32.mrb[0].mxu0
  %v5184 = vpop.f32.mrb[0].mxu0
  %v5185 = vadd.f32 %v5120, %v5184
  %v5186 = vpop.f32.mrb[0].mxu0
  %5187 = vdwg.mxu0
  %5188 = vmatprep.subr.bf16.mxu0 0
  %5189 = vmatpush1.bf16.msra.mxu0 %v3326
  %5190 = vmatprep.subr.bf16.mxu0 0
  %5191 = vmatpush1.bf16.msra.mxu0 %v3327
  %5192 = vmatprep.subr.bf16.mxu0 0
  %5193 = vmatpush1.bf16.msra.mxu0 %v3328
  %5194 = vmatprep.subr.bf16.mxu0 0
  %5195 = vmatpush1.bf16.msra.mxu0 %v3329
  %5196 = vmatprep.subr.bf16.mxu0 0
  %5197 = vmatpush1.bf16.msra.mxu0 %v3330
  %5198 = vmatprep.subr.bf16.mxu0 0
  %5199 = vmatpush1.bf16.msra.mxu0 %v3331
  %5200 = vmatprep.subr.bf16.mxu0 0
  %5201 = vmatpush1.bf16.msra.mxu0 %v3332
  %5202 = vmatprep.subr.bf16.mxu0 0
  %5203 = vmatpush1.bf16.msra.mxu0 %v3333
  %5204 = vmatprep.subr.bf16.mxu0 0
  %5205 = vmatpush1.bf16.msra.mxu0 %v3334
  %5206 = vmatprep.subr.bf16.mxu0 0
  %5207 = vmatpush1.bf16.msra.mxu0 %v3335
  %5208 = vmatprep.subr.bf16.mxu0 0
  %5209 = vmatpush1.bf16.msra.mxu0 %v3336
  %5210 = vmatprep.subr.bf16.mxu0 0
  %5211 = vmatpush1.bf16.msra.mxu0 %v3337
  %5212 = vmatprep.subr.bf16.mxu0 0
  %5213 = vmatpush1.bf16.msra.mxu0 %v3338
  %5214 = vmatprep.subr.bf16.mxu0 0
  %5215 = vmatpush1.bf16.msra.mxu0 %v3339
  %5216 = vmatprep.subr.bf16.mxu0 0
  %5217 = vmatpush1.bf16.msra.mxu0 %v3340
  %5218 = vmatprep.subr.bf16.mxu0 0
  %5219 = vmatpush1.bf16.msra.mxu0 %v3341
  %5220 = vmatprep.mubr.bf16.mxu0 %v464
  %5221 = vmatmul.mubr.bf16.gmra.mrb[0].mxu0 %v463
  %v5222 = vpop.f32.mrb[0].mxu0
  %v5223 = vadd.f32 %v5158, %v5222
  %v5224 = vpop.f32.mrb[0].mxu0
  %v5225 = vpop.f32.mrb[0].mxu0
  %v5226 = vadd.f32 %v5161, %v5225
  %v5227 = vpop.f32.mrb[0].mxu0
  %5228 = vmatprep.mubr.bf16.mxu0 %v513
  %5229 = vmatmul.mubr.bf16.gmra.mrb[0].mxu0 %v512
  %v5230 = vpop.f32.mrb[0].mxu0
  %v5231 = vadd.f32 %v5166, %v5230
  %v5232 = vpop.f32.mrb[0].mxu0
  %v5233 = vpop.f32.mrb[0].mxu0
  %v5234 = vadd.f32 %v5169, %v5233
  %v5235 = vpop.f32.mrb[0].mxu0
  %5236 = vmatprep.mubr.bf16.mxu0 %v562
  %5237 = vmatmul.mubr.bf16.gmra.mrb[0].mxu0 %v561
  %v5238 = vpop.f32.mrb[0].mxu0
  %v5239 = vadd.f32 %v5174, %v5238
  %v5240 = vpop.f32.mrb[0].mxu0
  %v5241 = vpop.f32.mrb[0].mxu0
  %v5242 = vadd.f32 %v5177, %v5241
  %v5243 = vpop.f32.mrb[0].mxu0
  %5244 = vmatprep.mubr.bf16.mxu0 %v611
  %5245 = vmatmul.mubr.bf16.gmra.mrb[0].mxu0 %v610
  %v5246 = vpop.f32.mrb[0].mxu0
  %v5247 = vadd.f32 %v5182, %v5246
  %v5248 = vpop.f32.mrb[0].mxu0
  %v5249 = vpop.f32.mrb[0].mxu0
  %v5250 = vadd.f32 %v5185, %v5249
  %v5251 = vpop.f32.mrb[0].mxu0
  %5252 = vdwg.mxu0
  %5253 = vmatprep.subr.bf16.mxu0 0
  %5254 = vmatpush1.bf16.msra.mxu0 %v3342
  %5255 = vmatprep.subr.bf16.mxu0 0
  %5256 = vmatpush1.bf16.msra.mxu0 %v3343
  %5257 = vmatprep.subr.bf16.mxu0 0
  %5258 = vmatpush1.bf16.msra.mxu0 %v3344
  %5259 = vmatprep.subr.bf16.mxu0 0
  %5260 = vmatpush1.bf16.msra.mxu0 %v3345
  %5261 = vmatprep.subr.bf16.mxu0 0
  %5262 = vmatpush1.bf16.msra.mxu0 %v3346
  %5263 = vmatprep.subr.bf16.mxu0 0
  %5264 = vmatpush1.bf16.msra.mxu0 %v3347
  %5265 = vmatprep.subr.bf16.mxu0 0
  %5266 = vmatpush1.bf16.msra.mxu0 %v3348
  %5267 = vmatprep.subr.bf16.mxu0 0
  %5268 = vmatpush1.bf16.msra.mxu0 %v3349
  %5269 = vmatprep.subr.bf16.mxu0 0
  %5270 = vmatpush1.bf16.msra.mxu0 %v3350
  %5271 = vmatprep.subr.bf16.mxu0 0
  %5272 = vmatpush1.bf16.msra.mxu0 %v3351
  %5273 = vmatprep.subr.bf16.mxu0 0
  %5274 = vmatpush1.bf16.msra.mxu0 %v3352
  %5275 = vmatprep.subr.bf16.mxu0 0
  %5276 = vmatpush1.bf16.msra.mxu0 %v3353
  %5277 = vmatprep.subr.bf16.mxu0 0
  %5278 = vmatpush1.bf16.msra.mxu0 %v3354
  %5279 = vmatprep.subr.bf16.mxu0 0
  %5280 = vmatpush1.bf16.msra.mxu0 %v3355
  %5281 = vmatprep.subr.bf16.mxu0 0
  %5282 = vmatpush1.bf16.msra.mxu0 %v3356
  %5283 = vmatprep.subr.bf16.mxu0 0
  %5284 = vmatpush1.bf16.msra.mxu0 %v3357
  %5285 = vmatprep.mubr.bf16.mxu0 %v466
  %5286 = vmatmul.mubr.bf16.gmra.mrb[0].mxu0 %v465
  %v5287 = vpop.f32.mrb[0].mxu0
  %v5288 = vadd.f32 %v5223, %v5287
  %v5289 = vpop.f32.mrb[0].mxu0
  %v5290 = vpop.f32.mrb[0].mxu0
  %v5291 = vadd.f32 %v5226, %v5290
  %v5292 = vpop.f32.mrb[0].mxu0
  %5293 = vmatprep.mubr.bf16.mxu0 %v515
  %5294 = vmatmul.mubr.bf16.gmra.mrb[0].mxu0 %v514
  %v5295 = vpop.f32.mrb[0].mxu0
  %v5296 = vadd.f32 %v5231, %v5295
  %v5297 = vpop.f32.mrb[0].mxu0
  %v5298 = vpop.f32.mrb[0].mxu0
  %v5299 = vadd.f32 %v5234, %v5298
  %v5300 = vpop.f32.mrb[0].mxu0
  %5301 = vmatprep.mubr.bf16.mxu0 %v564
  %5302 = vmatmul.mubr.bf16.gmra.mrb[0].mxu0 %v563
  %v5303 = vpop.f32.mrb[0].mxu0
  %v5304 = vadd.f32 %v5239, %v5303
  %v5305 = vpop.f32.mrb[0].mxu0
  %v5306 = vpop.f32.mrb[0].mxu0
  %v5307 = vadd.f32 %v5242, %v5306
  %v5308 = vpop.f32.mrb[0].mxu0
  %5309 = vmatprep.mubr.bf16.mxu0 %v613
  %5310 = vmatmul.mubr.bf16.gmra.mrb[0].mxu0 %v612
  %v5311 = vpop.f32.mrb[0].mxu0
  %v5312 = vadd.f32 %v5247, %v5311
  %v5313 = vpop.f32.mrb[0].mxu0
  %v5314 = vpop.f32.mrb[0].mxu0
  %v5315 = vadd.f32 %v5250, %v5314
  %v5316 = vpop.f32.mrb[0].mxu0
  %5317 = vdwg.mxu0
  %5318 = vmatprep.subr.bf16.mxu0 0
  %5319 = vmatpush1.bf16.msra.mxu0 %v3358
  %5320 = vmatprep.subr.bf16.mxu0 0
  %5321 = vmatpush1.bf16.msra.mxu0 %v3359
  %5322 = vmatprep.subr.bf16.mxu0 0
  %5323 = vmatpush1.bf16.msra.mxu0 %v3360
  %5324 = vmatprep.subr.bf16.mxu0 0
  %5325 = vmatpush1.bf16.msra.mxu0 %v3361
  %5326 = vmatprep.subr.bf16.mxu0 0
  %5327 = vmatpush1.bf16.msra.mxu0 %v3362
  %5328 = vmatprep.subr.bf16.mxu0 0
  %5329 = vmatpush1.bf16.msra.mxu0 %v3363
  %5330 = vmatprep.subr.bf16.mxu0 0
  %5331 = vmatpush1.bf16.msra.mxu0 %v3364
  %5332 = vmatprep.subr.bf16.mxu0 0
  %5333 = vmatpush1.bf16.msra.mxu0 %v3365
  %5334 = vmatprep.subr.bf16.mxu0 0
  %5335 = vmatpush1.bf16.msra.mxu0 0
  %5336 = vmatprep.subr.bf16.mxu0 0
  %5337 = vmatpush1.bf16.msra.mxu0 0
  %5338 = vmatprep.subr.bf16.mxu0 0
  %5339 = vmatpush1.bf16.msra.mxu0 0
  %5340 = vmatprep.subr.bf16.mxu0 0
  %5341 = vmatpush1.bf16.msra.mxu0 0
  %5342 = vmatprep.subr.bf16.mxu0 0
  %5343 = vmatpush1.bf16.msra.mxu0 0
  %5344 = vmatprep.subr.bf16.mxu0 0
  %5345 = vmatpush1.bf16.msra.mxu0 0
  %5346 = vmatprep.subr.bf16.mxu0 0
  %5347 = vmatpush1.bf16.msra.mxu0 0
  %5348 = vmatprep.subr.bf16.mxu0 0
  %5349 = vmatpush1.bf16.msra.mxu0 0
  %5350 = vmatprep.mubr.bf16.mxu0 0
  %5351 = vmatmul.mubr.bf16.gmra.mrb[0].mxu0 %v467
  %v5352 = vpop.f32.mrb[0].mxu0
  %v5353 = vadd.f32 %v5288, %v5352
  %v5354 = vpop.f32.mrb[0].mxu0
  %v5355 = vpop.f32.mrb[0].mxu0
  %v5356 = vadd.f32 %v5291, %v5355
  %v5357 = vpop.f32.mrb[0].mxu0
  %5358 = vmatprep.mubr.bf16.mxu0 0
  %5359 = vmatmul.mubr.bf16.gmra.mrb[0].mxu0 %v516
  %v5360 = vpop.f32.mrb[0].mxu0
  %v5361 = vadd.f32 %v5296, %v5360
  %v5362 = vpop.f32.mrb[0].mxu0
  %v5363 = vpop.f32.mrb[0].mxu0
  %v5364 = vadd.f32 %v5299, %v5363
  %v5365 = vpop.f32.mrb[0].mxu0
  %5366 = vmatprep.mubr.bf16.mxu0 0
  %5367 = vmatmul.mubr.bf16.gmra.mrb[0].mxu0 %v565
  %v5368 = vpop.f32.mrb[0].mxu0
  %v5369 = vadd.f32 %v5304, %v5368
  %v5370 = vpop.f32.mrb[0].mxu0
  %v5371 = vpop.f32.mrb[0].mxu0
  %v5372 = vadd.f32 %v5307, %v5371
  %v5373 = vpop.f32.mrb[0].mxu0
  %5374 = vmatprep.mubr.bf16.mxu0 0
  %5375 = vmatmul.mubr.bf16.gmra.mrb[0].mxu0 %v614
  %v5376 = vpop.f32.mrb[0].mxu0
  %v5377 = vadd.f32 %v5312, %v5376
  %v5378 = vpop.f32.mrb[0].mxu0
  %v5379 = vpop.f32.mrb[0].mxu0
  %v5380 = vadd.f32 %v5315, %v5379
  %v5381 = vpop.f32.mrb[0].mxu0
  %5382 = vdwg.mxu0
  %v5383 = vmax.f32 %v5353, 0.0
  %v5384 = vmax.f32 %v5356, 0.0
  %v5385 = vmax.f32 %v5361, 0.0
  %v5386 = vmax.f32 %v5364, 0.0
  %v5387 = vmax.f32 %v5369, 0.0
  %v5388 = vmax.f32 %v5372, 0.0
  %v5389 = vmax.f32 %v5377, 0.0
  %v5390 = vmax.f32 %v5380, 0.0
  %v5391 = vpack.c.bf16 %v5384, %v5383
  %v5392 = vpack.c.bf16 %v5386, %v5385
  %v5393 = vpack.c.bf16 %v5388, %v5387
  %v5394 = vpack.c.bf16 %v5390, %v5389
  %v5395 = vld [vmem:[%s3] sm:$0xf]
  %v5396 = vld [vmem:[%s3 + $0x4] sm:$0xf]
  %v5397 = vld [vmem:[%s3 + $0x8] sm:$0xf]
  %v5398 = vld [vmem:[%s3 + $0xc] sm:$0xf]
  %v5399 = vld [vmem:[%s3 + $0x10] sm:$0xf]
  %v5400 = vld [vmem:[%s3 + $0x14] sm:$0xf]
  %v5401 = vld [vmem:[%s3 + $0x18] sm:$0xf]
  %v5402 = vld [vmem:[%s3 + $0x1c] sm:$0xf]
  %v5403 = vld [vmem:[%s3 + $0x20] sm:$0xf]
  %v5404 = vld [vmem:[%s3 + $0x24] sm:$0xf]
  %v5405 = vld [vmem:[%s3 + $0x28] sm:$0xf]
  %v5406 = vld [vmem:[%s3 + $0x2c] sm:$0xf]
  %v5407 = vld [vmem:[%s3 + $0x30] sm:$0xf]
  %v5408 = vld [vmem:[%s3 + $0x34] sm:$0xf]
  %v5409 = vld [vmem:[%s3 + $0x38] sm:$0xf]
  %v5410 = vld [vmem:[%s3 + $0x3c] sm:$0xf]
  %v5411 = vld [vmem:[%s4] sm:$0x1]
  %v5413 = vlaneseq
  %v5414 = vshrl.u32 %v5413, 7
  %v5415 = vsub.s32 0, %v5414
  %v5416 = vrot.slane %v5411, %v5415
  %v5434 = vunpack.c.l.b16 %v5395
  %v5435 = vunpack.c.l.b16 %v5396
  %v5436 = vunpack.c.l.b16 %v5397
  %v5437 = vunpack.c.l.b16 %v5398
  %v5438 = vunpack.c.l.b16 %v5399
  %v5439 = vunpack.c.l.b16 %v5400
  %v5440 = vunpack.c.l.b16 %v5401
  %v5441 = vunpack.c.l.b16 %v5402
  %v5442 = vunpack.c.l.b16 %v5403
  %v5443 = vunpack.c.l.b16 %v5404
  %v5444 = vunpack.c.l.b16 %v5405
  %v5445 = vunpack.c.l.b16 %v5406
  %v5446 = vunpack.c.l.b16 %v5407
  %v5447 = vunpack.c.l.b16 %v5408
  %v5448 = vunpack.c.l.b16 %v5409
  %v5449 = vunpack.c.l.b16 %v5410
  %v5450 = vpack.c.b16 %v5435, %v5434
  %v5451 = vpack.c.b16 %v5437, %v5436
  %v5452 = vpack.c.b16 %v5439, %v5438
  %v5453 = vpack.c.b16 %v5441, %v5440
  %v5454 = vpack.c.b16 %v5443, %v5442
  %v5455 = vpack.c.b16 %v5445, %v5444
  %v5456 = vpack.c.b16 %v5447, %v5446
  %v5457 = vpack.c.b16 %v5449, %v5448
  %5466 = vmatprep.subr.bf16.mxu0 0
  %5467 = vmatpush1.bf16.msra.mxu0 %v5450
  %5468 = vmatprep.subr.bf16.mxu0 0
  %5469 = vmatpush1.bf16.msra.mxu0 %v5451
  %5470 = vmatprep.subr.bf16.mxu0 0
  %5471 = vmatpush1.bf16.msra.mxu0 %v5452
  %5472 = vmatprep.subr.bf16.mxu0 0
  %5473 = vmatpush1.bf16.msra.mxu0 %v5453
  %5474 = vmatprep.subr.bf16.mxu0 0
  %5475 = vmatpush1.bf16.msra.mxu0 %v5454
  %5476 = vmatprep.subr.bf16.mxu0 0
  %5477 = vmatpush1.bf16.msra.mxu0 %v5455
  %5478 = vmatprep.subr.bf16.mxu0 0
  %5479 = vmatpush1.bf16.msra.mxu0 %v5456
  %5480 = vmatprep.subr.bf16.mxu0 0
  %5481 = vmatpush1.bf16.msra.mxu0 %v5457
  %5482 = vmatprep.subr.bf16.mxu0 0
  %5483 = vmatpush1.bf16.msra.mxu0 0
  %5484 = vmatprep.subr.bf16.mxu0 0
  %5485 = vmatpush1.bf16.msra.mxu0 0
  %5486 = vmatprep.subr.bf16.mxu0 0
  %5487 = vmatpush1.bf16.msra.mxu0 0
  %5488 = vmatprep.subr.bf16.mxu0 0
  %5489 = vmatpush1.bf16.msra.mxu0 0
  %5490 = vmatprep.subr.bf16.mxu0 0
  %5491 = vmatpush1.bf16.msra.mxu0 0
  %5492 = vmatprep.subr.bf16.mxu0 0
  %5493 = vmatpush1.bf16.msra.mxu0 0
  %5494 = vmatprep.subr.bf16.mxu0 0
  %5495 = vmatpush1.bf16.msra.mxu0 0
  %5496 = vmatprep.subr.bf16.mxu0 0
  %5497 = vmatpush1.bf16.msra.mxu0 0
  %5498 = vmatprep.mubr.bf16.mxu0 0
  %5499 = vmatmul.mubr.bf16.gmra.mrb[0].mxu0 %v5391
  %v5500 = vpop.f32.mrb[0].mxu0
  %v5501 = vadd.f32 %v5416, %v5500
  %v5502 = vpop.f32.mrb[0].mxu0
  %v5503 = vpop.f32.mrb[0].mxu0
  %v5504 = vadd.f32 %v5416, %v5503
  %v5505 = vpop.f32.mrb[0].mxu0
  %5506 = vmatprep.mubr.bf16.mxu0 0
  %5507 = vmatmul.mubr.bf16.gmra.mrb[0].mxu0 %v5392
  %v5508 = vpop.f32.mrb[0].mxu0
  %v5509 = vadd.f32 %v5416, %v5508
  %v5510 = vpop.f32.mrb[0].mxu0
  %v5511 = vpop.f32.mrb[0].mxu0
  %v5512 = vadd.f32 %v5416, %v5511
  %v5513 = vpop.f32.mrb[0].mxu0
  %5514 = vmatprep.mubr.bf16.mxu0 0
  %5515 = vmatmul.mubr.bf16.gmra.mrb[0].mxu0 %v5393
  %v5516 = vpop.f32.mrb[0].mxu0
  %v5517 = vadd.f32 %v5416, %v5516
  %v5518 = vpop.f32.mrb[0].mxu0
  %v5519 = vpop.f32.mrb[0].mxu0
  %v5520 = vadd.f32 %v5416, %v5519
  %v5521 = vpop.f32.mrb[0].mxu0
  %5522 = vmatprep.mubr.bf16.mxu0 0
  %5523 = vmatmul.mubr.bf16.gmra.mrb[0].mxu0 %v5394
  %v5524 = vpop.f32.mrb[0].mxu0
  %v5525 = vadd.f32 %v5416, %v5524
  %v5526 = vpop.f32.mrb[0].mxu0
  %v5527 = vpop.f32.mrb[0].mxu0
  %v5528 = vadd.f32 %v5416, %v5527
  %v5529 = vpop.f32.mrb[0].mxu0
  %5530 = vdwg.mxu0
  %v5531 = vmax.f32 %v5501, 0.0
  %v5532 = vmax.f32 %v5504, 0.0
  %v5533 = vmax.f32 %v5509, 0.0
  %v5534 = vmax.f32 %v5512, 0.0
  %v5535 = vmax.f32 %v5517, 0.0
  %v5536 = vmax.f32 %v5520, 0.0
  %v5537 = vmax.f32 %v5525, 0.0
  %v5538 = vmax.f32 %v5528, 0.0
  %v5539 = vpack.c.bf16 %v5532, %v5531
  %v5540 = vpack.c.bf16 %v5534, %v5533
  %v5541 = vpack.c.bf16 %v5536, %v5535
  %v5542 = vpack.c.bf16 %v5538, %v5537
  %v5543 = vld [vmem:[%s5] sm:$0xf]
  %v5544 = vld [vmem:[%s5 + $0x4] sm:$0xf]
  %v5545 = vld [vmem:[%s5 + $0x8] sm:$0xf]
  %v5546 = vld [vmem:[%s5 + $0xc] sm:$0xf]
  %v5547 = vld [vmem:[%s5 + $0x10] sm:$0xf]
  %v5548 = vld [vmem:[%s5 + $0x14] sm:$0xf]
  %v5549 = vld [vmem:[%s5 + $0x18] sm:$0xf]
  %v5550 = vld [vmem:[%s5 + $0x1c] sm:$0xf]
  %v5551 = vld [vmem:[%s5 + $0x20] sm:$0xf]
  %v5552 = vld [vmem:[%s5 + $0x24] sm:$0xf]
  %v5553 = vld [vmem:[%s5 + $0x28] sm:$0xf]
  %v5554 = vld [vmem:[%s5 + $0x2c] sm:$0xf]
  %v5555 = vld [vmem:[%s5 + $0x30] sm:$0xf]
  %v5556 = vld [vmem:[%s5 + $0x34] sm:$0xf]
  %v5557 = vld [vmem:[%s5 + $0x38] sm:$0xf]
  %v5558 = vld [vmem:[%s5 + $0x3c] sm:$0xf]
  %v5559 = vld [vmem:[%s6] sm:$0x1]
  %v5561 = vlaneseq
  %v5562 = vshrl.u32 %v5561, 7
  %v5563 = vsub.s32 0, %v5562
  %v5564 = vrot.slane %v5559, %v5563
  %v5582 = vunpack.c.l.b16 %v5543
  %v5583 = vunpack.c.l.b16 %v5544
  %v5584 = vunpack.c.l.b16 %v5545
  %v5585 = vunpack.c.l.b16 %v5546
  %v5586 = vunpack.c.l.b16 %v5547
  %v5587 = vunpack.c.l.b16 %v5548
  %v5588 = vunpack.c.l.b16 %v5549
  %v5589 = vunpack.c.l.b16 %v5550
  %v5590 = vunpack.c.l.b16 %v5551
  %v5591 = vunpack.c.l.b16 %v5552
  %v5592 = vunpack.c.l.b16 %v5553
  %v5593 = vunpack.c.l.b16 %v5554
  %v5594 = vunpack.c.l.b16 %v5555
  %v5595 = vunpack.c.l.b16 %v5556
  %v5596 = vunpack.c.l.b16 %v5557
  %v5597 = vunpack.c.l.b16 %v5558
  %v5598 = vpack.c.b16 %v5583, %v5582
  %v5599 = vpack.c.b16 %v5585, %v5584
  %v5600 = vpack.c.b16 %v5587, %v5586
  %v5601 = vpack.c.b16 %v5589, %v5588
  %v5602 = vpack.c.b16 %v5591, %v5590
  %v5603 = vpack.c.b16 %v5593, %v5592
  %v5604 = vpack.c.b16 %v5595, %v5594
  %v5605 = vpack.c.b16 %v5597, %v5596
  %5614 = vmatprep.subr.bf16.mxu0 0
  %5615 = vmatpush1.bf16.msra.mxu0 %v5598
  %5616 = vmatprep.subr.bf16.mxu0 0
  %5617 = vmatpush1.bf16.msra.mxu0 %v5599
  %5618 = vmatprep.subr.bf16.mxu0 0
  %5619 = vmatpush1.bf16.msra.mxu0 %v5600
  %5620 = vmatprep.subr.bf16.mxu0 0
  %5621 = vmatpush1.bf16.msra.mxu0 %v5601
  %5622 = vmatprep.subr.bf16.mxu0 0
  %5623 = vmatpush1.bf16.msra.mxu0 %v5602
  %5624 = vmatprep.subr.bf16.mxu0 0
  %5625 = vmatpush1.bf16.msra.mxu0 %v5603
  %5626 = vmatprep.subr.bf16.mxu0 0
  %5627 = vmatpush1.bf16.msra.mxu0 %v5604
  %5628 = vmatprep.subr.bf16.mxu0 0
  %5629 = vmatpush1.bf16.msra.mxu0 %v5605
  %5630 = vmatprep.subr.bf16.mxu0 0
  %5631 = vmatpush1.bf16.msra.mxu0 0
  %5632 = vmatprep.subr.bf16.mxu0 0
  %5633 = vmatpush1.bf16.msra.mxu0 0
  %5634 = vmatprep.subr.bf16.mxu0 0
  %5635 = vmatpush1.bf16.msra.mxu0 0
  %5636 = vmatprep.subr.bf16.mxu0 0
  %5637 = vmatpush1.bf16.msra.mxu0 0
  %5638 = vmatprep.subr.bf16.mxu0 0
  %5639 = vmatpush1.bf16.msra.mxu0 0
  %5640 = vmatprep.subr.bf16.mxu0 0
  %5641 = vmatpush1.bf16.msra.mxu0 0
  %5642 = vmatprep.subr.bf16.mxu0 0
  %5643 = vmatpush1.bf16.msra.mxu0 0
  %5644 = vmatprep.subr.bf16.mxu0 0
  %5645 = vmatpush1.bf16.msra.mxu0 0
  %5646 = vmatprep.mubr.bf16.mxu0 0
  %5647 = vmatmul.mubr.bf16.gmra.mrb[0].mxu0 %v5539
  %v5648 = vpop.f32.mrb[0].mxu0
  %v5649 = vadd.f32 %v5564, %v5648
  %v5650 = vpop.f32.mrb[0].mxu0
  %v5651 = vpop.f32.mrb[0].mxu0
  %v5652 = vadd.f32 %v5564, %v5651
  %v5653 = vpop.f32.mrb[0].mxu0
  %5654 = vmatprep.mubr.bf16.mxu0 0
  %5655 = vmatmul.mubr.bf16.gmra.mrb[0].mxu0 %v5540
  %v5656 = vpop.f32.mrb[0].mxu0
  %v5657 = vadd.f32 %v5564, %v5656
  %v5658 = vpop.f32.mrb[0].mxu0
  %v5659 = vpop.f32.mrb[0].mxu0
  %v5660 = vadd.f32 %v5564, %v5659
  %v5661 = vpop.f32.mrb[0].mxu0
  %5662 = vmatprep.mubr.bf16.mxu0 0
  %5663 = vmatmul.mubr.bf16.gmra.mrb[0].mxu0 %v5541
  %v5664 = vpop.f32.mrb[0].mxu0
  %v5665 = vadd.f32 %v5564, %v5664
  %v5666 = vpop.f32.mrb[0].mxu0
  %v5667 = vpop.f32.mrb[0].mxu0
  %v5668 = vadd.f32 %v5564, %v5667
  %v5669 = vpop.f32.mrb[0].mxu0
  %5670 = vmatprep.mubr.bf16.mxu0 0
  %5671 = vmatmul.mubr.bf16.gmra.mrb[0].mxu0 %v5542
  %v5672 = vpop.f32.mrb[0].mxu0
  %v5673 = vadd.f32 %v5564, %v5672
  %v5674 = vpop.f32.mrb[0].mxu0
  %v5675 = vpop.f32.mrb[0].mxu0
  %v5676 = vadd.f32 %v5564, %v5675
  %v5677 = vpop.f32.mrb[0].mxu0
  %5678 = vdwg.mxu0
  %5679 = vst [vmem:[%s7] sm:$0xff] %v5649
  %5680 = vst [vmem:[%s7 + $0x8] sm:$0xff] %v5652
  %5681 = vst [vmem:[%s7 + $0x10] sm:$0xff] %v5657
  %5682 = vst [vmem:[%s7 + $0x18] sm:$0xff] %v5660
  %5683 = vst [vmem:[%s7 + $0x20] sm:$0xff] %v5665
  %5684 = vst [vmem:[%s7 + $0x28] sm:$0xff] %v5668
  %5685 = vst [vmem:[%s7 + $0x30] sm:$0xff] %v5673
  %5686 = vst [vmem:[%s7 + $0x38] sm:$0xff] %v5676
  // Predicated region
  $region30: #{_lambda_.5} parent=0 // pred_check
    _
  $region31: #{_lambda_.5} parent=0 // pred_check_branch
    %5688 = sbr.rel (0) target = $region33
  $region32: #{_lambda_.5} parent=0 // pred_region
    _
  $region33: #{_lambda_.5} parent=0 // pred_fallthru
    _
  // Predicated region
  $region34: #{_lambda_.5} parent=0 // pred_check
    _
  $region35: #{_lambda_.5} parent=0 // pred_check_branch
    %5690 = sbr.rel (0) target = $region37
  $region36: #{_lambda_.5} parent=0 // pred_region
    _
  $region37: #{_lambda_.5} parent=0 // pred_fallthru
    _

</llo_original>
